<compile_context>
chip_gen: v7x
topology: tpu7x:2x2x1
jax: 0.10.0
libtpu: 0.0.40
codegen_flags: <defaults>
</compile_context>

<pallas_src>
import math

import numpy as np
import jax
import jax.numpy as jnp
from jax import lax
from jax.experimental import pallas as pl
from jax.experimental.pallas import tpu as pltpu

POOL_OUT = 4   # AdaptiveAvgPool2d(4)


# ----------------------------------------------------------------------------
# Fused per-sample kernel:
#   conv1 -> relu -> conv2 -> relu -> (avgpool + NCHW repack + lin1) -> relu -> lin2
# ----------------------------------------------------------------------------
def _make_kernel(h, w, cin, c1, c2, k1, k2):
    rows = h * w                     # per-sample conv compute rows (256)
    hp2 = h + k2 - 1                 # conv2 halo buffer height (20)
    wp2 = w + k2 - 1                 # conv2 halo buffer width  (20)
    pad_far = k2 - 2                 # far-side halo width (3)

    def kernel(x_ref, pmat_ref, w1_ref, b1_ref, w2_ref, b2_ref,
               wl1_ref, bl1_ref, wl2_ref, bl2_ref, o_ref,
               col1_ref, h1p_ref, col2_ref, flat_ref):
        # ---- conv1 (3x3, pad=1): im2col into one lane-dense buffer + ONE dot
        for di in range(k1):
            for dj in range(k1):
                t = di * k1 + dj
                col1_ref[:, t * cin:(t + 1) * cin] = (
                    x_ref[0, di:di + h, dj:dj + w, :].reshape(rows, cin))
        acc1 = jnp.dot(col1_ref[...], w1_ref[...],          # bf16 x bf16
                       preferred_element_type=jnp.float32)
        h1 = jnp.maximum(acc1 + b1_ref[...], 0.0)            # (rows, c1) f32

        # ---- stage conv1 output with a zero halo; zero ONLY the border -----
        h1p_ref[0:1, :, :] = jnp.zeros((1, wp2, c1), jnp.float32)
        h1p_ref[h + 1:hp2, :, :] = jnp.zeros((pad_far, wp2, c1), jnp.float32)
        h1p_ref[1:h + 1, 0:1, :] = jnp.zeros((h, 1, c1), jnp.float32)
        h1p_ref[1:h + 1, w + 1:wp2, :] = jnp.zeros((h, pad_far, c1),
                                                   jnp.float32)
        h1p_ref[1:h + 1, 1:w + 1, :] = h1.reshape(h, w, c1)

        # ---- conv2 (5x5, pad=1): im2col + ONE dot ---------------------------
        # Full h x w grid; rows outside the valid (h-2)x(w-2) window are
        # finite garbage and get weight 0 in the pooling matrix.
        for di in range(k2):
            for dj in range(k2):
                t = di * k2 + dj
                col2_ref[:, t * c1:(t + 1) * c1] = (
                    h1p_ref[di:di + h, dj:dj + w, :]
                    .reshape(rows, c1).astype(jnp.bfloat16))
        acc2 = jnp.dot(col2_ref[...], w2_ref[...],           # bf16 x bf16
                       preferred_element_type=jnp.float32)
        h2 = jnp.maximum(acc2 + b2_ref[...], 0.0)             # (rows, c2) f32

        # ---- AdaptiveAvgPool2d(4): ONE (16, rows) x (rows, c2) matmul -------
        pooled = jnp.dot(pmat_ref[...], h2,
                         preferred_element_type=jnp.float32)  # (16, c2)

        # ---- repack pooled[p, c] -> flat[0, p*c2 + c] (NCHW .view order is
        #      folded into the offline lin1 weight permutation) --------------
        for p in range(POOL_OUT * POOL_OUT):
            flat_ref[:, p * c2:(p + 1) * c2] = pooled[p:p + 1, :]

        # ---- lin1 + relu, lin2 ----------------------------------------------
        h3 = jnp.maximum(
            jnp.dot(flat_ref[...], wl1_ref[...],
                    preferred_element_type=jnp.float32) + bl1_ref[...], 0.0)
        out = jnp.dot(h3, wl2_ref[...], preferred_element_type=jnp.float32)
        o_ref[0] = (out + bl2_ref[...]).astype(o_ref.dtype)

    return kernel


# ----------------------------------------------------------------------------
# Glue: specs, pooling matrix, offline weight re-layout, forward wrapper.
# ----------------------------------------------------------------------------
def _full_spec(shape):
    nd = len(shape)

    def idx(i):
        return (0,) * nd

    return pl.BlockSpec(shape, idx)


def _pool_matrix(grid_h, grid_w, valid_h, valid_w, out_size):
    """(out*out, grid_h*grid_w): per-sample AdaptiveAvgPool2d(out) over the
    valid top-left (valid_h, valid_w) region of the conv2 compute grid."""
    P = np.zeros((out_size * out_size, grid_h * grid_w), np.float32)
    for i in range(out_size):
        hs = (i * valid_h) // out_size
        he = -(-((i + 1) * valid_h) // out_size)
        for j in range(out_size):
            ws = (j * valid_w) // out_size
            we = -(-((j + 1) * valid_w) // out_size)
            inv = 1.0 / float((he - hs) * (we - ws))
            p = i * out_size + j
            for hh in range(hs, he):
                for ww in range(ws, we):
                    P[p, hh * grid_w + ww] = inv
    return P


def prepare_params(params, input_hw=(16, 16)):
    """One-time (outside-jit) re-layout of PyTorch-style weights."""
    h, w = input_hw

    def conv_cols(wc):               # (Cout, Cin, kh, kw) -> (kh*kw*Cin, Cout)
        co, ci, kh, kw = wc.shape
        return (jnp.transpose(wc, (2, 3, 1, 0))
                .reshape(kh * kw * ci, co).astype(jnp.bfloat16))

    # lin1 weight (128, c2*16); PyTorch flatten index = c*16 + p  (p = i*4+j).
    # Permute so row index becomes p*c2 + c (matching the kernel's repack).
    wl1 = params['lin1_w']
    nf1 = wl1.shape[0]
    c2 = params['conv2_w'].shape[0]
    wl1p = jnp.transpose(wl1.reshape(nf1, c2, POOL_OUT * POOL_OUT), (2, 1, 0))
    wl1p = wl1p.reshape(POOL_OUT * POOL_OUT * c2, nf1).astype(jnp.float32)

    vh, vw = h - 2, w - 2            # conv2 (k=5, pad=1) valid output size
    pmat = jnp.asarray(_pool_matrix(h, w, vh, vw, POOL_OUT))

    return {
        'w1': conv_cols(params['conv1_w']),                       # (36, 16) bf16
        'b1': params['conv1_b'].reshape(1, -1).astype(jnp.float32),
        'w2': conv_cols(params['conv2_w']),                       # (400, 64) bf16
        'b2': params['conv2_b'].reshape(1, -1).astype(jnp.float32),
        'wl1': wl1p,                                              # (1024, 128) f32
        'bl1': params['lin1_b'].reshape(1, -1).astype(jnp.float32),
        'wl2': params['lin2_w'].T.astype(jnp.float32),            # (128, 4)
        'bl2': params['lin2_b'].reshape(1, -1).astype(jnp.float32),
        'pmat': pmat,                                             # (16, h*w) f32
    }


def snake_convnet_sm_forward(prepped, x_nchw):
    """Forward pass of SnakeConvNetSm. x_nchw: (N, Cin, H, W) float32."""
    n, cin, h, w = x_nchw.shape
    w1, w2 = prepped['w1'], prepped['w2']
    c1, c2 = w1.shape[1], w2.shape[1]
    k1 = math.isqrt(w1.shape[0] // cin)      # 3  (square kernels assumed)
    k2 = math.isqrt(w2.shape[0] // c1)       # 5
    n_out = prepped['wl2'].shape[1]
    rows = h * w
    hp2, wp2 = h + k2 - 1, w + k2 - 1

    # NHWC transpose + conv1 halo pad + bf16 cast done once on the XLA side;
    # no padded-input scratch or zero fill inside the kernel.
    x = jnp.transpose(x_nchw, (0, 2, 3, 1))
    xpad = jnp.pad(x, ((0, 0), (1, 1), (1, 1), (0, 0))).astype(jnp.bfloat16)

    kernel = _make_kernel(h, w, cin, c1, c2, k1, k2)

    args = (xpad, prepped['pmat'], w1, prepped['b1'], w2, prepped['b2'],
            prepped['wl1'], prepped['bl1'], prepped['wl2'], prepped['bl2'])

    in_specs = [
        # per-sample input block; the grid shards the batch across cores
        pl.BlockSpec((1, h + 2, w + 2, cin), lambda i: (i, 0, 0, 0)),
        _full_spec(prepped['pmat'].shape),
        _full_spec(w1.shape), _full_spec(prepped['b1'].shape),
        _full_spec(w2.shape), _full_spec(prepped['b2'].shape),
        _full_spec(prepped['wl1'].shape), _full_spec(prepped['bl1'].shape),
        _full_spec(prepped['wl2'].shape), _full_spec(prepped['bl2'].shape),
    ]

    out = pl.pallas_call(
        kernel,
        out_shape=jax.ShapeDtypeStruct((n, 1, n_out), jnp.float32),
        grid=(n,),
        in_specs=in_specs,
        out_specs=pl.BlockSpec((1, 1, n_out), lambda i: (i, 0, 0)),
        scratch_shapes=[
            pltpu.VMEM((rows, k1 * k1 * cin), jnp.bfloat16),   # conv1 im2col
            pltpu.VMEM((hp2, wp2, c1), jnp.float32),           # conv1-out halo
            pltpu.VMEM((rows, k2 * k2 * c1), jnp.bfloat16),    # conv2 im2col
            pltpu.VMEM((1, POOL_OUT * POOL_OUT * c2), jnp.float32),  # NCHW flat
        ],
        compiler_params=pltpu.CompilerParams(
            dimension_semantics=("parallel",),       # batch over TCs (v7x)
            vmem_limit_bytes=32 * 1024 * 1024),      # real footprint ~2 MiB
    )(*args)
    return out.reshape(n, n_out)


# ----------------------------------------------------------------------------
# Pure-JAX (XLA) reference with the exact PyTorch forward semantics.
# ----------------------------------------------------------------------------
def _reference_forward(params, x):
    dn = ('NCHW', 'OIHW', 'NCHW')
    y = lax.conv_general_dilated(x, params['conv1_w'], (1, 1), ((1, 1), (1, 1)),
                                 dimension_numbers=dn)
    y = jnp.maximum(y + params['conv1_b'][None, :, None, None], 0.0)
    y = lax.conv_general_dilated(y, params['conv2_w'], (1, 1), ((1, 1), (1, 1)),
                                 dimension_numbers=dn)
    y = jnp.maximum(y + params['conv2_b'][None, :, None, None], 0.0)
    nb, c, hh, ww = y.shape
    rows = []
    for i in range(POOL_OUT):
        hs, he = (i * hh) // POOL_OUT, -(-((i + 1) * hh) // POOL_OUT)
        cols = []
        for j in range(POOL_OUT):
            ws, we = (j * ww) // POOL_OUT, -(-((j + 1) * ww) // POOL_OUT)
            cols.append(jnp.mean(y[:, :, hs:he, ws:we], axis=(2, 3)))
        rows.append(jnp.stack(cols, axis=-1))
    pooled = jnp.stack(rows, axis=-2)                 # (n, c, 4, 4)
    f = pooled.reshape(nb, -1)
    f = jnp.maximum(f @ params['lin1_w'].T + params['lin1_b'], 0.0)
    return f @ params['lin2_w'].T + params['lin2_b']


# ----------------------------------------------------------------------------
# Deterministic parameter init (PyTorch-default-like uniform bounds).
# ----------------------------------------------------------------------------
def _init_conv(key, cout, cin, k):
    kw_, kb = jax.random.split(key)
    bound = 1.0 / np.sqrt(cin * k * k)
    w = jax.random.uniform(kw_, (cout, cin, k, k), jnp.float32, -bound, bound)
    b = jax.random.uniform(kb, (cout,), jnp.float32, -bound, bound)
    return w, b


def _init_linear(key, out_f, in_f):
    kw_, kb = jax.random.split(key)
    bound = 1.0 / np.sqrt(in_f)
    w = jax.random.uniform(kw_, (out_f, in_f), jnp.float32, -bound, bound)
    b = jax.random.uniform(kb, (out_f,), jnp.float32, -bound, bound)
    return w, b


if __name__ == "__main__":
    key = jax.random.PRNGKey(0)
    keys = jax.random.split(key, 5)

    params = {}
    params['conv1_w'], params['conv1_b'] = _init_conv(keys[0], 16, 4, 3)
    params['conv2_w'], params['conv2_b'] = _init_conv(keys[1], 64, 16, 5)
    params['lin1_w'], params['lin1_b'] = _init_linear(keys[2], 128,
                                                      64 * POOL_OUT * POOL_OUT)
    params['lin2_w'], params['lin2_b'] = _init_linear(keys[3], 4, 128)

    # input_dim[0] == 4 channels; batch=2, spatial=16x16, NCHW like PyTorch.
    x = jax.random.normal(keys[4], (2, 4, 16, 16), jnp.float32)

    prepped = prepare_params(params, input_hw=(16, 16))   # one-time re-layout
    fwd = jax.jit(snake_convnet_sm_forward)
    out = jax.block_until_ready(fwd(prepped, x))

    assert out.shape == (2, 4), out.shape
    assert bool(jnp.all(jnp.isfinite(out)))

    # Cross-check against the pure-JAX (f32) reference of the PyTorch forward.
    # Tolerance is slightly looser than before because the two conv matmuls
    # now use bf16 MXU operands (f32 accumulation).
    with jax.default_matmul_precision('float32'):
        ref = jax.block_until_ready(_reference_forward(params, x))
    assert jnp.allclose(out, ref, rtol=2e-2, atol=5e-3), (
        "max abs err = %g" % float(jnp.max(jnp.abs(out - ref))))

    print("KERNEL_OK")
</pallas_src>

<mosaic_0001>
module attributes {stable_mosaic.version = 11 : i64} {
  func.func @kernel(%arg0: i32, %arg1: memref<1x18x18x4xbf16, #tpu.memory_space<vmem>>, %arg2: memref<16x256xf32, #tpu.memory_space<vmem>>, %arg3: memref<36x16xbf16, #tpu.memory_space<vmem>>, %arg4: memref<1x16xf32, #tpu.memory_space<vmem>>, %arg5: memref<400x64xbf16, #tpu.memory_space<vmem>>, %arg6: memref<1x64xf32, #tpu.memory_space<vmem>>, %arg7: memref<1024x128xf32, #tpu.memory_space<vmem>>, %arg8: memref<1x128xf32, #tpu.memory_space<vmem>>, %arg9: memref<128x4xf32, #tpu.memory_space<vmem>>, %arg10: memref<1x4xf32, #tpu.memory_space<vmem>>, %arg11: memref<1x1x4xf32, #tpu.memory_space<vmem>>, %arg12: memref<256x36xbf16, #tpu.memory_space<vmem>>, %arg13: memref<20x20x16xf32, #tpu.memory_space<vmem>>, %arg14: memref<256x400xbf16, #tpu.memory_space<vmem>>, %arg15: memref<1x1024xf32, #tpu.memory_space<vmem>>) attributes {dimension_semantics = [#tpu.dimension_semantics<parallel>], iteration_bounds = array<i64: 2>, scalar_prefetch = 0 : i64, scratch_operands = 4 : i64, tpu.core_type = #tpu.core_type<tc>, window_params = [{transform_indices = @transform_0, window_bounds = array<i64: 1, 18, 18, 4>}, {pipeline_mode = #tpu.pipeline_mode<synchronous>, transform_indices = @transform_1, window_bounds = array<i64: 16, 256>}, {pipeline_mode = #tpu.pipeline_mode<synchronous>, transform_indices = @transform_2, window_bounds = array<i64: 36, 16>}, {pipeline_mode = #tpu.pipeline_mode<synchronous>, transform_indices = @transform_3, window_bounds = array<i64: 1, 16>}, {pipeline_mode = #tpu.pipeline_mode<synchronous>, transform_indices = @transform_4, window_bounds = array<i64: 400, 64>}, {pipeline_mode = #tpu.pipeline_mode<synchronous>, transform_indices = @transform_5, window_bounds = array<i64: 1, 64>}, {pipeline_mode = #tpu.pipeline_mode<synchronous>, transform_indices = @transform_6, window_bounds = array<i64: 1024, 128>}, {pipeline_mode = #tpu.pipeline_mode<synchronous>, transform_indices = @transform_7, window_bounds = array<i64: 1, 128>}, {pipeline_mode = #tpu.pipeline_mode<synchronous>, transform_indices = @transform_8, window_bounds = array<i64: 128, 4>}, {pipeline_mode = #tpu.pipeline_mode<synchronous>, transform_indices = @transform_9, window_bounds = array<i64: 1, 4>}, {transform_indices = @transform_10, window_bounds = array<i64: 1, 1, 4>}]} {
    %c0 = arith.constant 0 : index
    %c0_0 = arith.constant 0 : index
    %c0_1 = arith.constant 0 : index
    %c0_2 = arith.constant 0 : index
    %0 = vector.load %arg1[%c0, %c0_0, %c0_1, %c0_2] : memref<1x18x18x4xbf16, #tpu.memory_space<vmem>>, vector<1x16x16x4xbf16>
    %1 = vector.shape_cast %0 : vector<1x16x16x4xbf16> to vector<16x16x4xbf16>
    %2 = vector.shape_cast %1 : vector<16x16x4xbf16> to vector<256x4xbf16>
    %c0_3 = arith.constant 0 : index
    %c0_4 = arith.constant 0 : index
    %3 = vector.load %arg12[%c0_3, %c0_4] : memref<256x36xbf16, #tpu.memory_space<vmem>>, vector<256x4xbf16>
    tpu.vector_store %arg12[%c0_3, %c0_4], %2 {strides = array<i32>} : memref<256x36xbf16, #tpu.memory_space<vmem>>, vector<256x4xbf16>,
    %c0_5 = arith.constant 0 : index
    %c0_6 = arith.constant 0 : index
    %c1 = arith.constant 1 : index
    %c0_7 = arith.constant 0 : index
    %4 = vector.load %arg1[%c0_5, %c0_6, %c1, %c0_7] : memref<1x18x18x4xbf16, #tpu.memory_space<vmem>>, vector<1x16x16x4xbf16>
    %5 = vector.shape_cast %4 : vector<1x16x16x4xbf16> to vector<16x16x4xbf16>
    %6 = vector.shape_cast %5 : vector<16x16x4xbf16> to vector<256x4xbf16>
    %c0_8 = arith.constant 0 : index
    %c4 = arith.constant 4 : index
    %7 = vector.load %arg12[%c0_8, %c4] : memref<256x36xbf16, #tpu.memory_space<vmem>>, vector<256x4xbf16>
    tpu.vector_store %arg12[%c0_8, %c4], %6 {strides = array<i32>} : memref<256x36xbf16, #tpu.memory_space<vmem>>, vector<256x4xbf16>,
    %c0_9 = arith.constant 0 : index
    %c0_10 = arith.constant 0 : index
    %c2 = arith.constant 2 : index
    %c0_11 = arith.constant 0 : index
    %8 = vector.load %arg1[%c0_9, %c0_10, %c2, %c0_11] : memref<1x18x18x4xbf16, #tpu.memory_space<vmem>>, vector<1x16x16x4xbf16>
    %9 = vector.shape_cast %8 : vector<1x16x16x4xbf16> to vector<16x16x4xbf16>
    %10 = vector.shape_cast %9 : vector<16x16x4xbf16> to vector<256x4xbf16>
    %c0_12 = arith.constant 0 : index
    %c8 = arith.constant 8 : index
    %11 = vector.load %arg12[%c0_12, %c8] : memref<256x36xbf16, #tpu.memory_space<vmem>>, vector<256x4xbf16>
    tpu.vector_store %arg12[%c0_12, %c8], %10 {strides = array<i32>} : memref<256x36xbf16, #tpu.memory_space<vmem>>, vector<256x4xbf16>,
    %c0_13 = arith.constant 0 : index
    %c1_14 = arith.constant 1 : index
    %c0_15 = arith.constant 0 : index
    %c0_16 = arith.constant 0 : index
    %12 = vector.load %arg1[%c0_13, %c1_14, %c0_15, %c0_16] : memref<1x18x18x4xbf16, #tpu.memory_space<vmem>>, vector<1x16x16x4xbf16>
    %13 = vector.shape_cast %12 : vector<1x16x16x4xbf16> to vector<16x16x4xbf16>
    %14 = vector.shape_cast %13 : vector<16x16x4xbf16> to vector<256x4xbf16>
    %c0_17 = arith.constant 0 : index
    %c12 = arith.constant 12 : index
    %15 = vector.load %arg12[%c0_17, %c12] : memref<256x36xbf16, #tpu.memory_space<vmem>>, vector<256x4xbf16>
    tpu.vector_store %arg12[%c0_17, %c12], %14 {strides = array<i32>} : memref<256x36xbf16, #tpu.memory_space<vmem>>, vector<256x4xbf16>,
    %c0_18 = arith.constant 0 : index
    %c1_19 = arith.constant 1 : index
    %c1_20 = arith.constant 1 : index
    %c0_21 = arith.constant 0 : index
    %16 = vector.load %arg1[%c0_18, %c1_19, %c1_20, %c0_21] : memref<1x18x18x4xbf16, #tpu.memory_space<vmem>>, vector<1x16x16x4xbf16>
    %17 = vector.shape_cast %16 : vector<1x16x16x4xbf16> to vector<16x16x4xbf16>
    %18 = vector.shape_cast %17 : vector<16x16x4xbf16> to vector<256x4xbf16>
    %c0_22 = arith.constant 0 : index
    %c16 = arith.constant 16 : index
    %19 = vector.load %arg12[%c0_22, %c16] : memref<256x36xbf16, #tpu.memory_space<vmem>>, vector<256x4xbf16>
    tpu.vector_store %arg12[%c0_22, %c16], %18 {strides = array<i32>} : memref<256x36xbf16, #tpu.memory_space<vmem>>, vector<256x4xbf16>,
    %c0_23 = arith.constant 0 : index
    %c1_24 = arith.constant 1 : index
    %c2_25 = arith.constant 2 : index
    %c0_26 = arith.constant 0 : index
    %20 = vector.load %arg1[%c0_23, %c1_24, %c2_25, %c0_26] : memref<1x18x18x4xbf16, #tpu.memory_space<vmem>>, vector<1x16x16x4xbf16>
    %21 = vector.shape_cast %20 : vector<1x16x16x4xbf16> to vector<16x16x4xbf16>
    %22 = vector.shape_cast %21 : vector<16x16x4xbf16> to vector<256x4xbf16>
    %c0_27 = arith.constant 0 : index
    %c20 = arith.constant 20 : index
    %23 = vector.load %arg12[%c0_27, %c20] : memref<256x36xbf16, #tpu.memory_space<vmem>>, vector<256x4xbf16>
    tpu.vector_store %arg12[%c0_27, %c20], %22 {strides = array<i32>} : memref<256x36xbf16, #tpu.memory_space<vmem>>, vector<256x4xbf16>,
    %c0_28 = arith.constant 0 : index
    %c2_29 = arith.constant 2 : index
    %c0_30 = arith.constant 0 : index
    %c0_31 = arith.constant 0 : index
    %24 = vector.load %arg1[%c0_28, %c2_29, %c0_30, %c0_31] : memref<1x18x18x4xbf16, #tpu.memory_space<vmem>>, vector<1x16x16x4xbf16>
    %25 = vector.shape_cast %24 : vector<1x16x16x4xbf16> to vector<16x16x4xbf16>
    %26 = vector.shape_cast %25 : vector<16x16x4xbf16> to vector<256x4xbf16>
    %c0_32 = arith.constant 0 : index
    %c24 = arith.constant 24 : index
    %27 = vector.load %arg12[%c0_32, %c24] : memref<256x36xbf16, #tpu.memory_space<vmem>>, vector<256x4xbf16>
    tpu.vector_store %arg12[%c0_32, %c24], %26 {strides = array<i32>} : memref<256x36xbf16, #tpu.memory_space<vmem>>, vector<256x4xbf16>,
    %c0_33 = arith.constant 0 : index
    %c2_34 = arith.constant 2 : index
    %c1_35 = arith.constant 1 : index
    %c0_36 = arith.constant 0 : index
    %28 = vector.load %arg1[%c0_33, %c2_34, %c1_35, %c0_36] : memref<1x18x18x4xbf16, #tpu.memory_space<vmem>>, vector<1x16x16x4xbf16>
    %29 = vector.shape_cast %28 : vector<1x16x16x4xbf16> to vector<16x16x4xbf16>
    %30 = vector.shape_cast %29 : vector<16x16x4xbf16> to vector<256x4xbf16>
    %c0_37 = arith.constant 0 : index
    %c28 = arith.constant 28 : index
    %31 = vector.load %arg12[%c0_37, %c28] : memref<256x36xbf16, #tpu.memory_space<vmem>>, vector<256x4xbf16>
    tpu.vector_store %arg12[%c0_37, %c28], %30 {strides = array<i32>} : memref<256x36xbf16, #tpu.memory_space<vmem>>, vector<256x4xbf16>,
    %c0_38 = arith.constant 0 : index
    %c2_39 = arith.constant 2 : index
    %c2_40 = arith.constant 2 : index
    %c0_41 = arith.constant 0 : index
    %32 = vector.load %arg1[%c0_38, %c2_39, %c2_40, %c0_41] : memref<1x18x18x4xbf16, #tpu.memory_space<vmem>>, vector<1x16x16x4xbf16>
    %33 = vector.shape_cast %32 : vector<1x16x16x4xbf16> to vector<16x16x4xbf16>
    %34 = vector.shape_cast %33 : vector<16x16x4xbf16> to vector<256x4xbf16>
    %c0_42 = arith.constant 0 : index
    %c32 = arith.constant 32 : index
    %35 = vector.load %arg12[%c0_42, %c32] : memref<256x36xbf16, #tpu.memory_space<vmem>>, vector<256x4xbf16>
    tpu.vector_store %arg12[%c0_42, %c32], %34 {strides = array<i32>} : memref<256x36xbf16, #tpu.memory_space<vmem>>, vector<256x4xbf16>,
    %c0_43 = arith.constant 0 : index
    %c0_44 = arith.constant 0 : index
    %36 = vector.load %arg12[%c0_43, %c0_44] : memref<256x36xbf16, #tpu.memory_space<vmem>>, vector<256x36xbf16>
    %c0_45 = arith.constant 0 : index
    %c0_46 = arith.constant 0 : index
    %37 = vector.load %arg3[%c0_45, %c0_46] : memref<36x16xbf16, #tpu.memory_space<vmem>>, vector<36x16xbf16>
    %cst = arith.constant dense<0.000000e+00> : vector<256x16xf32>
    %38 = tpu.matmul %36, %37, %cst {dimension_numbers = #tpu.dot_dimension_numbers<[1], [0], [0], [1], [0, 0, 1, 1], [], []>} : vector<256x36xbf16>, vector<36x16xbf16>, vector<256x16xf32> -> vector<256x16xf32>
    %c0_47 = arith.constant 0 : index
    %c0_48 = arith.constant 0 : index
    %39 = vector.load %arg4[%c0_47, %c0_48] : memref<1x16xf32, #tpu.memory_space<vmem>>, vector<1x16xf32>
    %40 = vector.broadcast %39 : vector<1x16xf32> to vector<256x16xf32>
    %41 = arith.addf %38, %40 : vector<256x16xf32>
    %cst_49 = arith.constant 0.000000e+00 : f32
    %42 = vector.broadcast %cst_49 : f32 to vector<256x16xf32>
    %43 = arith.maximumf %41, %42 : vector<256x16xf32>
    %cst_50 = arith.constant 0.000000e+00 : f32
    %44 = vector.broadcast %cst_50 : f32 to vector<1x20x16xf32>
    %c0_51 = arith.constant 0 : index
    %c0_52 = arith.constant 0 : index
    %c0_53 = arith.constant 0 : index
    %45 = vector.load %arg13[%c0_51, %c0_52, %c0_53] : memref<20x20x16xf32, #tpu.memory_space<vmem>>, vector<1x20x16xf32>
    tpu.vector_store %arg13[%c0_51, %c0_52, %c0_53], %44 {strides = array<i32>} : memref<20x20x16xf32, #tpu.memory_space<vmem>>, vector<1x20x16xf32>,
    %cst_54 = arith.constant 0.000000e+00 : f32
    %46 = vector.broadcast %cst_54 : f32 to vector<3x20x16xf32>
    %c17 = arith.constant 17 : index
    %c0_55 = arith.constant 0 : index
    %c0_56 = arith.constant 0 : index
    %47 = vector.load %arg13[%c17, %c0_55, %c0_56] : memref<20x20x16xf32, #tpu.memory_space<vmem>>, vector<3x20x16xf32>
    tpu.vector_store %arg13[%c17, %c0_55, %c0_56], %46 {strides = array<i32>} : memref<20x20x16xf32, #tpu.memory_space<vmem>>, vector<3x20x16xf32>,
    %cst_57 = arith.constant 0.000000e+00 : f32
    %48 = vector.broadcast %cst_57 : f32 to vector<16x1x16xf32>
    %c1_58 = arith.constant 1 : index
    %c0_59 = arith.constant 0 : index
    %c0_60 = arith.constant 0 : index
    %49 = vector.load %arg13[%c1_58, %c0_59, %c0_60] : memref<20x20x16xf32, #tpu.memory_space<vmem>>, vector<16x1x16xf32>
    tpu.vector_store %arg13[%c1_58, %c0_59, %c0_60], %48 {strides = array<i32>} : memref<20x20x16xf32, #tpu.memory_space<vmem>>, vector<16x1x16xf32>,
    %cst_61 = arith.constant 0.000000e+00 : f32
    %50 = vector.broadcast %cst_61 : f32 to vector<16x3x16xf32>
    %c1_62 = arith.constant 1 : index
    %c17_63 = arith.constant 17 : index
    %c0_64 = arith.constant 0 : index
    %51 = vector.load %arg13[%c1_62, %c17_63, %c0_64] : memref<20x20x16xf32, #tpu.memory_space<vmem>>, vector<16x3x16xf32>
    tpu.vector_store %arg13[%c1_62, %c17_63, %c0_64], %50 {strides = array<i32>} : memref<20x20x16xf32, #tpu.memory_space<vmem>>, vector<16x3x16xf32>,
    %52 = vector.shape_cast %43 : vector<256x16xf32> to vector<16x16x16xf32>
    %c1_65 = arith.constant 1 : index
    %c1_66 = arith.constant 1 : index
    %c0_67 = arith.constant 0 : index
    %53 = vector.load %arg13[%c1_65, %c1_66, %c0_67] : memref<20x20x16xf32, #tpu.memory_space<vmem>>, vector<16x16x16xf32>
    tpu.vector_store %arg13[%c1_65, %c1_66, %c0_67], %52 {strides = array<i32>} : memref<20x20x16xf32, #tpu.memory_space<vmem>>, vector<16x16x16xf32>,
    %c0_68 = arith.constant 0 : index
    %c0_69 = arith.constant 0 : index
    %c0_70 = arith.constant 0 : index
    %54 = vector.load %arg13[%c0_68, %c0_69, %c0_70] : memref<20x20x16xf32, #tpu.memory_space<vmem>>, vector<16x16x16xf32>
    %55 = vector.shape_cast %54 : vector<16x16x16xf32> to vector<256x16xf32>
    %56 = arith.truncf %55 : vector<256x16xf32> to vector<256x16xbf16>
    %c0_71 = arith.constant 0 : index
    %c0_72 = arith.constant 0 : index
    %57 = vector.load %arg14[%c0_71, %c0_72] : memref<256x400xbf16, #tpu.memory_space<vmem>>, vector<256x16xbf16>
    tpu.vector_store %arg14[%c0_71, %c0_72], %56 {strides = array<i32>} : memref<256x400xbf16, #tpu.memory_space<vmem>>, vector<256x16xbf16>,
    %c0_73 = arith.constant 0 : index
    %c1_74 = arith.constant 1 : index
    %c0_75 = arith.constant 0 : index
    %58 = vector.load %arg13[%c0_73, %c1_74, %c0_75] : memref<20x20x16xf32, #tpu.memory_space<vmem>>, vector<16x16x16xf32>
    %59 = vector.shape_cast %58 : vector<16x16x16xf32> to vector<256x16xf32>
    %60 = arith.truncf %59 : vector<256x16xf32> to vector<256x16xbf16>
    %c0_76 = arith.constant 0 : index
    %c16_77 = arith.constant 16 : index
    %61 = vector.load %arg14[%c0_76, %c16_77] : memref<256x400xbf16, #tpu.memory_space<vmem>>, vector<256x16xbf16>
    tpu.vector_store %arg14[%c0_76, %c16_77], %60 {strides = array<i32>} : memref<256x400xbf16, #tpu.memory_space<vmem>>, vector<256x16xbf16>,
    %c0_78 = arith.constant 0 : index
    %c2_79 = arith.constant 2 : index
    %c0_80 = arith.constant 0 : index
    %62 = vector.load %arg13[%c0_78, %c2_79, %c0_80] : memref<20x20x16xf32, #tpu.memory_space<vmem>>, vector<16x16x16xf32>
    %63 = vector.shape_cast %62 : vector<16x16x16xf32> to vector<256x16xf32>
    %64 = arith.truncf %63 : vector<256x16xf32> to vector<256x16xbf16>
    %c0_81 = arith.constant 0 : index
    %c32_82 = arith.constant 32 : index
    %65 = vector.load %arg14[%c0_81, %c32_82] : memref<256x400xbf16, #tpu.memory_space<vmem>>, vector<256x16xbf16>
    tpu.vector_store %arg14[%c0_81, %c32_82], %64 {strides = array<i32>} : memref<256x400xbf16, #tpu.memory_space<vmem>>, vector<256x16xbf16>,
    %c0_83 = arith.constant 0 : index
    %c3 = arith.constant 3 : index
    %c0_84 = arith.constant 0 : index
    %66 = vector.load %arg13[%c0_83, %c3, %c0_84] : memref<20x20x16xf32, #tpu.memory_space<vmem>>, vector<16x16x16xf32>
    %67 = vector.shape_cast %66 : vector<16x16x16xf32> to vector<256x16xf32>
    %68 = arith.truncf %67 : vector<256x16xf32> to vector<256x16xbf16>
    %c0_85 = arith.constant 0 : index
    %c48 = arith.constant 48 : index
    %69 = vector.load %arg14[%c0_85, %c48] : memref<256x400xbf16, #tpu.memory_space<vmem>>, vector<256x16xbf16>
    tpu.vector_store %arg14[%c0_85, %c48], %68 {strides = array<i32>} : memref<256x400xbf16, #tpu.memory_space<vmem>>, vector<256x16xbf16>,
    %c0_86 = arith.constant 0 : index
    %c4_87 = arith.constant 4 : index
    %c0_88 = arith.constant 0 : index
    %70 = vector.load %arg13[%c0_86, %c4_87, %c0_88] : memref<20x20x16xf32, #tpu.memory_space<vmem>>, vector<16x16x16xf32>
    %71 = vector.shape_cast %70 : vector<16x16x16xf32> to vector<256x16xf32>
    %72 = arith.truncf %71 : vector<256x16xf32> to vector<256x16xbf16>
    %c0_89 = arith.constant 0 : index
    %c64 = arith.constant 64 : index
    %73 = vector.load %arg14[%c0_89, %c64] : memref<256x400xbf16, #tpu.memory_space<vmem>>, vector<256x16xbf16>
    tpu.vector_store %arg14[%c0_89, %c64], %72 {strides = array<i32>} : memref<256x400xbf16, #tpu.memory_space<vmem>>, vector<256x16xbf16>,
    %c1_90 = arith.constant 1 : index
    %c0_91 = arith.constant 0 : index
    %c0_92 = arith.constant 0 : index
    %74 = vector.load %arg13[%c1_90, %c0_91, %c0_92] : memref<20x20x16xf32, #tpu.memory_space<vmem>>, vector<16x16x16xf32>
    %75 = vector.shape_cast %74 : vector<16x16x16xf32> to vector<256x16xf32>
    %76 = arith.truncf %75 : vector<256x16xf32> to vector<256x16xbf16>
    %c0_93 = arith.constant 0 : index
    %c80 = arith.constant 80 : index
    %77 = vector.load %arg14[%c0_93, %c80] : memref<256x400xbf16, #tpu.memory_space<vmem>>, vector<256x16xbf16>
    tpu.vector_store %arg14[%c0_93, %c80], %76 {strides = array<i32>} : memref<256x400xbf16, #tpu.memory_space<vmem>>, vector<256x16xbf16>,
    %c1_94 = arith.constant 1 : index
    %c1_95 = arith.constant 1 : index
    %c0_96 = arith.constant 0 : index
    %78 = vector.load %arg13[%c1_94, %c1_95, %c0_96] : memref<20x20x16xf32, #tpu.memory_space<vmem>>, vector<16x16x16xf32>
    %79 = vector.shape_cast %78 : vector<16x16x16xf32> to vector<256x16xf32>
    %80 = arith.truncf %79 : vector<256x16xf32> to vector<256x16xbf16>
    %c0_97 = arith.constant 0 : index
    %c96 = arith.constant 96 : index
    %81 = vector.load %arg14[%c0_97, %c96] : memref<256x400xbf16, #tpu.memory_space<vmem>>, vector<256x16xbf16>
    tpu.vector_store %arg14[%c0_97, %c96], %80 {strides = array<i32>} : memref<256x400xbf16, #tpu.memory_space<vmem>>, vector<256x16xbf16>,
    %c1_98 = arith.constant 1 : index
    %c2_99 = arith.constant 2 : index
    %c0_100 = arith.constant 0 : index
    %82 = vector.load %arg13[%c1_98, %c2_99, %c0_100] : memref<20x20x16xf32, #tpu.memory_space<vmem>>, vector<16x16x16xf32>
    %83 = vector.shape_cast %82 : vector<16x16x16xf32> to vector<256x16xf32>
    %84 = arith.truncf %83 : vector<256x16xf32> to vector<256x16xbf16>
    %c0_101 = arith.constant 0 : index
    %c112 = arith.constant 112 : index
    %85 = vector.load %arg14[%c0_101, %c112] : memref<256x400xbf16, #tpu.memory_space<vmem>>, vector<256x16xbf16>
    tpu.vector_store %arg14[%c0_101, %c112], %84 {strides = array<i32>} : memref<256x400xbf16, #tpu.memory_space<vmem>>, vector<256x16xbf16>,
    %c1_102 = arith.constant 1 : index
    %c3_103 = arith.constant 3 : index
    %c0_104 = arith.constant 0 : index
    %86 = vector.load %arg13[%c1_102, %c3_103, %c0_104] : memref<20x20x16xf32, #tpu.memory_space<vmem>>, vector<16x16x16xf32>
    %87 = vector.shape_cast %86 : vector<16x16x16xf32> to vector<256x16xf32>
    %88 = arith.truncf %87 : vector<256x16xf32> to vector<256x16xbf16>
    %c0_105 = arith.constant 0 : index
    %c128 = arith.constant 128 : index
    %89 = vector.load %arg14[%c0_105, %c128] : memref<256x400xbf16, #tpu.memory_space<vmem>>, vector<256x16xbf16>
    tpu.vector_store %arg14[%c0_105, %c128], %88 {strides = array<i32>} : memref<256x400xbf16, #tpu.memory_space<vmem>>, vector<256x16xbf16>,
    %c1_106 = arith.constant 1 : index
    %c4_107 = arith.constant 4 : index
    %c0_108 = arith.constant 0 : index
    %90 = vector.load %arg13[%c1_106, %c4_107, %c0_108] : memref<20x20x16xf32, #tpu.memory_space<vmem>>, vector<16x16x16xf32>
    %91 = vector.shape_cast %90 : vector<16x16x16xf32> to vector<256x16xf32>
    %92 = arith.truncf %91 : vector<256x16xf32> to vector<256x16xbf16>
    %c0_109 = arith.constant 0 : index
    %c144 = arith.constant 144 : index
    %93 = vector.load %arg14[%c0_109, %c144] : memref<256x400xbf16, #tpu.memory_space<vmem>>, vector<256x16xbf16>
    tpu.vector_store %arg14[%c0_109, %c144], %92 {strides = array<i32>} : memref<256x400xbf16, #tpu.memory_space<vmem>>, vector<256x16xbf16>,
    %c2_110 = arith.constant 2 : index
    %c0_111 = arith.constant 0 : index
    %c0_112 = arith.constant 0 : index
    %94 = vector.load %arg13[%c2_110, %c0_111, %c0_112] : memref<20x20x16xf32, #tpu.memory_space<vmem>>, vector<16x16x16xf32>
    %95 = vector.shape_cast %94 : vector<16x16x16xf32> to vector<256x16xf32>
    %96 = arith.truncf %95 : vector<256x16xf32> to vector<256x16xbf16>
    %c0_113 = arith.constant 0 : index
    %c160 = arith.constant 160 : index
    %97 = vector.load %arg14[%c0_113, %c160] : memref<256x400xbf16, #tpu.memory_space<vmem>>, vector<256x16xbf16>
    tpu.vector_store %arg14[%c0_113, %c160], %96 {strides = array<i32>} : memref<256x400xbf16, #tpu.memory_space<vmem>>, vector<256x16xbf16>,
    %c2_114 = arith.constant 2 : index
    %c1_115 = arith.constant 1 : index
    %c0_116 = arith.constant 0 : index
    %98 = vector.load %arg13[%c2_114, %c1_115, %c0_116] : memref<20x20x16xf32, #tpu.memory_space<vmem>>, vector<16x16x16xf32>
    %99 = vector.shape_cast %98 : vector<16x16x16xf32> to vector<256x16xf32>
    %100 = arith.truncf %99 : vector<256x16xf32> to vector<256x16xbf16>
    %c0_117 = arith.constant 0 : index
    %c176 = arith.constant 176 : index
    %101 = vector.load %arg14[%c0_117, %c176] : memref<256x400xbf16, #tpu.memory_space<vmem>>, vector<256x16xbf16>
    tpu.vector_store %arg14[%c0_117, %c176], %100 {strides = array<i32>} : memref<256x400xbf16, #tpu.memory_space<vmem>>, vector<256x16xbf16>,
    %c2_118 = arith.constant 2 : index
    %c2_119 = arith.constant 2 : index
    %c0_120 = arith.constant 0 : index
    %102 = vector.load %arg13[%c2_118, %c2_119, %c0_120] : memref<20x20x16xf32, #tpu.memory_space<vmem>>, vector<16x16x16xf32>
    %103 = vector.shape_cast %102 : vector<16x16x16xf32> to vector<256x16xf32>
    %104 = arith.truncf %103 : vector<256x16xf32> to vector<256x16xbf16>
    %c0_121 = arith.constant 0 : index
    %c192 = arith.constant 192 : index
    %105 = vector.load %arg14[%c0_121, %c192] : memref<256x400xbf16, #tpu.memory_space<vmem>>, vector<256x16xbf16>
    tpu.vector_store %arg14[%c0_121, %c192], %104 {strides = array<i32>} : memref<256x400xbf16, #tpu.memory_space<vmem>>, vector<256x16xbf16>,
    %c2_122 = arith.constant 2 : index
    %c3_123 = arith.constant 3 : index
    %c0_124 = arith.constant 0 : index
    %106 = vector.load %arg13[%c2_122, %c3_123, %c0_124] : memref<20x20x16xf32, #tpu.memory_space<vmem>>, vector<16x16x16xf32>
    %107 = vector.shape_cast %106 : vector<16x16x16xf32> to vector<256x16xf32>
    %108 = arith.truncf %107 : vector<256x16xf32> to vector<256x16xbf16>
    %c0_125 = arith.constant 0 : index
    %c208 = arith.constant 208 : index
    %109 = vector.load %arg14[%c0_125, %c208] : memref<256x400xbf16, #tpu.memory_space<vmem>>, vector<256x16xbf16>
    tpu.vector_store %arg14[%c0_125, %c208], %108 {strides = array<i32>} : memref<256x400xbf16, #tpu.memory_space<vmem>>, vector<256x16xbf16>,
    %c2_126 = arith.constant 2 : index
    %c4_127 = arith.constant 4 : index
    %c0_128 = arith.constant 0 : index
    %110 = vector.load %arg13[%c2_126, %c4_127, %c0_128] : memref<20x20x16xf32, #tpu.memory_space<vmem>>, vector<16x16x16xf32>
    %111 = vector.shape_cast %110 : vector<16x16x16xf32> to vector<256x16xf32>
    %112 = arith.truncf %111 : vector<256x16xf32> to vector<256x16xbf16>
    %c0_129 = arith.constant 0 : index
    %c224 = arith.constant 224 : index
    %113 = vector.load %arg14[%c0_129, %c224] : memref<256x400xbf16, #tpu.memory_space<vmem>>, vector<256x16xbf16>
    tpu.vector_store %arg14[%c0_129, %c224], %112 {strides = array<i32>} : memref<256x400xbf16, #tpu.memory_space<vmem>>, vector<256x16xbf16>,
    %c3_130 = arith.constant 3 : index
    %c0_131 = arith.constant 0 : index
    %c0_132 = arith.constant 0 : index
    %114 = vector.load %arg13[%c3_130, %c0_131, %c0_132] : memref<20x20x16xf32, #tpu.memory_space<vmem>>, vector<16x16x16xf32>
    %115 = vector.shape_cast %114 : vector<16x16x16xf32> to vector<256x16xf32>
    %116 = arith.truncf %115 : vector<256x16xf32> to vector<256x16xbf16>
    %c0_133 = arith.constant 0 : index
    %c240 = arith.constant 240 : index
    %117 = vector.load %arg14[%c0_133, %c240] : memref<256x400xbf16, #tpu.memory_space<vmem>>, vector<256x16xbf16>
    tpu.vector_store %arg14[%c0_133, %c240], %116 {strides = array<i32>} : memref<256x400xbf16, #tpu.memory_space<vmem>>, vector<256x16xbf16>,
    %c3_134 = arith.constant 3 : index
    %c1_135 = arith.constant 1 : index
    %c0_136 = arith.constant 0 : index
    %118 = vector.load %arg13[%c3_134, %c1_135, %c0_136] : memref<20x20x16xf32, #tpu.memory_space<vmem>>, vector<16x16x16xf32>
    %119 = vector.shape_cast %118 : vector<16x16x16xf32> to vector<256x16xf32>
    %120 = arith.truncf %119 : vector<256x16xf32> to vector<256x16xbf16>
    %c0_137 = arith.constant 0 : index
    %c256 = arith.constant 256 : index
    %121 = vector.load %arg14[%c0_137, %c256] : memref<256x400xbf16, #tpu.memory_space<vmem>>, vector<256x16xbf16>
    tpu.vector_store %arg14[%c0_137, %c256], %120 {strides = array<i32>} : memref<256x400xbf16, #tpu.memory_space<vmem>>, vector<256x16xbf16>,
    %c3_138 = arith.constant 3 : index
    %c2_139 = arith.constant 2 : index
    %c0_140 = arith.constant 0 : index
    %122 = vector.load %arg13[%c3_138, %c2_139, %c0_140] : memref<20x20x16xf32, #tpu.memory_space<vmem>>, vector<16x16x16xf32>
    %123 = vector.shape_cast %122 : vector<16x16x16xf32> to vector<256x16xf32>
    %124 = arith.truncf %123 : vector<256x16xf32> to vector<256x16xbf16>
    %c0_141 = arith.constant 0 : index
    %c272 = arith.constant 272 : index
    %125 = vector.load %arg14[%c0_141, %c272] : memref<256x400xbf16, #tpu.memory_space<vmem>>, vector<256x16xbf16>
    tpu.vector_store %arg14[%c0_141, %c272], %124 {strides = array<i32>} : memref<256x400xbf16, #tpu.memory_space<vmem>>, vector<256x16xbf16>,
    %c3_142 = arith.constant 3 : index
    %c3_143 = arith.constant 3 : index
    %c0_144 = arith.constant 0 : index
    %126 = vector.load %arg13[%c3_142, %c3_143, %c0_144] : memref<20x20x16xf32, #tpu.memory_space<vmem>>, vector<16x16x16xf32>
    %127 = vector.shape_cast %126 : vector<16x16x16xf32> to vector<256x16xf32>
    %128 = arith.truncf %127 : vector<256x16xf32> to vector<256x16xbf16>
    %c0_145 = arith.constant 0 : index
    %c288 = arith.constant 288 : index
    %129 = vector.load %arg14[%c0_145, %c288] : memref<256x400xbf16, #tpu.memory_space<vmem>>, vector<256x16xbf16>
    tpu.vector_store %arg14[%c0_145, %c288], %128 {strides = array<i32>} : memref<256x400xbf16, #tpu.memory_space<vmem>>, vector<256x16xbf16>,
    %c3_146 = arith.constant 3 : index
    %c4_147 = arith.constant 4 : index
    %c0_148 = arith.constant 0 : index
    %130 = vector.load %arg13[%c3_146, %c4_147, %c0_148] : memref<20x20x16xf32, #tpu.memory_space<vmem>>, vector<16x16x16xf32>
    %131 = vector.shape_cast %130 : vector<16x16x16xf32> to vector<256x16xf32>
    %132 = arith.truncf %131 : vector<256x16xf32> to vector<256x16xbf16>
    %c0_149 = arith.constant 0 : index
    %c304 = arith.constant 304 : index
    %133 = vector.load %arg14[%c0_149, %c304] : memref<256x400xbf16, #tpu.memory_space<vmem>>, vector<256x16xbf16>
    tpu.vector_store %arg14[%c0_149, %c304], %132 {strides = array<i32>} : memref<256x400xbf16, #tpu.memory_space<vmem>>, vector<256x16xbf16>,
    %c4_150 = arith.constant 4 : index
    %c0_151 = arith.constant 0 : index
    %c0_152 = arith.constant 0 : index
    %134 = vector.load %arg13[%c4_150, %c0_151, %c0_152] : memref<20x20x16xf32, #tpu.memory_space<vmem>>, vector<16x16x16xf32>
    %135 = vector.shape_cast %134 : vector<16x16x16xf32> to vector<256x16xf32>
    %136 = arith.truncf %135 : vector<256x16xf32> to vector<256x16xbf16>
    %c0_153 = arith.constant 0 : index
    %c320 = arith.constant 320 : index
    %137 = vector.load %arg14[%c0_153, %c320] : memref<256x400xbf16, #tpu.memory_space<vmem>>, vector<256x16xbf16>
    tpu.vector_store %arg14[%c0_153, %c320], %136 {strides = array<i32>} : memref<256x400xbf16, #tpu.memory_space<vmem>>, vector<256x16xbf16>,
    %c4_154 = arith.constant 4 : index
    %c1_155 = arith.constant 1 : index
    %c0_156 = arith.constant 0 : index
    %138 = vector.load %arg13[%c4_154, %c1_155, %c0_156] : memref<20x20x16xf32, #tpu.memory_space<vmem>>, vector<16x16x16xf32>
    %139 = vector.shape_cast %138 : vector<16x16x16xf32> to vector<256x16xf32>
    %140 = arith.truncf %139 : vector<256x16xf32> to vector<256x16xbf16>
    %c0_157 = arith.constant 0 : index
    %c336 = arith.constant 336 : index
    %141 = vector.load %arg14[%c0_157, %c336] : memref<256x400xbf16, #tpu.memory_space<vmem>>, vector<256x16xbf16>
    tpu.vector_store %arg14[%c0_157, %c336], %140 {strides = array<i32>} : memref<256x400xbf16, #tpu.memory_space<vmem>>, vector<256x16xbf16>,
    %c4_158 = arith.constant 4 : index
    %c2_159 = arith.constant 2 : index
    %c0_160 = arith.constant 0 : index
    %142 = vector.load %arg13[%c4_158, %c2_159, %c0_160] : memref<20x20x16xf32, #tpu.memory_space<vmem>>, vector<16x16x16xf32>
    %143 = vector.shape_cast %142 : vector<16x16x16xf32> to vector<256x16xf32>
    %144 = arith.truncf %143 : vector<256x16xf32> to vector<256x16xbf16>
    %c0_161 = arith.constant 0 : index
    %c352 = arith.constant 352 : index
    %145 = vector.load %arg14[%c0_161, %c352] : memref<256x400xbf16, #tpu.memory_space<vmem>>, vector<256x16xbf16>
    tpu.vector_store %arg14[%c0_161, %c352], %144 {strides = array<i32>} : memref<256x400xbf16, #tpu.memory_space<vmem>>, vector<256x16xbf16>,
    %c4_162 = arith.constant 4 : index
    %c3_163 = arith.constant 3 : index
    %c0_164 = arith.constant 0 : index
    %146 = vector.load %arg13[%c4_162, %c3_163, %c0_164] : memref<20x20x16xf32, #tpu.memory_space<vmem>>, vector<16x16x16xf32>
    %147 = vector.shape_cast %146 : vector<16x16x16xf32> to vector<256x16xf32>
    %148 = arith.truncf %147 : vector<256x16xf32> to vector<256x16xbf16>
    %c0_165 = arith.constant 0 : index
    %c368 = arith.constant 368 : index
    %149 = vector.load %arg14[%c0_165, %c368] : memref<256x400xbf16, #tpu.memory_space<vmem>>, vector<256x16xbf16>
    tpu.vector_store %arg14[%c0_165, %c368], %148 {strides = array<i32>} : memref<256x400xbf16, #tpu.memory_space<vmem>>, vector<256x16xbf16>,
    %c4_166 = arith.constant 4 : index
    %c4_167 = arith.constant 4 : index
    %c0_168 = arith.constant 0 : index
    %150 = vector.load %arg13[%c4_166, %c4_167, %c0_168] : memref<20x20x16xf32, #tpu.memory_space<vmem>>, vector<16x16x16xf32>
    %151 = vector.shape_cast %150 : vector<16x16x16xf32> to vector<256x16xf32>
    %152 = arith.truncf %151 : vector<256x16xf32> to vector<256x16xbf16>
    %c0_169 = arith.constant 0 : index
    %c384 = arith.constant 384 : index
    %153 = vector.load %arg14[%c0_169, %c384] : memref<256x400xbf16, #tpu.memory_space<vmem>>, vector<256x16xbf16>
    tpu.vector_store %arg14[%c0_169, %c384], %152 {strides = array<i32>} : memref<256x400xbf16, #tpu.memory_space<vmem>>, vector<256x16xbf16>,
    %c0_170 = arith.constant 0 : index
    %c0_171 = arith.constant 0 : index
    %154 = vector.load %arg14[%c0_170, %c0_171] : memref<256x400xbf16, #tpu.memory_space<vmem>>, vector<256x400xbf16>
    %c0_172 = arith.constant 0 : index
    %c0_173 = arith.constant 0 : index
    %155 = vector.load %arg5[%c0_172, %c0_173] : memref<400x64xbf16, #tpu.memory_space<vmem>>, vector<400x64xbf16>
    %cst_174 = arith.constant dense<0.000000e+00> : vector<256x64xf32>
    %156 = tpu.matmul %154, %155, %cst_174 {dimension_numbers = #tpu.dot_dimension_numbers<[1], [0], [0], [1], [0, 0, 1, 1], [], []>} : vector<256x400xbf16>, vector<400x64xbf16>, vector<256x64xf32> -> vector<256x64xf32>
    %c0_175 = arith.constant 0 : index
    %c0_176 = arith.constant 0 : index
    %157 = vector.load %arg6[%c0_175, %c0_176] : memref<1x64xf32, #tpu.memory_space<vmem>>, vector<1x64xf32>
    %158 = vector.broadcast %157 : vector<1x64xf32> to vector<256x64xf32>
    %159 = arith.addf %156, %158 : vector<256x64xf32>
    %cst_177 = arith.constant 0.000000e+00 : f32
    %160 = vector.broadcast %cst_177 : f32 to vector<256x64xf32>
    %161 = arith.maximumf %159, %160 : vector<256x64xf32>
    %c0_178 = arith.constant 0 : index
    %c0_179 = arith.constant 0 : index
    %162 = vector.load %arg2[%c0_178, %c0_179] : memref<16x256xf32, #tpu.memory_space<vmem>>, vector<16x256xf32>
    %cst_180 = arith.constant dense<0.000000e+00> : vector<16x64xf32>
    %163 = tpu.matmul %162, %161, %cst_180 {dimension_numbers = #tpu.dot_dimension_numbers<[1], [0], [0], [1], [0, 0, 1, 1], [], []>} : vector<16x256xf32>, vector<256x64xf32>, vector<16x64xf32> -> vector<16x64xf32>
    %164 = vector.extract_strided_slice %163 {offsets = [0, 0], sizes = [1, 64], strides = [1, 1]} : vector<16x64xf32> to vector<1x64xf32>
    %c0_181 = arith.constant 0 : index
    %c0_182 = arith.constant 0 : index
    %165 = vector.load %arg15[%c0_181, %c0_182] : memref<1x1024xf32, #tpu.memory_space<vmem>>, vector<1x64xf32>
    tpu.vector_store %arg15[%c0_181, %c0_182], %164 {strides = array<i32>} : memref<1x1024xf32, #tpu.memory_space<vmem>>, vector<1x64xf32>,
    %166 = vector.extract_strided_slice %163 {offsets = [1, 0], sizes = [1, 64], strides = [1, 1]} : vector<16x64xf32> to vector<1x64xf32>
    %c0_183 = arith.constant 0 : index
    %c64_184 = arith.constant 64 : index
    %167 = vector.load %arg15[%c0_183, %c64_184] : memref<1x1024xf32, #tpu.memory_space<vmem>>, vector<1x64xf32>
    tpu.vector_store %arg15[%c0_183, %c64_184], %166 {strides = array<i32>} : memref<1x1024xf32, #tpu.memory_space<vmem>>, vector<1x64xf32>,
    %168 = vector.extract_strided_slice %163 {offsets = [2, 0], sizes = [1, 64], strides = [1, 1]} : vector<16x64xf32> to vector<1x64xf32>
    %c0_185 = arith.constant 0 : index
    %c128_186 = arith.constant 128 : index
    %169 = vector.load %arg15[%c0_185, %c128_186] : memref<1x1024xf32, #tpu.memory_space<vmem>>, vector<1x64xf32>
    tpu.vector_store %arg15[%c0_185, %c128_186], %168 {strides = array<i32>} : memref<1x1024xf32, #tpu.memory_space<vmem>>, vector<1x64xf32>,
    %170 = vector.extract_strided_slice %163 {offsets = [3, 0], sizes = [1, 64], strides = [1, 1]} : vector<16x64xf32> to vector<1x64xf32>
    %c0_187 = arith.constant 0 : index
    %c192_188 = arith.constant 192 : index
    %171 = vector.load %arg15[%c0_187, %c192_188] : memref<1x1024xf32, #tpu.memory_space<vmem>>, vector<1x64xf32>
    tpu.vector_store %arg15[%c0_187, %c192_188], %170 {strides = array<i32>} : memref<1x1024xf32, #tpu.memory_space<vmem>>, vector<1x64xf32>,
    %172 = vector.extract_strided_slice %163 {offsets = [4, 0], sizes = [1, 64], strides = [1, 1]} : vector<16x64xf32> to vector<1x64xf32>
    %c0_189 = arith.constant 0 : index
    %c256_190 = arith.constant 256 : index
    %173 = vector.load %arg15[%c0_189, %c256_190] : memref<1x1024xf32, #tpu.memory_space<vmem>>, vector<1x64xf32>
    tpu.vector_store %arg15[%c0_189, %c256_190], %172 {strides = array<i32>} : memref<1x1024xf32, #tpu.memory_space<vmem>>, vector<1x64xf32>,
    %174 = vector.extract_strided_slice %163 {offsets = [5, 0], sizes = [1, 64], strides = [1, 1]} : vector<16x64xf32> to vector<1x64xf32>
    %c0_191 = arith.constant 0 : index
    %c320_192 = arith.constant 320 : index
    %175 = vector.load %arg15[%c0_191, %c320_192] : memref<1x1024xf32, #tpu.memory_space<vmem>>, vector<1x64xf32>
    tpu.vector_store %arg15[%c0_191, %c320_192], %174 {strides = array<i32>} : memref<1x1024xf32, #tpu.memory_space<vmem>>, vector<1x64xf32>,
    %176 = vector.extract_strided_slice %163 {offsets = [6, 0], sizes = [1, 64], strides = [1, 1]} : vector<16x64xf32> to vector<1x64xf32>
    %c0_193 = arith.constant 0 : index
    %c384_194 = arith.constant 384 : index
    %177 = vector.load %arg15[%c0_193, %c384_194] : memref<1x1024xf32, #tpu.memory_space<vmem>>, vector<1x64xf32>
    tpu.vector_store %arg15[%c0_193, %c384_194], %176 {strides = array<i32>} : memref<1x1024xf32, #tpu.memory_space<vmem>>, vector<1x64xf32>,
    %178 = vector.extract_strided_slice %163 {offsets = [7, 0], sizes = [1, 64], strides = [1, 1]} : vector<16x64xf32> to vector<1x64xf32>
    %c0_195 = arith.constant 0 : index
    %c448 = arith.constant 448 : index
    %179 = vector.load %arg15[%c0_195, %c448] : memref<1x1024xf32, #tpu.memory_space<vmem>>, vector<1x64xf32>
    tpu.vector_store %arg15[%c0_195, %c448], %178 {strides = array<i32>} : memref<1x1024xf32, #tpu.memory_space<vmem>>, vector<1x64xf32>,
    %180 = vector.extract_strided_slice %163 {offsets = [8, 0], sizes = [1, 64], strides = [1, 1]} : vector<16x64xf32> to vector<1x64xf32>
    %c0_196 = arith.constant 0 : index
    %c512 = arith.constant 512 : index
    %181 = vector.load %arg15[%c0_196, %c512] : memref<1x1024xf32, #tpu.memory_space<vmem>>, vector<1x64xf32>
    tpu.vector_store %arg15[%c0_196, %c512], %180 {strides = array<i32>} : memref<1x1024xf32, #tpu.memory_space<vmem>>, vector<1x64xf32>,
    %182 = vector.extract_strided_slice %163 {offsets = [9, 0], sizes = [1, 64], strides = [1, 1]} : vector<16x64xf32> to vector<1x64xf32>
    %c0_197 = arith.constant 0 : index
    %c576 = arith.constant 576 : index
    %183 = vector.load %arg15[%c0_197, %c576] : memref<1x1024xf32, #tpu.memory_space<vmem>>, vector<1x64xf32>
    tpu.vector_store %arg15[%c0_197, %c576], %182 {strides = array<i32>} : memref<1x1024xf32, #tpu.memory_space<vmem>>, vector<1x64xf32>,
    %184 = vector.extract_strided_slice %163 {offsets = [10, 0], sizes = [1, 64], strides = [1, 1]} : vector<16x64xf32> to vector<1x64xf32>
    %c0_198 = arith.constant 0 : index
    %c640 = arith.constant 640 : index
    %185 = vector.load %arg15[%c0_198, %c640] : memref<1x1024xf32, #tpu.memory_space<vmem>>, vector<1x64xf32>
    tpu.vector_store %arg15[%c0_198, %c640], %184 {strides = array<i32>} : memref<1x1024xf32, #tpu.memory_space<vmem>>, vector<1x64xf32>,
    %186 = vector.extract_strided_slice %163 {offsets = [11, 0], sizes = [1, 64], strides = [1, 1]} : vector<16x64xf32> to vector<1x64xf32>
    %c0_199 = arith.constant 0 : index
    %c704 = arith.constant 704 : index
    %187 = vector.load %arg15[%c0_199, %c704] : memref<1x1024xf32, #tpu.memory_space<vmem>>, vector<1x64xf32>
    tpu.vector_store %arg15[%c0_199, %c704], %186 {strides = array<i32>} : memref<1x1024xf32, #tpu.memory_space<vmem>>, vector<1x64xf32>,
    %188 = vector.extract_strided_slice %163 {offsets = [12, 0], sizes = [1, 64], strides = [1, 1]} : vector<16x64xf32> to vector<1x64xf32>
    %c0_200 = arith.constant 0 : index
    %c768 = arith.constant 768 : index
    %189 = vector.load %arg15[%c0_200, %c768] : memref<1x1024xf32, #tpu.memory_space<vmem>>, vector<1x64xf32>
    tpu.vector_store %arg15[%c0_200, %c768], %188 {strides = array<i32>} : memref<1x1024xf32, #tpu.memory_space<vmem>>, vector<1x64xf32>,
    %190 = vector.extract_strided_slice %163 {offsets = [13, 0], sizes = [1, 64], strides = [1, 1]} : vector<16x64xf32> to vector<1x64xf32>
    %c0_201 = arith.constant 0 : index
    %c832 = arith.constant 832 : index
    %191 = vector.load %arg15[%c0_201, %c832] : memref<1x1024xf32, #tpu.memory_space<vmem>>, vector<1x64xf32>
    tpu.vector_store %arg15[%c0_201, %c832], %190 {strides = array<i32>} : memref<1x1024xf32, #tpu.memory_space<vmem>>, vector<1x64xf32>,
    %192 = vector.extract_strided_slice %163 {offsets = [14, 0], sizes = [1, 64], strides = [1, 1]} : vector<16x64xf32> to vector<1x64xf32>
    %c0_202 = arith.constant 0 : index
    %c896 = arith.constant 896 : index
    %193 = vector.load %arg15[%c0_202, %c896] : memref<1x1024xf32, #tpu.memory_space<vmem>>, vector<1x64xf32>
    tpu.vector_store %arg15[%c0_202, %c896], %192 {strides = array<i32>} : memref<1x1024xf32, #tpu.memory_space<vmem>>, vector<1x64xf32>,
    %194 = vector.extract_strided_slice %163 {offsets = [15, 0], sizes = [1, 64], strides = [1, 1]} : vector<16x64xf32> to vector<1x64xf32>
    %c0_203 = arith.constant 0 : index
    %c960 = arith.constant 960 : index
    %195 = vector.load %arg15[%c0_203, %c960] : memref<1x1024xf32, #tpu.memory_space<vmem>>, vector<1x64xf32>
    tpu.vector_store %arg15[%c0_203, %c960], %194 {strides = array<i32>} : memref<1x1024xf32, #tpu.memory_space<vmem>>, vector<1x64xf32>,
    %c0_204 = arith.constant 0 : index
    %c0_205 = arith.constant 0 : index
    %196 = vector.load %arg15[%c0_204, %c0_205] : memref<1x1024xf32, #tpu.memory_space<vmem>>, vector<1x1024xf32>
    %c0_206 = arith.constant 0 : index
    %c0_207 = arith.constant 0 : index
    %197 = vector.load %arg7[%c0_206, %c0_207] : memref<1024x128xf32, #tpu.memory_space<vmem>>, vector<1024x128xf32>
    %cst_208 = arith.constant dense<0.000000e+00> : vector<1x128xf32>
    %198 = tpu.matmul %196, %197, %cst_208 {dimension_numbers = #tpu.dot_dimension_numbers<[1], [0], [0], [1], [0, 0, 1, 1], [], []>} : vector<1x1024xf32>, vector<1024x128xf32>, vector<1x128xf32> -> vector<1x128xf32>
    %c0_209 = arith.constant 0 : index
    %c0_210 = arith.constant 0 : index
    %199 = vector.load %arg8[%c0_209, %c0_210] : memref<1x128xf32, #tpu.memory_space<vmem>>, vector<1x128xf32>
    %200 = arith.addf %198, %199 : vector<1x128xf32>
    %cst_211 = arith.constant 0.000000e+00 : f32
    %201 = vector.broadcast %cst_211 : f32 to vector<1x128xf32>
    %202 = arith.maximumf %200, %201 : vector<1x128xf32>
    %c0_212 = arith.constant 0 : index
    %c0_213 = arith.constant 0 : index
    %203 = vector.load %arg9[%c0_212, %c0_213] : memref<128x4xf32, #tpu.memory_space<vmem>>, vector<128x4xf32>
    %cst_214 = arith.constant dense<0.000000e+00> : vector<1x4xf32>
    %204 = tpu.matmul %202, %203, %cst_214 {dimension_numbers = #tpu.dot_dimension_numbers<[1], [0], [0], [1], [0, 0, 1, 1], [], []>} : vector<1x128xf32>, vector<128x4xf32>, vector<1x4xf32> -> vector<1x4xf32>
    %c0_215 = arith.constant 0 : index
    %c0_216 = arith.constant 0 : index
    %205 = vector.load %arg10[%c0_215, %c0_216] : memref<1x4xf32, #tpu.memory_space<vmem>>, vector<1x4xf32>
    %206 = arith.addf %204, %205 : vector<1x4xf32>
    %c0_217 = arith.constant 0 : index
    %c0_218 = arith.constant 0 : index
    %c0_219 = arith.constant 0 : index
    %207 = vector.load %arg11[%c0_217, %c0_218, %c0_219] : memref<1x1x4xf32, #tpu.memory_space<vmem>>, vector<1x1x4xf32>
    %208 = vector.shape_cast %207 : vector<1x1x4xf32> to vector<1x4xf32>
    %209 = vector.shape_cast %206 : vector<1x4xf32> to vector<1x1x4xf32>
    tpu.vector_store %arg11[%c0_217, %c0_218, %c0_219], %209 {strides = array<i32>} : memref<1x1x4xf32, #tpu.memory_space<vmem>>, vector<1x1x4xf32>,
    return
  }
  func.func @transform_0(%arg0: i32) -> (i32, i32, i32, i32) {
    %c0_i32 = arith.constant 0 : i32
    %c0_i32_0 = arith.constant 0 : i32
    %c0_i32_1 = arith.constant 0 : i32
    %c0_i32_2 = arith.constant 0 : i32
    return %arg0, %c0_i32, %c0_i32_0, %c0_i32_1 : i32, i32, i32, i32
  }
  func.func @transform_1(%arg0: i32) -> (i32, i32) {
    %c0_i32 = arith.constant 0 : i32
    %c0_i32_0 = arith.constant 0 : i32
    %c0_i32_1 = arith.constant 0 : i32
    return %c0_i32, %c0_i32_0 : i32, i32
  }
  func.func @transform_2(%arg0: i32) -> (i32, i32) {
    %c0_i32 = arith.constant 0 : i32
    %c0_i32_0 = arith.constant 0 : i32
    %c0_i32_1 = arith.constant 0 : i32
    return %c0_i32, %c0_i32_0 : i32, i32
  }
  func.func @transform_3(%arg0: i32) -> (i32, i32) {
    %c0_i32 = arith.constant 0 : i32
    %c0_i32_0 = arith.constant 0 : i32
    %c0_i32_1 = arith.constant 0 : i32
    return %c0_i32, %c0_i32_0 : i32, i32
  }
  func.func @transform_4(%arg0: i32) -> (i32, i32) {
    %c0_i32 = arith.constant 0 : i32
    %c0_i32_0 = arith.constant 0 : i32
    %c0_i32_1 = arith.constant 0 : i32
    return %c0_i32, %c0_i32_0 : i32, i32
  }
  func.func @transform_5(%arg0: i32) -> (i32, i32) {
    %c0_i32 = arith.constant 0 : i32
    %c0_i32_0 = arith.constant 0 : i32
    %c0_i32_1 = arith.constant 0 : i32
    return %c0_i32, %c0_i32_0 : i32, i32
  }
  func.func @transform_6(%arg0: i32) -> (i32, i32) {
    %c0_i32 = arith.constant 0 : i32
    %c0_i32_0 = arith.constant 0 : i32
    %c0_i32_1 = arith.constant 0 : i32
    return %c0_i32, %c0_i32_0 : i32, i32
  }
  func.func @transform_7(%arg0: i32) -> (i32, i32) {
    %c0_i32 = arith.constant 0 : i32
    %c0_i32_0 = arith.constant 0 : i32
    %c0_i32_1 = arith.constant 0 : i32
    return %c0_i32, %c0_i32_0 : i32, i32
  }
  func.func @transform_8(%arg0: i32) -> (i32, i32) {
    %c0_i32 = arith.constant 0 : i32
    %c0_i32_0 = arith.constant 0 : i32
    %c0_i32_1 = arith.constant 0 : i32
    return %c0_i32, %c0_i32_0 : i32, i32
  }
  func.func @transform_9(%arg0: i32) -> (i32, i32) {
    %c0_i32 = arith.constant 0 : i32
    %c0_i32_0 = arith.constant 0 : i32
    %c0_i32_1 = arith.constant 0 : i32
    return %c0_i32, %c0_i32_0 : i32, i32
  }
  func.func @transform_10(%arg0: i32) -> (i32, i32, i32) {
    %c0_i32 = arith.constant 0 : i32
    %c0_i32_0 = arith.constant 0 : i32
    %c0_i32_1 = arith.constant 0 : i32
    return %arg0, %c0_i32, %c0_i32_0 : i32, i32, i32
  }
}

</mosaic_0001>

<llo_original>
// kernel: snake_convnet_sm_forward.1
$region0: #{snake_convnet_sm_forward.1}
  #allocation0 [shape = 'u32[]', space=smem, size = 0x4, offset = 0x4, fixed_abs, tag = 'smem constant byte address 0x4 - core index']
  #allocation1 [shape = 'u32[144,128]{1,0:T(1,128)}', space=vmem, size = 0x12000, scoped, tag = 'internal scratch']
  #allocation2 [shape = 'bf16[256,36]{1,0:T(16,128)(2,1)}', space=vmem, size = 0x10000, scoped, tag = 'scratch operand']
  #allocation3 [shape = 'f32[20,20,16]{2,1,0:T(8,128)}', space=vmem, size = 0x3c000, scoped, tag = 'scratch operand']
  #allocation4 [shape = 'bf16[256,400]{1,0:T(16,128)(2,1)}', space=vmem, size = 0x40000, scoped, tag = 'scratch operand']
  #allocation5 [shape = 'f32[1,1024]{1,0:T(1,128)}', space=vmem, size = 0x1000, scoped, tag = 'scratch operand']
  %s0 = inlined_call_operand.vmem [shape: bf16[2,18,18,4], index: 0, kind: input, shape index: {}]
  %s1 = inlined_call_operand.vmem [shape: f32[16,256], index: 1, kind: input, shape index: {}]
  %s2 = inlined_call_operand.vmem [shape: bf16[36,16], index: 2, kind: input, shape index: {}]
  %s3 = inlined_call_operand.vmem [shape: f32[1,16], index: 3, kind: input, shape index: {}]
  %s4 = inlined_call_operand.vmem [shape: bf16[400,64], index: 4, kind: input, shape index: {}]
  %s5 = inlined_call_operand.vmem [shape: f32[1,64], index: 5, kind: input, shape index: {}]
  %s6 = inlined_call_operand.vmem [shape: f32[1024,128], index: 6, kind: input, shape index: {}]
  %s7 = inlined_call_operand.vmem [shape: f32[1,128], index: 7, kind: input, shape index: {}]
  %s8 = inlined_call_operand.vmem [shape: f32[128,4], index: 8, kind: input, shape index: {}]
  %s9 = inlined_call_operand.vmem [shape: f32[1,4], index: 9, kind: input, shape index: {}]
  %s10 = inlined_call_operand.hbm [shape: f32[2,1,4], index: 10, kind: output, shape index: {}]
  %s11 = sld [smem:[#allocation0]]
  $region73: #{snake_convnet_sm_forward.1} parent=0
    _
  %s13 = ssub.s32 1, %s11
  %s14 = scalar_select 0, %s13, %s11
  $region1: #{snake_convnet_sm_forward.1} parent=0
    #allocation6 [shape = 'u8[1024]{0}', space=vmem, size = 0x400, scoped, tag = 'output window, operand 0']
    #allocation7 [shape = 's32[2]{0}', space=sflag, size = 0x8, scoped, tag = 'scoped memory for snake_convnet_sm_forward.1']
    %15 = vsyncpa [#allocation7], 0
    %s16 = scalar_lea.sflag [#allocation7], 1
    %17 = vsyncpa %s16, 0
    loop: start=0, step=1, limit=4
    $region2: #{snake_convnet_sm_forward.1} parent=1 // loop_pre_header
      _
    $region3: #{snake_convnet_sm_forward.1} parent=1 // loop_header
      %s19 = sphi 0, %s23
      %p20 = scmp.ge.s32.totalorder %s19, 4
      %s29 = sphi 0, %s31
      %s32 = sphi 0, %s29
      %s33 = sphi 0, %s32
      %s49 = sphi 0, %s33
      %s53 = sphi 0, %s53
      %s55 = sphi 0, %s53
      %s56 = sphi 0, %s55
      %s70 = sphi 0, %s56
      %s74 = sphi 0, %s74
      %s76 = sphi 0, %s74
      %s77 = sphi 0, %s76
      %s91 = sphi 0, %s77
      %s95 = sphi 0, %s95
      %s97 = sphi 0, %s95
      %s98 = sphi 0, %s97
      %s112 = sphi 0, %s98
      %s116 = sphi 0, %s116
      %s118 = sphi 0, %s116
      %s119 = sphi 0, %s118
      %s133 = sphi 0, %s119
      %s137 = sphi 0, %s137
      %s139 = sphi 0, %s137
      %s140 = sphi 0, %s139
      %s154 = sphi 0, %s140
      %s158 = sphi 0, %s158
      %s160 = sphi 0, %s158
      %s161 = sphi 0, %s160
      %s175 = sphi 0, %s161
      %s179 = sphi 0, %s179
      %s181 = sphi 0, %s179
      %s182 = sphi 0, %s181
      %s196 = sphi 0, %s182
      %s200 = sphi 0, %s200
      %s202 = sphi 0, %s200
      %s203 = sphi 0, %s202
      %s217 = sphi 0, %s203
      %s221 = sphi 0, %s221
      %s223 = sphi 0, %s221
      %s224 = sphi 0, %s223
      %s238 = sphi 0, %s224
      %s244 = sphi 0, %s246
      %s247 = sphi 0, %s244
      %s248 = sphi 0, %s247
      %s264 = sphi 0, %s248
    $region4: #{snake_convnet_sm_forward.1} parent=1 // loop_header_branch
      %22 = sbr.rel (%p20) target = $region8
    $region5: #{snake_convnet_sm_forward.1} parent=1 // loop_body
      %s24 = ssub.s32 %s19, 1
      %s25 = ssub.s32 %s19, 2
      %s26 = sadd.s32 %s19, 1
      %s27 = ssub.s32 %s19, %s26
      %p28 = scmp.eq.s32.totalorder %s27, 0
      %s30 = sadd.s32 %s29, 1
      %s31 = scalar_select %p28, %s29, %s30
      %p34 = pneg %p28
      %p35 = scmp.eq.s32.totalorder %s19, 1
      %p36 = por %p34, %p35
      %p37 = scmp.ne.s32.totalorder %s29, %s32
      %p38 = scmp.eq.s32.totalorder %s19, 0
      %p39 = por %p37, %p38
      %p40 = scmp.ne.s32.totalorder %s29, %s32
      %p41 = scmp.eq.s32.totalorder %s24, 1
      %p42 = por %p40, %p41
      %p43 = scmp.ne.s32.totalorder %s32, %s33
      %p44 = scmp.eq.s32.totalorder %s24, 0
      %p45 = por %p43, %p44
      %p46 = scmp.ne.s32.totalorder %s32, %s33
      %p47 = scmp.eq.s32.totalorder %s25, 1
      %p48 = por %p46, %p47
      %p50 = scmp.ne.s32.totalorder %s33, %s49
      %p51 = scmp.eq.s32.totalorder %s25, 0
      %p52 = por %p50, %p51
      %s54 = sadd.s32 %s53, 1
      %p57 = scmp.eq.s32.totalorder %s19, 1
      %p58 = scmp.ne.s32.totalorder %s53, %s55
      %p59 = scmp.eq.s32.totalorder %s19, 0
      %p60 = por %p58, %p59
      %p61 = scmp.ne.s32.totalorder %s53, %s55
      %p62 = scmp.eq.s32.totalorder %s24, 1
      %p63 = por %p61, %p62
      %p64 = scmp.ne.s32.totalorder %s55, %s56
      %p65 = scmp.eq.s32.totalorder %s24, 0
      %p66 = por %p64, %p65
      %p67 = scmp.ne.s32.totalorder %s55, %s56
      %p68 = scmp.eq.s32.totalorder %s25, 1
      %p69 = por %p67, %p68
      %p71 = scmp.ne.s32.totalorder %s56, %s70
      %p72 = scmp.eq.s32.totalorder %s25, 0
      %p73 = por %p71, %p72
      %s75 = sadd.s32 %s74, 1
      %p78 = scmp.eq.s32.totalorder %s19, 1
      %p79 = scmp.ne.s32.totalorder %s74, %s76
      %p80 = scmp.eq.s32.totalorder %s19, 0
      %p81 = por %p79, %p80
      %p82 = scmp.ne.s32.totalorder %s74, %s76
      %p83 = scmp.eq.s32.totalorder %s24, 1
      %p84 = por %p82, %p83
      %p85 = scmp.ne.s32.totalorder %s76, %s77
      %p86 = scmp.eq.s32.totalorder %s24, 0
      %p87 = por %p85, %p86
      %p88 = scmp.ne.s32.totalorder %s76, %s77
      %p89 = scmp.eq.s32.totalorder %s25, 1
      %p90 = por %p88, %p89
      %p92 = scmp.ne.s32.totalorder %s77, %s91
      %p93 = scmp.eq.s32.totalorder %s25, 0
      %p94 = por %p92, %p93
      %s96 = sadd.s32 %s95, 1
      %p99 = scmp.eq.s32.totalorder %s19, 1
      %p100 = scmp.ne.s32.totalorder %s95, %s97
      %p101 = scmp.eq.s32.totalorder %s19, 0
      %p102 = por %p100, %p101
      %p103 = scmp.ne.s32.totalorder %s95, %s97
      %p104 = scmp.eq.s32.totalorder %s24, 1
      %p105 = por %p103, %p104
      %p106 = scmp.ne.s32.totalorder %s97, %s98
      %p107 = scmp.eq.s32.totalorder %s24, 0
      %p108 = por %p106, %p107
      %p109 = scmp.ne.s32.totalorder %s97, %s98
      %p110 = scmp.eq.s32.totalorder %s25, 1
      %p111 = por %p109, %p110
      %p113 = scmp.ne.s32.totalorder %s98, %s112
      %p114 = scmp.eq.s32.totalorder %s25, 0
      %p115 = por %p113, %p114
      %s117 = sadd.s32 %s116, 1
      %p120 = scmp.eq.s32.totalorder %s19, 1
      %p121 = scmp.ne.s32.totalorder %s116, %s118
      %p122 = scmp.eq.s32.totalorder %s19, 0
      %p123 = por %p121, %p122
      %p124 = scmp.ne.s32.totalorder %s116, %s118
      %p125 = scmp.eq.s32.totalorder %s24, 1
      %p126 = por %p124, %p125
      %p127 = scmp.ne.s32.totalorder %s118, %s119
      %p128 = scmp.eq.s32.totalorder %s24, 0
      %p129 = por %p127, %p128
      %p130 = scmp.ne.s32.totalorder %s118, %s119
      %p131 = scmp.eq.s32.totalorder %s25, 1
      %p132 = por %p130, %p131
      %p134 = scmp.ne.s32.totalorder %s119, %s133
      %p135 = scmp.eq.s32.totalorder %s25, 0
      %p136 = por %p134, %p135
      %s138 = sadd.s32 %s137, 1
      %p141 = scmp.eq.s32.totalorder %s19, 1
      %p142 = scmp.ne.s32.totalorder %s137, %s139
      %p143 = scmp.eq.s32.totalorder %s19, 0
      %p144 = por %p142, %p143
      %p145 = scmp.ne.s32.totalorder %s137, %s139
      %p146 = scmp.eq.s32.totalorder %s24, 1
      %p147 = por %p145, %p146
      %p148 = scmp.ne.s32.totalorder %s139, %s140
      %p149 = scmp.eq.s32.totalorder %s24, 0
      %p150 = por %p148, %p149
      %p151 = scmp.ne.s32.totalorder %s139, %s140
      %p152 = scmp.eq.s32.totalorder %s25, 1
      %p153 = por %p151, %p152
      %p155 = scmp.ne.s32.totalorder %s140, %s154
      %p156 = scmp.eq.s32.totalorder %s25, 0
      %p157 = por %p155, %p156
      %s159 = sadd.s32 %s158, 1
      %p162 = scmp.eq.s32.totalorder %s19, 1
      %p163 = scmp.ne.s32.totalorder %s158, %s160
      %p164 = scmp.eq.s32.totalorder %s19, 0
      %p165 = por %p163, %p164
      %p166 = scmp.ne.s32.totalorder %s158, %s160
      %p167 = scmp.eq.s32.totalorder %s24, 1
      %p168 = por %p166, %p167
      %p169 = scmp.ne.s32.totalorder %s160, %s161
      %p170 = scmp.eq.s32.totalorder %s24, 0
      %p171 = por %p169, %p170
      %p172 = scmp.ne.s32.totalorder %s160, %s161
      %p173 = scmp.eq.s32.totalorder %s25, 1
      %p174 = por %p172, %p173
      %p176 = scmp.ne.s32.totalorder %s161, %s175
      %p177 = scmp.eq.s32.totalorder %s25, 0
      %p178 = por %p176, %p177
      %s180 = sadd.s32 %s179, 1
      %p183 = scmp.eq.s32.totalorder %s19, 1
      %p184 = scmp.ne.s32.totalorder %s179, %s181
      %p185 = scmp.eq.s32.totalorder %s19, 0
      %p186 = por %p184, %p185
      %p187 = scmp.ne.s32.totalorder %s179, %s181
      %p188 = scmp.eq.s32.totalorder %s24, 1
      %p189 = por %p187, %p188
      %p190 = scmp.ne.s32.totalorder %s181, %s182
      %p191 = scmp.eq.s32.totalorder %s24, 0
      %p192 = por %p190, %p191
      %p193 = scmp.ne.s32.totalorder %s181, %s182
      %p194 = scmp.eq.s32.totalorder %s25, 1
      %p195 = por %p193, %p194
      %p197 = scmp.ne.s32.totalorder %s182, %s196
      %p198 = scmp.eq.s32.totalorder %s25, 0
      %p199 = por %p197, %p198
      %s201 = sadd.s32 %s200, 1
      %p204 = scmp.eq.s32.totalorder %s19, 1
      %p205 = scmp.ne.s32.totalorder %s200, %s202
      %p206 = scmp.eq.s32.totalorder %s19, 0
      %p207 = por %p205, %p206
      %p208 = scmp.ne.s32.totalorder %s200, %s202
      %p209 = scmp.eq.s32.totalorder %s24, 1
      %p210 = por %p208, %p209
      %p211 = scmp.ne.s32.totalorder %s202, %s203
      %p212 = scmp.eq.s32.totalorder %s24, 0
      %p213 = por %p211, %p212
      %p214 = scmp.ne.s32.totalorder %s202, %s203
      %p215 = scmp.eq.s32.totalorder %s25, 1
      %p216 = por %p214, %p215
      %p218 = scmp.ne.s32.totalorder %s203, %s217
      %p219 = scmp.eq.s32.totalorder %s25, 0
      %p220 = por %p218, %p219
      %s222 = sadd.s32 %s221, 1
      %p225 = scmp.eq.s32.totalorder %s19, 1
      %p226 = scmp.ne.s32.totalorder %s221, %s223
      %p227 = scmp.eq.s32.totalorder %s19, 0
      %p228 = por %p226, %p227
      %p229 = scmp.ne.s32.totalorder %s221, %s223
      %p230 = scmp.eq.s32.totalorder %s24, 1
      %p231 = por %p229, %p230
      %p232 = scmp.ne.s32.totalorder %s223, %s224
      %p233 = scmp.eq.s32.totalorder %s24, 0
      %p234 = por %p232, %p233
      %p235 = scmp.ne.s32.totalorder %s223, %s224
      %p236 = scmp.eq.s32.totalorder %s25, 1
      %p237 = por %p235, %p236
      %p239 = scmp.ne.s32.totalorder %s224, %s238
      %p240 = scmp.eq.s32.totalorder %s25, 0
      %p241 = por %p239, %p240
      %s242 = ssub.s32 %s19, %s26
      %p243 = scmp.eq.s32.totalorder %s242, 0
      %s245 = sadd.s32 %s244, 1
      %s246 = scalar_select %p243, %s244, %s245
      %p249 = pneg %p243
      %p250 = scmp.eq.s32.totalorder %s19, 1
      %p251 = por %p249, %p250
      %p252 = scmp.ne.s32.totalorder %s244, %s247
      %p253 = scmp.eq.s32.totalorder %s19, 0
      %p254 = por %p252, %p253
      %p255 = scmp.ne.s32.totalorder %s244, %s247
      %p256 = scmp.eq.s32.totalorder %s24, 1
      %p257 = por %p255, %p256
      %p258 = scmp.ne.s32.totalorder %s247, %s248
      %p259 = scmp.eq.s32.totalorder %s24, 0
      %p260 = por %p258, %p259
      %p261 = scmp.ne.s32.totalorder %s247, %s248
      %p262 = scmp.eq.s32.totalorder %s25, 1
      %p263 = por %p261, %p262
      %p265 = scmp.ne.s32.totalorder %s248, %s264
      %p266 = scmp.eq.s32.totalorder %s25, 0
      %p267 = por %p265, %p266
      %p268 = scmp.le.s32.totalorder 1, %s19
      %p269 = scmp.lt.s32.totalorder %s19, 3
      %p270 = pnand %p268, %p269
      %p271 = pneg %p270
      // Predicated region
      $region9: #{snake_convnet_sm_forward.1} parent=5 // pred_check
        _
      $region10: #{snake_convnet_sm_forward.1} parent=5 // pred_check_branch
        %273 = sbr.rel (%p270) target = $region12
      $region11: #{snake_convnet_sm_forward.1} parent=5 // pred_region
        %s274 = ssub.s32 %s19, 1
        // Predicated region
        $region13: #{snake_convnet_sm_forward.1} parent=11 // pred_check
          %p275 = pneg %p66
        $region14: #{snake_convnet_sm_forward.1} parent=11 // pred_check_branch
          %277 = sbr.rel (%p275) target = $region16
        $region15: #{snake_convnet_sm_forward.1} parent=11 // pred_region
          _
        $region16: #{snake_convnet_sm_forward.1} parent=11 // pred_fallthru
          _
        // Predicated region
        $region17: #{snake_convnet_sm_forward.1} parent=11 // pred_check
          %p278 = pneg %p87
        $region18: #{snake_convnet_sm_forward.1} parent=11 // pred_check_branch
          %280 = sbr.rel (%p278) target = $region20
        $region19: #{snake_convnet_sm_forward.1} parent=11 // pred_region
          _
        $region20: #{snake_convnet_sm_forward.1} parent=11 // pred_fallthru
          _
        // Predicated region
        $region21: #{snake_convnet_sm_forward.1} parent=11 // pred_check
          %p281 = pneg %p108
        $region22: #{snake_convnet_sm_forward.1} parent=11 // pred_check_branch
          %283 = sbr.rel (%p281) target = $region24
        $region23: #{snake_convnet_sm_forward.1} parent=11 // pred_region
          _
        $region24: #{snake_convnet_sm_forward.1} parent=11 // pred_fallthru
          _
        // Predicated region
        $region25: #{snake_convnet_sm_forward.1} parent=11 // pred_check
          %p284 = pneg %p129
        $region26: #{snake_convnet_sm_forward.1} parent=11 // pred_check_branch
          %286 = sbr.rel (%p284) target = $region28
        $region27: #{snake_convnet_sm_forward.1} parent=11 // pred_region
          _
        $region28: #{snake_convnet_sm_forward.1} parent=11 // pred_fallthru
          _
        // Predicated region
        $region29: #{snake_convnet_sm_forward.1} parent=11 // pred_check
          %p287 = pneg %p150
        $region30: #{snake_convnet_sm_forward.1} parent=11 // pred_check_branch
          %289 = sbr.rel (%p287) target = $region32
        $region31: #{snake_convnet_sm_forward.1} parent=11 // pred_region
          _
        $region32: #{snake_convnet_sm_forward.1} parent=11 // pred_fallthru
          _
        // Predicated region
        $region33: #{snake_convnet_sm_forward.1} parent=11 // pred_check
          %p290 = pneg %p171
        $region34: #{snake_convnet_sm_forward.1} parent=11 // pred_check_branch
          %292 = sbr.rel (%p290) target = $region36
        $region35: #{snake_convnet_sm_forward.1} parent=11 // pred_region
          _
        $region36: #{snake_convnet_sm_forward.1} parent=11 // pred_fallthru
          _
        // Predicated region
        $region37: #{snake_convnet_sm_forward.1} parent=11 // pred_check
          %p293 = pneg %p192
        $region38: #{snake_convnet_sm_forward.1} parent=11 // pred_check_branch
          %295 = sbr.rel (%p293) target = $region40
        $region39: #{snake_convnet_sm_forward.1} parent=11 // pred_region
          _
        $region40: #{snake_convnet_sm_forward.1} parent=11 // pred_fallthru
          _
        // Predicated region
        $region41: #{snake_convnet_sm_forward.1} parent=11 // pred_check
          %p296 = pneg %p213
        $region42: #{snake_convnet_sm_forward.1} parent=11 // pred_check_branch
          %298 = sbr.rel (%p296) target = $region44
        $region43: #{snake_convnet_sm_forward.1} parent=11 // pred_region
          _
        $region44: #{snake_convnet_sm_forward.1} parent=11 // pred_fallthru
          _
        // Predicated region
        $region45: #{snake_convnet_sm_forward.1} parent=11 // pred_check
          %p299 = pneg %p234
        $region46: #{snake_convnet_sm_forward.1} parent=11 // pred_check_branch
          %301 = sbr.rel (%p299) target = $region48
        $region47: #{snake_convnet_sm_forward.1} parent=11 // pred_region
          _
        $region48: #{snake_convnet_sm_forward.1} parent=11 // pred_fallthru
          _
      $region12: #{snake_convnet_sm_forward.1} parent=5 // pred_fallthru
        _
      %p302 = scmp.lt.s32.totalorder %s19, 2
      // Predicated region
      $region49: #{snake_convnet_sm_forward.1} parent=5 // pred_check
        %p303 = pneg %p302
      $region50: #{snake_convnet_sm_forward.1} parent=5 // pred_check_branch
        %305 = sbr.rel (%p303) target = $region52
      $region51: #{snake_convnet_sm_forward.1} parent=5 // pred_region
        // Predicated region
        $region53: #{snake_convnet_sm_forward.1} parent=51 // pred_check
          %p306 = pneg %p39
        $region54: #{snake_convnet_sm_forward.1} parent=51 // pred_check_branch
          %308 = sbr.rel (%p306) target = $region56
        $region55: #{snake_convnet_sm_forward.1} parent=51 // pred_region
          %p309 = scmp.lt.s32.totalorder %s19, 1
          %s310 = scalar_select %p309, %s19, 1
          %s311 = smul.addr %s310, 54
          %s312 = smul.addr %s311, 4
          %s313 = scalar_lea.vmem %s0, %s312
        $region56: #{snake_convnet_sm_forward.1} parent=51 // pred_fallthru
          _
      $region52: #{snake_convnet_sm_forward.1} parent=5 // pred_fallthru
        _
      %p314 = scmp.le.s32.totalorder 1, %s19
      %p315 = scmp.lt.s32.totalorder %s19, 3
      %p316 = pnand %p314, %p315
      %p317 = pneg %p316
      // Predicated region
      $region57: #{snake_convnet_sm_forward.1} parent=5 // pred_check
        _
      $region58: #{snake_convnet_sm_forward.1} parent=5 // pred_check_branch
        %319 = sbr.rel (%p316) target = $region60
      $region59: #{snake_convnet_sm_forward.1} parent=5 // pred_region
        %s320 = ssub.s32 %s19, 1
        %p321 = scmp.lt.s32.totalorder %s24, 1
        %s322 = scalar_select %p321, %s24, 1
        %s323 = smul.addr %s322, 54
        %s324 = smul.addr %s323, 4
        %s325 = scalar_lea.vmem %s0, %s324
        %p326 = pneg %p45
        %p327 = pneg %p42
        %p328 = pneg %p66
        %p329 = pneg %p63
        %p330 = pneg %p87
        %p331 = pneg %p84
        %p332 = pneg %p108
        %p333 = pneg %p105
        %p334 = pneg %p129
        %p335 = pneg %p126
        %p336 = pneg %p150
        %p337 = pneg %p147
        %p338 = pneg %p171
        %p339 = pneg %p168
        %p340 = pneg %p192
        %p341 = pneg %p189
        %p342 = pneg %p213
        %p343 = pneg %p210
        %p344 = pneg %p234
        %p345 = pneg %p231
        %p346 = pneg %p260
        %p347 = pneg %p257
        %s348 = sand.u32 %s247, 1
        %s349 = scalar_lea.sflag [#allocation7], %s348
        %s350 = sand.u32 %s247, 1
        %s351 = scalar_lea.vmem [#allocation6], %s350
        %p352 = scmp.lt.s32.totalorder %s24, 1
        %s353 = scalar_select %p352, %s24, 1
        %s354 = smul.addr %s353, 54
        %s355 = smul.addr %s354, 4
        %s356 = scalar_lea.vmem %s0, %s355
        %v358 = vld [vmem:[%s356] sm:$0xf]
        %v359 = vld [vmem:[%s356 + $0x4] sm:$0xf]
        %v360 = vld [vmem:[%s356 + $0xc] sm:$0xf]
        %v361 = vld [vmem:[%s356 + $0x10] sm:$0xf]
        %v362 = vld [vmem:[%s356 + $0x18] sm:$0xf]
        %v363 = vld [vmem:[%s356 + $0x1c] sm:$0xf]
        %v364 = vld [vmem:[%s356 + $0x24] sm:$0xf]
        %v365 = vld [vmem:[%s356 + $0x28] sm:$0xf]
        %v366 = vld [vmem:[%s356 + $0x30] sm:$0xf]
        %v367 = vld [vmem:[%s356 + $0x34] sm:$0xf]
        %v368 = vld [vmem:[%s356 + $0x3c] sm:$0xf]
        %v369 = vld [vmem:[%s356 + $0x40] sm:$0xf]
        %v370 = vld [vmem:[%s356 + $0x48] sm:$0xf]
        %v371 = vld [vmem:[%s356 + $0x4c] sm:$0xf]
        %v372 = vld [vmem:[%s356 + $0x54] sm:$0xf]
        %v373 = vld [vmem:[%s356 + $0x58] sm:$0xf]
        %v374 = vld [vmem:[%s356 + $0x60] sm:$0xf]
        %v375 = vld [vmem:[%s356 + $0x64] sm:$0xf]
        %v376 = vld [vmem:[%s356 + $0x6c] sm:$0xf]
        %v377 = vld [vmem:[%s356 + $0x70] sm:$0xf]
        %v378 = vld [vmem:[%s356 + $0x78] sm:$0xf]
        %v379 = vld [vmem:[%s356 + $0x7c] sm:$0xf]
        %v380 = vld [vmem:[%s356 + $0x84] sm:$0xf]
        %v381 = vld [vmem:[%s356 + $0x88] sm:$0xf]
        %v382 = vld [vmem:[%s356 + $0x90] sm:$0xf]
        %v383 = vld [vmem:[%s356 + $0x94] sm:$0xf]
        %v384 = vld [vmem:[%s356 + $0x9c] sm:$0xf]
        %v385 = vld [vmem:[%s356 + $0xa0] sm:$0xf]
        %v386 = vld [vmem:[%s356 + $0xa8] sm:$0xf]
        %v387 = vld [vmem:[%s356 + $0xac] sm:$0xf]
        %v388 = vld [vmem:[%s356 + $0xb4] sm:$0xf]
        %v389 = vld [vmem:[%s356 + $0xb8] sm:$0xf]
        %v422 = vunpack.c.l.b16 %v358
        %v423 = vunpack.c.l.b16 %v359
        %v424 = vunpack.c.l.b16 %v360
        %v425 = vunpack.c.l.b16 %v361
        %v426 = vunpack.c.l.b16 %v362
        %v427 = vunpack.c.l.b16 %v363
        %v428 = vunpack.c.l.b16 %v364
        %v429 = vunpack.c.l.b16 %v365
        %v430 = vunpack.c.l.b16 %v366
        %v431 = vunpack.c.l.b16 %v367
        %v432 = vunpack.c.l.b16 %v368
        %v433 = vunpack.c.l.b16 %v369
        %v434 = vunpack.c.l.b16 %v370
        %v435 = vunpack.c.l.b16 %v371
        %v436 = vunpack.c.l.b16 %v372
        %v437 = vunpack.c.l.b16 %v373
        %v438 = vunpack.c.l.b16 %v374
        %v439 = vunpack.c.l.b16 %v375
        %v440 = vunpack.c.l.b16 %v376
        %v441 = vunpack.c.l.b16 %v377
        %v442 = vunpack.c.l.b16 %v378
        %v443 = vunpack.c.l.b16 %v379
        %v444 = vunpack.c.l.b16 %v380
        %v445 = vunpack.c.l.b16 %v381
        %v446 = vunpack.c.l.b16 %v382
        %v447 = vunpack.c.l.b16 %v383
        %v448 = vunpack.c.l.b16 %v384
        %v449 = vunpack.c.l.b16 %v385
        %v450 = vunpack.c.l.b16 %v386
        %v451 = vunpack.c.l.b16 %v387
        %v452 = vunpack.c.l.b16 %v388
        %v453 = vunpack.c.l.b16 %v389
        %v454 = vpack.c.b16 %v423, %v422
        %v455 = vpack.c.b16 %v425, %v424
        %v456 = vpack.c.b16 %v427, %v426
        %v457 = vpack.c.b16 %v429, %v428
        %v458 = vpack.c.b16 %v431, %v430
        %v459 = vpack.c.b16 %v433, %v432
        %v460 = vpack.c.b16 %v435, %v434
        %v461 = vpack.c.b16 %v437, %v436
        %v462 = vpack.c.b16 %v439, %v438
        %v463 = vpack.c.b16 %v441, %v440
        %v464 = vpack.c.b16 %v443, %v442
        %v465 = vpack.c.b16 %v445, %v444
        %v466 = vpack.c.b16 %v447, %v446
        %v467 = vpack.c.b16 %v449, %v448
        %v468 = vpack.c.b16 %v451, %v450
        %v469 = vpack.c.b16 %v453, %v452
        %vm486 = vcmask 31744
        %487 = vst.msk [vmem:[#allocation2] sm:$0xff] %vm486, %v454
        %488 = vst.msk [vmem:[#allocation2 + $0x8] sm:$0xff] %vm486, %v455
        %489 = vst.msk [vmem:[#allocation2 + $0x10] sm:$0xff] %vm486, %v456
        %490 = vst.msk [vmem:[#allocation2 + $0x18] sm:$0xff] %vm486, %v457
        %491 = vst.msk [vmem:[#allocation2 + $0x20] sm:$0xff] %vm486, %v458
        %492 = vst.msk [vmem:[#allocation2 + $0x28] sm:$0xff] %vm486, %v459
        %493 = vst.msk [vmem:[#allocation2 + $0x30] sm:$0xff] %vm486, %v460
        %494 = vst.msk [vmem:[#allocation2 + $0x38] sm:$0xff] %vm486, %v461
        %495 = vst.msk [vmem:[#allocation2 + $0x40] sm:$0xff] %vm486, %v462
        %496 = vst.msk [vmem:[#allocation2 + $0x48] sm:$0xff] %vm486, %v463
        %497 = vst.msk [vmem:[#allocation2 + $0x50] sm:$0xff] %vm486, %v464
        %498 = vst.msk [vmem:[#allocation2 + $0x58] sm:$0xff] %vm486, %v465
        %499 = vst.msk [vmem:[#allocation2 + $0x60] sm:$0xff] %vm486, %v466
        %500 = vst.msk [vmem:[#allocation2 + $0x68] sm:$0xff] %vm486, %v467
        %501 = vst.msk [vmem:[#allocation2 + $0x70] sm:$0xff] %vm486, %v468
        %502 = vst.msk [vmem:[#allocation2 + $0x78] sm:$0xff] %vm486, %v469
        %v503 = vld [vmem:[%s356] sm:$0xf]
        %v504 = vld [vmem:[%s356 + $0x4] sm:$0xf]
        %v505 = vld [vmem:[%s356 + $0x8] sm:$0x1]
        %v506 = vld [vmem:[%s356 + $0xc] sm:$0xf]
        %v507 = vld [vmem:[%s356 + $0x10] sm:$0xf]
        %v508 = vld [vmem:[%s356 + $0x14] sm:$0x1]
        %v509 = vld [vmem:[%s356 + $0x18] sm:$0xf]
        %v510 = vld [vmem:[%s356 + $0x1c] sm:$0xf]
        %v511 = vld [vmem:[%s356 + $0x20] sm:$0x1]
        %v512 = vld [vmem:[%s356 + $0x24] sm:$0xf]
        %v513 = vld [vmem:[%s356 + $0x28] sm:$0xf]
        %v514 = vld [vmem:[%s356 + $0x2c] sm:$0x1]
        %v515 = vld [vmem:[%s356 + $0x30] sm:$0xf]
        %v516 = vld [vmem:[%s356 + $0x34] sm:$0xf]
        %v517 = vld [vmem:[%s356 + $0x38] sm:$0x1]
        %v518 = vld [vmem:[%s356 + $0x3c] sm:$0xf]
        %v519 = vld [vmem:[%s356 + $0x40] sm:$0xf]
        %v520 = vld [vmem:[%s356 + $0x44] sm:$0x1]
        %v521 = vld [vmem:[%s356 + $0x48] sm:$0xf]
        %v522 = vld [vmem:[%s356 + $0x4c] sm:$0xf]
        %v523 = vld [vmem:[%s356 + $0x50] sm:$0x1]
        %v524 = vld [vmem:[%s356 + $0x54] sm:$0xf]
        %v525 = vld [vmem:[%s356 + $0x58] sm:$0xf]
        %v526 = vld [vmem:[%s356 + $0x5c] sm:$0x1]
        %v527 = vld [vmem:[%s356 + $0x60] sm:$0xf]
        %v528 = vld [vmem:[%s356 + $0x64] sm:$0xf]
        %v529 = vld [vmem:[%s356 + $0x68] sm:$0x1]
        %v530 = vld [vmem:[%s356 + $0x6c] sm:$0xf]
        %v531 = vld [vmem:[%s356 + $0x70] sm:$0xf]
        %v532 = vld [vmem:[%s356 + $0x74] sm:$0x1]
        %v533 = vld [vmem:[%s356 + $0x78] sm:$0xf]
        %v534 = vld [vmem:[%s356 + $0x7c] sm:$0xf]
        %v535 = vld [vmem:[%s356 + $0x80] sm:$0x1]
        %v536 = vld [vmem:[%s356 + $0x84] sm:$0xf]
        %v537 = vld [vmem:[%s356 + $0x88] sm:$0xf]
        %v538 = vld [vmem:[%s356 + $0x8c] sm:$0x1]
        %v539 = vld [vmem:[%s356 + $0x90] sm:$0xf]
        %v540 = vld [vmem:[%s356 + $0x94] sm:$0xf]
        %v541 = vld [vmem:[%s356 + $0x98] sm:$0x1]
        %v542 = vld [vmem:[%s356 + $0x9c] sm:$0xf]
        %v543 = vld [vmem:[%s356 + $0xa0] sm:$0xf]
        %v544 = vld [vmem:[%s356 + $0xa4] sm:$0x1]
        %v545 = vld [vmem:[%s356 + $0xa8] sm:$0xf]
        %v546 = vld [vmem:[%s356 + $0xac] sm:$0xf]
        %v547 = vld [vmem:[%s356 + $0xb0] sm:$0x1]
        %v548 = vld [vmem:[%s356 + $0xb4] sm:$0xf]
        %v549 = vld [vmem:[%s356 + $0xb8] sm:$0xf]
        %v550 = vld [vmem:[%s356 + $0xbc] sm:$0x1]
        %vm551 = vsmask.f32 3328
        %vm552 = vsmask.f32 7440
        %vm553 = vmor %vm551, %vm552
        %v555 = vshrl.u32 %v503, 16
        %v557 = vrot.slane %v555, 4
        %v558 = vshll.u32 %v503, 16
        %v560 = vrot.slane %v558, 5
        %v561 = vor.u32 %v557, %v560
        %v562 = vrot.slane %v561, 4
        %v564 = vshll.u32 %v504, 16
        %v566 = vrot.slane %v564, 5
        %v567 = vsel %vm553, %v562, %v566
        %v568 = vshrl.u32 %v504, 16
        %v570 = vrot.slane %v568, 4
        %v571 = vor.u32 %v570, %v566
        %v572 = vrot.slane %v571, 4
        %v574 = vshll.u32 %v505, 16
        %v576 = vrot.slane %v574, 5
        %v577 = vsel %vm553, %v572, %v576
        %v579 = vshrl.u32 %v506, 16
        %v581 = vrot.slane %v579, 4
        %v582 = vshll.u32 %v506, 16
        %v584 = vrot.slane %v582, 5
        %v585 = vor.u32 %v581, %v584
        %v586 = vrot.slane %v585, 4
        %v588 = vshll.u32 %v507, 16
        %v590 = vrot.slane %v588, 5
        %v591 = vsel %vm553, %v586, %v590
        %v592 = vshrl.u32 %v507, 16
        %v594 = vrot.slane %v592, 4
        %v595 = vor.u32 %v594, %v590
        %v596 = vrot.slane %v595, 4
        %v598 = vshll.u32 %v508, 16
        %v600 = vrot.slane %v598, 5
        %v601 = vsel %vm553, %v596, %v600
        %v603 = vshrl.u32 %v509, 16
        %v605 = vrot.slane %v603, 4
        %v606 = vshll.u32 %v509, 16
        %v608 = vrot.slane %v606, 5
        %v609 = vor.u32 %v605, %v608
        %v610 = vrot.slane %v609, 4
        %v612 = vshll.u32 %v510, 16
        %v614 = vrot.slane %v612, 5
        %v615 = vsel %vm553, %v610, %v614
        %v616 = vshrl.u32 %v510, 16
        %v618 = vrot.slane %v616, 4
        %v619 = vor.u32 %v618, %v614
        %v620 = vrot.slane %v619, 4
        %v622 = vshll.u32 %v511, 16
        %v624 = vrot.slane %v622, 5
        %v625 = vsel %vm553, %v620, %v624
        %v627 = vshrl.u32 %v512, 16
        %v629 = vrot.slane %v627, 4
        %v630 = vshll.u32 %v512, 16
        %v632 = vrot.slane %v630, 5
        %v633 = vor.u32 %v629, %v632
        %v634 = vrot.slane %v633, 4
        %v636 = vshll.u32 %v513, 16
        %v638 = vrot.slane %v636, 5
        %v639 = vsel %vm553, %v634, %v638
        %v640 = vshrl.u32 %v513, 16
        %v642 = vrot.slane %v640, 4
        %v643 = vor.u32 %v642, %v638
        %v644 = vrot.slane %v643, 4
        %v646 = vshll.u32 %v514, 16
        %v648 = vrot.slane %v646, 5
        %v649 = vsel %vm553, %v644, %v648
        %v651 = vshrl.u32 %v515, 16
        %v653 = vrot.slane %v651, 4
        %v654 = vshll.u32 %v515, 16
        %v656 = vrot.slane %v654, 5
        %v657 = vor.u32 %v653, %v656
        %v658 = vrot.slane %v657, 4
        %v660 = vshll.u32 %v516, 16
        %v662 = vrot.slane %v660, 5
        %v663 = vsel %vm553, %v658, %v662
        %v664 = vshrl.u32 %v516, 16
        %v666 = vrot.slane %v664, 4
        %v667 = vor.u32 %v666, %v662
        %v668 = vrot.slane %v667, 4
        %v670 = vshll.u32 %v517, 16
        %v672 = vrot.slane %v670, 5
        %v673 = vsel %vm553, %v668, %v672
        %v675 = vshrl.u32 %v518, 16
        %v677 = vrot.slane %v675, 4
        %v678 = vshll.u32 %v518, 16
        %v680 = vrot.slane %v678, 5
        %v681 = vor.u32 %v677, %v680
        %v682 = vrot.slane %v681, 4
        %v684 = vshll.u32 %v519, 16
        %v686 = vrot.slane %v684, 5
        %v687 = vsel %vm553, %v682, %v686
        %v688 = vshrl.u32 %v519, 16
        %v690 = vrot.slane %v688, 4
        %v691 = vor.u32 %v690, %v686
        %v692 = vrot.slane %v691, 4
        %v694 = vshll.u32 %v520, 16
        %v696 = vrot.slane %v694, 5
        %v697 = vsel %vm553, %v692, %v696
        %v699 = vshrl.u32 %v521, 16
        %v701 = vrot.slane %v699, 4
        %v702 = vshll.u32 %v521, 16
        %v704 = vrot.slane %v702, 5
        %v705 = vor.u32 %v701, %v704
        %v706 = vrot.slane %v705, 4
        %v708 = vshll.u32 %v522, 16
        %v710 = vrot.slane %v708, 5
        %v711 = vsel %vm553, %v706, %v710
        %v712 = vshrl.u32 %v522, 16
        %v714 = vrot.slane %v712, 4
        %v715 = vor.u32 %v714, %v710
        %v716 = vrot.slane %v715, 4
        %v718 = vshll.u32 %v523, 16
        %v720 = vrot.slane %v718, 5
        %v721 = vsel %vm553, %v716, %v720
        %v723 = vshrl.u32 %v524, 16
        %v725 = vrot.slane %v723, 4
        %v726 = vshll.u32 %v524, 16
        %v728 = vrot.slane %v726, 5
        %v729 = vor.u32 %v725, %v728
        %v730 = vrot.slane %v729, 4
        %v732 = vshll.u32 %v525, 16
        %v734 = vrot.slane %v732, 5
        %v735 = vsel %vm553, %v730, %v734
        %v736 = vshrl.u32 %v525, 16
        %v738 = vrot.slane %v736, 4
        %v739 = vor.u32 %v738, %v734
        %v740 = vrot.slane %v739, 4
        %v742 = vshll.u32 %v526, 16
        %v744 = vrot.slane %v742, 5
        %v745 = vsel %vm553, %v740, %v744
        %v747 = vshrl.u32 %v527, 16
        %v749 = vrot.slane %v747, 4
        %v750 = vshll.u32 %v527, 16
        %v752 = vrot.slane %v750, 5
        %v753 = vor.u32 %v749, %v752
        %v754 = vrot.slane %v753, 4
        %v756 = vshll.u32 %v528, 16
        %v758 = vrot.slane %v756, 5
        %v759 = vsel %vm553, %v754, %v758
        %v760 = vshrl.u32 %v528, 16
        %v762 = vrot.slane %v760, 4
        %v763 = vor.u32 %v762, %v758
        %v764 = vrot.slane %v763, 4
        %v766 = vshll.u32 %v529, 16
        %v768 = vrot.slane %v766, 5
        %v769 = vsel %vm553, %v764, %v768
        %v771 = vshrl.u32 %v530, 16
        %v773 = vrot.slane %v771, 4
        %v774 = vshll.u32 %v530, 16
        %v776 = vrot.slane %v774, 5
        %v777 = vor.u32 %v773, %v776
        %v778 = vrot.slane %v777, 4
        %v780 = vshll.u32 %v531, 16
        %v782 = vrot.slane %v780, 5
        %v783 = vsel %vm553, %v778, %v782
        %v784 = vshrl.u32 %v531, 16
        %v786 = vrot.slane %v784, 4
        %v787 = vor.u32 %v786, %v782
        %v788 = vrot.slane %v787, 4
        %v790 = vshll.u32 %v532, 16
        %v792 = vrot.slane %v790, 5
        %v793 = vsel %vm553, %v788, %v792
        %v795 = vshrl.u32 %v533, 16
        %v797 = vrot.slane %v795, 4
        %v798 = vshll.u32 %v533, 16
        %v800 = vrot.slane %v798, 5
        %v801 = vor.u32 %v797, %v800
        %v802 = vrot.slane %v801, 4
        %v804 = vshll.u32 %v534, 16
        %v806 = vrot.slane %v804, 5
        %v807 = vsel %vm553, %v802, %v806
        %v808 = vshrl.u32 %v534, 16
        %v810 = vrot.slane %v808, 4
        %v811 = vor.u32 %v810, %v806
        %v812 = vrot.slane %v811, 4
        %v814 = vshll.u32 %v535, 16
        %v816 = vrot.slane %v814, 5
        %v817 = vsel %vm553, %v812, %v816
        %v819 = vshrl.u32 %v536, 16
        %v821 = vrot.slane %v819, 4
        %v822 = vshll.u32 %v536, 16
        %v824 = vrot.slane %v822, 5
        %v825 = vor.u32 %v821, %v824
        %v826 = vrot.slane %v825, 4
        %v828 = vshll.u32 %v537, 16
        %v830 = vrot.slane %v828, 5
        %v831 = vsel %vm553, %v826, %v830
        %v832 = vshrl.u32 %v537, 16
        %v834 = vrot.slane %v832, 4
        %v835 = vor.u32 %v834, %v830
        %v836 = vrot.slane %v835, 4
        %v838 = vshll.u32 %v538, 16
        %v840 = vrot.slane %v838, 5
        %v841 = vsel %vm553, %v836, %v840
        %v843 = vshrl.u32 %v539, 16
        %v845 = vrot.slane %v843, 4
        %v846 = vshll.u32 %v539, 16
        %v848 = vrot.slane %v846, 5
        %v849 = vor.u32 %v845, %v848
        %v850 = vrot.slane %v849, 4
        %v852 = vshll.u32 %v540, 16
        %v854 = vrot.slane %v852, 5
        %v855 = vsel %vm553, %v850, %v854
        %v856 = vshrl.u32 %v540, 16
        %v858 = vrot.slane %v856, 4
        %v859 = vor.u32 %v858, %v854
        %v860 = vrot.slane %v859, 4
        %v862 = vshll.u32 %v541, 16
        %v864 = vrot.slane %v862, 5
        %v865 = vsel %vm553, %v860, %v864
        %v867 = vshrl.u32 %v542, 16
        %v869 = vrot.slane %v867, 4
        %v870 = vshll.u32 %v542, 16
        %v872 = vrot.slane %v870, 5
        %v873 = vor.u32 %v869, %v872
        %v874 = vrot.slane %v873, 4
        %v876 = vshll.u32 %v543, 16
        %v878 = vrot.slane %v876, 5
        %v879 = vsel %vm553, %v874, %v878
        %v880 = vshrl.u32 %v543, 16
        %v882 = vrot.slane %v880, 4
        %v883 = vor.u32 %v882, %v878
        %v884 = vrot.slane %v883, 4
        %v886 = vshll.u32 %v544, 16
        %v888 = vrot.slane %v886, 5
        %v889 = vsel %vm553, %v884, %v888
        %v891 = vshrl.u32 %v545, 16
        %v893 = vrot.slane %v891, 4
        %v894 = vshll.u32 %v545, 16
        %v896 = vrot.slane %v894, 5
        %v897 = vor.u32 %v893, %v896
        %v898 = vrot.slane %v897, 4
        %v900 = vshll.u32 %v546, 16
        %v902 = vrot.slane %v900, 5
        %v903 = vsel %vm553, %v898, %v902
        %v904 = vshrl.u32 %v546, 16
        %v906 = vrot.slane %v904, 4
        %v907 = vor.u32 %v906, %v902
        %v908 = vrot.slane %v907, 4
        %v910 = vshll.u32 %v547, 16
        %v912 = vrot.slane %v910, 5
        %v913 = vsel %vm553, %v908, %v912
        %v915 = vshrl.u32 %v548, 16
        %v917 = vrot.slane %v915, 4
        %v918 = vshll.u32 %v548, 16
        %v920 = vrot.slane %v918, 5
        %v921 = vor.u32 %v917, %v920
        %v922 = vrot.slane %v921, 4
        %v924 = vshll.u32 %v549, 16
        %v926 = vrot.slane %v924, 5
        %v927 = vsel %vm553, %v922, %v926
        %v928 = vshrl.u32 %v549, 16
        %v930 = vrot.slane %v928, 4
        %v931 = vor.u32 %v930, %v926
        %v932 = vrot.slane %v931, 4
        %v934 = vshll.u32 %v550, 16
        %v936 = vrot.slane %v934, 5
        %v937 = vsel %vm553, %v932, %v936
        %v938 = vunpack.c.l.b16 %v567
        %v939 = vunpack.c.l.b16 %v577
        %v940 = vunpack.c.l.b16 %v591
        %v941 = vunpack.c.l.b16 %v601
        %v942 = vunpack.c.l.b16 %v615
        %v943 = vunpack.c.l.b16 %v625
        %v944 = vunpack.c.l.b16 %v639
        %v945 = vunpack.c.l.b16 %v649
        %v946 = vunpack.c.l.b16 %v663
        %v947 = vunpack.c.l.b16 %v673
        %v948 = vunpack.c.l.b16 %v687
        %v949 = vunpack.c.l.b16 %v697
        %v950 = vunpack.c.l.b16 %v711
        %v951 = vunpack.c.l.b16 %v721
        %v952 = vunpack.c.l.b16 %v735
        %v953 = vunpack.c.l.b16 %v745
        %v954 = vunpack.c.l.b16 %v759
        %v955 = vunpack.c.l.b16 %v769
        %v956 = vunpack.c.l.b16 %v783
        %v957 = vunpack.c.l.b16 %v793
        %v958 = vunpack.c.l.b16 %v807
        %v959 = vunpack.c.l.b16 %v817
        %v960 = vunpack.c.l.b16 %v831
        %v961 = vunpack.c.l.b16 %v841
        %v962 = vunpack.c.l.b16 %v855
        %v963 = vunpack.c.l.b16 %v865
        %v964 = vunpack.c.l.b16 %v879
        %v965 = vunpack.c.l.b16 %v889
        %v966 = vunpack.c.l.b16 %v903
        %v967 = vunpack.c.l.b16 %v913
        %v968 = vunpack.c.l.b16 %v927
        %v969 = vunpack.c.l.b16 %v937
        %v970 = vpack.c.b16 %v939, %v938
        %v971 = vpack.c.b16 %v941, %v940
        %v972 = vpack.c.b16 %v943, %v942
        %v973 = vpack.c.b16 %v945, %v944
        %v974 = vpack.c.b16 %v947, %v946
        %v975 = vpack.c.b16 %v949, %v948
        %v976 = vpack.c.b16 %v951, %v950
        %v977 = vpack.c.b16 %v953, %v952
        %v978 = vpack.c.b16 %v955, %v954
        %v979 = vpack.c.b16 %v957, %v956
        %v980 = vpack.c.b16 %v959, %v958
        %v981 = vpack.c.b16 %v961, %v960
        %v982 = vpack.c.b16 %v963, %v962
        %v983 = vpack.c.b16 %v965, %v964
        %v984 = vpack.c.b16 %v967, %v966
        %v985 = vpack.c.b16 %v969, %v968
        %986 = vrot.lane.b32.xlu0 %v970, 4
        %v987 = vpop.permute.xlu0 %986
        %988 = vrot.lane.b32.xlu0 %v971, 4
        %v989 = vpop.permute.xlu0 %988
        %990 = vrot.lane.b32.xlu0 %v972, 4
        %v991 = vpop.permute.xlu0 %990
        %992 = vrot.lane.b32.xlu0 %v973, 4
        %v993 = vpop.permute.xlu0 %992
        %994 = vrot.lane.b32.xlu0 %v974, 4
        %v995 = vpop.permute.xlu0 %994
        %996 = vrot.lane.b32.xlu0 %v975, 4
        %v997 = vpop.permute.xlu0 %996
        %998 = vrot.lane.b32.xlu0 %v976, 4
        %v999 = vpop.permute.xlu0 %998
        %1000 = vrot.lane.b32.xlu0 %v977, 4
        %v1001 = vpop.permute.xlu0 %1000
        %1002 = vrot.lane.b32.xlu0 %v978, 4
        %v1003 = vpop.permute.xlu0 %1002
        %1004 = vrot.lane.b32.xlu0 %v979, 4
        %v1005 = vpop.permute.xlu0 %1004
        %1006 = vrot.lane.b32.xlu0 %v980, 4
        %v1007 = vpop.permute.xlu0 %1006
        %1008 = vrot.lane.b32.xlu0 %v981, 4
        %v1009 = vpop.permute.xlu0 %1008
        %1010 = vrot.lane.b32.xlu0 %v982, 4
        %v1011 = vpop.permute.xlu0 %1010
        %1012 = vrot.lane.b32.xlu0 %v983, 4
        %v1013 = vpop.permute.xlu0 %1012
        %1014 = vrot.lane.b32.xlu0 %v984, 4
        %v1015 = vpop.permute.xlu0 %1014
        %1016 = vrot.lane.b32.xlu0 %v985, 4
        %v1017 = vpop.permute.xlu0 %1016
        %vm1034 = vcmask 64544
        %1035 = vst.msk [vmem:[#allocation2] sm:$0xff] %vm1034, %v987
        %1036 = vst.msk [vmem:[#allocation2 + $0x8] sm:$0xff] %vm1034, %v989
        %1037 = vst.msk [vmem:[#allocation2 + $0x10] sm:$0xff] %vm1034, %v991
        %1038 = vst.msk [vmem:[#allocation2 + $0x18] sm:$0xff] %vm1034, %v993
        %1039 = vst.msk [vmem:[#allocation2 + $0x20] sm:$0xff] %vm1034, %v995
        %1040 = vst.msk [vmem:[#allocation2 + $0x28] sm:$0xff] %vm1034, %v997
        %1041 = vst.msk [vmem:[#allocation2 + $0x30] sm:$0xff] %vm1034, %v999
        %1042 = vst.msk [vmem:[#allocation2 + $0x38] sm:$0xff] %vm1034, %v1001
        %1043 = vst.msk [vmem:[#allocation2 + $0x40] sm:$0xff] %vm1034, %v1003
        %1044 = vst.msk [vmem:[#allocation2 + $0x48] sm:$0xff] %vm1034, %v1005
        %1045 = vst.msk [vmem:[#allocation2 + $0x50] sm:$0xff] %vm1034, %v1007
        %1046 = vst.msk [vmem:[#allocation2 + $0x58] sm:$0xff] %vm1034, %v1009
        %1047 = vst.msk [vmem:[#allocation2 + $0x60] sm:$0xff] %vm1034, %v1011
        %1048 = vst.msk [vmem:[#allocation2 + $0x68] sm:$0xff] %vm1034, %v1013
        %1049 = vst.msk [vmem:[#allocation2 + $0x70] sm:$0xff] %vm1034, %v1015
        %1050 = vst.msk [vmem:[#allocation2 + $0x78] sm:$0xff] %vm1034, %v1017
        %v1051 = vld [vmem:[%s356] sm:$0xe]
        %v1052 = vld [vmem:[%s356 + $0x4] sm:$0xf]
        %v1053 = vld [vmem:[%s356 + $0x8] sm:$0x1]
        %v1054 = vld [vmem:[%s356 + $0xc] sm:$0xe]
        %v1055 = vld [vmem:[%s356 + $0x10] sm:$0xf]
        %v1056 = vld [vmem:[%s356 + $0x14] sm:$0x1]
        %v1057 = vld [vmem:[%s356 + $0x18] sm:$0xe]
        %v1058 = vld [vmem:[%s356 + $0x1c] sm:$0xf]
        %v1059 = vld [vmem:[%s356 + $0x20] sm:$0x1]
        %v1060 = vld [vmem:[%s356 + $0x24] sm:$0xe]
        %v1061 = vld [vmem:[%s356 + $0x28] sm:$0xf]
        %v1062 = vld [vmem:[%s356 + $0x2c] sm:$0x1]
        %v1063 = vld [vmem:[%s356 + $0x30] sm:$0xe]
        %v1064 = vld [vmem:[%s356 + $0x34] sm:$0xf]
        %v1065 = vld [vmem:[%s356 + $0x38] sm:$0x1]
        %v1066 = vld [vmem:[%s356 + $0x3c] sm:$0xe]
        %v1067 = vld [vmem:[%s356 + $0x40] sm:$0xf]
        %v1068 = vld [vmem:[%s356 + $0x44] sm:$0x1]
        %v1069 = vld [vmem:[%s356 + $0x48] sm:$0xe]
        %v1070 = vld [vmem:[%s356 + $0x4c] sm:$0xf]
        %v1071 = vld [vmem:[%s356 + $0x50] sm:$0x1]
        %v1072 = vld [vmem:[%s356 + $0x54] sm:$0xe]
        %v1073 = vld [vmem:[%s356 + $0x58] sm:$0xf]
        %v1074 = vld [vmem:[%s356 + $0x5c] sm:$0x1]
        %v1075 = vld [vmem:[%s356 + $0x60] sm:$0xe]
        %v1076 = vld [vmem:[%s356 + $0x64] sm:$0xf]
        %v1077 = vld [vmem:[%s356 + $0x68] sm:$0x1]
        %v1078 = vld [vmem:[%s356 + $0x6c] sm:$0xe]
        %v1079 = vld [vmem:[%s356 + $0x70] sm:$0xf]
        %v1080 = vld [vmem:[%s356 + $0x74] sm:$0x1]
        %v1081 = vld [vmem:[%s356 + $0x78] sm:$0xe]
        %v1082 = vld [vmem:[%s356 + $0x7c] sm:$0xf]
        %v1083 = vld [vmem:[%s356 + $0x80] sm:$0x1]
        %v1084 = vld [vmem:[%s356 + $0x84] sm:$0xe]
        %v1085 = vld [vmem:[%s356 + $0x88] sm:$0xf]
        %v1086 = vld [vmem:[%s356 + $0x8c] sm:$0x1]
        %v1087 = vld [vmem:[%s356 + $0x90] sm:$0xe]
        %v1088 = vld [vmem:[%s356 + $0x94] sm:$0xf]
        %v1089 = vld [vmem:[%s356 + $0x98] sm:$0x1]
        %v1090 = vld [vmem:[%s356 + $0x9c] sm:$0xe]
        %v1091 = vld [vmem:[%s356 + $0xa0] sm:$0xf]
        %v1092 = vld [vmem:[%s356 + $0xa4] sm:$0x1]
        %v1093 = vld [vmem:[%s356 + $0xa8] sm:$0xe]
        %v1094 = vld [vmem:[%s356 + $0xac] sm:$0xf]
        %v1095 = vld [vmem:[%s356 + $0xb0] sm:$0x1]
        %v1096 = vld [vmem:[%s356 + $0xb4] sm:$0xe]
        %v1097 = vld [vmem:[%s356 + $0xb8] sm:$0xf]
        %v1098 = vld [vmem:[%s356 + $0xbc] sm:$0x1]
        %vm1147 = vcmask 1042432
        %vm1148 = vcmask 1046532
        %vm1149 = vmor %vm1147, %vm1148
        %v1150 = vrot.slane %v1051, 5
        %v1151 = vrot.slane %v1150, 4
        %v1152 = vrot.slane %v1052, 5
        %v1153 = vsel %vm1149, %v1151, %v1152
        %v1154 = vrot.slane %v1152, 4
        %v1155 = vrot.slane %v1053, 5
        %v1156 = vsel %vm1149, %v1154, %v1155
        %v1157 = vrot.slane %v1054, 5
        %v1158 = vrot.slane %v1157, 4
        %v1159 = vrot.slane %v1055, 5
        %v1160 = vsel %vm1149, %v1158, %v1159
        %v1161 = vrot.slane %v1159, 4
        %v1162 = vrot.slane %v1056, 5
        %v1163 = vsel %vm1149, %v1161, %v1162
        %v1164 = vrot.slane %v1057, 5
        %v1165 = vrot.slane %v1164, 4
        %v1166 = vrot.slane %v1058, 5
        %v1167 = vsel %vm1149, %v1165, %v1166
        %v1168 = vrot.slane %v1166, 4
        %v1169 = vrot.slane %v1059, 5
        %v1170 = vsel %vm1149, %v1168, %v1169
        %v1171 = vrot.slane %v1060, 5
        %v1172 = vrot.slane %v1171, 4
        %v1173 = vrot.slane %v1061, 5
        %v1174 = vsel %vm1149, %v1172, %v1173
        %v1175 = vrot.slane %v1173, 4
        %v1176 = vrot.slane %v1062, 5
        %v1177 = vsel %vm1149, %v1175, %v1176
        %v1178 = vrot.slane %v1063, 5
        %v1179 = vrot.slane %v1178, 4
        %v1180 = vrot.slane %v1064, 5
        %v1181 = vsel %vm1149, %v1179, %v1180
        %v1182 = vrot.slane %v1180, 4
        %v1183 = vrot.slane %v1065, 5
        %v1184 = vsel %vm1149, %v1182, %v1183
        %v1185 = vrot.slane %v1066, 5
        %v1186 = vrot.slane %v1185, 4
        %v1187 = vrot.slane %v1067, 5
        %v1188 = vsel %vm1149, %v1186, %v1187
        %v1189 = vrot.slane %v1187, 4
        %v1190 = vrot.slane %v1068, 5
        %v1191 = vsel %vm1149, %v1189, %v1190
        %v1192 = vrot.slane %v1069, 5
        %v1193 = vrot.slane %v1192, 4
        %v1194 = vrot.slane %v1070, 5
        %v1195 = vsel %vm1149, %v1193, %v1194
        %v1196 = vrot.slane %v1194, 4
        %v1197 = vrot.slane %v1071, 5
        %v1198 = vsel %vm1149, %v1196, %v1197
        %v1199 = vrot.slane %v1072, 5
        %v1200 = vrot.slane %v1199, 4
        %v1201 = vrot.slane %v1073, 5
        %v1202 = vsel %vm1149, %v1200, %v1201
        %v1203 = vrot.slane %v1201, 4
        %v1204 = vrot.slane %v1074, 5
        %v1205 = vsel %vm1149, %v1203, %v1204
        %v1206 = vrot.slane %v1075, 5
        %v1207 = vrot.slane %v1206, 4
        %v1208 = vrot.slane %v1076, 5
        %v1209 = vsel %vm1149, %v1207, %v1208
        %v1210 = vrot.slane %v1208, 4
        %v1211 = vrot.slane %v1077, 5
        %v1212 = vsel %vm1149, %v1210, %v1211
        %v1213 = vrot.slane %v1078, 5
        %v1214 = vrot.slane %v1213, 4
        %v1215 = vrot.slane %v1079, 5
        %v1216 = vsel %vm1149, %v1214, %v1215
        %v1217 = vrot.slane %v1215, 4
        %v1218 = vrot.slane %v1080, 5
        %v1219 = vsel %vm1149, %v1217, %v1218
        %v1220 = vrot.slane %v1081, 5
        %v1221 = vrot.slane %v1220, 4
        %v1222 = vrot.slane %v1082, 5
        %v1223 = vsel %vm1149, %v1221, %v1222
        %v1224 = vrot.slane %v1222, 4
        %v1225 = vrot.slane %v1083, 5
        %v1226 = vsel %vm1149, %v1224, %v1225
        %v1227 = vrot.slane %v1084, 5
        %v1228 = vrot.slane %v1227, 4
        %v1229 = vrot.slane %v1085, 5
        %v1230 = vsel %vm1149, %v1228, %v1229
        %v1231 = vrot.slane %v1229, 4
        %v1232 = vrot.slane %v1086, 5
        %v1233 = vsel %vm1149, %v1231, %v1232
        %v1234 = vrot.slane %v1087, 5
        %v1235 = vrot.slane %v1234, 4
        %v1236 = vrot.slane %v1088, 5
        %v1237 = vsel %vm1149, %v1235, %v1236
        %v1238 = vrot.slane %v1236, 4
        %v1239 = vrot.slane %v1089, 5
        %v1240 = vsel %vm1149, %v1238, %v1239
        %v1241 = vrot.slane %v1090, 5
        %v1242 = vrot.slane %v1241, 4
        %v1243 = vrot.slane %v1091, 5
        %v1244 = vsel %vm1149, %v1242, %v1243
        %v1245 = vrot.slane %v1243, 4
        %v1246 = vrot.slane %v1092, 5
        %v1247 = vsel %vm1149, %v1245, %v1246
        %v1248 = vrot.slane %v1093, 5
        %v1249 = vrot.slane %v1248, 4
        %v1250 = vrot.slane %v1094, 5
        %v1251 = vsel %vm1149, %v1249, %v1250
        %v1252 = vrot.slane %v1250, 4
        %v1253 = vrot.slane %v1095, 5
        %v1254 = vsel %vm1149, %v1252, %v1253
        %v1255 = vrot.slane %v1096, 5
        %v1256 = vrot.slane %v1255, 4
        %v1257 = vrot.slane %v1097, 5
        %v1258 = vsel %vm1149, %v1256, %v1257
        %v1259 = vrot.slane %v1257, 4
        %v1260 = vrot.slane %v1098, 5
        %v1261 = vsel %vm1149, %v1259, %v1260
        %v1262 = vunpack.c.l.b16 %v1153
        %v1263 = vunpack.c.l.b16 %v1156
        %v1264 = vunpack.c.l.b16 %v1160
        %v1265 = vunpack.c.l.b16 %v1163
        %v1266 = vunpack.c.l.b16 %v1167
        %v1267 = vunpack.c.l.b16 %v1170
        %v1268 = vunpack.c.l.b16 %v1174
        %v1269 = vunpack.c.l.b16 %v1177
        %v1270 = vunpack.c.l.b16 %v1181
        %v1271 = vunpack.c.l.b16 %v1184
        %v1272 = vunpack.c.l.b16 %v1188
        %v1273 = vunpack.c.l.b16 %v1191
        %v1274 = vunpack.c.l.b16 %v1195
        %v1275 = vunpack.c.l.b16 %v1198
        %v1276 = vunpack.c.l.b16 %v1202
        %v1277 = vunpack.c.l.b16 %v1205
        %v1278 = vunpack.c.l.b16 %v1209
        %v1279 = vunpack.c.l.b16 %v1212
        %v1280 = vunpack.c.l.b16 %v1216
        %v1281 = vunpack.c.l.b16 %v1219
        %v1282 = vunpack.c.l.b16 %v1223
        %v1283 = vunpack.c.l.b16 %v1226
        %v1284 = vunpack.c.l.b16 %v1230
        %v1285 = vunpack.c.l.b16 %v1233
        %v1286 = vunpack.c.l.b16 %v1237
        %v1287 = vunpack.c.l.b16 %v1240
        %v1288 = vunpack.c.l.b16 %v1244
        %v1289 = vunpack.c.l.b16 %v1247
        %v1290 = vunpack.c.l.b16 %v1251
        %v1291 = vunpack.c.l.b16 %v1254
        %v1292 = vunpack.c.l.b16 %v1258
        %v1293 = vunpack.c.l.b16 %v1261
        %v1294 = vpack.c.b16 %v1263, %v1262
        %v1295 = vpack.c.b16 %v1265, %v1264
        %v1296 = vpack.c.b16 %v1267, %v1266
        %v1297 = vpack.c.b16 %v1269, %v1268
        %v1298 = vpack.c.b16 %v1271, %v1270
        %v1299 = vpack.c.b16 %v1273, %v1272
        %v1300 = vpack.c.b16 %v1275, %v1274
        %v1301 = vpack.c.b16 %v1277, %v1276
        %v1302 = vpack.c.b16 %v1279, %v1278
        %v1303 = vpack.c.b16 %v1281, %v1280
        %v1304 = vpack.c.b16 %v1283, %v1282
        %v1305 = vpack.c.b16 %v1285, %v1284
        %v1306 = vpack.c.b16 %v1287, %v1286
        %v1307 = vpack.c.b16 %v1289, %v1288
        %v1308 = vpack.c.b16 %v1291, %v1290
        %v1309 = vpack.c.b16 %v1293, %v1292
        %1310 = vrot.lane.b32.xlu0 %v1294, 8
        %v1311 = vpop.permute.xlu0 %1310
        %1312 = vrot.lane.b32.xlu0 %v1295, 8
        %v1313 = vpop.permute.xlu0 %1312
        %1314 = vrot.lane.b32.xlu0 %v1296, 8
        %v1315 = vpop.permute.xlu0 %1314
        %1316 = vrot.lane.b32.xlu0 %v1297, 8
        %v1317 = vpop.permute.xlu0 %1316
        %1318 = vrot.lane.b32.xlu0 %v1298, 8
        %v1319 = vpop.permute.xlu0 %1318
        %1320 = vrot.lane.b32.xlu0 %v1299, 8
        %v1321 = vpop.permute.xlu0 %1320
        %1322 = vrot.lane.b32.xlu0 %v1300, 8
        %v1323 = vpop.permute.xlu0 %1322
        %1324 = vrot.lane.b32.xlu0 %v1301, 8
        %v1325 = vpop.permute.xlu0 %1324
        %1326 = vrot.lane.b32.xlu0 %v1302, 8
        %v1327 = vpop.permute.xlu0 %1326
        %1328 = vrot.lane.b32.xlu0 %v1303, 8
        %v1329 = vpop.permute.xlu0 %1328
        %1330 = vrot.lane.b32.xlu0 %v1304, 8
        %v1331 = vpop.permute.xlu0 %1330
        %1332 = vrot.lane.b32.xlu0 %v1305, 8
        %v1333 = vpop.permute.xlu0 %1332
        %1334 = vrot.lane.b32.xlu0 %v1306, 8
        %v1335 = vpop.permute.xlu0 %1334
        %1336 = vrot.lane.b32.xlu0 %v1307, 8
        %v1337 = vpop.permute.xlu0 %1336
        %1338 = vrot.lane.b32.xlu0 %v1308, 8
        %v1339 = vpop.permute.xlu0 %1338
        %1340 = vrot.lane.b32.xlu0 %v1309, 8
        %v1341 = vpop.permute.xlu0 %1340
        %vm1358 = vcmask 97344
        %1359 = vst.msk [vmem:[#allocation2] sm:$0xff] %vm1358, %v1311
        %1360 = vst.msk [vmem:[#allocation2 + $0x8] sm:$0xff] %vm1358, %v1313
        %1361 = vst.msk [vmem:[#allocation2 + $0x10] sm:$0xff] %vm1358, %v1315
        %1362 = vst.msk [vmem:[#allocation2 + $0x18] sm:$0xff] %vm1358, %v1317
        %1363 = vst.msk [vmem:[#allocation2 + $0x20] sm:$0xff] %vm1358, %v1319
        %1364 = vst.msk [vmem:[#allocation2 + $0x28] sm:$0xff] %vm1358, %v1321
        %1365 = vst.msk [vmem:[#allocation2 + $0x30] sm:$0xff] %vm1358, %v1323
        %1366 = vst.msk [vmem:[#allocation2 + $0x38] sm:$0xff] %vm1358, %v1325
        %1367 = vst.msk [vmem:[#allocation2 + $0x40] sm:$0xff] %vm1358, %v1327
        %1368 = vst.msk [vmem:[#allocation2 + $0x48] sm:$0xff] %vm1358, %v1329
        %1369 = vst.msk [vmem:[#allocation2 + $0x50] sm:$0xff] %vm1358, %v1331
        %1370 = vst.msk [vmem:[#allocation2 + $0x58] sm:$0xff] %vm1358, %v1333
        %1371 = vst.msk [vmem:[#allocation2 + $0x60] sm:$0xff] %vm1358, %v1335
        %1372 = vst.msk [vmem:[#allocation2 + $0x68] sm:$0xff] %vm1358, %v1337
        %1373 = vst.msk [vmem:[#allocation2 + $0x70] sm:$0xff] %vm1358, %v1339
        %1374 = vst.msk [vmem:[#allocation2 + $0x78] sm:$0xff] %vm1358, %v1341
        %s1375 = scalar_lea.vmem %s356, 12
        %v1376 = vld [vmem:[%s1375] sm:$0xf]
        %v1377 = vld [vmem:[%s1375 + $0x4] sm:$0xf]
        %v1378 = vld [vmem:[%s1375 + $0xc] sm:$0xf]
        %v1379 = vld [vmem:[%s1375 + $0x10] sm:$0xf]
        %v1380 = vld [vmem:[%s1375 + $0x18] sm:$0xf]
        %v1381 = vld [vmem:[%s1375 + $0x1c] sm:$0xf]
        %v1382 = vld [vmem:[%s1375 + $0x24] sm:$0xf]
        %v1383 = vld [vmem:[%s1375 + $0x28] sm:$0xf]
        %v1384 = vld [vmem:[%s1375 + $0x30] sm:$0xf]
        %v1385 = vld [vmem:[%s1375 + $0x34] sm:$0xf]
        %v1386 = vld [vmem:[%s1375 + $0x3c] sm:$0xf]
        %v1387 = vld [vmem:[%s1375 + $0x40] sm:$0xf]
        %v1388 = vld [vmem:[%s1375 + $0x48] sm:$0xf]
        %v1389 = vld [vmem:[%s1375 + $0x4c] sm:$0xf]
        %v1390 = vld [vmem:[%s1375 + $0x54] sm:$0xf]
        %v1391 = vld [vmem:[%s1375 + $0x58] sm:$0xf]
        %v1392 = vld [vmem:[%s1375 + $0x60] sm:$0xf]
        %v1393 = vld [vmem:[%s1375 + $0x64] sm:$0xf]
        %v1394 = vld [vmem:[%s1375 + $0x6c] sm:$0xf]
        %v1395 = vld [vmem:[%s1375 + $0x70] sm:$0xf]
        %v1396 = vld [vmem:[%s1375 + $0x78] sm:$0xf]
        %v1397 = vld [vmem:[%s1375 + $0x7c] sm:$0xf]
        %v1398 = vld [vmem:[%s1375 + $0x84] sm:$0xf]
        %v1399 = vld [vmem:[%s1375 + $0x88] sm:$0xf]
        %v1400 = vld [vmem:[%s1375 + $0x90] sm:$0xf]
        %v1401 = vld [vmem:[%s1375 + $0x94] sm:$0xf]
        %v1402 = vld [vmem:[%s1375 + $0x9c] sm:$0xf]
        %v1403 = vld [vmem:[%s1375 + $0xa0] sm:$0xf]
        %v1404 = vld [vmem:[%s1375 + $0xa8] sm:$0xf]
        %v1405 = vld [vmem:[%s1375 + $0xac] sm:$0xf]
        %v1406 = vld [vmem:[%s1375 + $0xb4] sm:$0xf]
        %v1407 = vld [vmem:[%s1375 + $0xb8] sm:$0xf]
        %v1440 = vunpack.c.l.b16 %v1376
        %v1441 = vunpack.c.l.b16 %v1377
        %v1442 = vunpack.c.l.b16 %v1378
        %v1443 = vunpack.c.l.b16 %v1379
        %v1444 = vunpack.c.l.b16 %v1380
        %v1445 = vunpack.c.l.b16 %v1381
        %v1446 = vunpack.c.l.b16 %v1382
        %v1447 = vunpack.c.l.b16 %v1383
        %v1448 = vunpack.c.l.b16 %v1384
        %v1449 = vunpack.c.l.b16 %v1385
        %v1450 = vunpack.c.l.b16 %v1386
        %v1451 = vunpack.c.l.b16 %v1387
        %v1452 = vunpack.c.l.b16 %v1388
        %v1453 = vunpack.c.l.b16 %v1389
        %v1454 = vunpack.c.l.b16 %v1390
        %v1455 = vunpack.c.l.b16 %v1391
        %v1456 = vunpack.c.l.b16 %v1392
        %v1457 = vunpack.c.l.b16 %v1393
        %v1458 = vunpack.c.l.b16 %v1394
        %v1459 = vunpack.c.l.b16 %v1395
        %v1460 = vunpack.c.l.b16 %v1396
        %v1461 = vunpack.c.l.b16 %v1397
        %v1462 = vunpack.c.l.b16 %v1398
        %v1463 = vunpack.c.l.b16 %v1399
        %v1464 = vunpack.c.l.b16 %v1400
        %v1465 = vunpack.c.l.b16 %v1401
        %v1466 = vunpack.c.l.b16 %v1402
        %v1467 = vunpack.c.l.b16 %v1403
        %v1468 = vunpack.c.l.b16 %v1404
        %v1469 = vunpack.c.l.b16 %v1405
        %v1470 = vunpack.c.l.b16 %v1406
        %v1471 = vunpack.c.l.b16 %v1407
        %v1472 = vpack.c.b16 %v1441, %v1440
        %v1473 = vpack.c.b16 %v1443, %v1442
        %v1474 = vpack.c.b16 %v1445, %v1444
        %v1475 = vpack.c.b16 %v1447, %v1446
        %v1476 = vpack.c.b16 %v1449, %v1448
        %v1477 = vpack.c.b16 %v1451, %v1450
        %v1478 = vpack.c.b16 %v1453, %v1452
        %v1479 = vpack.c.b16 %v1455, %v1454
        %v1480 = vpack.c.b16 %v1457, %v1456
        %v1481 = vpack.c.b16 %v1459, %v1458
        %v1482 = vpack.c.b16 %v1461, %v1460
        %v1483 = vpack.c.b16 %v1463, %v1462
        %v1484 = vpack.c.b16 %v1465, %v1464
        %v1485 = vpack.c.b16 %v1467, %v1466
        %v1486 = vpack.c.b16 %v1469, %v1468
        %v1487 = vpack.c.b16 %v1471, %v1470
        %1488 = vrot.lane.b32.xlu0 %v1472, 12
        %v1489 = vpop.permute.xlu0 %1488
        %1490 = vrot.lane.b32.xlu0 %v1473, 12
        %v1491 = vpop.permute.xlu0 %1490
        %1492 = vrot.lane.b32.xlu0 %v1474, 12
        %v1493 = vpop.permute.xlu0 %1492
        %1494 = vrot.lane.b32.xlu0 %v1475, 12
        %v1495 = vpop.permute.xlu0 %1494
        %1496 = vrot.lane.b32.xlu0 %v1476, 12
        %v1497 = vpop.permute.xlu0 %1496
        %1498 = vrot.lane.b32.xlu0 %v1477, 12
        %v1499 = vpop.permute.xlu0 %1498
        %1500 = vrot.lane.b32.xlu0 %v1478, 12
        %v1501 = vpop.permute.xlu0 %1500
        %1502 = vrot.lane.b32.xlu0 %v1479, 12
        %v1503 = vpop.permute.xlu0 %1502
        %1504 = vrot.lane.b32.xlu0 %v1480, 12
        %v1505 = vpop.permute.xlu0 %1504
        %1506 = vrot.lane.b32.xlu0 %v1481, 12
        %v1507 = vpop.permute.xlu0 %1506
        %1508 = vrot.lane.b32.xlu0 %v1482, 12
        %v1509 = vpop.permute.xlu0 %1508
        %1510 = vrot.lane.b32.xlu0 %v1483, 12
        %v1511 = vpop.permute.xlu0 %1510
        %1512 = vrot.lane.b32.xlu0 %v1484, 12
        %v1513 = vpop.permute.xlu0 %1512
        %1514 = vrot.lane.b32.xlu0 %v1485, 12
        %v1515 = vpop.permute.xlu0 %1514
        %1516 = vrot.lane.b32.xlu0 %v1486, 12
        %v1517 = vpop.permute.xlu0 %1516
        %1518 = vrot.lane.b32.xlu0 %v1487, 12
        %v1519 = vpop.permute.xlu0 %1518
        %vm1536 = vcmask 130144
        %1537 = vst.msk [vmem:[#allocation2] sm:$0xff] %vm1536, %v1489
        %1538 = vst.msk [vmem:[#allocation2 + $0x8] sm:$0xff] %vm1536, %v1491
        %1539 = vst.msk [vmem:[#allocation2 + $0x10] sm:$0xff] %vm1536, %v1493
        %1540 = vst.msk [vmem:[#allocation2 + $0x18] sm:$0xff] %vm1536, %v1495
        %1541 = vst.msk [vmem:[#allocation2 + $0x20] sm:$0xff] %vm1536, %v1497
        %1542 = vst.msk [vmem:[#allocation2 + $0x28] sm:$0xff] %vm1536, %v1499
        %1543 = vst.msk [vmem:[#allocation2 + $0x30] sm:$0xff] %vm1536, %v1501
        %1544 = vst.msk [vmem:[#allocation2 + $0x38] sm:$0xff] %vm1536, %v1503
        %1545 = vst.msk [vmem:[#allocation2 + $0x40] sm:$0xff] %vm1536, %v1505
        %1546 = vst.msk [vmem:[#allocation2 + $0x48] sm:$0xff] %vm1536, %v1507
        %1547 = vst.msk [vmem:[#allocation2 + $0x50] sm:$0xff] %vm1536, %v1509
        %1548 = vst.msk [vmem:[#allocation2 + $0x58] sm:$0xff] %vm1536, %v1511
        %1549 = vst.msk [vmem:[#allocation2 + $0x60] sm:$0xff] %vm1536, %v1513
        %1550 = vst.msk [vmem:[#allocation2 + $0x68] sm:$0xff] %vm1536, %v1515
        %1551 = vst.msk [vmem:[#allocation2 + $0x70] sm:$0xff] %vm1536, %v1517
        %1552 = vst.msk [vmem:[#allocation2 + $0x78] sm:$0xff] %vm1536, %v1519
        %v1553 = vld [vmem:[%s1375] sm:$0xf]
        %v1554 = vld [vmem:[%s1375 + $0x4] sm:$0xf]
        %v1555 = vld [vmem:[%s1375 + $0x8] sm:$0x1]
        %v1556 = vld [vmem:[%s1375 + $0xc] sm:$0xf]
        %v1557 = vld [vmem:[%s1375 + $0x10] sm:$0xf]
        %v1558 = vld [vmem:[%s1375 + $0x14] sm:$0x1]
        %v1559 = vld [vmem:[%s1375 + $0x18] sm:$0xf]
        %v1560 = vld [vmem:[%s1375 + $0x1c] sm:$0xf]
        %v1561 = vld [vmem:[%s1375 + $0x20] sm:$0x1]
        %v1562 = vld [vmem:[%s1375 + $0x24] sm:$0xf]
        %v1563 = vld [vmem:[%s1375 + $0x28] sm:$0xf]
        %v1564 = vld [vmem:[%s1375 + $0x2c] sm:$0x1]
        %v1565 = vld [vmem:[%s1375 + $0x30] sm:$0xf]
        %v1566 = vld [vmem:[%s1375 + $0x34] sm:$0xf]
        %v1567 = vld [vmem:[%s1375 + $0x38] sm:$0x1]
        %v1568 = vld [vmem:[%s1375 + $0x3c] sm:$0xf]
        %v1569 = vld [vmem:[%s1375 + $0x40] sm:$0xf]
        %v1570 = vld [vmem:[%s1375 + $0x44] sm:$0x1]
        %v1571 = vld [vmem:[%s1375 + $0x48] sm:$0xf]
        %v1572 = vld [vmem:[%s1375 + $0x4c] sm:$0xf]
        %v1573 = vld [vmem:[%s1375 + $0x50] sm:$0x1]
        %v1574 = vld [vmem:[%s1375 + $0x54] sm:$0xf]
        %v1575 = vld [vmem:[%s1375 + $0x58] sm:$0xf]
        %v1576 = vld [vmem:[%s1375 + $0x5c] sm:$0x1]
        %v1577 = vld [vmem:[%s1375 + $0x60] sm:$0xf]
        %v1578 = vld [vmem:[%s1375 + $0x64] sm:$0xf]
        %v1579 = vld [vmem:[%s1375 + $0x68] sm:$0x1]
        %v1580 = vld [vmem:[%s1375 + $0x6c] sm:$0xf]
        %v1581 = vld [vmem:[%s1375 + $0x70] sm:$0xf]
        %v1582 = vld [vmem:[%s1375 + $0x74] sm:$0x1]
        %v1583 = vld [vmem:[%s1375 + $0x78] sm:$0xf]
        %v1584 = vld [vmem:[%s1375 + $0x7c] sm:$0xf]
        %v1585 = vld [vmem:[%s1375 + $0x80] sm:$0x1]
        %v1586 = vld [vmem:[%s1375 + $0x84] sm:$0xf]
        %v1587 = vld [vmem:[%s1375 + $0x88] sm:$0xf]
        %v1588 = vld [vmem:[%s1375 + $0x8c] sm:$0x1]
        %v1589 = vld [vmem:[%s1375 + $0x90] sm:$0xf]
        %v1590 = vld [vmem:[%s1375 + $0x94] sm:$0xf]
        %v1591 = vld [vmem:[%s1375 + $0x98] sm:$0x1]
        %v1592 = vld [vmem:[%s1375 + $0x9c] sm:$0xf]
        %v1593 = vld [vmem:[%s1375 + $0xa0] sm:$0xf]
        %v1594 = vld [vmem:[%s1375 + $0xa4] sm:$0x1]
        %v1595 = vld [vmem:[%s1375 + $0xa8] sm:$0xf]
        %v1596 = vld [vmem:[%s1375 + $0xac] sm:$0xf]
        %v1597 = vld [vmem:[%s1375 + $0xb0] sm:$0x1]
        %v1598 = vld [vmem:[%s1375 + $0xb4] sm:$0xf]
        %v1599 = vld [vmem:[%s1375 + $0xb8] sm:$0xf]
        %v1600 = vld [vmem:[%s1375 + $0xbc] sm:$0x1]
        %v1602 = vshrl.u32 %v1553, 16
        %v1604 = vrot.slane %v1602, 4
        %v1605 = vshll.u32 %v1553, 16
        %v1607 = vrot.slane %v1605, 5
        %v1608 = vor.u32 %v1604, %v1607
        %v1609 = vrot.slane %v1608, 4
        %v1611 = vshll.u32 %v1554, 16
        %v1613 = vrot.slane %v1611, 5
        %v1614 = vsel %vm553, %v1609, %v1613
        %v1615 = vshrl.u32 %v1554, 16
        %v1617 = vrot.slane %v1615, 4
        %v1618 = vor.u32 %v1617, %v1613
        %v1619 = vrot.slane %v1618, 4
        %v1621 = vshll.u32 %v1555, 16
        %v1623 = vrot.slane %v1621, 5
        %v1624 = vsel %vm553, %v1619, %v1623
        %v1626 = vshrl.u32 %v1556, 16
        %v1628 = vrot.slane %v1626, 4
        %v1629 = vshll.u32 %v1556, 16
        %v1631 = vrot.slane %v1629, 5
        %v1632 = vor.u32 %v1628, %v1631
        %v1633 = vrot.slane %v1632, 4
        %v1635 = vshll.u32 %v1557, 16
        %v1637 = vrot.slane %v1635, 5
        %v1638 = vsel %vm553, %v1633, %v1637
        %v1639 = vshrl.u32 %v1557, 16
        %v1641 = vrot.slane %v1639, 4
        %v1642 = vor.u32 %v1641, %v1637
        %v1643 = vrot.slane %v1642, 4
        %v1645 = vshll.u32 %v1558, 16
        %v1647 = vrot.slane %v1645, 5
        %v1648 = vsel %vm553, %v1643, %v1647
        %v1650 = vshrl.u32 %v1559, 16
        %v1652 = vrot.slane %v1650, 4
        %v1653 = vshll.u32 %v1559, 16
        %v1655 = vrot.slane %v1653, 5
        %v1656 = vor.u32 %v1652, %v1655
        %v1657 = vrot.slane %v1656, 4
        %v1659 = vshll.u32 %v1560, 16
        %v1661 = vrot.slane %v1659, 5
        %v1662 = vsel %vm553, %v1657, %v1661
        %v1663 = vshrl.u32 %v1560, 16
        %v1665 = vrot.slane %v1663, 4
        %v1666 = vor.u32 %v1665, %v1661
        %v1667 = vrot.slane %v1666, 4
        %v1669 = vshll.u32 %v1561, 16
        %v1671 = vrot.slane %v1669, 5
        %v1672 = vsel %vm553, %v1667, %v1671
        %v1674 = vshrl.u32 %v1562, 16
        %v1676 = vrot.slane %v1674, 4
        %v1677 = vshll.u32 %v1562, 16
        %v1679 = vrot.slane %v1677, 5
        %v1680 = vor.u32 %v1676, %v1679
        %v1681 = vrot.slane %v1680, 4
        %v1683 = vshll.u32 %v1563, 16
        %v1685 = vrot.slane %v1683, 5
        %v1686 = vsel %vm553, %v1681, %v1685
        %v1687 = vshrl.u32 %v1563, 16
        %v1689 = vrot.slane %v1687, 4
        %v1690 = vor.u32 %v1689, %v1685
        %v1691 = vrot.slane %v1690, 4
        %v1693 = vshll.u32 %v1564, 16
        %v1695 = vrot.slane %v1693, 5
        %v1696 = vsel %vm553, %v1691, %v1695
        %v1698 = vshrl.u32 %v1565, 16
        %v1700 = vrot.slane %v1698, 4
        %v1701 = vshll.u32 %v1565, 16
        %v1703 = vrot.slane %v1701, 5
        %v1704 = vor.u32 %v1700, %v1703
        %v1705 = vrot.slane %v1704, 4
        %v1707 = vshll.u32 %v1566, 16
        %v1709 = vrot.slane %v1707, 5
        %v1710 = vsel %vm553, %v1705, %v1709
        %v1711 = vshrl.u32 %v1566, 16
        %v1713 = vrot.slane %v1711, 4
        %v1714 = vor.u32 %v1713, %v1709
        %v1715 = vrot.slane %v1714, 4
        %v1717 = vshll.u32 %v1567, 16
        %v1719 = vrot.slane %v1717, 5
        %v1720 = vsel %vm553, %v1715, %v1719
        %v1722 = vshrl.u32 %v1568, 16
        %v1724 = vrot.slane %v1722, 4
        %v1725 = vshll.u32 %v1568, 16
        %v1727 = vrot.slane %v1725, 5
        %v1728 = vor.u32 %v1724, %v1727
        %v1729 = vrot.slane %v1728, 4
        %v1731 = vshll.u32 %v1569, 16
        %v1733 = vrot.slane %v1731, 5
        %v1734 = vsel %vm553, %v1729, %v1733
        %v1735 = vshrl.u32 %v1569, 16
        %v1737 = vrot.slane %v1735, 4
        %v1738 = vor.u32 %v1737, %v1733
        %v1739 = vrot.slane %v1738, 4
        %v1741 = vshll.u32 %v1570, 16
        %v1743 = vrot.slane %v1741, 5
        %v1744 = vsel %vm553, %v1739, %v1743
        %v1746 = vshrl.u32 %v1571, 16
        %v1748 = vrot.slane %v1746, 4
        %v1749 = vshll.u32 %v1571, 16
        %v1751 = vrot.slane %v1749, 5
        %v1752 = vor.u32 %v1748, %v1751
        %v1753 = vrot.slane %v1752, 4
        %v1755 = vshll.u32 %v1572, 16
        %v1757 = vrot.slane %v1755, 5
        %v1758 = vsel %vm553, %v1753, %v1757
        %v1759 = vshrl.u32 %v1572, 16
        %v1761 = vrot.slane %v1759, 4
        %v1762 = vor.u32 %v1761, %v1757
        %v1763 = vrot.slane %v1762, 4
        %v1765 = vshll.u32 %v1573, 16
        %v1767 = vrot.slane %v1765, 5
        %v1768 = vsel %vm553, %v1763, %v1767
        %v1770 = vshrl.u32 %v1574, 16
        %v1772 = vrot.slane %v1770, 4
        %v1773 = vshll.u32 %v1574, 16
        %v1775 = vrot.slane %v1773, 5
        %v1776 = vor.u32 %v1772, %v1775
        %v1777 = vrot.slane %v1776, 4
        %v1779 = vshll.u32 %v1575, 16
        %v1781 = vrot.slane %v1779, 5
        %v1782 = vsel %vm553, %v1777, %v1781
        %v1783 = vshrl.u32 %v1575, 16
        %v1785 = vrot.slane %v1783, 4
        %v1786 = vor.u32 %v1785, %v1781
        %v1787 = vrot.slane %v1786, 4
        %v1789 = vshll.u32 %v1576, 16
        %v1791 = vrot.slane %v1789, 5
        %v1792 = vsel %vm553, %v1787, %v1791
        %v1794 = vshrl.u32 %v1577, 16
        %v1796 = vrot.slane %v1794, 4
        %v1797 = vshll.u32 %v1577, 16
        %v1799 = vrot.slane %v1797, 5
        %v1800 = vor.u32 %v1796, %v1799
        %v1801 = vrot.slane %v1800, 4
        %v1803 = vshll.u32 %v1578, 16
        %v1805 = vrot.slane %v1803, 5
        %v1806 = vsel %vm553, %v1801, %v1805
        %v1807 = vshrl.u32 %v1578, 16
        %v1809 = vrot.slane %v1807, 4
        %v1810 = vor.u32 %v1809, %v1805
        %v1811 = vrot.slane %v1810, 4
        %v1813 = vshll.u32 %v1579, 16
        %v1815 = vrot.slane %v1813, 5
        %v1816 = vsel %vm553, %v1811, %v1815
        %v1818 = vshrl.u32 %v1580, 16
        %v1820 = vrot.slane %v1818, 4
        %v1821 = vshll.u32 %v1580, 16
        %v1823 = vrot.slane %v1821, 5
        %v1824 = vor.u32 %v1820, %v1823
        %v1825 = vrot.slane %v1824, 4
        %v1827 = vshll.u32 %v1581, 16
        %v1829 = vrot.slane %v1827, 5
        %v1830 = vsel %vm553, %v1825, %v1829
        %v1831 = vshrl.u32 %v1581, 16
        %v1833 = vrot.slane %v1831, 4
        %v1834 = vor.u32 %v1833, %v1829
        %v1835 = vrot.slane %v1834, 4
        %v1837 = vshll.u32 %v1582, 16
        %v1839 = vrot.slane %v1837, 5
        %v1840 = vsel %vm553, %v1835, %v1839
        %v1842 = vshrl.u32 %v1583, 16
        %v1844 = vrot.slane %v1842, 4
        %v1845 = vshll.u32 %v1583, 16
        %v1847 = vrot.slane %v1845, 5
        %v1848 = vor.u32 %v1844, %v1847
        %v1849 = vrot.slane %v1848, 4
        %v1851 = vshll.u32 %v1584, 16
        %v1853 = vrot.slane %v1851, 5
        %v1854 = vsel %vm553, %v1849, %v1853
        %v1855 = vshrl.u32 %v1584, 16
        %v1857 = vrot.slane %v1855, 4
        %v1858 = vor.u32 %v1857, %v1853
        %v1859 = vrot.slane %v1858, 4
        %v1861 = vshll.u32 %v1585, 16
        %v1863 = vrot.slane %v1861, 5
        %v1864 = vsel %vm553, %v1859, %v1863
        %v1866 = vshrl.u32 %v1586, 16
        %v1868 = vrot.slane %v1866, 4
        %v1869 = vshll.u32 %v1586, 16
        %v1871 = vrot.slane %v1869, 5
        %v1872 = vor.u32 %v1868, %v1871
        %v1873 = vrot.slane %v1872, 4
        %v1875 = vshll.u32 %v1587, 16
        %v1877 = vrot.slane %v1875, 5
        %v1878 = vsel %vm553, %v1873, %v1877
        %v1879 = vshrl.u32 %v1587, 16
        %v1881 = vrot.slane %v1879, 4
        %v1882 = vor.u32 %v1881, %v1877
        %v1883 = vrot.slane %v1882, 4
        %v1885 = vshll.u32 %v1588, 16
        %v1887 = vrot.slane %v1885, 5
        %v1888 = vsel %vm553, %v1883, %v1887
        %v1890 = vshrl.u32 %v1589, 16
        %v1892 = vrot.slane %v1890, 4
        %v1893 = vshll.u32 %v1589, 16
        %v1895 = vrot.slane %v1893, 5
        %v1896 = vor.u32 %v1892, %v1895
        %v1897 = vrot.slane %v1896, 4
        %v1899 = vshll.u32 %v1590, 16
        %v1901 = vrot.slane %v1899, 5
        %v1902 = vsel %vm553, %v1897, %v1901
        %v1903 = vshrl.u32 %v1590, 16
        %v1905 = vrot.slane %v1903, 4
        %v1906 = vor.u32 %v1905, %v1901
        %v1907 = vrot.slane %v1906, 4
        %v1909 = vshll.u32 %v1591, 16
        %v1911 = vrot.slane %v1909, 5
        %v1912 = vsel %vm553, %v1907, %v1911
        %v1914 = vshrl.u32 %v1592, 16
        %v1916 = vrot.slane %v1914, 4
        %v1917 = vshll.u32 %v1592, 16
        %v1919 = vrot.slane %v1917, 5
        %v1920 = vor.u32 %v1916, %v1919
        %v1921 = vrot.slane %v1920, 4
        %v1923 = vshll.u32 %v1593, 16
        %v1925 = vrot.slane %v1923, 5
        %v1926 = vsel %vm553, %v1921, %v1925
        %v1927 = vshrl.u32 %v1593, 16
        %v1929 = vrot.slane %v1927, 4
        %v1930 = vor.u32 %v1929, %v1925
        %v1931 = vrot.slane %v1930, 4
        %v1933 = vshll.u32 %v1594, 16
        %v1935 = vrot.slane %v1933, 5
        %v1936 = vsel %vm553, %v1931, %v1935
        %v1938 = vshrl.u32 %v1595, 16
        %v1940 = vrot.slane %v1938, 4
        %v1941 = vshll.u32 %v1595, 16
        %v1943 = vrot.slane %v1941, 5
        %v1944 = vor.u32 %v1940, %v1943
        %v1945 = vrot.slane %v1944, 4
        %v1947 = vshll.u32 %v1596, 16
        %v1949 = vrot.slane %v1947, 5
        %v1950 = vsel %vm553, %v1945, %v1949
        %v1951 = vshrl.u32 %v1596, 16
        %v1953 = vrot.slane %v1951, 4
        %v1954 = vor.u32 %v1953, %v1949
        %v1955 = vrot.slane %v1954, 4
        %v1957 = vshll.u32 %v1597, 16
        %v1959 = vrot.slane %v1957, 5
        %v1960 = vsel %vm553, %v1955, %v1959
        %v1962 = vshrl.u32 %v1598, 16
        %v1964 = vrot.slane %v1962, 4
        %v1965 = vshll.u32 %v1598, 16
        %v1967 = vrot.slane %v1965, 5
        %v1968 = vor.u32 %v1964, %v1967
        %v1969 = vrot.slane %v1968, 4
        %v1971 = vshll.u32 %v1599, 16
        %v1973 = vrot.slane %v1971, 5
        %v1974 = vsel %vm553, %v1969, %v1973
        %v1975 = vshrl.u32 %v1599, 16
        %v1977 = vrot.slane %v1975, 4
        %v1978 = vor.u32 %v1977, %v1973
        %v1979 = vrot.slane %v1978, 4
        %v1981 = vshll.u32 %v1600, 16
        %v1983 = vrot.slane %v1981, 5
        %v1984 = vsel %vm553, %v1979, %v1983
        %v1985 = vunpack.c.l.b16 %v1614
        %v1986 = vunpack.c.l.b16 %v1624
        %v1987 = vunpack.c.l.b16 %v1638
        %v1988 = vunpack.c.l.b16 %v1648
        %v1989 = vunpack.c.l.b16 %v1662
        %v1990 = vunpack.c.l.b16 %v1672
        %v1991 = vunpack.c.l.b16 %v1686
        %v1992 = vunpack.c.l.b16 %v1696
        %v1993 = vunpack.c.l.b16 %v1710
        %v1994 = vunpack.c.l.b16 %v1720
        %v1995 = vunpack.c.l.b16 %v1734
        %v1996 = vunpack.c.l.b16 %v1744
        %v1997 = vunpack.c.l.b16 %v1758
        %v1998 = vunpack.c.l.b16 %v1768
        %v1999 = vunpack.c.l.b16 %v1782
        %v2000 = vunpack.c.l.b16 %v1792
        %v2001 = vunpack.c.l.b16 %v1806
        %v2002 = vunpack.c.l.b16 %v1816
        %v2003 = vunpack.c.l.b16 %v1830
        %v2004 = vunpack.c.l.b16 %v1840
        %v2005 = vunpack.c.l.b16 %v1854
        %v2006 = vunpack.c.l.b16 %v1864
        %v2007 = vunpack.c.l.b16 %v1878
        %v2008 = vunpack.c.l.b16 %v1888
        %v2009 = vunpack.c.l.b16 %v1902
        %v2010 = vunpack.c.l.b16 %v1912
        %v2011 = vunpack.c.l.b16 %v1926
        %v2012 = vunpack.c.l.b16 %v1936
        %v2013 = vunpack.c.l.b16 %v1950
        %v2014 = vunpack.c.l.b16 %v1960
        %v2015 = vunpack.c.l.b16 %v1974
        %v2016 = vunpack.c.l.b16 %v1984
        %v2017 = vpack.c.b16 %v1986, %v1985
        %v2018 = vpack.c.b16 %v1988, %v1987
        %v2019 = vpack.c.b16 %v1990, %v1989
        %v2020 = vpack.c.b16 %v1992, %v1991
        %v2021 = vpack.c.b16 %v1994, %v1993
        %v2022 = vpack.c.b16 %v1996, %v1995
        %v2023 = vpack.c.b16 %v1998, %v1997
        %v2024 = vpack.c.b16 %v2000, %v1999
        %v2025 = vpack.c.b16 %v2002, %v2001
        %v2026 = vpack.c.b16 %v2004, %v2003
        %v2027 = vpack.c.b16 %v2006, %v2005
        %v2028 = vpack.c.b16 %v2008, %v2007
        %v2029 = vpack.c.b16 %v2010, %v2009
        %v2030 = vpack.c.b16 %v2012, %v2011
        %v2031 = vpack.c.b16 %v2014, %v2013
        %v2032 = vpack.c.b16 %v2016, %v2015
        %2033 = vrot.lane.b32.xlu0 %v2017, 16
        %v2034 = vpop.permute.xlu0 %2033
        %2035 = vrot.lane.b32.xlu0 %v2018, 16
        %v2036 = vpop.permute.xlu0 %2035
        %2037 = vrot.lane.b32.xlu0 %v2019, 16
        %v2038 = vpop.permute.xlu0 %2037
        %2039 = vrot.lane.b32.xlu0 %v2020, 16
        %v2040 = vpop.permute.xlu0 %2039
        %2041 = vrot.lane.b32.xlu0 %v2021, 16
        %v2042 = vpop.permute.xlu0 %2041
        %2043 = vrot.lane.b32.xlu0 %v2022, 16
        %v2044 = vpop.permute.xlu0 %2043
        %2045 = vrot.lane.b32.xlu0 %v2023, 16
        %v2046 = vpop.permute.xlu0 %2045
        %2047 = vrot.lane.b32.xlu0 %v2024, 16
        %v2048 = vpop.permute.xlu0 %2047
        %2049 = vrot.lane.b32.xlu0 %v2025, 16
        %v2050 = vpop.permute.xlu0 %2049
        %2051 = vrot.lane.b32.xlu0 %v2026, 16
        %v2052 = vpop.permute.xlu0 %2051
        %2053 = vrot.lane.b32.xlu0 %v2027, 16
        %v2054 = vpop.permute.xlu0 %2053
        %2055 = vrot.lane.b32.xlu0 %v2028, 16
        %v2056 = vpop.permute.xlu0 %2055
        %2057 = vrot.lane.b32.xlu0 %v2029, 16
        %v2058 = vpop.permute.xlu0 %2057
        %2059 = vrot.lane.b32.xlu0 %v2030, 16
        %v2060 = vpop.permute.xlu0 %2059
        %2061 = vrot.lane.b32.xlu0 %v2031, 16
        %v2062 = vpop.permute.xlu0 %2061
        %2063 = vrot.lane.b32.xlu0 %v2032, 16
        %v2064 = vpop.permute.xlu0 %2063
        %vm2081 = vcmask 162944
        %2082 = vst.msk [vmem:[#allocation2] sm:$0xff] %vm2081, %v2034
        %2083 = vst.msk [vmem:[#allocation2 + $0x8] sm:$0xff] %vm2081, %v2036
        %2084 = vst.msk [vmem:[#allocation2 + $0x10] sm:$0xff] %vm2081, %v2038
        %2085 = vst.msk [vmem:[#allocation2 + $0x18] sm:$0xff] %vm2081, %v2040
        %2086 = vst.msk [vmem:[#allocation2 + $0x20] sm:$0xff] %vm2081, %v2042
        %2087 = vst.msk [vmem:[#allocation2 + $0x28] sm:$0xff] %vm2081, %v2044
        %2088 = vst.msk [vmem:[#allocation2 + $0x30] sm:$0xff] %vm2081, %v2046
        %2089 = vst.msk [vmem:[#allocation2 + $0x38] sm:$0xff] %vm2081, %v2048
        %2090 = vst.msk [vmem:[#allocation2 + $0x40] sm:$0xff] %vm2081, %v2050
        %2091 = vst.msk [vmem:[#allocation2 + $0x48] sm:$0xff] %vm2081, %v2052
        %2092 = vst.msk [vmem:[#allocation2 + $0x50] sm:$0xff] %vm2081, %v2054
        %2093 = vst.msk [vmem:[#allocation2 + $0x58] sm:$0xff] %vm2081, %v2056
        %2094 = vst.msk [vmem:[#allocation2 + $0x60] sm:$0xff] %vm2081, %v2058
        %2095 = vst.msk [vmem:[#allocation2 + $0x68] sm:$0xff] %vm2081, %v2060
        %2096 = vst.msk [vmem:[#allocation2 + $0x70] sm:$0xff] %vm2081, %v2062
        %2097 = vst.msk [vmem:[#allocation2 + $0x78] sm:$0xff] %vm2081, %v2064
        %v2098 = vld [vmem:[%s1375] sm:$0xe]
        %v2099 = vld [vmem:[%s1375 + $0x4] sm:$0xf]
        %v2100 = vld [vmem:[%s1375 + $0x8] sm:$0x1]
        %v2101 = vld [vmem:[%s1375 + $0xc] sm:$0xe]
        %v2102 = vld [vmem:[%s1375 + $0x10] sm:$0xf]
        %v2103 = vld [vmem:[%s1375 + $0x14] sm:$0x1]
        %v2104 = vld [vmem:[%s1375 + $0x18] sm:$0xe]
        %v2105 = vld [vmem:[%s1375 + $0x1c] sm:$0xf]
        %v2106 = vld [vmem:[%s1375 + $0x20] sm:$0x1]
        %v2107 = vld [vmem:[%s1375 + $0x24] sm:$0xe]
        %v2108 = vld [vmem:[%s1375 + $0x28] sm:$0xf]
        %v2109 = vld [vmem:[%s1375 + $0x2c] sm:$0x1]
        %v2110 = vld [vmem:[%s1375 + $0x30] sm:$0xe]
        %v2111 = vld [vmem:[%s1375 + $0x34] sm:$0xf]
        %v2112 = vld [vmem:[%s1375 + $0x38] sm:$0x1]
        %v2113 = vld [vmem:[%s1375 + $0x3c] sm:$0xe]
        %v2114 = vld [vmem:[%s1375 + $0x40] sm:$0xf]
        %v2115 = vld [vmem:[%s1375 + $0x44] sm:$0x1]
        %v2116 = vld [vmem:[%s1375 + $0x48] sm:$0xe]
        %v2117 = vld [vmem:[%s1375 + $0x4c] sm:$0xf]
        %v2118 = vld [vmem:[%s1375 + $0x50] sm:$0x1]
        %v2119 = vld [vmem:[%s1375 + $0x54] sm:$0xe]
        %v2120 = vld [vmem:[%s1375 + $0x58] sm:$0xf]
        %v2121 = vld [vmem:[%s1375 + $0x5c] sm:$0x1]
        %v2122 = vld [vmem:[%s1375 + $0x60] sm:$0xe]
        %v2123 = vld [vmem:[%s1375 + $0x64] sm:$0xf]
        %v2124 = vld [vmem:[%s1375 + $0x68] sm:$0x1]
        %v2125 = vld [vmem:[%s1375 + $0x6c] sm:$0xe]
        %v2126 = vld [vmem:[%s1375 + $0x70] sm:$0xf]
        %v2127 = vld [vmem:[%s1375 + $0x74] sm:$0x1]
        %v2128 = vld [vmem:[%s1375 + $0x78] sm:$0xe]
        %v2129 = vld [vmem:[%s1375 + $0x7c] sm:$0xf]
        %v2130 = vld [vmem:[%s1375 + $0x80] sm:$0x1]
        %v2131 = vld [vmem:[%s1375 + $0x84] sm:$0xe]
        %v2132 = vld [vmem:[%s1375 + $0x88] sm:$0xf]
        %v2133 = vld [vmem:[%s1375 + $0x8c] sm:$0x1]
        %v2134 = vld [vmem:[%s1375 + $0x90] sm:$0xe]
        %v2135 = vld [vmem:[%s1375 + $0x94] sm:$0xf]
        %v2136 = vld [vmem:[%s1375 + $0x98] sm:$0x1]
        %v2137 = vld [vmem:[%s1375 + $0x9c] sm:$0xe]
        %v2138 = vld [vmem:[%s1375 + $0xa0] sm:$0xf]
        %v2139 = vld [vmem:[%s1375 + $0xa4] sm:$0x1]
        %v2140 = vld [vmem:[%s1375 + $0xa8] sm:$0xe]
        %v2141 = vld [vmem:[%s1375 + $0xac] sm:$0xf]
        %v2142 = vld [vmem:[%s1375 + $0xb0] sm:$0x1]
        %v2143 = vld [vmem:[%s1375 + $0xb4] sm:$0xe]
        %v2144 = vld [vmem:[%s1375 + $0xb8] sm:$0xf]
        %v2145 = vld [vmem:[%s1375 + $0xbc] sm:$0x1]
        %v2194 = vrot.slane %v2098, 5
        %v2195 = vrot.slane %v2194, 4
        %v2196 = vrot.slane %v2099, 5
        %v2197 = vsel %vm1149, %v2195, %v2196
        %v2198 = vrot.slane %v2196, 4
        %v2199 = vrot.slane %v2100, 5
        %v2200 = vsel %vm1149, %v2198, %v2199
        %v2201 = vrot.slane %v2101, 5
        %v2202 = vrot.slane %v2201, 4
        %v2203 = vrot.slane %v2102, 5
        %v2204 = vsel %vm1149, %v2202, %v2203
        %v2205 = vrot.slane %v2203, 4
        %v2206 = vrot.slane %v2103, 5
        %v2207 = vsel %vm1149, %v2205, %v2206
        %v2208 = vrot.slane %v2104, 5
        %v2209 = vrot.slane %v2208, 4
        %v2210 = vrot.slane %v2105, 5
        %v2211 = vsel %vm1149, %v2209, %v2210
        %v2212 = vrot.slane %v2210, 4
        %v2213 = vrot.slane %v2106, 5
        %v2214 = vsel %vm1149, %v2212, %v2213
        %v2215 = vrot.slane %v2107, 5
        %v2216 = vrot.slane %v2215, 4
        %v2217 = vrot.slane %v2108, 5
        %v2218 = vsel %vm1149, %v2216, %v2217
        %v2219 = vrot.slane %v2217, 4
        %v2220 = vrot.slane %v2109, 5
        %v2221 = vsel %vm1149, %v2219, %v2220
        %v2222 = vrot.slane %v2110, 5
        %v2223 = vrot.slane %v2222, 4
        %v2224 = vrot.slane %v2111, 5
        %v2225 = vsel %vm1149, %v2223, %v2224
        %v2226 = vrot.slane %v2224, 4
        %v2227 = vrot.slane %v2112, 5
        %v2228 = vsel %vm1149, %v2226, %v2227
        %v2229 = vrot.slane %v2113, 5
        %v2230 = vrot.slane %v2229, 4
        %v2231 = vrot.slane %v2114, 5
        %v2232 = vsel %vm1149, %v2230, %v2231
        %v2233 = vrot.slane %v2231, 4
        %v2234 = vrot.slane %v2115, 5
        %v2235 = vsel %vm1149, %v2233, %v2234
        %v2236 = vrot.slane %v2116, 5
        %v2237 = vrot.slane %v2236, 4
        %v2238 = vrot.slane %v2117, 5
        %v2239 = vsel %vm1149, %v2237, %v2238
        %v2240 = vrot.slane %v2238, 4
        %v2241 = vrot.slane %v2118, 5
        %v2242 = vsel %vm1149, %v2240, %v2241
        %v2243 = vrot.slane %v2119, 5
        %v2244 = vrot.slane %v2243, 4
        %v2245 = vrot.slane %v2120, 5
        %v2246 = vsel %vm1149, %v2244, %v2245
        %v2247 = vrot.slane %v2245, 4
        %v2248 = vrot.slane %v2121, 5
        %v2249 = vsel %vm1149, %v2247, %v2248
        %v2250 = vrot.slane %v2122, 5
        %v2251 = vrot.slane %v2250, 4
        %v2252 = vrot.slane %v2123, 5
        %v2253 = vsel %vm1149, %v2251, %v2252
        %v2254 = vrot.slane %v2252, 4
        %v2255 = vrot.slane %v2124, 5
        %v2256 = vsel %vm1149, %v2254, %v2255
        %v2257 = vrot.slane %v2125, 5
        %v2258 = vrot.slane %v2257, 4
        %v2259 = vrot.slane %v2126, 5
        %v2260 = vsel %vm1149, %v2258, %v2259
        %v2261 = vrot.slane %v2259, 4
        %v2262 = vrot.slane %v2127, 5
        %v2263 = vsel %vm1149, %v2261, %v2262
        %v2264 = vrot.slane %v2128, 5
        %v2265 = vrot.slane %v2264, 4
        %v2266 = vrot.slane %v2129, 5
        %v2267 = vsel %vm1149, %v2265, %v2266
        %v2268 = vrot.slane %v2266, 4
        %v2269 = vrot.slane %v2130, 5
        %v2270 = vsel %vm1149, %v2268, %v2269
        %v2271 = vrot.slane %v2131, 5
        %v2272 = vrot.slane %v2271, 4
        %v2273 = vrot.slane %v2132, 5
        %v2274 = vsel %vm1149, %v2272, %v2273
        %v2275 = vrot.slane %v2273, 4
        %v2276 = vrot.slane %v2133, 5
        %v2277 = vsel %vm1149, %v2275, %v2276
        %v2278 = vrot.slane %v2134, 5
        %v2279 = vrot.slane %v2278, 4
        %v2280 = vrot.slane %v2135, 5
        %v2281 = vsel %vm1149, %v2279, %v2280
        %v2282 = vrot.slane %v2280, 4
        %v2283 = vrot.slane %v2136, 5
        %v2284 = vsel %vm1149, %v2282, %v2283
        %v2285 = vrot.slane %v2137, 5
        %v2286 = vrot.slane %v2285, 4
        %v2287 = vrot.slane %v2138, 5
        %v2288 = vsel %vm1149, %v2286, %v2287
        %v2289 = vrot.slane %v2287, 4
        %v2290 = vrot.slane %v2139, 5
        %v2291 = vsel %vm1149, %v2289, %v2290
        %v2292 = vrot.slane %v2140, 5
        %v2293 = vrot.slane %v2292, 4
        %v2294 = vrot.slane %v2141, 5
        %v2295 = vsel %vm1149, %v2293, %v2294
        %v2296 = vrot.slane %v2294, 4
        %v2297 = vrot.slane %v2142, 5
        %v2298 = vsel %vm1149, %v2296, %v2297
        %v2299 = vrot.slane %v2143, 5
        %v2300 = vrot.slane %v2299, 4
        %v2301 = vrot.slane %v2144, 5
        %v2302 = vsel %vm1149, %v2300, %v2301
        %v2303 = vrot.slane %v2301, 4
        %v2304 = vrot.slane %v2145, 5
        %v2305 = vsel %vm1149, %v2303, %v2304
        %v2306 = vunpack.c.l.b16 %v2197
        %v2307 = vunpack.c.l.b16 %v2200
        %v2308 = vunpack.c.l.b16 %v2204
        %v2309 = vunpack.c.l.b16 %v2207
        %v2310 = vunpack.c.l.b16 %v2211
        %v2311 = vunpack.c.l.b16 %v2214
        %v2312 = vunpack.c.l.b16 %v2218
        %v2313 = vunpack.c.l.b16 %v2221
        %v2314 = vunpack.c.l.b16 %v2225
        %v2315 = vunpack.c.l.b16 %v2228
        %v2316 = vunpack.c.l.b16 %v2232
        %v2317 = vunpack.c.l.b16 %v2235
        %v2318 = vunpack.c.l.b16 %v2239
        %v2319 = vunpack.c.l.b16 %v2242
        %v2320 = vunpack.c.l.b16 %v2246
        %v2321 = vunpack.c.l.b16 %v2249
        %v2322 = vunpack.c.l.b16 %v2253
        %v2323 = vunpack.c.l.b16 %v2256
        %v2324 = vunpack.c.l.b16 %v2260
        %v2325 = vunpack.c.l.b16 %v2263
        %v2326 = vunpack.c.l.b16 %v2267
        %v2327 = vunpack.c.l.b16 %v2270
        %v2328 = vunpack.c.l.b16 %v2274
        %v2329 = vunpack.c.l.b16 %v2277
        %v2330 = vunpack.c.l.b16 %v2281
        %v2331 = vunpack.c.l.b16 %v2284
        %v2332 = vunpack.c.l.b16 %v2288
        %v2333 = vunpack.c.l.b16 %v2291
        %v2334 = vunpack.c.l.b16 %v2295
        %v2335 = vunpack.c.l.b16 %v2298
        %v2336 = vunpack.c.l.b16 %v2302
        %v2337 = vunpack.c.l.b16 %v2305
        %v2338 = vpack.c.b16 %v2307, %v2306
        %v2339 = vpack.c.b16 %v2309, %v2308
        %v2340 = vpack.c.b16 %v2311, %v2310
        %v2341 = vpack.c.b16 %v2313, %v2312
        %v2342 = vpack.c.b16 %v2315, %v2314
        %v2343 = vpack.c.b16 %v2317, %v2316
        %v2344 = vpack.c.b16 %v2319, %v2318
        %v2345 = vpack.c.b16 %v2321, %v2320
        %v2346 = vpack.c.b16 %v2323, %v2322
        %v2347 = vpack.c.b16 %v2325, %v2324
        %v2348 = vpack.c.b16 %v2327, %v2326
        %v2349 = vpack.c.b16 %v2329, %v2328
        %v2350 = vpack.c.b16 %v2331, %v2330
        %v2351 = vpack.c.b16 %v2333, %v2332
        %v2352 = vpack.c.b16 %v2335, %v2334
        %v2353 = vpack.c.b16 %v2337, %v2336
        %2354 = vrot.lane.b32.xlu0 %v2338, 20
        %v2355 = vpop.permute.xlu0 %2354
        %2356 = vrot.lane.b32.xlu0 %v2339, 20
        %v2357 = vpop.permute.xlu0 %2356
        %2358 = vrot.lane.b32.xlu0 %v2340, 20
        %v2359 = vpop.permute.xlu0 %2358
        %2360 = vrot.lane.b32.xlu0 %v2341, 20
        %v2361 = vpop.permute.xlu0 %2360
        %2362 = vrot.lane.b32.xlu0 %v2342, 20
        %v2363 = vpop.permute.xlu0 %2362
        %2364 = vrot.lane.b32.xlu0 %v2343, 20
        %v2365 = vpop.permute.xlu0 %2364
        %2366 = vrot.lane.b32.xlu0 %v2344, 20
        %v2367 = vpop.permute.xlu0 %2366
        %2368 = vrot.lane.b32.xlu0 %v2345, 20
        %v2369 = vpop.permute.xlu0 %2368
        %2370 = vrot.lane.b32.xlu0 %v2346, 20
        %v2371 = vpop.permute.xlu0 %2370
        %2372 = vrot.lane.b32.xlu0 %v2347, 20
        %v2373 = vpop.permute.xlu0 %2372
        %2374 = vrot.lane.b32.xlu0 %v2348, 20
        %v2375 = vpop.permute.xlu0 %2374
        %2376 = vrot.lane.b32.xlu0 %v2349, 20
        %v2377 = vpop.permute.xlu0 %2376
        %2378 = vrot.lane.b32.xlu0 %v2350, 20
        %v2379 = vpop.permute.xlu0 %2378
        %2380 = vrot.lane.b32.xlu0 %v2351, 20
        %v2381 = vpop.permute.xlu0 %2380
        %2382 = vrot.lane.b32.xlu0 %v2352, 20
        %v2383 = vpop.permute.xlu0 %2382
        %2384 = vrot.lane.b32.xlu0 %v2353, 20
        %v2385 = vpop.permute.xlu0 %2384
        %vm2402 = vcmask 195744
        %2403 = vst.msk [vmem:[#allocation2] sm:$0xff] %vm2402, %v2355
        %2404 = vst.msk [vmem:[#allocation2 + $0x8] sm:$0xff] %vm2402, %v2357
        %2405 = vst.msk [vmem:[#allocation2 + $0x10] sm:$0xff] %vm2402, %v2359
        %2406 = vst.msk [vmem:[#allocation2 + $0x18] sm:$0xff] %vm2402, %v2361
        %2407 = vst.msk [vmem:[#allocation2 + $0x20] sm:$0xff] %vm2402, %v2363
        %2408 = vst.msk [vmem:[#allocation2 + $0x28] sm:$0xff] %vm2402, %v2365
        %2409 = vst.msk [vmem:[#allocation2 + $0x30] sm:$0xff] %vm2402, %v2367
        %2410 = vst.msk [vmem:[#allocation2 + $0x38] sm:$0xff] %vm2402, %v2369
        %2411 = vst.msk [vmem:[#allocation2 + $0x40] sm:$0xff] %vm2402, %v2371
        %2412 = vst.msk [vmem:[#allocation2 + $0x48] sm:$0xff] %vm2402, %v2373
        %2413 = vst.msk [vmem:[#allocation2 + $0x50] sm:$0xff] %vm2402, %v2375
        %2414 = vst.msk [vmem:[#allocation2 + $0x58] sm:$0xff] %vm2402, %v2377
        %2415 = vst.msk [vmem:[#allocation2 + $0x60] sm:$0xff] %vm2402, %v2379
        %2416 = vst.msk [vmem:[#allocation2 + $0x68] sm:$0xff] %vm2402, %v2381
        %2417 = vst.msk [vmem:[#allocation2 + $0x70] sm:$0xff] %vm2402, %v2383
        %2418 = vst.msk [vmem:[#allocation2 + $0x78] sm:$0xff] %vm2402, %v2385
        %s2419 = scalar_lea.vmem %s356, 24
        %v2420 = vld [vmem:[%s2419] sm:$0xf]
        %v2421 = vld [vmem:[%s2419 + $0x4] sm:$0xf]
        %v2422 = vld [vmem:[%s2419 + $0xc] sm:$0xf]
        %v2423 = vld [vmem:[%s2419 + $0x10] sm:$0xf]
        %v2424 = vld [vmem:[%s2419 + $0x18] sm:$0xf]
        %v2425 = vld [vmem:[%s2419 + $0x1c] sm:$0xf]
        %v2426 = vld [vmem:[%s2419 + $0x24] sm:$0xf]
        %v2427 = vld [vmem:[%s2419 + $0x28] sm:$0xf]
        %v2428 = vld [vmem:[%s2419 + $0x30] sm:$0xf]
        %v2429 = vld [vmem:[%s2419 + $0x34] sm:$0xf]
        %v2430 = vld [vmem:[%s2419 + $0x3c] sm:$0xf]
        %v2431 = vld [vmem:[%s2419 + $0x40] sm:$0xf]
        %v2432 = vld [vmem:[%s2419 + $0x48] sm:$0xf]
        %v2433 = vld [vmem:[%s2419 + $0x4c] sm:$0xf]
        %v2434 = vld [vmem:[%s2419 + $0x54] sm:$0xf]
        %v2435 = vld [vmem:[%s2419 + $0x58] sm:$0xf]
        %v2436 = vld [vmem:[%s2419 + $0x60] sm:$0xf]
        %v2437 = vld [vmem:[%s2419 + $0x64] sm:$0xf]
        %v2438 = vld [vmem:[%s2419 + $0x6c] sm:$0xf]
        %v2439 = vld [vmem:[%s2419 + $0x70] sm:$0xf]
        %v2440 = vld [vmem:[%s2419 + $0x78] sm:$0xf]
        %v2441 = vld [vmem:[%s2419 + $0x7c] sm:$0xf]
        %v2442 = vld [vmem:[%s2419 + $0x84] sm:$0xf]
        %v2443 = vld [vmem:[%s2419 + $0x88] sm:$0xf]
        %v2444 = vld [vmem:[%s2419 + $0x90] sm:$0xf]
        %v2445 = vld [vmem:[%s2419 + $0x94] sm:$0xf]
        %v2446 = vld [vmem:[%s2419 + $0x9c] sm:$0xf]
        %v2447 = vld [vmem:[%s2419 + $0xa0] sm:$0xf]
        %v2448 = vld [vmem:[%s2419 + $0xa8] sm:$0xf]
        %v2449 = vld [vmem:[%s2419 + $0xac] sm:$0xf]
        %v2450 = vld [vmem:[%s2419 + $0xb4] sm:$0xf]
        %v2451 = vld [vmem:[%s2419 + $0xb8] sm:$0xf]
        %v2484 = vunpack.c.l.b16 %v2420
        %v2485 = vunpack.c.l.b16 %v2421
        %v2486 = vunpack.c.l.b16 %v2422
        %v2487 = vunpack.c.l.b16 %v2423
        %v2488 = vunpack.c.l.b16 %v2424
        %v2489 = vunpack.c.l.b16 %v2425
        %v2490 = vunpack.c.l.b16 %v2426
        %v2491 = vunpack.c.l.b16 %v2427
        %v2492 = vunpack.c.l.b16 %v2428
        %v2493 = vunpack.c.l.b16 %v2429
        %v2494 = vunpack.c.l.b16 %v2430
        %v2495 = vunpack.c.l.b16 %v2431
        %v2496 = vunpack.c.l.b16 %v2432
        %v2497 = vunpack.c.l.b16 %v2433
        %v2498 = vunpack.c.l.b16 %v2434
        %v2499 = vunpack.c.l.b16 %v2435
        %v2500 = vunpack.c.l.b16 %v2436
        %v2501 = vunpack.c.l.b16 %v2437
        %v2502 = vunpack.c.l.b16 %v2438
        %v2503 = vunpack.c.l.b16 %v2439
        %v2504 = vunpack.c.l.b16 %v2440
        %v2505 = vunpack.c.l.b16 %v2441
        %v2506 = vunpack.c.l.b16 %v2442
        %v2507 = vunpack.c.l.b16 %v2443
        %v2508 = vunpack.c.l.b16 %v2444
        %v2509 = vunpack.c.l.b16 %v2445
        %v2510 = vunpack.c.l.b16 %v2446
        %v2511 = vunpack.c.l.b16 %v2447
        %v2512 = vunpack.c.l.b16 %v2448
        %v2513 = vunpack.c.l.b16 %v2449
        %v2514 = vunpack.c.l.b16 %v2450
        %v2515 = vunpack.c.l.b16 %v2451
        %v2516 = vpack.c.b16 %v2485, %v2484
        %v2517 = vpack.c.b16 %v2487, %v2486
        %v2518 = vpack.c.b16 %v2489, %v2488
        %v2519 = vpack.c.b16 %v2491, %v2490
        %v2520 = vpack.c.b16 %v2493, %v2492
        %v2521 = vpack.c.b16 %v2495, %v2494
        %v2522 = vpack.c.b16 %v2497, %v2496
        %v2523 = vpack.c.b16 %v2499, %v2498
        %v2524 = vpack.c.b16 %v2501, %v2500
        %v2525 = vpack.c.b16 %v2503, %v2502
        %v2526 = vpack.c.b16 %v2505, %v2504
        %v2527 = vpack.c.b16 %v2507, %v2506
        %v2528 = vpack.c.b16 %v2509, %v2508
        %v2529 = vpack.c.b16 %v2511, %v2510
        %v2530 = vpack.c.b16 %v2513, %v2512
        %v2531 = vpack.c.b16 %v2515, %v2514
        %2532 = vrot.lane.b32.xlu0 %v2516, 24
        %v2533 = vpop.permute.xlu0 %2532
        %2534 = vrot.lane.b32.xlu0 %v2517, 24
        %v2535 = vpop.permute.xlu0 %2534
        %2536 = vrot.lane.b32.xlu0 %v2518, 24
        %v2537 = vpop.permute.xlu0 %2536
        %2538 = vrot.lane.b32.xlu0 %v2519, 24
        %v2539 = vpop.permute.xlu0 %2538
        %2540 = vrot.lane.b32.xlu0 %v2520, 24
        %v2541 = vpop.permute.xlu0 %2540
        %2542 = vrot.lane.b32.xlu0 %v2521, 24
        %v2543 = vpop.permute.xlu0 %2542
        %2544 = vrot.lane.b32.xlu0 %v2522, 24
        %v2545 = vpop.permute.xlu0 %2544
        %2546 = vrot.lane.b32.xlu0 %v2523, 24
        %v2547 = vpop.permute.xlu0 %2546
        %2548 = vrot.lane.b32.xlu0 %v2524, 24
        %v2549 = vpop.permute.xlu0 %2548
        %2550 = vrot.lane.b32.xlu0 %v2525, 24
        %v2551 = vpop.permute.xlu0 %2550
        %2552 = vrot.lane.b32.xlu0 %v2526, 24
        %v2553 = vpop.permute.xlu0 %2552
        %2554 = vrot.lane.b32.xlu0 %v2527, 24
        %v2555 = vpop.permute.xlu0 %2554
        %2556 = vrot.lane.b32.xlu0 %v2528, 24
        %v2557 = vpop.permute.xlu0 %2556
        %2558 = vrot.lane.b32.xlu0 %v2529, 24
        %v2559 = vpop.permute.xlu0 %2558
        %2560 = vrot.lane.b32.xlu0 %v2530, 24
        %v2561 = vpop.permute.xlu0 %2560
        %2562 = vrot.lane.b32.xlu0 %v2531, 24
        %v2563 = vpop.permute.xlu0 %2562
        %vm2580 = vcmask 228544
        %2581 = vst.msk [vmem:[#allocation2] sm:$0xff] %vm2580, %v2533
        %2582 = vst.msk [vmem:[#allocation2 + $0x8] sm:$0xff] %vm2580, %v2535
        %2583 = vst.msk [vmem:[#allocation2 + $0x10] sm:$0xff] %vm2580, %v2537
        %2584 = vst.msk [vmem:[#allocation2 + $0x18] sm:$0xff] %vm2580, %v2539
        %2585 = vst.msk [vmem:[#allocation2 + $0x20] sm:$0xff] %vm2580, %v2541
        %2586 = vst.msk [vmem:[#allocation2 + $0x28] sm:$0xff] %vm2580, %v2543
        %2587 = vst.msk [vmem:[#allocation2 + $0x30] sm:$0xff] %vm2580, %v2545
        %2588 = vst.msk [vmem:[#allocation2 + $0x38] sm:$0xff] %vm2580, %v2547
        %2589 = vst.msk [vmem:[#allocation2 + $0x40] sm:$0xff] %vm2580, %v2549
        %2590 = vst.msk [vmem:[#allocation2 + $0x48] sm:$0xff] %vm2580, %v2551
        %2591 = vst.msk [vmem:[#allocation2 + $0x50] sm:$0xff] %vm2580, %v2553
        %2592 = vst.msk [vmem:[#allocation2 + $0x58] sm:$0xff] %vm2580, %v2555
        %2593 = vst.msk [vmem:[#allocation2 + $0x60] sm:$0xff] %vm2580, %v2557
        %2594 = vst.msk [vmem:[#allocation2 + $0x68] sm:$0xff] %vm2580, %v2559
        %2595 = vst.msk [vmem:[#allocation2 + $0x70] sm:$0xff] %vm2580, %v2561
        %2596 = vst.msk [vmem:[#allocation2 + $0x78] sm:$0xff] %vm2580, %v2563
        %v2597 = vld [vmem:[%s2419] sm:$0xf]
        %v2598 = vld [vmem:[%s2419 + $0x4] sm:$0xf]
        %v2599 = vld [vmem:[%s2419 + $0x8] sm:$0x1]
        %v2600 = vld [vmem:[%s2419 + $0xc] sm:$0xf]
        %v2601 = vld [vmem:[%s2419 + $0x10] sm:$0xf]
        %v2602 = vld [vmem:[%s2419 + $0x14] sm:$0x1]
        %v2603 = vld [vmem:[%s2419 + $0x18] sm:$0xf]
        %v2604 = vld [vmem:[%s2419 + $0x1c] sm:$0xf]
        %v2605 = vld [vmem:[%s2419 + $0x20] sm:$0x1]
        %v2606 = vld [vmem:[%s2419 + $0x24] sm:$0xf]
        %v2607 = vld [vmem:[%s2419 + $0x28] sm:$0xf]
        %v2608 = vld [vmem:[%s2419 + $0x2c] sm:$0x1]
        %v2609 = vld [vmem:[%s2419 + $0x30] sm:$0xf]
        %v2610 = vld [vmem:[%s2419 + $0x34] sm:$0xf]
        %v2611 = vld [vmem:[%s2419 + $0x38] sm:$0x1]
        %v2612 = vld [vmem:[%s2419 + $0x3c] sm:$0xf]
        %v2613 = vld [vmem:[%s2419 + $0x40] sm:$0xf]
        %v2614 = vld [vmem:[%s2419 + $0x44] sm:$0x1]
        %v2615 = vld [vmem:[%s2419 + $0x48] sm:$0xf]
        %v2616 = vld [vmem:[%s2419 + $0x4c] sm:$0xf]
        %v2617 = vld [vmem:[%s2419 + $0x50] sm:$0x1]
        %v2618 = vld [vmem:[%s2419 + $0x54] sm:$0xf]
        %v2619 = vld [vmem:[%s2419 + $0x58] sm:$0xf]
        %v2620 = vld [vmem:[%s2419 + $0x5c] sm:$0x1]
        %v2621 = vld [vmem:[%s2419 + $0x60] sm:$0xf]
        %v2622 = vld [vmem:[%s2419 + $0x64] sm:$0xf]
        %v2623 = vld [vmem:[%s2419 + $0x68] sm:$0x1]
        %v2624 = vld [vmem:[%s2419 + $0x6c] sm:$0xf]
        %v2625 = vld [vmem:[%s2419 + $0x70] sm:$0xf]
        %v2626 = vld [vmem:[%s2419 + $0x74] sm:$0x1]
        %v2627 = vld [vmem:[%s2419 + $0x78] sm:$0xf]
        %v2628 = vld [vmem:[%s2419 + $0x7c] sm:$0xf]
        %v2629 = vld [vmem:[%s2419 + $0x80] sm:$0x1]
        %v2630 = vld [vmem:[%s2419 + $0x84] sm:$0xf]
        %v2631 = vld [vmem:[%s2419 + $0x88] sm:$0xf]
        %v2632 = vld [vmem:[%s2419 + $0x8c] sm:$0x1]
        %v2633 = vld [vmem:[%s2419 + $0x90] sm:$0xf]
        %v2634 = vld [vmem:[%s2419 + $0x94] sm:$0xf]
        %v2635 = vld [vmem:[%s2419 + $0x98] sm:$0x1]
        %v2636 = vld [vmem:[%s2419 + $0x9c] sm:$0xf]
        %v2637 = vld [vmem:[%s2419 + $0xa0] sm:$0xf]
        %v2638 = vld [vmem:[%s2419 + $0xa4] sm:$0x1]
        %v2639 = vld [vmem:[%s2419 + $0xa8] sm:$0xf]
        %v2640 = vld [vmem:[%s2419 + $0xac] sm:$0xf]
        %v2641 = vld [vmem:[%s2419 + $0xb0] sm:$0x1]
        %v2642 = vld [vmem:[%s2419 + $0xb4] sm:$0xf]
        %v2643 = vld [vmem:[%s2419 + $0xb8] sm:$0xf]
        %v2644 = vld [vmem:[%s2419 + $0xbc] sm:$0x1]
        %v2646 = vshrl.u32 %v2597, 16
        %v2648 = vrot.slane %v2646, 4
        %v2649 = vshll.u32 %v2597, 16
        %v2651 = vrot.slane %v2649, 5
        %v2652 = vor.u32 %v2648, %v2651
        %v2653 = vrot.slane %v2652, 4
        %v2655 = vshll.u32 %v2598, 16
        %v2657 = vrot.slane %v2655, 5
        %v2658 = vsel %vm553, %v2653, %v2657
        %v2659 = vshrl.u32 %v2598, 16
        %v2661 = vrot.slane %v2659, 4
        %v2662 = vor.u32 %v2661, %v2657
        %v2663 = vrot.slane %v2662, 4
        %v2665 = vshll.u32 %v2599, 16
        %v2667 = vrot.slane %v2665, 5
        %v2668 = vsel %vm553, %v2663, %v2667
        %v2670 = vshrl.u32 %v2600, 16
        %v2672 = vrot.slane %v2670, 4
        %v2673 = vshll.u32 %v2600, 16
        %v2675 = vrot.slane %v2673, 5
        %v2676 = vor.u32 %v2672, %v2675
        %v2677 = vrot.slane %v2676, 4
        %v2679 = vshll.u32 %v2601, 16
        %v2681 = vrot.slane %v2679, 5
        %v2682 = vsel %vm553, %v2677, %v2681
        %v2683 = vshrl.u32 %v2601, 16
        %v2685 = vrot.slane %v2683, 4
        %v2686 = vor.u32 %v2685, %v2681
        %v2687 = vrot.slane %v2686, 4
        %v2689 = vshll.u32 %v2602, 16
        %v2691 = vrot.slane %v2689, 5
        %v2692 = vsel %vm553, %v2687, %v2691
        %v2694 = vshrl.u32 %v2603, 16
        %v2696 = vrot.slane %v2694, 4
        %v2697 = vshll.u32 %v2603, 16
        %v2699 = vrot.slane %v2697, 5
        %v2700 = vor.u32 %v2696, %v2699
        %v2701 = vrot.slane %v2700, 4
        %v2703 = vshll.u32 %v2604, 16
        %v2705 = vrot.slane %v2703, 5
        %v2706 = vsel %vm553, %v2701, %v2705
        %v2707 = vshrl.u32 %v2604, 16
        %v2709 = vrot.slane %v2707, 4
        %v2710 = vor.u32 %v2709, %v2705
        %v2711 = vrot.slane %v2710, 4
        %v2713 = vshll.u32 %v2605, 16
        %v2715 = vrot.slane %v2713, 5
        %v2716 = vsel %vm553, %v2711, %v2715
        %v2718 = vshrl.u32 %v2606, 16
        %v2720 = vrot.slane %v2718, 4
        %v2721 = vshll.u32 %v2606, 16
        %v2723 = vrot.slane %v2721, 5
        %v2724 = vor.u32 %v2720, %v2723
        %v2725 = vrot.slane %v2724, 4
        %v2727 = vshll.u32 %v2607, 16
        %v2729 = vrot.slane %v2727, 5
        %v2730 = vsel %vm553, %v2725, %v2729
        %v2731 = vshrl.u32 %v2607, 16
        %v2733 = vrot.slane %v2731, 4
        %v2734 = vor.u32 %v2733, %v2729
        %v2735 = vrot.slane %v2734, 4
        %v2737 = vshll.u32 %v2608, 16
        %v2739 = vrot.slane %v2737, 5
        %v2740 = vsel %vm553, %v2735, %v2739
        %v2742 = vshrl.u32 %v2609, 16
        %v2744 = vrot.slane %v2742, 4
        %v2745 = vshll.u32 %v2609, 16
        %v2747 = vrot.slane %v2745, 5
        %v2748 = vor.u32 %v2744, %v2747
        %v2749 = vrot.slane %v2748, 4
        %v2751 = vshll.u32 %v2610, 16
        %v2753 = vrot.slane %v2751, 5
        %v2754 = vsel %vm553, %v2749, %v2753
        %v2755 = vshrl.u32 %v2610, 16
        %v2757 = vrot.slane %v2755, 4
        %v2758 = vor.u32 %v2757, %v2753
        %v2759 = vrot.slane %v2758, 4
        %v2761 = vshll.u32 %v2611, 16
        %v2763 = vrot.slane %v2761, 5
        %v2764 = vsel %vm553, %v2759, %v2763
        %v2766 = vshrl.u32 %v2612, 16
        %v2768 = vrot.slane %v2766, 4
        %v2769 = vshll.u32 %v2612, 16
        %v2771 = vrot.slane %v2769, 5
        %v2772 = vor.u32 %v2768, %v2771
        %v2773 = vrot.slane %v2772, 4
        %v2775 = vshll.u32 %v2613, 16
        %v2777 = vrot.slane %v2775, 5
        %v2778 = vsel %vm553, %v2773, %v2777
        %v2779 = vshrl.u32 %v2613, 16
        %v2781 = vrot.slane %v2779, 4
        %v2782 = vor.u32 %v2781, %v2777
        %v2783 = vrot.slane %v2782, 4
        %v2785 = vshll.u32 %v2614, 16
        %v2787 = vrot.slane %v2785, 5
        %v2788 = vsel %vm553, %v2783, %v2787
        %v2790 = vshrl.u32 %v2615, 16
        %v2792 = vrot.slane %v2790, 4
        %v2793 = vshll.u32 %v2615, 16
        %v2795 = vrot.slane %v2793, 5
        %v2796 = vor.u32 %v2792, %v2795
        %v2797 = vrot.slane %v2796, 4
        %v2799 = vshll.u32 %v2616, 16
        %v2801 = vrot.slane %v2799, 5
        %v2802 = vsel %vm553, %v2797, %v2801
        %v2803 = vshrl.u32 %v2616, 16
        %v2805 = vrot.slane %v2803, 4
        %v2806 = vor.u32 %v2805, %v2801
        %v2807 = vrot.slane %v2806, 4
        %v2809 = vshll.u32 %v2617, 16
        %v2811 = vrot.slane %v2809, 5
        %v2812 = vsel %vm553, %v2807, %v2811
        %v2814 = vshrl.u32 %v2618, 16
        %v2816 = vrot.slane %v2814, 4
        %v2817 = vshll.u32 %v2618, 16
        %v2819 = vrot.slane %v2817, 5
        %v2820 = vor.u32 %v2816, %v2819
        %v2821 = vrot.slane %v2820, 4
        %v2823 = vshll.u32 %v2619, 16
        %v2825 = vrot.slane %v2823, 5
        %v2826 = vsel %vm553, %v2821, %v2825
        %v2827 = vshrl.u32 %v2619, 16
        %v2829 = vrot.slane %v2827, 4
        %v2830 = vor.u32 %v2829, %v2825
        %v2831 = vrot.slane %v2830, 4
        %v2833 = vshll.u32 %v2620, 16
        %v2835 = vrot.slane %v2833, 5
        %v2836 = vsel %vm553, %v2831, %v2835
        %v2838 = vshrl.u32 %v2621, 16
        %v2840 = vrot.slane %v2838, 4
        %v2841 = vshll.u32 %v2621, 16
        %v2843 = vrot.slane %v2841, 5
        %v2844 = vor.u32 %v2840, %v2843
        %v2845 = vrot.slane %v2844, 4
        %v2847 = vshll.u32 %v2622, 16
        %v2849 = vrot.slane %v2847, 5
        %v2850 = vsel %vm553, %v2845, %v2849
        %v2851 = vshrl.u32 %v2622, 16
        %v2853 = vrot.slane %v2851, 4
        %v2854 = vor.u32 %v2853, %v2849
        %v2855 = vrot.slane %v2854, 4
        %v2857 = vshll.u32 %v2623, 16
        %v2859 = vrot.slane %v2857, 5
        %v2860 = vsel %vm553, %v2855, %v2859
        %v2862 = vshrl.u32 %v2624, 16
        %v2864 = vrot.slane %v2862, 4
        %v2865 = vshll.u32 %v2624, 16
        %v2867 = vrot.slane %v2865, 5
        %v2868 = vor.u32 %v2864, %v2867
        %v2869 = vrot.slane %v2868, 4
        %v2871 = vshll.u32 %v2625, 16
        %v2873 = vrot.slane %v2871, 5
        %v2874 = vsel %vm553, %v2869, %v2873
        %v2875 = vshrl.u32 %v2625, 16
        %v2877 = vrot.slane %v2875, 4
        %v2878 = vor.u32 %v2877, %v2873
        %v2879 = vrot.slane %v2878, 4
        %v2881 = vshll.u32 %v2626, 16
        %v2883 = vrot.slane %v2881, 5
        %v2884 = vsel %vm553, %v2879, %v2883
        %v2886 = vshrl.u32 %v2627, 16
        %v2888 = vrot.slane %v2886, 4
        %v2889 = vshll.u32 %v2627, 16
        %v2891 = vrot.slane %v2889, 5
        %v2892 = vor.u32 %v2888, %v2891
        %v2893 = vrot.slane %v2892, 4
        %v2895 = vshll.u32 %v2628, 16
        %v2897 = vrot.slane %v2895, 5
        %v2898 = vsel %vm553, %v2893, %v2897
        %v2899 = vshrl.u32 %v2628, 16
        %v2901 = vrot.slane %v2899, 4
        %v2902 = vor.u32 %v2901, %v2897
        %v2903 = vrot.slane %v2902, 4
        %v2905 = vshll.u32 %v2629, 16
        %v2907 = vrot.slane %v2905, 5
        %v2908 = vsel %vm553, %v2903, %v2907
        %v2910 = vshrl.u32 %v2630, 16
        %v2912 = vrot.slane %v2910, 4
        %v2913 = vshll.u32 %v2630, 16
        %v2915 = vrot.slane %v2913, 5
        %v2916 = vor.u32 %v2912, %v2915
        %v2917 = vrot.slane %v2916, 4
        %v2919 = vshll.u32 %v2631, 16
        %v2921 = vrot.slane %v2919, 5
        %v2922 = vsel %vm553, %v2917, %v2921
        %v2923 = vshrl.u32 %v2631, 16
        %v2925 = vrot.slane %v2923, 4
        %v2926 = vor.u32 %v2925, %v2921
        %v2927 = vrot.slane %v2926, 4
        %v2929 = vshll.u32 %v2632, 16
        %v2931 = vrot.slane %v2929, 5
        %v2932 = vsel %vm553, %v2927, %v2931
        %v2934 = vshrl.u32 %v2633, 16
        %v2936 = vrot.slane %v2934, 4
        %v2937 = vshll.u32 %v2633, 16
        %v2939 = vrot.slane %v2937, 5
        %v2940 = vor.u32 %v2936, %v2939
        %v2941 = vrot.slane %v2940, 4
        %v2943 = vshll.u32 %v2634, 16
        %v2945 = vrot.slane %v2943, 5
        %v2946 = vsel %vm553, %v2941, %v2945
        %v2947 = vshrl.u32 %v2634, 16
        %v2949 = vrot.slane %v2947, 4
        %v2950 = vor.u32 %v2949, %v2945
        %v2951 = vrot.slane %v2950, 4
        %v2953 = vshll.u32 %v2635, 16
        %v2955 = vrot.slane %v2953, 5
        %v2956 = vsel %vm553, %v2951, %v2955
        %v2958 = vshrl.u32 %v2636, 16
        %v2960 = vrot.slane %v2958, 4
        %v2961 = vshll.u32 %v2636, 16
        %v2963 = vrot.slane %v2961, 5
        %v2964 = vor.u32 %v2960, %v2963
        %v2965 = vrot.slane %v2964, 4
        %v2967 = vshll.u32 %v2637, 16
        %v2969 = vrot.slane %v2967, 5
        %v2970 = vsel %vm553, %v2965, %v2969
        %v2971 = vshrl.u32 %v2637, 16
        %v2973 = vrot.slane %v2971, 4
        %v2974 = vor.u32 %v2973, %v2969
        %v2975 = vrot.slane %v2974, 4
        %v2977 = vshll.u32 %v2638, 16
        %v2979 = vrot.slane %v2977, 5
        %v2980 = vsel %vm553, %v2975, %v2979
        %v2982 = vshrl.u32 %v2639, 16
        %v2984 = vrot.slane %v2982, 4
        %v2985 = vshll.u32 %v2639, 16
        %v2987 = vrot.slane %v2985, 5
        %v2988 = vor.u32 %v2984, %v2987
        %v2989 = vrot.slane %v2988, 4
        %v2991 = vshll.u32 %v2640, 16
        %v2993 = vrot.slane %v2991, 5
        %v2994 = vsel %vm553, %v2989, %v2993
        %v2995 = vshrl.u32 %v2640, 16
        %v2997 = vrot.slane %v2995, 4
        %v2998 = vor.u32 %v2997, %v2993
        %v2999 = vrot.slane %v2998, 4
        %v3001 = vshll.u32 %v2641, 16
        %v3003 = vrot.slane %v3001, 5
        %v3004 = vsel %vm553, %v2999, %v3003
        %v3006 = vshrl.u32 %v2642, 16
        %v3008 = vrot.slane %v3006, 4
        %v3009 = vshll.u32 %v2642, 16
        %v3011 = vrot.slane %v3009, 5
        %v3012 = vor.u32 %v3008, %v3011
        %v3013 = vrot.slane %v3012, 4
        %v3015 = vshll.u32 %v2643, 16
        %v3017 = vrot.slane %v3015, 5
        %v3018 = vsel %vm553, %v3013, %v3017
        %v3019 = vshrl.u32 %v2643, 16
        %v3021 = vrot.slane %v3019, 4
        %v3022 = vor.u32 %v3021, %v3017
        %v3023 = vrot.slane %v3022, 4
        %v3025 = vshll.u32 %v2644, 16
        %v3027 = vrot.slane %v3025, 5
        %v3028 = vsel %vm553, %v3023, %v3027
        %v3029 = vunpack.c.l.b16 %v2658
        %v3030 = vunpack.c.l.b16 %v2668
        %v3031 = vunpack.c.l.b16 %v2682
        %v3032 = vunpack.c.l.b16 %v2692
        %v3033 = vunpack.c.l.b16 %v2706
        %v3034 = vunpack.c.l.b16 %v2716
        %v3035 = vunpack.c.l.b16 %v2730
        %v3036 = vunpack.c.l.b16 %v2740
        %v3037 = vunpack.c.l.b16 %v2754
        %v3038 = vunpack.c.l.b16 %v2764
        %v3039 = vunpack.c.l.b16 %v2778
        %v3040 = vunpack.c.l.b16 %v2788
        %v3041 = vunpack.c.l.b16 %v2802
        %v3042 = vunpack.c.l.b16 %v2812
        %v3043 = vunpack.c.l.b16 %v2826
        %v3044 = vunpack.c.l.b16 %v2836
        %v3045 = vunpack.c.l.b16 %v2850
        %v3046 = vunpack.c.l.b16 %v2860
        %v3047 = vunpack.c.l.b16 %v2874
        %v3048 = vunpack.c.l.b16 %v2884
        %v3049 = vunpack.c.l.b16 %v2898
        %v3050 = vunpack.c.l.b16 %v2908
        %v3051 = vunpack.c.l.b16 %v2922
        %v3052 = vunpack.c.l.b16 %v2932
        %v3053 = vunpack.c.l.b16 %v2946
        %v3054 = vunpack.c.l.b16 %v2956
        %v3055 = vunpack.c.l.b16 %v2970
        %v3056 = vunpack.c.l.b16 %v2980
        %v3057 = vunpack.c.l.b16 %v2994
        %v3058 = vunpack.c.l.b16 %v3004
        %v3059 = vunpack.c.l.b16 %v3018
        %v3060 = vunpack.c.l.b16 %v3028
        %v3061 = vpack.c.b16 %v3030, %v3029
        %v3062 = vpack.c.b16 %v3032, %v3031
        %v3063 = vpack.c.b16 %v3034, %v3033
        %v3064 = vpack.c.b16 %v3036, %v3035
        %v3065 = vpack.c.b16 %v3038, %v3037
        %v3066 = vpack.c.b16 %v3040, %v3039
        %v3067 = vpack.c.b16 %v3042, %v3041
        %v3068 = vpack.c.b16 %v3044, %v3043
        %v3069 = vpack.c.b16 %v3046, %v3045
        %v3070 = vpack.c.b16 %v3048, %v3047
        %v3071 = vpack.c.b16 %v3050, %v3049
        %v3072 = vpack.c.b16 %v3052, %v3051
        %v3073 = vpack.c.b16 %v3054, %v3053
        %v3074 = vpack.c.b16 %v3056, %v3055
        %v3075 = vpack.c.b16 %v3058, %v3057
        %v3076 = vpack.c.b16 %v3060, %v3059
        %3077 = vrot.lane.b32.xlu0 %v3061, 28
        %v3078 = vpop.permute.xlu0 %3077
        %3079 = vrot.lane.b32.xlu0 %v3062, 28
        %v3080 = vpop.permute.xlu0 %3079
        %3081 = vrot.lane.b32.xlu0 %v3063, 28
        %v3082 = vpop.permute.xlu0 %3081
        %3083 = vrot.lane.b32.xlu0 %v3064, 28
        %v3084 = vpop.permute.xlu0 %3083
        %3085 = vrot.lane.b32.xlu0 %v3065, 28
        %v3086 = vpop.permute.xlu0 %3085
        %3087 = vrot.lane.b32.xlu0 %v3066, 28
        %v3088 = vpop.permute.xlu0 %3087
        %3089 = vrot.lane.b32.xlu0 %v3067, 28
        %v3090 = vpop.permute.xlu0 %3089
        %3091 = vrot.lane.b32.xlu0 %v3068, 28
        %v3092 = vpop.permute.xlu0 %3091
        %3093 = vrot.lane.b32.xlu0 %v3069, 28
        %v3094 = vpop.permute.xlu0 %3093
        %3095 = vrot.lane.b32.xlu0 %v3070, 28
        %v3096 = vpop.permute.xlu0 %3095
        %3097 = vrot.lane.b32.xlu0 %v3071, 28
        %v3098 = vpop.permute.xlu0 %3097
        %3099 = vrot.lane.b32.xlu0 %v3072, 28
        %v3100 = vpop.permute.xlu0 %3099
        %3101 = vrot.lane.b32.xlu0 %v3073, 28
        %v3102 = vpop.permute.xlu0 %3101
        %3103 = vrot.lane.b32.xlu0 %v3074, 28
        %v3104 = vpop.permute.xlu0 %3103
        %3105 = vrot.lane.b32.xlu0 %v3075, 28
        %v3106 = vpop.permute.xlu0 %3105
        %3107 = vrot.lane.b32.xlu0 %v3076, 28
        %v3108 = vpop.permute.xlu0 %3107
        %vm3125 = vcmask 261344
        %3126 = vst.msk [vmem:[#allocation2] sm:$0xff] %vm3125, %v3078
        %3127 = vst.msk [vmem:[#allocation2 + $0x8] sm:$0xff] %vm3125, %v3080
        %3128 = vst.msk [vmem:[#allocation2 + $0x10] sm:$0xff] %vm3125, %v3082
        %3129 = vst.msk [vmem:[#allocation2 + $0x18] sm:$0xff] %vm3125, %v3084
        %3130 = vst.msk [vmem:[#allocation2 + $0x20] sm:$0xff] %vm3125, %v3086
        %3131 = vst.msk [vmem:[#allocation2 + $0x28] sm:$0xff] %vm3125, %v3088
        %3132 = vst.msk [vmem:[#allocation2 + $0x30] sm:$0xff] %vm3125, %v3090
        %3133 = vst.msk [vmem:[#allocation2 + $0x38] sm:$0xff] %vm3125, %v3092
        %3134 = vst.msk [vmem:[#allocation2 + $0x40] sm:$0xff] %vm3125, %v3094
        %3135 = vst.msk [vmem:[#allocation2 + $0x48] sm:$0xff] %vm3125, %v3096
        %3136 = vst.msk [vmem:[#allocation2 + $0x50] sm:$0xff] %vm3125, %v3098
        %3137 = vst.msk [vmem:[#allocation2 + $0x58] sm:$0xff] %vm3125, %v3100
        %3138 = vst.msk [vmem:[#allocation2 + $0x60] sm:$0xff] %vm3125, %v3102
        %3139 = vst.msk [vmem:[#allocation2 + $0x68] sm:$0xff] %vm3125, %v3104
        %3140 = vst.msk [vmem:[#allocation2 + $0x70] sm:$0xff] %vm3125, %v3106
        %3141 = vst.msk [vmem:[#allocation2 + $0x78] sm:$0xff] %vm3125, %v3108
        %v3142 = vld [vmem:[%s2419] sm:$0xe]
        %v3143 = vld [vmem:[%s2419 + $0x4] sm:$0xf]
        %v3144 = vld [vmem:[%s2419 + $0x8] sm:$0x1]
        %v3145 = vld [vmem:[%s2419 + $0xc] sm:$0xe]
        %v3146 = vld [vmem:[%s2419 + $0x10] sm:$0xf]
        %v3147 = vld [vmem:[%s2419 + $0x14] sm:$0x1]
        %v3148 = vld [vmem:[%s2419 + $0x18] sm:$0xe]
        %v3149 = vld [vmem:[%s2419 + $0x1c] sm:$0xf]
        %v3150 = vld [vmem:[%s2419 + $0x20] sm:$0x1]
        %v3151 = vld [vmem:[%s2419 + $0x24] sm:$0xe]
        %v3152 = vld [vmem:[%s2419 + $0x28] sm:$0xf]
        %v3153 = vld [vmem:[%s2419 + $0x2c] sm:$0x1]
        %v3154 = vld [vmem:[%s2419 + $0x30] sm:$0xe]
        %v3155 = vld [vmem:[%s2419 + $0x34] sm:$0xf]
        %v3156 = vld [vmem:[%s2419 + $0x38] sm:$0x1]
        %v3157 = vld [vmem:[%s2419 + $0x3c] sm:$0xe]
        %v3158 = vld [vmem:[%s2419 + $0x40] sm:$0xf]
        %v3159 = vld [vmem:[%s2419 + $0x44] sm:$0x1]
        %v3160 = vld [vmem:[%s2419 + $0x48] sm:$0xe]
        %v3161 = vld [vmem:[%s2419 + $0x4c] sm:$0xf]
        %v3162 = vld [vmem:[%s2419 + $0x50] sm:$0x1]
        %v3163 = vld [vmem:[%s2419 + $0x54] sm:$0xe]
        %v3164 = vld [vmem:[%s2419 + $0x58] sm:$0xf]
        %v3165 = vld [vmem:[%s2419 + $0x5c] sm:$0x1]
        %v3166 = vld [vmem:[%s2419 + $0x60] sm:$0xe]
        %v3167 = vld [vmem:[%s2419 + $0x64] sm:$0xf]
        %v3168 = vld [vmem:[%s2419 + $0x68] sm:$0x1]
        %v3169 = vld [vmem:[%s2419 + $0x6c] sm:$0xe]
        %v3170 = vld [vmem:[%s2419 + $0x70] sm:$0xf]
        %v3171 = vld [vmem:[%s2419 + $0x74] sm:$0x1]
        %v3172 = vld [vmem:[%s2419 + $0x78] sm:$0xe]
        %v3173 = vld [vmem:[%s2419 + $0x7c] sm:$0xf]
        %v3174 = vld [vmem:[%s2419 + $0x80] sm:$0x1]
        %v3175 = vld [vmem:[%s2419 + $0x84] sm:$0xe]
        %v3176 = vld [vmem:[%s2419 + $0x88] sm:$0xf]
        %v3177 = vld [vmem:[%s2419 + $0x8c] sm:$0x1]
        %v3178 = vld [vmem:[%s2419 + $0x90] sm:$0xe]
        %v3179 = vld [vmem:[%s2419 + $0x94] sm:$0xf]
        %v3180 = vld [vmem:[%s2419 + $0x98] sm:$0x1]
        %v3181 = vld [vmem:[%s2419 + $0x9c] sm:$0xe]
        %v3182 = vld [vmem:[%s2419 + $0xa0] sm:$0xf]
        %v3183 = vld [vmem:[%s2419 + $0xa4] sm:$0x1]
        %v3184 = vld [vmem:[%s2419 + $0xa8] sm:$0xe]
        %v3185 = vld [vmem:[%s2419 + $0xac] sm:$0xf]
        %v3186 = vld [vmem:[%s2419 + $0xb0] sm:$0x1]
        %v3187 = vld [vmem:[%s2419 + $0xb4] sm:$0xe]
        %v3188 = vld [vmem:[%s2419 + $0xb8] sm:$0xf]
        %v3189 = vld [vmem:[%s2419 + $0xbc] sm:$0x1]
        %v3238 = vrot.slane %v3142, 5
        %v3239 = vrot.slane %v3238, 4
        %v3240 = vrot.slane %v3143, 5
        %v3241 = vsel %vm1149, %v3239, %v3240
        %v3242 = vrot.slane %v3240, 4
        %v3243 = vrot.slane %v3144, 5
        %v3244 = vsel %vm1149, %v3242, %v3243
        %v3245 = vrot.slane %v3145, 5
        %v3246 = vrot.slane %v3245, 4
        %v3247 = vrot.slane %v3146, 5
        %v3248 = vsel %vm1149, %v3246, %v3247
        %v3249 = vrot.slane %v3247, 4
        %v3250 = vrot.slane %v3147, 5
        %v3251 = vsel %vm1149, %v3249, %v3250
        %v3252 = vrot.slane %v3148, 5
        %v3253 = vrot.slane %v3252, 4
        %v3254 = vrot.slane %v3149, 5
        %v3255 = vsel %vm1149, %v3253, %v3254
        %v3256 = vrot.slane %v3254, 4
        %v3257 = vrot.slane %v3150, 5
        %v3258 = vsel %vm1149, %v3256, %v3257
        %v3259 = vrot.slane %v3151, 5
        %v3260 = vrot.slane %v3259, 4
        %v3261 = vrot.slane %v3152, 5
        %v3262 = vsel %vm1149, %v3260, %v3261
        %v3263 = vrot.slane %v3261, 4
        %v3264 = vrot.slane %v3153, 5
        %v3265 = vsel %vm1149, %v3263, %v3264
        %v3266 = vrot.slane %v3154, 5
        %v3267 = vrot.slane %v3266, 4
        %v3268 = vrot.slane %v3155, 5
        %v3269 = vsel %vm1149, %v3267, %v3268
        %v3270 = vrot.slane %v3268, 4
        %v3271 = vrot.slane %v3156, 5
        %v3272 = vsel %vm1149, %v3270, %v3271
        %v3273 = vrot.slane %v3157, 5
        %v3274 = vrot.slane %v3273, 4
        %v3275 = vrot.slane %v3158, 5
        %v3276 = vsel %vm1149, %v3274, %v3275
        %v3277 = vrot.slane %v3275, 4
        %v3278 = vrot.slane %v3159, 5
        %v3279 = vsel %vm1149, %v3277, %v3278
        %v3280 = vrot.slane %v3160, 5
        %v3281 = vrot.slane %v3280, 4
        %v3282 = vrot.slane %v3161, 5
        %v3283 = vsel %vm1149, %v3281, %v3282
        %v3284 = vrot.slane %v3282, 4
        %v3285 = vrot.slane %v3162, 5
        %v3286 = vsel %vm1149, %v3284, %v3285
        %v3287 = vrot.slane %v3163, 5
        %v3288 = vrot.slane %v3287, 4
        %v3289 = vrot.slane %v3164, 5
        %v3290 = vsel %vm1149, %v3288, %v3289
        %v3291 = vrot.slane %v3289, 4
        %v3292 = vrot.slane %v3165, 5
        %v3293 = vsel %vm1149, %v3291, %v3292
        %v3294 = vrot.slane %v3166, 5
        %v3295 = vrot.slane %v3294, 4
        %v3296 = vrot.slane %v3167, 5
        %v3297 = vsel %vm1149, %v3295, %v3296
        %v3298 = vrot.slane %v3296, 4
        %v3299 = vrot.slane %v3168, 5
        %v3300 = vsel %vm1149, %v3298, %v3299
        %v3301 = vrot.slane %v3169, 5
        %v3302 = vrot.slane %v3301, 4
        %v3303 = vrot.slane %v3170, 5
        %v3304 = vsel %vm1149, %v3302, %v3303
        %v3305 = vrot.slane %v3303, 4
        %v3306 = vrot.slane %v3171, 5
        %v3307 = vsel %vm1149, %v3305, %v3306
        %v3308 = vrot.slane %v3172, 5
        %v3309 = vrot.slane %v3308, 4
        %v3310 = vrot.slane %v3173, 5
        %v3311 = vsel %vm1149, %v3309, %v3310
        %v3312 = vrot.slane %v3310, 4
        %v3313 = vrot.slane %v3174, 5
        %v3314 = vsel %vm1149, %v3312, %v3313
        %v3315 = vrot.slane %v3175, 5
        %v3316 = vrot.slane %v3315, 4
        %v3317 = vrot.slane %v3176, 5
        %v3318 = vsel %vm1149, %v3316, %v3317
        %v3319 = vrot.slane %v3317, 4
        %v3320 = vrot.slane %v3177, 5
        %v3321 = vsel %vm1149, %v3319, %v3320
        %v3322 = vrot.slane %v3178, 5
        %v3323 = vrot.slane %v3322, 4
        %v3324 = vrot.slane %v3179, 5
        %v3325 = vsel %vm1149, %v3323, %v3324
        %v3326 = vrot.slane %v3324, 4
        %v3327 = vrot.slane %v3180, 5
        %v3328 = vsel %vm1149, %v3326, %v3327
        %v3329 = vrot.slane %v3181, 5
        %v3330 = vrot.slane %v3329, 4
        %v3331 = vrot.slane %v3182, 5
        %v3332 = vsel %vm1149, %v3330, %v3331
        %v3333 = vrot.slane %v3331, 4
        %v3334 = vrot.slane %v3183, 5
        %v3335 = vsel %vm1149, %v3333, %v3334
        %v3336 = vrot.slane %v3184, 5
        %v3337 = vrot.slane %v3336, 4
        %v3338 = vrot.slane %v3185, 5
        %v3339 = vsel %vm1149, %v3337, %v3338
        %v3340 = vrot.slane %v3338, 4
        %v3341 = vrot.slane %v3186, 5
        %v3342 = vsel %vm1149, %v3340, %v3341
        %v3343 = vrot.slane %v3187, 5
        %v3344 = vrot.slane %v3343, 4
        %v3345 = vrot.slane %v3188, 5
        %v3346 = vsel %vm1149, %v3344, %v3345
        %v3347 = vrot.slane %v3345, 4
        %v3348 = vrot.slane %v3189, 5
        %v3349 = vsel %vm1149, %v3347, %v3348
        %v3350 = vunpack.c.l.b16 %v3241
        %v3351 = vunpack.c.l.b16 %v3244
        %v3352 = vunpack.c.l.b16 %v3248
        %v3353 = vunpack.c.l.b16 %v3251
        %v3354 = vunpack.c.l.b16 %v3255
        %v3355 = vunpack.c.l.b16 %v3258
        %v3356 = vunpack.c.l.b16 %v3262
        %v3357 = vunpack.c.l.b16 %v3265
        %v3358 = vunpack.c.l.b16 %v3269
        %v3359 = vunpack.c.l.b16 %v3272
        %v3360 = vunpack.c.l.b16 %v3276
        %v3361 = vunpack.c.l.b16 %v3279
        %v3362 = vunpack.c.l.b16 %v3283
        %v3363 = vunpack.c.l.b16 %v3286
        %v3364 = vunpack.c.l.b16 %v3290
        %v3365 = vunpack.c.l.b16 %v3293
        %v3366 = vunpack.c.l.b16 %v3297
        %v3367 = vunpack.c.l.b16 %v3300
        %v3368 = vunpack.c.l.b16 %v3304
        %v3369 = vunpack.c.l.b16 %v3307
        %v3370 = vunpack.c.l.b16 %v3311
        %v3371 = vunpack.c.l.b16 %v3314
        %v3372 = vunpack.c.l.b16 %v3318
        %v3373 = vunpack.c.l.b16 %v3321
        %v3374 = vunpack.c.l.b16 %v3325
        %v3375 = vunpack.c.l.b16 %v3328
        %v3376 = vunpack.c.l.b16 %v3332
        %v3377 = vunpack.c.l.b16 %v3335
        %v3378 = vunpack.c.l.b16 %v3339
        %v3379 = vunpack.c.l.b16 %v3342
        %v3380 = vunpack.c.l.b16 %v3346
        %v3381 = vunpack.c.l.b16 %v3349
        %v3382 = vpack.c.b16 %v3351, %v3350
        %v3383 = vpack.c.b16 %v3353, %v3352
        %v3384 = vpack.c.b16 %v3355, %v3354
        %v3385 = vpack.c.b16 %v3357, %v3356
        %v3386 = vpack.c.b16 %v3359, %v3358
        %v3387 = vpack.c.b16 %v3361, %v3360
        %v3388 = vpack.c.b16 %v3363, %v3362
        %v3389 = vpack.c.b16 %v3365, %v3364
        %v3390 = vpack.c.b16 %v3367, %v3366
        %v3391 = vpack.c.b16 %v3369, %v3368
        %v3392 = vpack.c.b16 %v3371, %v3370
        %v3393 = vpack.c.b16 %v3373, %v3372
        %v3394 = vpack.c.b16 %v3375, %v3374
        %v3395 = vpack.c.b16 %v3377, %v3376
        %v3396 = vpack.c.b16 %v3379, %v3378
        %v3397 = vpack.c.b16 %v3381, %v3380
        %3398 = vrot.lane.b32.xlu0 %v3382, 32
        %v3399 = vpop.permute.xlu0 %3398
        %3400 = vrot.lane.b32.xlu0 %v3383, 32
        %v3401 = vpop.permute.xlu0 %3400
        %3402 = vrot.lane.b32.xlu0 %v3384, 32
        %v3403 = vpop.permute.xlu0 %3402
        %3404 = vrot.lane.b32.xlu0 %v3385, 32
        %v3405 = vpop.permute.xlu0 %3404
        %3406 = vrot.lane.b32.xlu0 %v3386, 32
        %v3407 = vpop.permute.xlu0 %3406
        %3408 = vrot.lane.b32.xlu0 %v3387, 32
        %v3409 = vpop.permute.xlu0 %3408
        %3410 = vrot.lane.b32.xlu0 %v3388, 32
        %v3411 = vpop.permute.xlu0 %3410
        %3412 = vrot.lane.b32.xlu0 %v3389, 32
        %v3413 = vpop.permute.xlu0 %3412
        %3414 = vrot.lane.b32.xlu0 %v3390, 32
        %v3415 = vpop.permute.xlu0 %3414
        %3416 = vrot.lane.b32.xlu0 %v3391, 32
        %v3417 = vpop.permute.xlu0 %3416
        %3418 = vrot.lane.b32.xlu0 %v3392, 32
        %v3419 = vpop.permute.xlu0 %3418
        %3420 = vrot.lane.b32.xlu0 %v3393, 32
        %v3421 = vpop.permute.xlu0 %3420
        %3422 = vrot.lane.b32.xlu0 %v3394, 32
        %v3423 = vpop.permute.xlu0 %3422
        %3424 = vrot.lane.b32.xlu0 %v3395, 32
        %v3425 = vpop.permute.xlu0 %3424
        %3426 = vrot.lane.b32.xlu0 %v3396, 32
        %v3427 = vpop.permute.xlu0 %3426
        %3428 = vrot.lane.b32.xlu0 %v3397, 32
        %v3429 = vpop.permute.xlu0 %3428
        %vm3446 = vcmask 294144
        %3447 = vst.msk [vmem:[#allocation2] sm:$0xff] %vm3446, %v3399
        %3448 = vst.msk [vmem:[#allocation2 + $0x8] sm:$0xff] %vm3446, %v3401
        %3449 = vst.msk [vmem:[#allocation2 + $0x10] sm:$0xff] %vm3446, %v3403
        %3450 = vst.msk [vmem:[#allocation2 + $0x18] sm:$0xff] %vm3446, %v3405
        %3451 = vst.msk [vmem:[#allocation2 + $0x20] sm:$0xff] %vm3446, %v3407
        %3452 = vst.msk [vmem:[#allocation2 + $0x28] sm:$0xff] %vm3446, %v3409
        %3453 = vst.msk [vmem:[#allocation2 + $0x30] sm:$0xff] %vm3446, %v3411
        %3454 = vst.msk [vmem:[#allocation2 + $0x38] sm:$0xff] %vm3446, %v3413
        %3455 = vst.msk [vmem:[#allocation2 + $0x40] sm:$0xff] %vm3446, %v3415
        %3456 = vst.msk [vmem:[#allocation2 + $0x48] sm:$0xff] %vm3446, %v3417
        %3457 = vst.msk [vmem:[#allocation2 + $0x50] sm:$0xff] %vm3446, %v3419
        %3458 = vst.msk [vmem:[#allocation2 + $0x58] sm:$0xff] %vm3446, %v3421
        %3459 = vst.msk [vmem:[#allocation2 + $0x60] sm:$0xff] %vm3446, %v3423
        %3460 = vst.msk [vmem:[#allocation2 + $0x68] sm:$0xff] %vm3446, %v3425
        %3461 = vst.msk [vmem:[#allocation2 + $0x70] sm:$0xff] %vm3446, %v3427
        %3462 = vst.msk [vmem:[#allocation2 + $0x78] sm:$0xff] %vm3446, %v3429
        %v3463 = vld [vmem:[#allocation2] sm:$0xff]
        %v3464 = vld [vmem:[#allocation2 + $0x8] sm:$0xff]
        %v3465 = vld [vmem:[#allocation2 + $0x10] sm:$0xff]
        %v3466 = vld [vmem:[#allocation2 + $0x18] sm:$0xff]
        %v3467 = vld [vmem:[#allocation2 + $0x20] sm:$0xff]
        %v3468 = vld [vmem:[#allocation2 + $0x28] sm:$0xff]
        %v3469 = vld [vmem:[#allocation2 + $0x30] sm:$0xff]
        %v3470 = vld [vmem:[#allocation2 + $0x38] sm:$0xff]
        %v3471 = vld [vmem:[#allocation2 + $0x40] sm:$0xff]
        %v3472 = vld [vmem:[#allocation2 + $0x48] sm:$0xff]
        %v3473 = vld [vmem:[#allocation2 + $0x50] sm:$0xff]
        %v3474 = vld [vmem:[#allocation2 + $0x58] sm:$0xff]
        %v3475 = vld [vmem:[#allocation2 + $0x60] sm:$0xff]
        %v3476 = vld [vmem:[#allocation2 + $0x68] sm:$0xff]
        %v3477 = vld [vmem:[#allocation2 + $0x70] sm:$0xff]
        %v3478 = vld [vmem:[#allocation2 + $0x78] sm:$0xff]
        %v3479 = vld [vmem:[%s2] sm:$0xf]
        %v3480 = vld [vmem:[%s2 + $0x4] sm:$0xf]
        %v3481 = vld [vmem:[%s2 + $0x8] sm:$0xf]
        %v3482 = vld [vmem:[%s2 + $0xc] sm:$0xf]
        %v3483 = vld [vmem:[%s2 + $0x10] sm:$0x3]
        %v3484 = vld [vmem:[%s3] sm:$0x1]
        %v3486 = vlaneseq
        %v3487 = vshrl.u32 %v3486, 7
        %v3488 = vsub.s32 0, %v3487
        %v3489 = vrot.slane %v3484, %v3488
        %v3496 = vunpack.c.l.b16 %v3479
        %v3497 = vunpack.c.l.b16 %v3480
        %v3498 = vunpack.c.l.b16 %v3481
        %v3499 = vunpack.c.l.b16 %v3482
        %v3500 = vunpack.c.l.b16 %v3483
        %v3501 = vpack.c.b16 %v3497, %v3496
        %v3502 = vpack.c.b16 %v3499, %v3498
        %v3503 = vpack.c.b16 %v3500, %v3500
        %vm3506 = vcmask 293888
        %v3508 = vsel %vm3506, %v3463, 0
        %v3511 = vsel %vm3506, %v3464, 0
        %v3514 = vsel %vm3506, %v3465, 0
        %v3517 = vsel %vm3506, %v3466, 0
        %v3520 = vsel %vm3506, %v3467, 0
        %v3523 = vsel %vm3506, %v3468, 0
        %v3526 = vsel %vm3506, %v3469, 0
        %v3529 = vsel %vm3506, %v3470, 0
        %v3532 = vsel %vm3506, %v3471, 0
        %v3535 = vsel %vm3506, %v3472, 0
        %v3538 = vsel %vm3506, %v3473, 0
        %v3541 = vsel %vm3506, %v3474, 0
        %v3544 = vsel %vm3506, %v3475, 0
        %v3547 = vsel %vm3506, %v3476, 0
        %v3550 = vsel %vm3506, %v3477, 0
        %v3553 = vsel %vm3506, %v3478, 0
        %vm3555 = vcmask 1041408
        %v3557 = vsel %vm3555, %v3503, 0
        %3559 = vmatprep.subr.bf16.mxu0 0
        %3560 = vmatpush1.bf16.msra.mxu0 %v3501
        %3561 = vmatprep.subr.bf16.mxu0 0
        %3562 = vmatpush1.bf16.msra.mxu0 %v3502
        %3563 = vmatprep.subr.bf16.mxu0 0
        %3564 = vmatpush1.bf16.msra.mxu0 %v3557
        %3565 = vmatprep.subr.bf16.mxu0 0
        %3566 = vmatpush1.bf16.msra.mxu0 0
        %3567 = vmatprep.subr.bf16.mxu0 0
        %3568 = vmatpush1.bf16.msra.mxu0 0
        %3569 = vmatprep.subr.bf16.mxu0 0
        %3570 = vmatpush1.bf16.msra.mxu0 0
        %3571 = vmatprep.subr.bf16.mxu0 0
        %3572 = vmatpush1.bf16.msra.mxu0 0
        %3573 = vmatprep.subr.bf16.mxu0 0
        %3574 = vmatpush1.bf16.msra.mxu0 0
        %3575 = vmatprep.subr.bf16.mxu0 0
        %3576 = vmatpush1.bf16.msra.mxu0 0
        %3577 = vmatprep.subr.bf16.mxu0 0
        %3578 = vmatpush1.bf16.msra.mxu0 0
        %3579 = vmatprep.subr.bf16.mxu0 0
        %3580 = vmatpush1.bf16.msra.mxu0 0
        %3581 = vmatprep.subr.bf16.mxu0 0
        %3582 = vmatpush1.bf16.msra.mxu0 0
        %3583 = vmatprep.subr.bf16.mxu0 0
        %3584 = vmatpush1.bf16.msra.mxu0 0
        %3585 = vmatprep.subr.bf16.mxu0 0
        %3586 = vmatpush1.bf16.msra.mxu0 0
        %3587 = vmatprep.subr.bf16.mxu0 0
        %3588 = vmatpush1.bf16.msra.mxu0 0
        %3589 = vmatprep.subr.bf16.mxu0 0
        %3590 = vmatpush1.bf16.msra.mxu0 0
        %3591 = vmatprep.mubr.bf16.mxu0 0
        %3592 = vmatmul.mubr.bf16.gmra.mrb[0].mxu0 %v3508
        %v3593 = vpop.f32.mrb[0].mxu0
        %v3594 = vadd.f32 %v3489, %v3593
        %v3595 = vpop.f32.mrb[0].mxu0
        %v3596 = vpop.f32.mrb[0].mxu0
        %v3597 = vadd.f32 %v3489, %v3596
        %v3598 = vpop.f32.mrb[0].mxu0
        %3599 = vmatprep.mubr.bf16.mxu0 0
        %3600 = vmatmul.mubr.bf16.gmra.mrb[0].mxu0 %v3511
        %v3601 = vpop.f32.mrb[0].mxu0
        %v3602 = vadd.f32 %v3489, %v3601
        %v3603 = vpop.f32.mrb[0].mxu0
        %v3604 = vpop.f32.mrb[0].mxu0
        %v3605 = vadd.f32 %v3489, %v3604
        %v3606 = vpop.f32.mrb[0].mxu0
        %3607 = vmatprep.mubr.bf16.mxu0 0
        %3608 = vmatmul.mubr.bf16.gmra.mrb[0].mxu0 %v3514
        %v3609 = vpop.f32.mrb[0].mxu0
        %v3610 = vadd.f32 %v3489, %v3609
        %v3611 = vpop.f32.mrb[0].mxu0
        %v3612 = vpop.f32.mrb[0].mxu0
        %v3613 = vadd.f32 %v3489, %v3612
        %v3614 = vpop.f32.mrb[0].mxu0
        %3615 = vmatprep.mubr.bf16.mxu0 0
        %3616 = vmatmul.mubr.bf16.gmra.mrb[0].mxu0 %v3517
        %v3617 = vpop.f32.mrb[0].mxu0
        %v3618 = vadd.f32 %v3489, %v3617
        %v3619 = vpop.f32.mrb[0].mxu0
        %v3620 = vpop.f32.mrb[0].mxu0
        %v3621 = vadd.f32 %v3489, %v3620
        %v3622 = vpop.f32.mrb[0].mxu0
        %3623 = vmatprep.mubr.bf16.mxu0 0
        %3624 = vmatmul.mubr.bf16.gmra.mrb[0].mxu0 %v3520
        %v3625 = vpop.f32.mrb[0].mxu0
        %v3626 = vadd.f32 %v3489, %v3625
        %v3627 = vpop.f32.mrb[0].mxu0
        %v3628 = vpop.f32.mrb[0].mxu0
        %v3629 = vadd.f32 %v3489, %v3628
        %v3630 = vpop.f32.mrb[0].mxu0
        %3631 = vmatprep.mubr.bf16.mxu0 0
        %3632 = vmatmul.mubr.bf16.gmra.mrb[0].mxu0 %v3523
        %v3633 = vpop.f32.mrb[0].mxu0
        %v3634 = vadd.f32 %v3489, %v3633
        %v3635 = vpop.f32.mrb[0].mxu0
        %v3636 = vpop.f32.mrb[0].mxu0
        %v3637 = vadd.f32 %v3489, %v3636
        %v3638 = vpop.f32.mrb[0].mxu0
        %3639 = vmatprep.mubr.bf16.mxu0 0
        %3640 = vmatmul.mubr.bf16.gmra.mrb[0].mxu0 %v3526
        %v3641 = vpop.f32.mrb[0].mxu0
        %v3642 = vadd.f32 %v3489, %v3641
        %v3643 = vpop.f32.mrb[0].mxu0
        %v3644 = vpop.f32.mrb[0].mxu0
        %v3645 = vadd.f32 %v3489, %v3644
        %v3646 = vpop.f32.mrb[0].mxu0
        %3647 = vmatprep.mubr.bf16.mxu0 0
        %3648 = vmatmul.mubr.bf16.gmra.mrb[0].mxu0 %v3529
        %v3649 = vpop.f32.mrb[0].mxu0
        %v3650 = vadd.f32 %v3489, %v3649
        %v3651 = vpop.f32.mrb[0].mxu0
        %v3652 = vpop.f32.mrb[0].mxu0
        %v3653 = vadd.f32 %v3489, %v3652
        %v3654 = vpop.f32.mrb[0].mxu0
        %3655 = vmatprep.mubr.bf16.mxu0 0
        %3656 = vmatmul.mubr.bf16.gmra.mrb[0].mxu0 %v3532
        %v3657 = vpop.f32.mrb[0].mxu0
        %v3658 = vadd.f32 %v3489, %v3657
        %v3659 = vpop.f32.mrb[0].mxu0
        %v3660 = vpop.f32.mrb[0].mxu0
        %v3661 = vadd.f32 %v3489, %v3660
        %v3662 = vpop.f32.mrb[0].mxu0
        %3663 = vmatprep.mubr.bf16.mxu0 0
        %3664 = vmatmul.mubr.bf16.gmra.mrb[0].mxu0 %v3535
        %v3665 = vpop.f32.mrb[0].mxu0
        %v3666 = vadd.f32 %v3489, %v3665
        %v3667 = vpop.f32.mrb[0].mxu0
        %v3668 = vpop.f32.mrb[0].mxu0
        %v3669 = vadd.f32 %v3489, %v3668
        %v3670 = vpop.f32.mrb[0].mxu0
        %3671 = vmatprep.mubr.bf16.mxu0 0
        %3672 = vmatmul.mubr.bf16.gmra.mrb[0].mxu0 %v3538
        %v3673 = vpop.f32.mrb[0].mxu0
        %v3674 = vadd.f32 %v3489, %v3673
        %v3675 = vpop.f32.mrb[0].mxu0
        %v3676 = vpop.f32.mrb[0].mxu0
        %v3677 = vadd.f32 %v3489, %v3676
        %v3678 = vpop.f32.mrb[0].mxu0
        %3679 = vmatprep.mubr.bf16.mxu0 0
        %3680 = vmatmul.mubr.bf16.gmra.mrb[0].mxu0 %v3541
        %v3681 = vpop.f32.mrb[0].mxu0
        %v3682 = vadd.f32 %v3489, %v3681
        %v3683 = vpop.f32.mrb[0].mxu0
        %v3684 = vpop.f32.mrb[0].mxu0
        %v3685 = vadd.f32 %v3489, %v3684
        %v3686 = vpop.f32.mrb[0].mxu0
        %3687 = vmatprep.mubr.bf16.mxu0 0
        %3688 = vmatmul.mubr.bf16.gmra.mrb[0].mxu0 %v3544
        %v3689 = vpop.f32.mrb[0].mxu0
        %v3690 = vadd.f32 %v3489, %v3689
        %v3691 = vpop.f32.mrb[0].mxu0
        %v3692 = vpop.f32.mrb[0].mxu0
        %v3693 = vadd.f32 %v3489, %v3692
        %v3694 = vpop.f32.mrb[0].mxu0
        %3695 = vmatprep.mubr.bf16.mxu0 0
        %3696 = vmatmul.mubr.bf16.gmra.mrb[0].mxu0 %v3547
        %v3697 = vpop.f32.mrb[0].mxu0
        %v3698 = vadd.f32 %v3489, %v3697
        %v3699 = vpop.f32.mrb[0].mxu0
        %v3700 = vpop.f32.mrb[0].mxu0
        %v3701 = vadd.f32 %v3489, %v3700
        %v3702 = vpop.f32.mrb[0].mxu0
        %3703 = vmatprep.mubr.bf16.mxu0 0
        %3704 = vmatmul.mubr.bf16.gmra.mrb[0].mxu0 %v3550
        %v3705 = vpop.f32.mrb[0].mxu0
        %v3706 = vadd.f32 %v3489, %v3705
        %v3707 = vpop.f32.mrb[0].mxu0
        %v3708 = vpop.f32.mrb[0].mxu0
        %v3709 = vadd.f32 %v3489, %v3708
        %v3710 = vpop.f32.mrb[0].mxu0
        %3711 = vmatprep.mubr.bf16.mxu0 0
        %3712 = vmatmul.mubr.bf16.gmra.mrb[0].mxu0 %v3553
        %v3713 = vpop.f32.mrb[0].mxu0
        %v3714 = vadd.f32 %v3489, %v3713
        %v3715 = vpop.f32.mrb[0].mxu0
        %v3716 = vpop.f32.mrb[0].mxu0
        %v3717 = vadd.f32 %v3489, %v3716
        %v3718 = vpop.f32.mrb[0].mxu0
        %3719 = vdwg.mxu0
        %v3720 = vmax.f32 %v3594, 0.0
        %v3721 = vmax.f32 %v3597, 0.0
        %v3722 = vmax.f32 %v3602, 0.0
        %v3723 = vmax.f32 %v3605, 0.0
        %v3724 = vmax.f32 %v3610, 0.0
        %v3725 = vmax.f32 %v3613, 0.0
        %v3726 = vmax.f32 %v3618, 0.0
        %v3727 = vmax.f32 %v3621, 0.0
        %v3728 = vmax.f32 %v3626, 0.0
        %v3729 = vmax.f32 %v3629, 0.0
        %v3730 = vmax.f32 %v3634, 0.0
        %v3731 = vmax.f32 %v3637, 0.0
        %v3732 = vmax.f32 %v3642, 0.0
        %v3733 = vmax.f32 %v3645, 0.0
        %v3734 = vmax.f32 %v3650, 0.0
        %v3735 = vmax.f32 %v3653, 0.0
        %v3736 = vmax.f32 %v3658, 0.0
        %v3737 = vmax.f32 %v3661, 0.0
        %v3738 = vmax.f32 %v3666, 0.0
        %v3739 = vmax.f32 %v3669, 0.0
        %v3740 = vmax.f32 %v3674, 0.0
        %v3741 = vmax.f32 %v3677, 0.0
        %v3742 = vmax.f32 %v3682, 0.0
        %v3743 = vmax.f32 %v3685, 0.0
        %v3744 = vmax.f32 %v3690, 0.0
        %v3745 = vmax.f32 %v3693, 0.0
        %v3746 = vmax.f32 %v3698, 0.0
        %v3747 = vmax.f32 %v3701, 0.0
        %v3748 = vmax.f32 %v3706, 0.0
        %v3749 = vmax.f32 %v3709, 0.0
        %v3750 = vmax.f32 %v3714, 0.0
        %v3751 = vmax.f32 %v3717, 0.0
        %vm3752 = vcmask 130048
        %3753 = vst.msk [vmem:[#allocation3] sm:$0xff] %vm3752, 0.0
        %3754 = vst.msk [vmem:[#allocation3 + $0x8] sm:$0xff] %vm3752, 0.0
        %vm3755 = vcmask 125952
        %3756 = vst.msk [vmem:[#allocation3 + $0x10] sm:$0xf] %vm3755, 0.0
        %s3757 = scalar_lea.vmem [#allocation3], 408
        %3758 = vst.msk [vmem:[%s3757] sm:$0xff] %vm3752, 0.0
        %3759 = vst.msk [vmem:[%s3757 + $0x8] sm:$0xff] %vm3752, 0.0
        %3760 = vst.msk [vmem:[%s3757 + $0x10] sm:$0xf] %vm3755, 0.0
        %3761 = vst.msk [vmem:[%s3757 + $0x18] sm:$0xff] %vm3752, 0.0
        %3762 = vst.msk [vmem:[%s3757 + $0x20] sm:$0xff] %vm3752, 0.0
        %3763 = vst.msk [vmem:[%s3757 + $0x28] sm:$0xf] %vm3755, 0.0
        %3764 = vst.msk [vmem:[%s3757 + $0x30] sm:$0xff] %vm3752, 0.0
        %3765 = vst.msk [vmem:[%s3757 + $0x38] sm:$0xff] %vm3752, 0.0
        %3766 = vst.msk [vmem:[%s3757 + $0x40] sm:$0xf] %vm3755, 0.0
        %s3767 = scalar_lea.vmem [#allocation3], 24
        %vm3768 = vcmask 122880
        %3769 = vst.msk [vmem:[%s3767] sm:$0x1] %vm3768, 0.0
        %3770 = vst.msk [vmem:[%s3767 + $0x18] sm:$0x1] %vm3768, 0.0
        %3771 = vst.msk [vmem:[%s3767 + $0x30] sm:$0x1] %vm3768, 0.0
        %3772 = vst.msk [vmem:[%s3767 + $0x48] sm:$0x1] %vm3768, 0.0
        %3773 = vst.msk [vmem:[%s3767 + $0x60] sm:$0x1] %vm3768, 0.0
        %3774 = vst.msk [vmem:[%s3767 + $0x78] sm:$0x1] %vm3768, 0.0
        %3775 = vst.msk [vmem:[%s3767 + $0x90] sm:$0x1] %vm3768, 0.0
        %3776 = vst.msk [vmem:[%s3767 + $0xa8] sm:$0x1] %vm3768, 0.0
        %3777 = vst.msk [vmem:[%s3767 + $0xc0] sm:$0x1] %vm3768, 0.0
        %3778 = vst.msk [vmem:[%s3767 + $0xd8] sm:$0x1] %vm3768, 0.0
        %3779 = vst.msk [vmem:[%s3767 + $0xf0] sm:$0x1] %vm3768, 0.0
        %3780 = vst.msk [vmem:[%s3767 + $0x108] sm:$0x1] %vm3768, 0.0
        %3781 = vst.msk [vmem:[%s3767 + $0x120] sm:$0x1] %vm3768, 0.0
        %3782 = vst.msk [vmem:[%s3767 + $0x138] sm:$0x1] %vm3768, 0.0
        %3783 = vst.msk [vmem:[%s3767 + $0x150] sm:$0x1] %vm3768, 0.0
        %3784 = vst.msk [vmem:[%s3767 + $0x168] sm:$0x1] %vm3768, 0.0
        %vm3785 = vcmask 124928
        %3786 = vst.msk [vmem:[%s3767 + $0x11] sm:$0x7] %vm3785, 0.0
        %3787 = vst.msk [vmem:[%s3767 + $0x29] sm:$0x7] %vm3785, 0.0
        %3788 = vst.msk [vmem:[%s3767 + $0x41] sm:$0x7] %vm3785, 0.0
        %3789 = vst.msk [vmem:[%s3767 + $0x59] sm:$0x7] %vm3785, 0.0
        %3790 = vst.msk [vmem:[%s3767 + $0x71] sm:$0x7] %vm3785, 0.0
        %3791 = vst.msk [vmem:[%s3767 + $0x89] sm:$0x7] %vm3785, 0.0
        %3792 = vst.msk [vmem:[%s3767 + $0xa1] sm:$0x7] %vm3785, 0.0
        %3793 = vst.msk [vmem:[%s3767 + $0xb9] sm:$0x7] %vm3785, 0.0
        %3794 = vst.msk [vmem:[%s3767 + $0xd1] sm:$0x7] %vm3785, 0.0
        %3795 = vst.msk [vmem:[%s3767 + $0xe9] sm:$0x7] %vm3785, 0.0
        %3796 = vst.msk [vmem:[%s3767 + $0x101] sm:$0x7] %vm3785, 0.0
        %3797 = vst.msk [vmem:[%s3767 + $0x119] sm:$0x7] %vm3785, 0.0
        %3798 = vst.msk [vmem:[%s3767 + $0x131] sm:$0x7] %vm3785, 0.0
        %3799 = vst.msk [vmem:[%s3767 + $0x149] sm:$0x7] %vm3785, 0.0
        %3800 = vst.msk [vmem:[%s3767 + $0x161] sm:$0x7] %vm3785, 0.0
        %3801 = vst.msk [vmem:[%s3767 + $0x179] sm:$0x7] %vm3785, 0.0
        %3802 = vst.msk [vmem:[%s3767 + $0x1] sm:$0xff] %vm3752, %v3720
        %3803 = vst.msk [vmem:[%s3767 + $0x9] sm:$0xff] %vm3752, %v3721
        %3804 = vst.msk [vmem:[%s3767 + $0x19] sm:$0xff] %vm3752, %v3722
        %3805 = vst.msk [vmem:[%s3767 + $0x21] sm:$0xff] %vm3752, %v3723
        %3806 = vst.msk [vmem:[%s3767 + $0x31] sm:$0xff] %vm3752, %v3724
        %3807 = vst.msk [vmem:[%s3767 + $0x39] sm:$0xff] %vm3752, %v3725
        %3808 = vst.msk [vmem:[%s3767 + $0x49] sm:$0xff] %vm3752, %v3726
        %3809 = vst.msk [vmem:[%s3767 + $0x51] sm:$0xff] %vm3752, %v3727
        %3810 = vst.msk [vmem:[%s3767 + $0x61] sm:$0xff] %vm3752, %v3728
        %3811 = vst.msk [vmem:[%s3767 + $0x69] sm:$0xff] %vm3752, %v3729
        %3812 = vst.msk [vmem:[%s3767 + $0x79] sm:$0xff] %vm3752, %v3730
        %3813 = vst.msk [vmem:[%s3767 + $0x81] sm:$0xff] %vm3752, %v3731
        %3814 = vst.msk [vmem:[%s3767 + $0x91] sm:$0xff] %vm3752, %v3732
        %3815 = vst.msk [vmem:[%s3767 + $0x99] sm:$0xff] %vm3752, %v3733
        %3816 = vst.msk [vmem:[%s3767 + $0xa9] sm:$0xff] %vm3752, %v3734
        %3817 = vst.msk [vmem:[%s3767 + $0xb1] sm:$0xff] %vm3752, %v3735
        %3818 = vst.msk [vmem:[%s3767 + $0xc1] sm:$0xff] %vm3752, %v3736
        %3819 = vst.msk [vmem:[%s3767 + $0xc9] sm:$0xff] %vm3752, %v3737
        %3820 = vst.msk [vmem:[%s3767 + $0xd9] sm:$0xff] %vm3752, %v3738
        %3821 = vst.msk [vmem:[%s3767 + $0xe1] sm:$0xff] %vm3752, %v3739
        %3822 = vst.msk [vmem:[%s3767 + $0xf1] sm:$0xff] %vm3752, %v3740
        %3823 = vst.msk [vmem:[%s3767 + $0xf9] sm:$0xff] %vm3752, %v3741
        %3824 = vst.msk [vmem:[%s3767 + $0x109] sm:$0xff] %vm3752, %v3742
        %3825 = vst.msk [vmem:[%s3767 + $0x111] sm:$0xff] %vm3752, %v3743
        %3826 = vst.msk [vmem:[%s3767 + $0x121] sm:$0xff] %vm3752, %v3744
        %3827 = vst.msk [vmem:[%s3767 + $0x129] sm:$0xff] %vm3752, %v3745
        %3828 = vst.msk [vmem:[%s3767 + $0x139] sm:$0xff] %vm3752, %v3746
        %3829 = vst.msk [vmem:[%s3767 + $0x141] sm:$0xff] %vm3752, %v3747
        %3830 = vst.msk [vmem:[%s3767 + $0x151] sm:$0xff] %vm3752, %v3748
        %3831 = vst.msk [vmem:[%s3767 + $0x159] sm:$0xff] %vm3752, %v3749
        %3832 = vst.msk [vmem:[%s3767 + $0x169] sm:$0xff] %vm3752, %v3750
        %3833 = vst.msk [vmem:[%s3767 + $0x171] sm:$0xff] %vm3752, %v3751
        %v3834 = vld [vmem:[#allocation3] sm:$0xff]
        %v3835 = vld [vmem:[#allocation3 + $0x8] sm:$0xff]
        %v3836 = vld [vmem:[#allocation3 + $0x18] sm:$0xff]
        %v3837 = vld [vmem:[#allocation3 + $0x20] sm:$0xff]
        %v3838 = vld [vmem:[#allocation3 + $0x30] sm:$0xff]
        %v3839 = vld [vmem:[#allocation3 + $0x38] sm:$0xff]
        %v3840 = vld [vmem:[#allocation3 + $0x48] sm:$0xff]
        %v3841 = vld [vmem:[#allocation3 + $0x50] sm:$0xff]
        %v3842 = vld [vmem:[#allocation3 + $0x60] sm:$0xff]
        %v3843 = vld [vmem:[#allocation3 + $0x68] sm:$0xff]
        %v3844 = vld [vmem:[#allocation3 + $0x78] sm:$0xff]
        %v3845 = vld [vmem:[#allocation3 + $0x80] sm:$0xff]
        %v3846 = vld [vmem:[#allocation3 + $0x90] sm:$0xff]
        %v3847 = vld [vmem:[#allocation3 + $0x98] sm:$0xff]
        %v3848 = vld [vmem:[#allocation3 + $0xa8] sm:$0xff]
        %v3849 = vld [vmem:[#allocation3 + $0xb0] sm:$0xff]
        %v3850 = vld [vmem:[#allocation3 + $0xc0] sm:$0xff]
        %v3851 = vld [vmem:[#allocation3 + $0xc8] sm:$0xff]
        %v3852 = vld [vmem:[#allocation3 + $0xd8] sm:$0xff]
        %v3853 = vld [vmem:[#allocation3 + $0xe0] sm:$0xff]
        %v3854 = vld [vmem:[#allocation3 + $0xf0] sm:$0xff]
        %v3855 = vld [vmem:[#allocation3 + $0xf8] sm:$0xff]
        %v3856 = vld [vmem:[#allocation3 + $0x108] sm:$0xff]
        %v3857 = vld [vmem:[#allocation3 + $0x110] sm:$0xff]
        %v3858 = vld [vmem:[#allocation3 + $0x120] sm:$0xff]
        %v3859 = vld [vmem:[#allocation3 + $0x128] sm:$0xff]
        %v3860 = vld [vmem:[#allocation3 + $0x138] sm:$0xff]
        %v3861 = vld [vmem:[#allocation3 + $0x140] sm:$0xff]
        %v3862 = vld [vmem:[#allocation3 + $0x150] sm:$0xff]
        %v3863 = vld [vmem:[#allocation3 + $0x158] sm:$0xff]
        %v3864 = vld [vmem:[#allocation3 + $0x168] sm:$0xff]
        %v3865 = vld [vmem:[#allocation3 + $0x170] sm:$0xff]
        %v3866 = vpack.c.bf16 %v3835, %v3834
        %v3867 = vpack.c.bf16 %v3837, %v3836
        %v3868 = vpack.c.bf16 %v3839, %v3838
        %v3869 = vpack.c.bf16 %v3841, %v3840
        %v3870 = vpack.c.bf16 %v3843, %v3842
        %v3871 = vpack.c.bf16 %v3845, %v3844
        %v3872 = vpack.c.bf16 %v3847, %v3846
        %v3873 = vpack.c.bf16 %v3849, %v3848
        %v3874 = vpack.c.bf16 %v3851, %v3850
        %v3875 = vpack.c.bf16 %v3853, %v3852
        %v3876 = vpack.c.bf16 %v3855, %v3854
        %v3877 = vpack.c.bf16 %v3857, %v3856
        %v3878 = vpack.c.bf16 %v3859, %v3858
        %v3879 = vpack.c.bf16 %v3861, %v3860
        %v3880 = vpack.c.bf16 %v3863, %v3862
        %v3881 = vpack.c.bf16 %v3865, %v3864
        %3882 = vst.msk [vmem:[#allocation4] sm:$0xff] %vm3752, %v3866
        %3883 = vst.msk [vmem:[#allocation4 + $0x20] sm:$0xff] %vm3752, %v3867
        %3884 = vst.msk [vmem:[#allocation4 + $0x40] sm:$0xff] %vm3752, %v3868
        %3885 = vst.msk [vmem:[#allocation4 + $0x60] sm:$0xff] %vm3752, %v3869
        %3886 = vst.msk [vmem:[#allocation4 + $0x80] sm:$0xff] %vm3752, %v3870
        %3887 = vst.msk [vmem:[#allocation4 + $0xa0] sm:$0xff] %vm3752, %v3871
        %3888 = vst.msk [vmem:[#allocation4 + $0xc0] sm:$0xff] %vm3752, %v3872
        %3889 = vst.msk [vmem:[#allocation4 + $0xe0] sm:$0xff] %vm3752, %v3873
        %3890 = vst.msk [vmem:[#allocation4 + $0x100] sm:$0xff] %vm3752, %v3874
        %3891 = vst.msk [vmem:[#allocation4 + $0x120] sm:$0xff] %vm3752, %v3875
        %3892 = vst.msk [vmem:[#allocation4 + $0x140] sm:$0xff] %vm3752, %v3876
        %3893 = vst.msk [vmem:[#allocation4 + $0x160] sm:$0xff] %vm3752, %v3877
        %3894 = vst.msk [vmem:[#allocation4 + $0x180] sm:$0xff] %vm3752, %v3878
        %3895 = vst.msk [vmem:[#allocation4 + $0x1a0] sm:$0xff] %vm3752, %v3879
        %3896 = vst.msk [vmem:[#allocation4 + $0x1c0] sm:$0xff] %vm3752, %v3880
        %3897 = vst.msk [vmem:[#allocation4 + $0x1e0] sm:$0xff] %vm3752, %v3881
        %v3898 = vld [vmem:[#allocation3 + $0x1] sm:$0xff]
        %v3899 = vld [vmem:[#allocation3 + $0x9] sm:$0xff]
        %v3900 = vld [vmem:[#allocation3 + $0x19] sm:$0xff]
        %v3901 = vld [vmem:[#allocation3 + $0x21] sm:$0xff]
        %v3902 = vld [vmem:[#allocation3 + $0x31] sm:$0xff]
        %v3903 = vld [vmem:[#allocation3 + $0x39] sm:$0xff]
        %v3904 = vld [vmem:[#allocation3 + $0x49] sm:$0xff]
        %v3905 = vld [vmem:[#allocation3 + $0x51] sm:$0xff]
        %v3906 = vld [vmem:[#allocation3 + $0x61] sm:$0xff]
        %v3907 = vld [vmem:[#allocation3 + $0x69] sm:$0xff]
        %v3908 = vld [vmem:[#allocation3 + $0x79] sm:$0xff]
        %v3909 = vld [vmem:[#allocation3 + $0x81] sm:$0xff]
        %v3910 = vld [vmem:[#allocation3 + $0x91] sm:$0xff]
        %v3911 = vld [vmem:[#allocation3 + $0x99] sm:$0xff]
        %v3912 = vld [vmem:[#allocation3 + $0xa9] sm:$0xff]
        %v3913 = vld [vmem:[#allocation3 + $0xb1] sm:$0xff]
        %v3914 = vld [vmem:[#allocation3 + $0xc1] sm:$0xff]
        %v3915 = vld [vmem:[#allocation3 + $0xc9] sm:$0xff]
        %v3916 = vld [vmem:[#allocation3 + $0xd9] sm:$0xff]
        %v3917 = vld [vmem:[#allocation3 + $0xe1] sm:$0xff]
        %v3918 = vld [vmem:[#allocation3 + $0xf1] sm:$0xff]
        %v3919 = vld [vmem:[#allocation3 + $0xf9] sm:$0xff]
        %v3920 = vld [vmem:[#allocation3 + $0x109] sm:$0xff]
        %v3921 = vld [vmem:[#allocation3 + $0x111] sm:$0xff]
        %v3922 = vld [vmem:[#allocation3 + $0x121] sm:$0xff]
        %v3923 = vld [vmem:[#allocation3 + $0x129] sm:$0xff]
        %v3924 = vld [vmem:[#allocation3 + $0x139] sm:$0xff]
        %v3925 = vld [vmem:[#allocation3 + $0x141] sm:$0xff]
        %v3926 = vld [vmem:[#allocation3 + $0x151] sm:$0xff]
        %v3927 = vld [vmem:[#allocation3 + $0x159] sm:$0xff]
        %v3928 = vld [vmem:[#allocation3 + $0x169] sm:$0xff]
        %v3929 = vld [vmem:[#allocation3 + $0x171] sm:$0xff]
        %v3930 = vpack.c.bf16 %v3899, %v3898
        %v3931 = vpack.c.bf16 %v3901, %v3900
        %v3932 = vpack.c.bf16 %v3903, %v3902
        %v3933 = vpack.c.bf16 %v3905, %v3904
        %v3934 = vpack.c.bf16 %v3907, %v3906
        %v3935 = vpack.c.bf16 %v3909, %v3908
        %v3936 = vpack.c.bf16 %v3911, %v3910
        %v3937 = vpack.c.bf16 %v3913, %v3912
        %v3938 = vpack.c.bf16 %v3915, %v3914
        %v3939 = vpack.c.bf16 %v3917, %v3916
        %v3940 = vpack.c.bf16 %v3919, %v3918
        %v3941 = vpack.c.bf16 %v3921, %v3920
        %v3942 = vpack.c.bf16 %v3923, %v3922
        %v3943 = vpack.c.bf16 %v3925, %v3924
        %v3944 = vpack.c.bf16 %v3927, %v3926
        %v3945 = vpack.c.bf16 %v3929, %v3928
        %3962 = vrot.lane.b32.xlu0 %v3930, 16
        %v3963 = vpop.permute.xlu0 %3962
        %3964 = vrot.lane.b32.xlu0 %v3931, 16
        %v3965 = vpop.permute.xlu0 %3964
        %3966 = vrot.lane.b32.xlu0 %v3932, 16
        %v3967 = vpop.permute.xlu0 %3966
        %3968 = vrot.lane.b32.xlu0 %v3933, 16
        %v3969 = vpop.permute.xlu0 %3968
        %3970 = vrot.lane.b32.xlu0 %v3934, 16
        %v3971 = vpop.permute.xlu0 %3970
        %3972 = vrot.lane.b32.xlu0 %v3935, 16
        %v3973 = vpop.permute.xlu0 %3972
        %3974 = vrot.lane.b32.xlu0 %v3936, 16
        %v3975 = vpop.permute.xlu0 %3974
        %3976 = vrot.lane.b32.xlu0 %v3937, 16
        %v3977 = vpop.permute.xlu0 %3976
        %3978 = vrot.lane.b32.xlu0 %v3938, 16
        %v3979 = vpop.permute.xlu0 %3978
        %3980 = vrot.lane.b32.xlu0 %v3939, 16
        %v3981 = vpop.permute.xlu0 %3980
        %3982 = vrot.lane.b32.xlu0 %v3940, 16
        %v3983 = vpop.permute.xlu0 %3982
        %3984 = vrot.lane.b32.xlu0 %v3941, 16
        %v3985 = vpop.permute.xlu0 %3984
        %3986 = vrot.lane.b32.xlu0 %v3942, 16
        %v3987 = vpop.permute.xlu0 %3986
        %3988 = vrot.lane.b32.xlu0 %v3943, 16
        %v3989 = vpop.permute.xlu0 %3988
        %3990 = vrot.lane.b32.xlu0 %v3944, 16
        %v3991 = vpop.permute.xlu0 %3990
        %3992 = vrot.lane.b32.xlu0 %v3945, 16
        %v3993 = vpop.permute.xlu0 %3992
        %vm4010 = vcmask 261248
        %4011 = vst.msk [vmem:[#allocation4] sm:$0xff] %vm4010, %v3963
        %4012 = vst.msk [vmem:[#allocation4 + $0x20] sm:$0xff] %vm4010, %v3965
        %4013 = vst.msk [vmem:[#allocation4 + $0x40] sm:$0xff] %vm4010, %v3967
        %4014 = vst.msk [vmem:[#allocation4 + $0x60] sm:$0xff] %vm4010, %v3969
        %4015 = vst.msk [vmem:[#allocation4 + $0x80] sm:$0xff] %vm4010, %v3971
        %4016 = vst.msk [vmem:[#allocation4 + $0xa0] sm:$0xff] %vm4010, %v3973
        %4017 = vst.msk [vmem:[#allocation4 + $0xc0] sm:$0xff] %vm4010, %v3975
        %4018 = vst.msk [vmem:[#allocation4 + $0xe0] sm:$0xff] %vm4010, %v3977
        %4019 = vst.msk [vmem:[#allocation4 + $0x100] sm:$0xff] %vm4010, %v3979
        %4020 = vst.msk [vmem:[#allocation4 + $0x120] sm:$0xff] %vm4010, %v3981
        %4021 = vst.msk [vmem:[#allocation4 + $0x140] sm:$0xff] %vm4010, %v3983
        %4022 = vst.msk [vmem:[#allocation4 + $0x160] sm:$0xff] %vm4010, %v3985
        %4023 = vst.msk [vmem:[#allocation4 + $0x180] sm:$0xff] %vm4010, %v3987
        %4024 = vst.msk [vmem:[#allocation4 + $0x1a0] sm:$0xff] %vm4010, %v3989
        %4025 = vst.msk [vmem:[#allocation4 + $0x1c0] sm:$0xff] %vm4010, %v3991
        %4026 = vst.msk [vmem:[#allocation4 + $0x1e0] sm:$0xff] %vm4010, %v3993
        %v4027 = vld [vmem:[#allocation3 + $0x2] sm:$0xff]
        %v4028 = vld [vmem:[#allocation3 + $0xa] sm:$0xff]
        %v4029 = vld [vmem:[#allocation3 + $0x1a] sm:$0xff]
        %v4030 = vld [vmem:[#allocation3 + $0x22] sm:$0xff]
        %v4031 = vld [vmem:[#allocation3 + $0x32] sm:$0xff]
        %v4032 = vld [vmem:[#allocation3 + $0x3a] sm:$0xff]
        %v4033 = vld [vmem:[#allocation3 + $0x4a] sm:$0xff]
        %v4034 = vld [vmem:[#allocation3 + $0x52] sm:$0xff]
        %v4035 = vld [vmem:[#allocation3 + $0x62] sm:$0xff]
        %v4036 = vld [vmem:[#allocation3 + $0x6a] sm:$0xff]
        %v4037 = vld [vmem:[#allocation3 + $0x7a] sm:$0xff]
        %v4038 = vld [vmem:[#allocation3 + $0x82] sm:$0xff]
        %v4039 = vld [vmem:[#allocation3 + $0x92] sm:$0xff]
        %v4040 = vld [vmem:[#allocation3 + $0x9a] sm:$0xff]
        %v4041 = vld [vmem:[#allocation3 + $0xaa] sm:$0xff]
        %v4042 = vld [vmem:[#allocation3 + $0xb2] sm:$0xff]
        %v4043 = vld [vmem:[#allocation3 + $0xc2] sm:$0xff]
        %v4044 = vld [vmem:[#allocation3 + $0xca] sm:$0xff]
        %v4045 = vld [vmem:[#allocation3 + $0xda] sm:$0xff]
        %v4046 = vld [vmem:[#allocation3 + $0xe2] sm:$0xff]
        %v4047 = vld [vmem:[#allocation3 + $0xf2] sm:$0xff]
        %v4048 = vld [vmem:[#allocation3 + $0xfa] sm:$0xff]
        %v4049 = vld [vmem:[#allocation3 + $0x10a] sm:$0xff]
        %v4050 = vld [vmem:[#allocation3 + $0x112] sm:$0xff]
        %v4051 = vld [vmem:[#allocation3 + $0x122] sm:$0xff]
        %v4052 = vld [vmem:[#allocation3 + $0x12a] sm:$0xff]
        %v4053 = vld [vmem:[#allocation3 + $0x13a] sm:$0xff]
        %v4054 = vld [vmem:[#allocation3 + $0x142] sm:$0xff]
        %v4055 = vld [vmem:[#allocation3 + $0x152] sm:$0xff]
        %v4056 = vld [vmem:[#allocation3 + $0x15a] sm:$0xff]
        %v4057 = vld [vmem:[#allocation3 + $0x16a] sm:$0xff]
        %v4058 = vld [vmem:[#allocation3 + $0x172] sm:$0xff]
        %v4059 = vpack.c.bf16 %v4028, %v4027
        %v4060 = vpack.c.bf16 %v4030, %v4029
        %v4061 = vpack.c.bf16 %v4032, %v4031
        %v4062 = vpack.c.bf16 %v4034, %v4033
        %v4063 = vpack.c.bf16 %v4036, %v4035
        %v4064 = vpack.c.bf16 %v4038, %v4037
        %v4065 = vpack.c.bf16 %v4040, %v4039
        %v4066 = vpack.c.bf16 %v4042, %v4041
        %v4067 = vpack.c.bf16 %v4044, %v4043
        %v4068 = vpack.c.bf16 %v4046, %v4045
        %v4069 = vpack.c.bf16 %v4048, %v4047
        %v4070 = vpack.c.bf16 %v4050, %v4049
        %v4071 = vpack.c.bf16 %v4052, %v4051
        %v4072 = vpack.c.bf16 %v4054, %v4053
        %v4073 = vpack.c.bf16 %v4056, %v4055
        %v4074 = vpack.c.bf16 %v4058, %v4057
        %4091 = vrot.lane.b32.xlu0 %v4059, 32
        %v4092 = vpop.permute.xlu0 %4091
        %4093 = vrot.lane.b32.xlu0 %v4060, 32
        %v4094 = vpop.permute.xlu0 %4093
        %4095 = vrot.lane.b32.xlu0 %v4061, 32
        %v4096 = vpop.permute.xlu0 %4095
        %4097 = vrot.lane.b32.xlu0 %v4062, 32
        %v4098 = vpop.permute.xlu0 %4097
        %4099 = vrot.lane.b32.xlu0 %v4063, 32
        %v4100 = vpop.permute.xlu0 %4099
        %4101 = vrot.lane.b32.xlu0 %v4064, 32
        %v4102 = vpop.permute.xlu0 %4101
        %4103 = vrot.lane.b32.xlu0 %v4065, 32
        %v4104 = vpop.permute.xlu0 %4103
        %4105 = vrot.lane.b32.xlu0 %v4066, 32
        %v4106 = vpop.permute.xlu0 %4105
        %4107 = vrot.lane.b32.xlu0 %v4067, 32
        %v4108 = vpop.permute.xlu0 %4107
        %4109 = vrot.lane.b32.xlu0 %v4068, 32
        %v4110 = vpop.permute.xlu0 %4109
        %4111 = vrot.lane.b32.xlu0 %v4069, 32
        %v4112 = vpop.permute.xlu0 %4111
        %4113 = vrot.lane.b32.xlu0 %v4070, 32
        %v4114 = vpop.permute.xlu0 %4113
        %4115 = vrot.lane.b32.xlu0 %v4071, 32
        %v4116 = vpop.permute.xlu0 %4115
        %4117 = vrot.lane.b32.xlu0 %v4072, 32
        %v4118 = vpop.permute.xlu0 %4117
        %4119 = vrot.lane.b32.xlu0 %v4073, 32
        %v4120 = vpop.permute.xlu0 %4119
        %4121 = vrot.lane.b32.xlu0 %v4074, 32
        %v4122 = vpop.permute.xlu0 %4121
        %vm4139 = vcmask 392448
        %4140 = vst.msk [vmem:[#allocation4] sm:$0xff] %vm4139, %v4092
        %4141 = vst.msk [vmem:[#allocation4 + $0x20] sm:$0xff] %vm4139, %v4094
        %4142 = vst.msk [vmem:[#allocation4 + $0x40] sm:$0xff] %vm4139, %v4096
        %4143 = vst.msk [vmem:[#allocation4 + $0x60] sm:$0xff] %vm4139, %v4098
        %4144 = vst.msk [vmem:[#allocation4 + $0x80] sm:$0xff] %vm4139, %v4100
        %4145 = vst.msk [vmem:[#allocation4 + $0xa0] sm:$0xff] %vm4139, %v4102
        %4146 = vst.msk [vmem:[#allocation4 + $0xc0] sm:$0xff] %vm4139, %v4104
        %4147 = vst.msk [vmem:[#allocation4 + $0xe0] sm:$0xff] %vm4139, %v4106
        %4148 = vst.msk [vmem:[#allocation4 + $0x100] sm:$0xff] %vm4139, %v4108
        %4149 = vst.msk [vmem:[#allocation4 + $0x120] sm:$0xff] %vm4139, %v4110
        %4150 = vst.msk [vmem:[#allocation4 + $0x140] sm:$0xff] %vm4139, %v4112
        %4151 = vst.msk [vmem:[#allocation4 + $0x160] sm:$0xff] %vm4139, %v4114
        %4152 = vst.msk [vmem:[#allocation4 + $0x180] sm:$0xff] %vm4139, %v4116
        %4153 = vst.msk [vmem:[#allocation4 + $0x1a0] sm:$0xff] %vm4139, %v4118
        %4154 = vst.msk [vmem:[#allocation4 + $0x1c0] sm:$0xff] %vm4139, %v4120
        %4155 = vst.msk [vmem:[#allocation4 + $0x1e0] sm:$0xff] %vm4139, %v4122
        %v4156 = vld [vmem:[#allocation3 + $0x3] sm:$0xff]
        %v4157 = vld [vmem:[#allocation3 + $0xb] sm:$0xff]
        %v4158 = vld [vmem:[#allocation3 + $0x1b] sm:$0xff]
        %v4159 = vld [vmem:[#allocation3 + $0x23] sm:$0xff]
        %v4160 = vld [vmem:[#allocation3 + $0x33] sm:$0xff]
        %v4161 = vld [vmem:[#allocation3 + $0x3b] sm:$0xff]
        %v4162 = vld [vmem:[#allocation3 + $0x4b] sm:$0xff]
        %v4163 = vld [vmem:[#allocation3 + $0x53] sm:$0xff]
        %v4164 = vld [vmem:[#allocation3 + $0x63] sm:$0xff]
        %v4165 = vld [vmem:[#allocation3 + $0x6b] sm:$0xff]
        %v4166 = vld [vmem:[#allocation3 + $0x7b] sm:$0xff]
        %v4167 = vld [vmem:[#allocation3 + $0x83] sm:$0xff]
        %v4168 = vld [vmem:[#allocation3 + $0x93] sm:$0xff]
        %v4169 = vld [vmem:[#allocation3 + $0x9b] sm:$0xff]
        %v4170 = vld [vmem:[#allocation3 + $0xab] sm:$0xff]
        %v4171 = vld [vmem:[#allocation3 + $0xb3] sm:$0xff]
        %v4172 = vld [vmem:[#allocation3 + $0xc3] sm:$0xff]
        %v4173 = vld [vmem:[#allocation3 + $0xcb] sm:$0xff]
        %v4174 = vld [vmem:[#allocation3 + $0xdb] sm:$0xff]
        %v4175 = vld [vmem:[#allocation3 + $0xe3] sm:$0xff]
        %v4176 = vld [vmem:[#allocation3 + $0xf3] sm:$0xff]
        %v4177 = vld [vmem:[#allocation3 + $0xfb] sm:$0xff]
        %v4178 = vld [vmem:[#allocation3 + $0x10b] sm:$0xff]
        %v4179 = vld [vmem:[#allocation3 + $0x113] sm:$0xff]
        %v4180 = vld [vmem:[#allocation3 + $0x123] sm:$0xff]
        %v4181 = vld [vmem:[#allocation3 + $0x12b] sm:$0xff]
        %v4182 = vld [vmem:[#allocation3 + $0x13b] sm:$0xff]
        %v4183 = vld [vmem:[#allocation3 + $0x143] sm:$0xff]
        %v4184 = vld [vmem:[#allocation3 + $0x153] sm:$0xff]
        %v4185 = vld [vmem:[#allocation3 + $0x15b] sm:$0xff]
        %v4186 = vld [vmem:[#allocation3 + $0x16b] sm:$0xff]
        %v4187 = vld [vmem:[#allocation3 + $0x173] sm:$0xff]
        %v4188 = vpack.c.bf16 %v4157, %v4156
        %v4189 = vpack.c.bf16 %v4159, %v4158
        %v4190 = vpack.c.bf16 %v4161, %v4160
        %v4191 = vpack.c.bf16 %v4163, %v4162
        %v4192 = vpack.c.bf16 %v4165, %v4164
        %v4193 = vpack.c.bf16 %v4167, %v4166
        %v4194 = vpack.c.bf16 %v4169, %v4168
        %v4195 = vpack.c.bf16 %v4171, %v4170
        %v4196 = vpack.c.bf16 %v4173, %v4172
        %v4197 = vpack.c.bf16 %v4175, %v4174
        %v4198 = vpack.c.bf16 %v4177, %v4176
        %v4199 = vpack.c.bf16 %v4179, %v4178
        %v4200 = vpack.c.bf16 %v4181, %v4180
        %v4201 = vpack.c.bf16 %v4183, %v4182
        %v4202 = vpack.c.bf16 %v4185, %v4184
        %v4203 = vpack.c.bf16 %v4187, %v4186
        %4220 = vrot.lane.b32.xlu0 %v4188, 48
        %v4221 = vpop.permute.xlu0 %4220
        %4222 = vrot.lane.b32.xlu0 %v4189, 48
        %v4223 = vpop.permute.xlu0 %4222
        %4224 = vrot.lane.b32.xlu0 %v4190, 48
        %v4225 = vpop.permute.xlu0 %4224
        %4226 = vrot.lane.b32.xlu0 %v4191, 48
        %v4227 = vpop.permute.xlu0 %4226
        %4228 = vrot.lane.b32.xlu0 %v4192, 48
        %v4229 = vpop.permute.xlu0 %4228
        %4230 = vrot.lane.b32.xlu0 %v4193, 48
        %v4231 = vpop.permute.xlu0 %4230
        %4232 = vrot.lane.b32.xlu0 %v4194, 48
        %v4233 = vpop.permute.xlu0 %4232
        %4234 = vrot.lane.b32.xlu0 %v4195, 48
        %v4235 = vpop.permute.xlu0 %4234
        %4236 = vrot.lane.b32.xlu0 %v4196, 48
        %v4237 = vpop.permute.xlu0 %4236
        %4238 = vrot.lane.b32.xlu0 %v4197, 48
        %v4239 = vpop.permute.xlu0 %4238
        %4240 = vrot.lane.b32.xlu0 %v4198, 48
        %v4241 = vpop.permute.xlu0 %4240
        %4242 = vrot.lane.b32.xlu0 %v4199, 48
        %v4243 = vpop.permute.xlu0 %4242
        %4244 = vrot.lane.b32.xlu0 %v4200, 48
        %v4245 = vpop.permute.xlu0 %4244
        %4246 = vrot.lane.b32.xlu0 %v4201, 48
        %v4247 = vpop.permute.xlu0 %4246
        %4248 = vrot.lane.b32.xlu0 %v4202, 48
        %v4249 = vpop.permute.xlu0 %4248
        %4250 = vrot.lane.b32.xlu0 %v4203, 48
        %v4251 = vpop.permute.xlu0 %4250
        %vm4268 = vcmask 523648
        %4269 = vst.msk [vmem:[#allocation4] sm:$0xff] %vm4268, %v4221
        %4270 = vst.msk [vmem:[#allocation4 + $0x20] sm:$0xff] %vm4268, %v4223
        %4271 = vst.msk [vmem:[#allocation4 + $0x40] sm:$0xff] %vm4268, %v4225
        %4272 = vst.msk [vmem:[#allocation4 + $0x60] sm:$0xff] %vm4268, %v4227
        %4273 = vst.msk [vmem:[#allocation4 + $0x80] sm:$0xff] %vm4268, %v4229
        %4274 = vst.msk [vmem:[#allocation4 + $0xa0] sm:$0xff] %vm4268, %v4231
        %4275 = vst.msk [vmem:[#allocation4 + $0xc0] sm:$0xff] %vm4268, %v4233
        %4276 = vst.msk [vmem:[#allocation4 + $0xe0] sm:$0xff] %vm4268, %v4235
        %4277 = vst.msk [vmem:[#allocation4 + $0x100] sm:$0xff] %vm4268, %v4237
        %4278 = vst.msk [vmem:[#allocation4 + $0x120] sm:$0xff] %vm4268, %v4239
        %4279 = vst.msk [vmem:[#allocation4 + $0x140] sm:$0xff] %vm4268, %v4241
        %4280 = vst.msk [vmem:[#allocation4 + $0x160] sm:$0xff] %vm4268, %v4243
        %4281 = vst.msk [vmem:[#allocation4 + $0x180] sm:$0xff] %vm4268, %v4245
        %4282 = vst.msk [vmem:[#allocation4 + $0x1a0] sm:$0xff] %vm4268, %v4247
        %4283 = vst.msk [vmem:[#allocation4 + $0x1c0] sm:$0xff] %vm4268, %v4249
        %4284 = vst.msk [vmem:[#allocation4 + $0x1e0] sm:$0xff] %vm4268, %v4251
        %v4285 = vld [vmem:[#allocation3 + $0x4] sm:$0xff]
        %v4286 = vld [vmem:[#allocation3 + $0xc] sm:$0xff]
        %v4287 = vld [vmem:[#allocation3 + $0x1c] sm:$0xff]
        %v4288 = vld [vmem:[#allocation3 + $0x24] sm:$0xff]
        %v4289 = vld [vmem:[#allocation3 + $0x34] sm:$0xff]
        %v4290 = vld [vmem:[#allocation3 + $0x3c] sm:$0xff]
        %v4291 = vld [vmem:[#allocation3 + $0x4c] sm:$0xff]
        %v4292 = vld [vmem:[#allocation3 + $0x54] sm:$0xff]
        %v4293 = vld [vmem:[#allocation3 + $0x64] sm:$0xff]
        %v4294 = vld [vmem:[#allocation3 + $0x6c] sm:$0xff]
        %v4295 = vld [vmem:[#allocation3 + $0x7c] sm:$0xff]
        %v4296 = vld [vmem:[#allocation3 + $0x84] sm:$0xff]
        %v4297 = vld [vmem:[#allocation3 + $0x94] sm:$0xff]
        %v4298 = vld [vmem:[#allocation3 + $0x9c] sm:$0xff]
        %v4299 = vld [vmem:[#allocation3 + $0xac] sm:$0xff]
        %v4300 = vld [vmem:[#allocation3 + $0xb4] sm:$0xff]
        %v4301 = vld [vmem:[#allocation3 + $0xc4] sm:$0xff]
        %v4302 = vld [vmem:[#allocation3 + $0xcc] sm:$0xff]
        %v4303 = vld [vmem:[#allocation3 + $0xdc] sm:$0xff]
        %v4304 = vld [vmem:[#allocation3 + $0xe4] sm:$0xff]
        %v4305 = vld [vmem:[#allocation3 + $0xf4] sm:$0xff]
        %v4306 = vld [vmem:[#allocation3 + $0xfc] sm:$0xff]
        %v4307 = vld [vmem:[#allocation3 + $0x10c] sm:$0xff]
        %v4308 = vld [vmem:[#allocation3 + $0x114] sm:$0xff]
        %v4309 = vld [vmem:[#allocation3 + $0x124] sm:$0xff]
        %v4310 = vld [vmem:[#allocation3 + $0x12c] sm:$0xff]
        %v4311 = vld [vmem:[#allocation3 + $0x13c] sm:$0xff]
        %v4312 = vld [vmem:[#allocation3 + $0x144] sm:$0xff]
        %v4313 = vld [vmem:[#allocation3 + $0x154] sm:$0xff]
        %v4314 = vld [vmem:[#allocation3 + $0x15c] sm:$0xff]
        %v4315 = vld [vmem:[#allocation3 + $0x16c] sm:$0xff]
        %v4316 = vld [vmem:[#allocation3 + $0x174] sm:$0xff]
        %v4317 = vpack.c.bf16 %v4286, %v4285
        %v4318 = vpack.c.bf16 %v4288, %v4287
        %v4319 = vpack.c.bf16 %v4290, %v4289
        %v4320 = vpack.c.bf16 %v4292, %v4291
        %v4321 = vpack.c.bf16 %v4294, %v4293
        %v4322 = vpack.c.bf16 %v4296, %v4295
        %v4323 = vpack.c.bf16 %v4298, %v4297
        %v4324 = vpack.c.bf16 %v4300, %v4299
        %v4325 = vpack.c.bf16 %v4302, %v4301
        %v4326 = vpack.c.bf16 %v4304, %v4303
        %v4327 = vpack.c.bf16 %v4306, %v4305
        %v4328 = vpack.c.bf16 %v4308, %v4307
        %v4329 = vpack.c.bf16 %v4310, %v4309
        %v4330 = vpack.c.bf16 %v4312, %v4311
        %v4331 = vpack.c.bf16 %v4314, %v4313
        %v4332 = vpack.c.bf16 %v4316, %v4315
        %4349 = vrot.lane.b32.xlu0 %v4317, 64
        %v4350 = vpop.permute.xlu0 %4349
        %4351 = vrot.lane.b32.xlu0 %v4318, 64
        %v4352 = vpop.permute.xlu0 %4351
        %4353 = vrot.lane.b32.xlu0 %v4319, 64
        %v4354 = vpop.permute.xlu0 %4353
        %4355 = vrot.lane.b32.xlu0 %v4320, 64
        %v4356 = vpop.permute.xlu0 %4355
        %4357 = vrot.lane.b32.xlu0 %v4321, 64
        %v4358 = vpop.permute.xlu0 %4357
        %4359 = vrot.lane.b32.xlu0 %v4322, 64
        %v4360 = vpop.permute.xlu0 %4359
        %4361 = vrot.lane.b32.xlu0 %v4323, 64
        %v4362 = vpop.permute.xlu0 %4361
        %4363 = vrot.lane.b32.xlu0 %v4324, 64
        %v4364 = vpop.permute.xlu0 %4363
        %4365 = vrot.lane.b32.xlu0 %v4325, 64
        %v4366 = vpop.permute.xlu0 %4365
        %4367 = vrot.lane.b32.xlu0 %v4326, 64
        %v4368 = vpop.permute.xlu0 %4367
        %4369 = vrot.lane.b32.xlu0 %v4327, 64
        %v4370 = vpop.permute.xlu0 %4369
        %4371 = vrot.lane.b32.xlu0 %v4328, 64
        %v4372 = vpop.permute.xlu0 %4371
        %4373 = vrot.lane.b32.xlu0 %v4329, 64
        %v4374 = vpop.permute.xlu0 %4373
        %4375 = vrot.lane.b32.xlu0 %v4330, 64
        %v4376 = vpop.permute.xlu0 %4375
        %4377 = vrot.lane.b32.xlu0 %v4331, 64
        %v4378 = vpop.permute.xlu0 %4377
        %4379 = vrot.lane.b32.xlu0 %v4332, 64
        %v4380 = vpop.permute.xlu0 %4379
        %vm4397 = vcmask 654848
        %4398 = vst.msk [vmem:[#allocation4] sm:$0xff] %vm4397, %v4350
        %4399 = vst.msk [vmem:[#allocation4 + $0x20] sm:$0xff] %vm4397, %v4352
        %4400 = vst.msk [vmem:[#allocation4 + $0x40] sm:$0xff] %vm4397, %v4354
        %4401 = vst.msk [vmem:[#allocation4 + $0x60] sm:$0xff] %vm4397, %v4356
        %4402 = vst.msk [vmem:[#allocation4 + $0x80] sm:$0xff] %vm4397, %v4358
        %4403 = vst.msk [vmem:[#allocation4 + $0xa0] sm:$0xff] %vm4397, %v4360
        %4404 = vst.msk [vmem:[#allocation4 + $0xc0] sm:$0xff] %vm4397, %v4362
        %4405 = vst.msk [vmem:[#allocation4 + $0xe0] sm:$0xff] %vm4397, %v4364
        %4406 = vst.msk [vmem:[#allocation4 + $0x100] sm:$0xff] %vm4397, %v4366
        %4407 = vst.msk [vmem:[#allocation4 + $0x120] sm:$0xff] %vm4397, %v4368
        %4408 = vst.msk [vmem:[#allocation4 + $0x140] sm:$0xff] %vm4397, %v4370
        %4409 = vst.msk [vmem:[#allocation4 + $0x160] sm:$0xff] %vm4397, %v4372
        %4410 = vst.msk [vmem:[#allocation4 + $0x180] sm:$0xff] %vm4397, %v4374
        %4411 = vst.msk [vmem:[#allocation4 + $0x1a0] sm:$0xff] %vm4397, %v4376
        %4412 = vst.msk [vmem:[#allocation4 + $0x1c0] sm:$0xff] %vm4397, %v4378
        %4413 = vst.msk [vmem:[#allocation4 + $0x1e0] sm:$0xff] %vm4397, %v4380
        %v4414 = vld [vmem:[%s3767] sm:$0xff]
        %v4415 = vld [vmem:[%s3767 + $0x8] sm:$0xff]
        %v4416 = vld [vmem:[%s3767 + $0x18] sm:$0xff]
        %v4417 = vld [vmem:[%s3767 + $0x20] sm:$0xff]
        %v4418 = vld [vmem:[%s3767 + $0x30] sm:$0xff]
        %v4419 = vld [vmem:[%s3767 + $0x38] sm:$0xff]
        %v4420 = vld [vmem:[%s3767 + $0x48] sm:$0xff]
        %v4421 = vld [vmem:[%s3767 + $0x50] sm:$0xff]
        %v4422 = vld [vmem:[%s3767 + $0x60] sm:$0xff]
        %v4423 = vld [vmem:[%s3767 + $0x68] sm:$0xff]
        %v4424 = vld [vmem:[%s3767 + $0x78] sm:$0xff]
        %v4425 = vld [vmem:[%s3767 + $0x80] sm:$0xff]
        %v4426 = vld [vmem:[%s3767 + $0x90] sm:$0xff]
        %v4427 = vld [vmem:[%s3767 + $0x98] sm:$0xff]
        %v4428 = vld [vmem:[%s3767 + $0xa8] sm:$0xff]
        %v4429 = vld [vmem:[%s3767 + $0xb0] sm:$0xff]
        %v4430 = vld [vmem:[%s3767 + $0xc0] sm:$0xff]
        %v4431 = vld [vmem:[%s3767 + $0xc8] sm:$0xff]
        %v4432 = vld [vmem:[%s3767 + $0xd8] sm:$0xff]
        %v4433 = vld [vmem:[%s3767 + $0xe0] sm:$0xff]
        %v4434 = vld [vmem:[%s3767 + $0xf0] sm:$0xff]
        %v4435 = vld [vmem:[%s3767 + $0xf8] sm:$0xff]
        %v4436 = vld [vmem:[%s3767 + $0x108] sm:$0xff]
        %v4437 = vld [vmem:[%s3767 + $0x110] sm:$0xff]
        %v4438 = vld [vmem:[%s3767 + $0x120] sm:$0xff]
        %v4439 = vld [vmem:[%s3767 + $0x128] sm:$0xff]
        %v4440 = vld [vmem:[%s3767 + $0x138] sm:$0xff]
        %v4441 = vld [vmem:[%s3767 + $0x140] sm:$0xff]
        %v4442 = vld [vmem:[%s3767 + $0x150] sm:$0xff]
        %v4443 = vld [vmem:[%s3767 + $0x158] sm:$0xff]
        %v4444 = vld [vmem:[%s3767 + $0x168] sm:$0xff]
        %v4445 = vld [vmem:[%s3767 + $0x170] sm:$0xff]
        %v4446 = vpack.c.bf16 %v4415, %v4414
        %v4447 = vpack.c.bf16 %v4417, %v4416
        %v4448 = vpack.c.bf16 %v4419, %v4418
        %v4449 = vpack.c.bf16 %v4421, %v4420
        %v4450 = vpack.c.bf16 %v4423, %v4422
        %v4451 = vpack.c.bf16 %v4425, %v4424
        %v4452 = vpack.c.bf16 %v4427, %v4426
        %v4453 = vpack.c.bf16 %v4429, %v4428
        %v4454 = vpack.c.bf16 %v4431, %v4430
        %v4455 = vpack.c.bf16 %v4433, %v4432
        %v4456 = vpack.c.bf16 %v4435, %v4434
        %v4457 = vpack.c.bf16 %v4437, %v4436
        %v4458 = vpack.c.bf16 %v4439, %v4438
        %v4459 = vpack.c.bf16 %v4441, %v4440
        %v4460 = vpack.c.bf16 %v4443, %v4442
        %v4461 = vpack.c.bf16 %v4445, %v4444
        %4478 = vrot.lane.b32.xlu0 %v4446, 80
        %v4479 = vpop.permute.xlu0 %4478
        %4480 = vrot.lane.b32.xlu0 %v4447, 80
        %v4481 = vpop.permute.xlu0 %4480
        %4482 = vrot.lane.b32.xlu0 %v4448, 80
        %v4483 = vpop.permute.xlu0 %4482
        %4484 = vrot.lane.b32.xlu0 %v4449, 80
        %v4485 = vpop.permute.xlu0 %4484
        %4486 = vrot.lane.b32.xlu0 %v4450, 80
        %v4487 = vpop.permute.xlu0 %4486
        %4488 = vrot.lane.b32.xlu0 %v4451, 80
        %v4489 = vpop.permute.xlu0 %4488
        %4490 = vrot.lane.b32.xlu0 %v4452, 80
        %v4491 = vpop.permute.xlu0 %4490
        %4492 = vrot.lane.b32.xlu0 %v4453, 80
        %v4493 = vpop.permute.xlu0 %4492
        %4494 = vrot.lane.b32.xlu0 %v4454, 80
        %v4495 = vpop.permute.xlu0 %4494
        %4496 = vrot.lane.b32.xlu0 %v4455, 80
        %v4497 = vpop.permute.xlu0 %4496
        %4498 = vrot.lane.b32.xlu0 %v4456, 80
        %v4499 = vpop.permute.xlu0 %4498
        %4500 = vrot.lane.b32.xlu0 %v4457, 80
        %v4501 = vpop.permute.xlu0 %4500
        %4502 = vrot.lane.b32.xlu0 %v4458, 80
        %v4503 = vpop.permute.xlu0 %4502
        %4504 = vrot.lane.b32.xlu0 %v4459, 80
        %v4505 = vpop.permute.xlu0 %4504
        %4506 = vrot.lane.b32.xlu0 %v4460, 80
        %v4507 = vpop.permute.xlu0 %4506
        %4508 = vrot.lane.b32.xlu0 %v4461, 80
        %v4509 = vpop.permute.xlu0 %4508
        %vm4526 = vcmask 786048
        %4527 = vst.msk [vmem:[#allocation4] sm:$0xff] %vm4526, %v4479
        %4528 = vst.msk [vmem:[#allocation4 + $0x20] sm:$0xff] %vm4526, %v4481
        %4529 = vst.msk [vmem:[#allocation4 + $0x40] sm:$0xff] %vm4526, %v4483
        %4530 = vst.msk [vmem:[#allocation4 + $0x60] sm:$0xff] %vm4526, %v4485
        %4531 = vst.msk [vmem:[#allocation4 + $0x80] sm:$0xff] %vm4526, %v4487
        %4532 = vst.msk [vmem:[#allocation4 + $0xa0] sm:$0xff] %vm4526, %v4489
        %4533 = vst.msk [vmem:[#allocation4 + $0xc0] sm:$0xff] %vm4526, %v4491
        %4534 = vst.msk [vmem:[#allocation4 + $0xe0] sm:$0xff] %vm4526, %v4493
        %4535 = vst.msk [vmem:[#allocation4 + $0x100] sm:$0xff] %vm4526, %v4495
        %4536 = vst.msk [vmem:[#allocation4 + $0x120] sm:$0xff] %vm4526, %v4497
        %4537 = vst.msk [vmem:[#allocation4 + $0x140] sm:$0xff] %vm4526, %v4499
        %4538 = vst.msk [vmem:[#allocation4 + $0x160] sm:$0xff] %vm4526, %v4501
        %4539 = vst.msk [vmem:[#allocation4 + $0x180] sm:$0xff] %vm4526, %v4503
        %4540 = vst.msk [vmem:[#allocation4 + $0x1a0] sm:$0xff] %vm4526, %v4505
        %4541 = vst.msk [vmem:[#allocation4 + $0x1c0] sm:$0xff] %vm4526, %v4507
        %4542 = vst.msk [vmem:[#allocation4 + $0x1e0] sm:$0xff] %vm4526, %v4509
        %v4543 = vld [vmem:[%s3767 + $0x1] sm:$0xff]
        %v4544 = vld [vmem:[%s3767 + $0x9] sm:$0xff]
        %v4545 = vld [vmem:[%s3767 + $0x19] sm:$0xff]
        %v4546 = vld [vmem:[%s3767 + $0x21] sm:$0xff]
        %v4547 = vld [vmem:[%s3767 + $0x31] sm:$0xff]
        %v4548 = vld [vmem:[%s3767 + $0x39] sm:$0xff]
        %v4549 = vld [vmem:[%s3767 + $0x49] sm:$0xff]
        %v4550 = vld [vmem:[%s3767 + $0x51] sm:$0xff]
        %v4551 = vld [vmem:[%s3767 + $0x61] sm:$0xff]
        %v4552 = vld [vmem:[%s3767 + $0x69] sm:$0xff]
        %v4553 = vld [vmem:[%s3767 + $0x79] sm:$0xff]
        %v4554 = vld [vmem:[%s3767 + $0x81] sm:$0xff]
        %v4555 = vld [vmem:[%s3767 + $0x91] sm:$0xff]
        %v4556 = vld [vmem:[%s3767 + $0x99] sm:$0xff]
        %v4557 = vld [vmem:[%s3767 + $0xa9] sm:$0xff]
        %v4558 = vld [vmem:[%s3767 + $0xb1] sm:$0xff]
        %v4559 = vld [vmem:[%s3767 + $0xc1] sm:$0xff]
        %v4560 = vld [vmem:[%s3767 + $0xc9] sm:$0xff]
        %v4561 = vld [vmem:[%s3767 + $0xd9] sm:$0xff]
        %v4562 = vld [vmem:[%s3767 + $0xe1] sm:$0xff]
        %v4563 = vld [vmem:[%s3767 + $0xf1] sm:$0xff]
        %v4564 = vld [vmem:[%s3767 + $0xf9] sm:$0xff]
        %v4565 = vld [vmem:[%s3767 + $0x109] sm:$0xff]
        %v4566 = vld [vmem:[%s3767 + $0x111] sm:$0xff]
        %v4567 = vld [vmem:[%s3767 + $0x121] sm:$0xff]
        %v4568 = vld [vmem:[%s3767 + $0x129] sm:$0xff]
        %v4569 = vld [vmem:[%s3767 + $0x139] sm:$0xff]
        %v4570 = vld [vmem:[%s3767 + $0x141] sm:$0xff]
        %v4571 = vld [vmem:[%s3767 + $0x151] sm:$0xff]
        %v4572 = vld [vmem:[%s3767 + $0x159] sm:$0xff]
        %v4573 = vld [vmem:[%s3767 + $0x169] sm:$0xff]
        %v4574 = vld [vmem:[%s3767 + $0x171] sm:$0xff]
        %v4575 = vpack.c.bf16 %v4544, %v4543
        %v4576 = vpack.c.bf16 %v4546, %v4545
        %v4577 = vpack.c.bf16 %v4548, %v4547
        %v4578 = vpack.c.bf16 %v4550, %v4549
        %v4579 = vpack.c.bf16 %v4552, %v4551
        %v4580 = vpack.c.bf16 %v4554, %v4553
        %v4581 = vpack.c.bf16 %v4556, %v4555
        %v4582 = vpack.c.bf16 %v4558, %v4557
        %v4583 = vpack.c.bf16 %v4560, %v4559
        %v4584 = vpack.c.bf16 %v4562, %v4561
        %v4585 = vpack.c.bf16 %v4564, %v4563
        %v4586 = vpack.c.bf16 %v4566, %v4565
        %v4587 = vpack.c.bf16 %v4568, %v4567
        %v4588 = vpack.c.bf16 %v4570, %v4569
        %v4589 = vpack.c.bf16 %v4572, %v4571
        %v4590 = vpack.c.bf16 %v4574, %v4573
        %4607 = vrot.lane.b32.xlu0 %v4575, 96
        %v4608 = vpop.permute.xlu0 %4607
        %4609 = vrot.lane.b32.xlu0 %v4576, 96
        %v4610 = vpop.permute.xlu0 %4609
        %4611 = vrot.lane.b32.xlu0 %v4577, 96
        %v4612 = vpop.permute.xlu0 %4611
        %4613 = vrot.lane.b32.xlu0 %v4578, 96
        %v4614 = vpop.permute.xlu0 %4613
        %4615 = vrot.lane.b32.xlu0 %v4579, 96
        %v4616 = vpop.permute.xlu0 %4615
        %4617 = vrot.lane.b32.xlu0 %v4580, 96
        %v4618 = vpop.permute.xlu0 %4617
        %4619 = vrot.lane.b32.xlu0 %v4581, 96
        %v4620 = vpop.permute.xlu0 %4619
        %4621 = vrot.lane.b32.xlu0 %v4582, 96
        %v4622 = vpop.permute.xlu0 %4621
        %4623 = vrot.lane.b32.xlu0 %v4583, 96
        %v4624 = vpop.permute.xlu0 %4623
        %4625 = vrot.lane.b32.xlu0 %v4584, 96
        %v4626 = vpop.permute.xlu0 %4625
        %4627 = vrot.lane.b32.xlu0 %v4585, 96
        %v4628 = vpop.permute.xlu0 %4627
        %4629 = vrot.lane.b32.xlu0 %v4586, 96
        %v4630 = vpop.permute.xlu0 %4629
        %4631 = vrot.lane.b32.xlu0 %v4587, 96
        %v4632 = vpop.permute.xlu0 %4631
        %4633 = vrot.lane.b32.xlu0 %v4588, 96
        %v4634 = vpop.permute.xlu0 %4633
        %4635 = vrot.lane.b32.xlu0 %v4589, 96
        %v4636 = vpop.permute.xlu0 %4635
        %4637 = vrot.lane.b32.xlu0 %v4590, 96
        %v4638 = vpop.permute.xlu0 %4637
        %vm4655 = vcmask 917248
        %4656 = vst.msk [vmem:[#allocation4] sm:$0xff] %vm4655, %v4608
        %4657 = vst.msk [vmem:[#allocation4 + $0x20] sm:$0xff] %vm4655, %v4610
        %4658 = vst.msk [vmem:[#allocation4 + $0x40] sm:$0xff] %vm4655, %v4612
        %4659 = vst.msk [vmem:[#allocation4 + $0x60] sm:$0xff] %vm4655, %v4614
        %4660 = vst.msk [vmem:[#allocation4 + $0x80] sm:$0xff] %vm4655, %v4616
        %4661 = vst.msk [vmem:[#allocation4 + $0xa0] sm:$0xff] %vm4655, %v4618
        %4662 = vst.msk [vmem:[#allocation4 + $0xc0] sm:$0xff] %vm4655, %v4620
        %4663 = vst.msk [vmem:[#allocation4 + $0xe0] sm:$0xff] %vm4655, %v4622
        %4664 = vst.msk [vmem:[#allocation4 + $0x100] sm:$0xff] %vm4655, %v4624
        %4665 = vst.msk [vmem:[#allocation4 + $0x120] sm:$0xff] %vm4655, %v4626
        %4666 = vst.msk [vmem:[#allocation4 + $0x140] sm:$0xff] %vm4655, %v4628
        %4667 = vst.msk [vmem:[#allocation4 + $0x160] sm:$0xff] %vm4655, %v4630
        %4668 = vst.msk [vmem:[#allocation4 + $0x180] sm:$0xff] %vm4655, %v4632
        %4669 = vst.msk [vmem:[#allocation4 + $0x1a0] sm:$0xff] %vm4655, %v4634
        %4670 = vst.msk [vmem:[#allocation4 + $0x1c0] sm:$0xff] %vm4655, %v4636
        %4671 = vst.msk [vmem:[#allocation4 + $0x1e0] sm:$0xff] %vm4655, %v4638
        %v4672 = vld [vmem:[%s3767 + $0x2] sm:$0xff]
        %v4673 = vld [vmem:[%s3767 + $0xa] sm:$0xff]
        %v4674 = vld [vmem:[%s3767 + $0x1a] sm:$0xff]
        %v4675 = vld [vmem:[%s3767 + $0x22] sm:$0xff]
        %v4676 = vld [vmem:[%s3767 + $0x32] sm:$0xff]
        %v4677 = vld [vmem:[%s3767 + $0x3a] sm:$0xff]
        %v4678 = vld [vmem:[%s3767 + $0x4a] sm:$0xff]
        %v4679 = vld [vmem:[%s3767 + $0x52] sm:$0xff]
        %v4680 = vld [vmem:[%s3767 + $0x62] sm:$0xff]
        %v4681 = vld [vmem:[%s3767 + $0x6a] sm:$0xff]
        %v4682 = vld [vmem:[%s3767 + $0x7a] sm:$0xff]
        %v4683 = vld [vmem:[%s3767 + $0x82] sm:$0xff]
        %v4684 = vld [vmem:[%s3767 + $0x92] sm:$0xff]
        %v4685 = vld [vmem:[%s3767 + $0x9a] sm:$0xff]
        %v4686 = vld [vmem:[%s3767 + $0xaa] sm:$0xff]
        %v4687 = vld [vmem:[%s3767 + $0xb2] sm:$0xff]
        %v4688 = vld [vmem:[%s3767 + $0xc2] sm:$0xff]
        %v4689 = vld [vmem:[%s3767 + $0xca] sm:$0xff]
        %v4690 = vld [vmem:[%s3767 + $0xda] sm:$0xff]
        %v4691 = vld [vmem:[%s3767 + $0xe2] sm:$0xff]
        %v4692 = vld [vmem:[%s3767 + $0xf2] sm:$0xff]
        %v4693 = vld [vmem:[%s3767 + $0xfa] sm:$0xff]
        %v4694 = vld [vmem:[%s3767 + $0x10a] sm:$0xff]
        %v4695 = vld [vmem:[%s3767 + $0x112] sm:$0xff]
        %v4696 = vld [vmem:[%s3767 + $0x122] sm:$0xff]
        %v4697 = vld [vmem:[%s3767 + $0x12a] sm:$0xff]
        %v4698 = vld [vmem:[%s3767 + $0x13a] sm:$0xff]
        %v4699 = vld [vmem:[%s3767 + $0x142] sm:$0xff]
        %v4700 = vld [vmem:[%s3767 + $0x152] sm:$0xff]
        %v4701 = vld [vmem:[%s3767 + $0x15a] sm:$0xff]
        %v4702 = vld [vmem:[%s3767 + $0x16a] sm:$0xff]
        %v4703 = vld [vmem:[%s3767 + $0x172] sm:$0xff]
        %v4704 = vpack.c.bf16 %v4673, %v4672
        %v4705 = vpack.c.bf16 %v4675, %v4674
        %v4706 = vpack.c.bf16 %v4677, %v4676
        %v4707 = vpack.c.bf16 %v4679, %v4678
        %v4708 = vpack.c.bf16 %v4681, %v4680
        %v4709 = vpack.c.bf16 %v4683, %v4682
        %v4710 = vpack.c.bf16 %v4685, %v4684
        %v4711 = vpack.c.bf16 %v4687, %v4686
        %v4712 = vpack.c.bf16 %v4689, %v4688
        %v4713 = vpack.c.bf16 %v4691, %v4690
        %v4714 = vpack.c.bf16 %v4693, %v4692
        %v4715 = vpack.c.bf16 %v4695, %v4694
        %v4716 = vpack.c.bf16 %v4697, %v4696
        %v4717 = vpack.c.bf16 %v4699, %v4698
        %v4718 = vpack.c.bf16 %v4701, %v4700
        %v4719 = vpack.c.bf16 %v4703, %v4702
        %4736 = vrot.lane.b32.xlu0 %v4704, 112
        %v4737 = vpop.permute.xlu0 %4736
        %4738 = vrot.lane.b32.xlu0 %v4705, 112
        %v4739 = vpop.permute.xlu0 %4738
        %4740 = vrot.lane.b32.xlu0 %v4706, 112
        %v4741 = vpop.permute.xlu0 %4740
        %4742 = vrot.lane.b32.xlu0 %v4707, 112
        %v4743 = vpop.permute.xlu0 %4742
        %4744 = vrot.lane.b32.xlu0 %v4708, 112
        %v4745 = vpop.permute.xlu0 %4744
        %4746 = vrot.lane.b32.xlu0 %v4709, 112
        %v4747 = vpop.permute.xlu0 %4746
        %4748 = vrot.lane.b32.xlu0 %v4710, 112
        %v4749 = vpop.permute.xlu0 %4748
        %4750 = vrot.lane.b32.xlu0 %v4711, 112
        %v4751 = vpop.permute.xlu0 %4750
        %4752 = vrot.lane.b32.xlu0 %v4712, 112
        %v4753 = vpop.permute.xlu0 %4752
        %4754 = vrot.lane.b32.xlu0 %v4713, 112
        %v4755 = vpop.permute.xlu0 %4754
        %4756 = vrot.lane.b32.xlu0 %v4714, 112
        %v4757 = vpop.permute.xlu0 %4756
        %4758 = vrot.lane.b32.xlu0 %v4715, 112
        %v4759 = vpop.permute.xlu0 %4758
        %4760 = vrot.lane.b32.xlu0 %v4716, 112
        %v4761 = vpop.permute.xlu0 %4760
        %4762 = vrot.lane.b32.xlu0 %v4717, 112
        %v4763 = vpop.permute.xlu0 %4762
        %4764 = vrot.lane.b32.xlu0 %v4718, 112
        %v4765 = vpop.permute.xlu0 %4764
        %4766 = vrot.lane.b32.xlu0 %v4719, 112
        %v4767 = vpop.permute.xlu0 %4766
        %vm4784 = vcmask 1048448
        %4785 = vst.msk [vmem:[#allocation4] sm:$0xff] %vm4784, %v4737
        %4786 = vst.msk [vmem:[#allocation4 + $0x20] sm:$0xff] %vm4784, %v4739
        %4787 = vst.msk [vmem:[#allocation4 + $0x40] sm:$0xff] %vm4784, %v4741
        %4788 = vst.msk [vmem:[#allocation4 + $0x60] sm:$0xff] %vm4784, %v4743
        %4789 = vst.msk [vmem:[#allocation4 + $0x80] sm:$0xff] %vm4784, %v4745
        %4790 = vst.msk [vmem:[#allocation4 + $0xa0] sm:$0xff] %vm4784, %v4747
        %4791 = vst.msk [vmem:[#allocation4 + $0xc0] sm:$0xff] %vm4784, %v4749
        %4792 = vst.msk [vmem:[#allocation4 + $0xe0] sm:$0xff] %vm4784, %v4751
        %4793 = vst.msk [vmem:[#allocation4 + $0x100] sm:$0xff] %vm4784, %v4753
        %4794 = vst.msk [vmem:[#allocation4 + $0x120] sm:$0xff] %vm4784, %v4755
        %4795 = vst.msk [vmem:[#allocation4 + $0x140] sm:$0xff] %vm4784, %v4757
        %4796 = vst.msk [vmem:[#allocation4 + $0x160] sm:$0xff] %vm4784, %v4759
        %4797 = vst.msk [vmem:[#allocation4 + $0x180] sm:$0xff] %vm4784, %v4761
        %4798 = vst.msk [vmem:[#allocation4 + $0x1a0] sm:$0xff] %vm4784, %v4763
        %4799 = vst.msk [vmem:[#allocation4 + $0x1c0] sm:$0xff] %vm4784, %v4765
        %4800 = vst.msk [vmem:[#allocation4 + $0x1e0] sm:$0xff] %vm4784, %v4767
        %v4801 = vld [vmem:[%s3767 + $0x3] sm:$0xff]
        %v4802 = vld [vmem:[%s3767 + $0xb] sm:$0xff]
        %v4803 = vld [vmem:[%s3767 + $0x1b] sm:$0xff]
        %v4804 = vld [vmem:[%s3767 + $0x23] sm:$0xff]
        %v4805 = vld [vmem:[%s3767 + $0x33] sm:$0xff]
        %v4806 = vld [vmem:[%s3767 + $0x3b] sm:$0xff]
        %v4807 = vld [vmem:[%s3767 + $0x4b] sm:$0xff]
        %v4808 = vld [vmem:[%s3767 + $0x53] sm:$0xff]
        %v4809 = vld [vmem:[%s3767 + $0x63] sm:$0xff]
        %v4810 = vld [vmem:[%s3767 + $0x6b] sm:$0xff]
        %v4811 = vld [vmem:[%s3767 + $0x7b] sm:$0xff]
        %v4812 = vld [vmem:[%s3767 + $0x83] sm:$0xff]
        %v4813 = vld [vmem:[%s3767 + $0x93] sm:$0xff]
        %v4814 = vld [vmem:[%s3767 + $0x9b] sm:$0xff]
        %v4815 = vld [vmem:[%s3767 + $0xab] sm:$0xff]
        %v4816 = vld [vmem:[%s3767 + $0xb3] sm:$0xff]
        %v4817 = vld [vmem:[%s3767 + $0xc3] sm:$0xff]
        %v4818 = vld [vmem:[%s3767 + $0xcb] sm:$0xff]
        %v4819 = vld [vmem:[%s3767 + $0xdb] sm:$0xff]
        %v4820 = vld [vmem:[%s3767 + $0xe3] sm:$0xff]
        %v4821 = vld [vmem:[%s3767 + $0xf3] sm:$0xff]
        %v4822 = vld [vmem:[%s3767 + $0xfb] sm:$0xff]
        %v4823 = vld [vmem:[%s3767 + $0x10b] sm:$0xff]
        %v4824 = vld [vmem:[%s3767 + $0x113] sm:$0xff]
        %v4825 = vld [vmem:[%s3767 + $0x123] sm:$0xff]
        %v4826 = vld [vmem:[%s3767 + $0x12b] sm:$0xff]
        %v4827 = vld [vmem:[%s3767 + $0x13b] sm:$0xff]
        %v4828 = vld [vmem:[%s3767 + $0x143] sm:$0xff]
        %v4829 = vld [vmem:[%s3767 + $0x153] sm:$0xff]
        %v4830 = vld [vmem:[%s3767 + $0x15b] sm:$0xff]
        %v4831 = vld [vmem:[%s3767 + $0x16b] sm:$0xff]
        %v4832 = vld [vmem:[%s3767 + $0x173] sm:$0xff]
        %v4833 = vpack.c.bf16 %v4802, %v4801
        %v4834 = vpack.c.bf16 %v4804, %v4803
        %v4835 = vpack.c.bf16 %v4806, %v4805
        %v4836 = vpack.c.bf16 %v4808, %v4807
        %v4837 = vpack.c.bf16 %v4810, %v4809
        %v4838 = vpack.c.bf16 %v4812, %v4811
        %v4839 = vpack.c.bf16 %v4814, %v4813
        %v4840 = vpack.c.bf16 %v4816, %v4815
        %v4841 = vpack.c.bf16 %v4818, %v4817
        %v4842 = vpack.c.bf16 %v4820, %v4819
        %v4843 = vpack.c.bf16 %v4822, %v4821
        %v4844 = vpack.c.bf16 %v4824, %v4823
        %v4845 = vpack.c.bf16 %v4826, %v4825
        %v4846 = vpack.c.bf16 %v4828, %v4827
        %v4847 = vpack.c.bf16 %v4830, %v4829
        %v4848 = vpack.c.bf16 %v4832, %v4831
        %4849 = vst.msk [vmem:[#allocation4 + $0x8] sm:$0xff] %vm3752, %v4833
        %4850 = vst.msk [vmem:[#allocation4 + $0x28] sm:$0xff] %vm3752, %v4834
        %4851 = vst.msk [vmem:[#allocation4 + $0x48] sm:$0xff] %vm3752, %v4835
        %4852 = vst.msk [vmem:[#allocation4 + $0x68] sm:$0xff] %vm3752, %v4836
        %4853 = vst.msk [vmem:[#allocation4 + $0x88] sm:$0xff] %vm3752, %v4837
        %4854 = vst.msk [vmem:[#allocation4 + $0xa8] sm:$0xff] %vm3752, %v4838
        %4855 = vst.msk [vmem:[#allocation4 + $0xc8] sm:$0xff] %vm3752, %v4839
        %4856 = vst.msk [vmem:[#allocation4 + $0xe8] sm:$0xff] %vm3752, %v4840
        %4857 = vst.msk [vmem:[#allocation4 + $0x108] sm:$0xff] %vm3752, %v4841
        %4858 = vst.msk [vmem:[#allocation4 + $0x128] sm:$0xff] %vm3752, %v4842
        %4859 = vst.msk [vmem:[#allocation4 + $0x148] sm:$0xff] %vm3752, %v4843
        %4860 = vst.msk [vmem:[#allocation4 + $0x168] sm:$0xff] %vm3752, %v4844
        %4861 = vst.msk [vmem:[#allocation4 + $0x188] sm:$0xff] %vm3752, %v4845
        %4862 = vst.msk [vmem:[#allocation4 + $0x1a8] sm:$0xff] %vm3752, %v4846
        %4863 = vst.msk [vmem:[#allocation4 + $0x1c8] sm:$0xff] %vm3752, %v4847
        %4864 = vst.msk [vmem:[#allocation4 + $0x1e8] sm:$0xff] %vm3752, %v4848
        %v4865 = vld [vmem:[%s3767 + $0x4] sm:$0xff]
        %v4866 = vld [vmem:[%s3767 + $0xc] sm:$0xff]
        %v4867 = vld [vmem:[%s3767 + $0x1c] sm:$0xff]
        %v4868 = vld [vmem:[%s3767 + $0x24] sm:$0xff]
        %v4869 = vld [vmem:[%s3767 + $0x34] sm:$0xff]
        %v4870 = vld [vmem:[%s3767 + $0x3c] sm:$0xff]
        %v4871 = vld [vmem:[%s3767 + $0x4c] sm:$0xff]
        %v4872 = vld [vmem:[%s3767 + $0x54] sm:$0xff]
        %v4873 = vld [vmem:[%s3767 + $0x64] sm:$0xff]
        %v4874 = vld [vmem:[%s3767 + $0x6c] sm:$0xff]
        %v4875 = vld [vmem:[%s3767 + $0x7c] sm:$0xff]
        %v4876 = vld [vmem:[%s3767 + $0x84] sm:$0xff]
        %v4877 = vld [vmem:[%s3767 + $0x94] sm:$0xff]
        %v4878 = vld [vmem:[%s3767 + $0x9c] sm:$0xff]
        %v4879 = vld [vmem:[%s3767 + $0xac] sm:$0xff]
        %v4880 = vld [vmem:[%s3767 + $0xb4] sm:$0xff]
        %v4881 = vld [vmem:[%s3767 + $0xc4] sm:$0xff]
        %v4882 = vld [vmem:[%s3767 + $0xcc] sm:$0xff]
        %v4883 = vld [vmem:[%s3767 + $0xdc] sm:$0xff]
        %v4884 = vld [vmem:[%s3767 + $0xe4] sm:$0xff]
        %v4885 = vld [vmem:[%s3767 + $0xf4] sm:$0xff]
        %v4886 = vld [vmem:[%s3767 + $0xfc] sm:$0xff]
        %v4887 = vld [vmem:[%s3767 + $0x10c] sm:$0xff]
        %v4888 = vld [vmem:[%s3767 + $0x114] sm:$0xff]
        %v4889 = vld [vmem:[%s3767 + $0x124] sm:$0xff]
        %v4890 = vld [vmem:[%s3767 + $0x12c] sm:$0xff]
        %v4891 = vld [vmem:[%s3767 + $0x13c] sm:$0xff]
        %v4892 = vld [vmem:[%s3767 + $0x144] sm:$0xff]
        %v4893 = vld [vmem:[%s3767 + $0x154] sm:$0xff]
        %v4894 = vld [vmem:[%s3767 + $0x15c] sm:$0xff]
        %v4895 = vld [vmem:[%s3767 + $0x16c] sm:$0xff]
        %v4896 = vld [vmem:[%s3767 + $0x174] sm:$0xff]
        %v4897 = vpack.c.bf16 %v4866, %v4865
        %v4898 = vpack.c.bf16 %v4868, %v4867
        %v4899 = vpack.c.bf16 %v4870, %v4869
        %v4900 = vpack.c.bf16 %v4872, %v4871
        %v4901 = vpack.c.bf16 %v4874, %v4873
        %v4902 = vpack.c.bf16 %v4876, %v4875
        %v4903 = vpack.c.bf16 %v4878, %v4877
        %v4904 = vpack.c.bf16 %v4880, %v4879
        %v4905 = vpack.c.bf16 %v4882, %v4881
        %v4906 = vpack.c.bf16 %v4884, %v4883
        %v4907 = vpack.c.bf16 %v4886, %v4885
        %v4908 = vpack.c.bf16 %v4888, %v4887
        %v4909 = vpack.c.bf16 %v4890, %v4889
        %v4910 = vpack.c.bf16 %v4892, %v4891
        %v4911 = vpack.c.bf16 %v4894, %v4893
        %v4912 = vpack.c.bf16 %v4896, %v4895
        %4929 = vrot.lane.b32.xlu0 %v4897, 16
        %v4930 = vpop.permute.xlu0 %4929
        %4931 = vrot.lane.b32.xlu0 %v4898, 16
        %v4932 = vpop.permute.xlu0 %4931
        %4933 = vrot.lane.b32.xlu0 %v4899, 16
        %v4934 = vpop.permute.xlu0 %4933
        %4935 = vrot.lane.b32.xlu0 %v4900, 16
        %v4936 = vpop.permute.xlu0 %4935
        %4937 = vrot.lane.b32.xlu0 %v4901, 16
        %v4938 = vpop.permute.xlu0 %4937
        %4939 = vrot.lane.b32.xlu0 %v4902, 16
        %v4940 = vpop.permute.xlu0 %4939
        %4941 = vrot.lane.b32.xlu0 %v4903, 16
        %v4942 = vpop.permute.xlu0 %4941
        %4943 = vrot.lane.b32.xlu0 %v4904, 16
        %v4944 = vpop.permute.xlu0 %4943
        %4945 = vrot.lane.b32.xlu0 %v4905, 16
        %v4946 = vpop.permute.xlu0 %4945
        %4947 = vrot.lane.b32.xlu0 %v4906, 16
        %v4948 = vpop.permute.xlu0 %4947
        %4949 = vrot.lane.b32.xlu0 %v4907, 16
        %v4950 = vpop.permute.xlu0 %4949
        %4951 = vrot.lane.b32.xlu0 %v4908, 16
        %v4952 = vpop.permute.xlu0 %4951
        %4953 = vrot.lane.b32.xlu0 %v4909, 16
        %v4954 = vpop.permute.xlu0 %4953
        %4955 = vrot.lane.b32.xlu0 %v4910, 16
        %v4956 = vpop.permute.xlu0 %4955
        %4957 = vrot.lane.b32.xlu0 %v4911, 16
        %v4958 = vpop.permute.xlu0 %4957
        %4959 = vrot.lane.b32.xlu0 %v4912, 16
        %v4960 = vpop.permute.xlu0 %4959
        %4977 = vst.msk [vmem:[#allocation4 + $0x8] sm:$0xff] %vm4010, %v4930
        %4978 = vst.msk [vmem:[#allocation4 + $0x28] sm:$0xff] %vm4010, %v4932
        %4979 = vst.msk [vmem:[#allocation4 + $0x48] sm:$0xff] %vm4010, %v4934
        %4980 = vst.msk [vmem:[#allocation4 + $0x68] sm:$0xff] %vm4010, %v4936
        %4981 = vst.msk [vmem:[#allocation4 + $0x88] sm:$0xff] %vm4010, %v4938
        %4982 = vst.msk [vmem:[#allocation4 + $0xa8] sm:$0xff] %vm4010, %v4940
        %4983 = vst.msk [vmem:[#allocation4 + $0xc8] sm:$0xff] %vm4010, %v4942
        %4984 = vst.msk [vmem:[#allocation4 + $0xe8] sm:$0xff] %vm4010, %v4944
        %4985 = vst.msk [vmem:[#allocation4 + $0x108] sm:$0xff] %vm4010, %v4946
        %4986 = vst.msk [vmem:[#allocation4 + $0x128] sm:$0xff] %vm4010, %v4948
        %4987 = vst.msk [vmem:[#allocation4 + $0x148] sm:$0xff] %vm4010, %v4950
        %4988 = vst.msk [vmem:[#allocation4 + $0x168] sm:$0xff] %vm4010, %v4952
        %4989 = vst.msk [vmem:[#allocation4 + $0x188] sm:$0xff] %vm4010, %v4954
        %4990 = vst.msk [vmem:[#allocation4 + $0x1a8] sm:$0xff] %vm4010, %v4956
        %4991 = vst.msk [vmem:[#allocation4 + $0x1c8] sm:$0xff] %vm4010, %v4958
        %4992 = vst.msk [vmem:[#allocation4 + $0x1e8] sm:$0xff] %vm4010, %v4960
        %s4993 = scalar_lea.vmem [#allocation3], 48
        %v4994 = vld [vmem:[%s4993] sm:$0xff]
        %v4995 = vld [vmem:[%s4993 + $0x8] sm:$0xff]
        %v4996 = vld [vmem:[%s4993 + $0x18] sm:$0xff]
        %v4997 = vld [vmem:[%s4993 + $0x20] sm:$0xff]
        %v4998 = vld [vmem:[%s4993 + $0x30] sm:$0xff]
        %v4999 = vld [vmem:[%s4993 + $0x38] sm:$0xff]
        %v5000 = vld [vmem:[%s4993 + $0x48] sm:$0xff]
        %v5001 = vld [vmem:[%s4993 + $0x50] sm:$0xff]
        %v5002 = vld [vmem:[%s4993 + $0x60] sm:$0xff]
        %v5003 = vld [vmem:[%s4993 + $0x68] sm:$0xff]
        %v5004 = vld [vmem:[%s4993 + $0x78] sm:$0xff]
        %v5005 = vld [vmem:[%s4993 + $0x80] sm:$0xff]
        %v5006 = vld [vmem:[%s4993 + $0x90] sm:$0xff]
        %v5007 = vld [vmem:[%s4993 + $0x98] sm:$0xff]
        %v5008 = vld [vmem:[%s4993 + $0xa8] sm:$0xff]
        %v5009 = vld [vmem:[%s4993 + $0xb0] sm:$0xff]
        %v5010 = vld [vmem:[%s4993 + $0xc0] sm:$0xff]
        %v5011 = vld [vmem:[%s4993 + $0xc8] sm:$0xff]
        %v5012 = vld [vmem:[%s4993 + $0xd8] sm:$0xff]
        %v5013 = vld [vmem:[%s4993 + $0xe0] sm:$0xff]
        %v5014 = vld [vmem:[%s4993 + $0xf0] sm:$0xff]
        %v5015 = vld [vmem:[%s4993 + $0xf8] sm:$0xff]
        %v5016 = vld [vmem:[%s4993 + $0x108] sm:$0xff]
        %v5017 = vld [vmem:[%s4993 + $0x110] sm:$0xff]
        %v5018 = vld [vmem:[%s4993 + $0x120] sm:$0xff]
        %v5019 = vld [vmem:[%s4993 + $0x128] sm:$0xff]
        %v5020 = vld [vmem:[%s4993 + $0x138] sm:$0xff]
        %v5021 = vld [vmem:[%s4993 + $0x140] sm:$0xff]
        %v5022 = vld [vmem:[%s4993 + $0x150] sm:$0xff]
        %v5023 = vld [vmem:[%s4993 + $0x158] sm:$0xff]
        %v5024 = vld [vmem:[%s4993 + $0x168] sm:$0xff]
        %v5025 = vld [vmem:[%s4993 + $0x170] sm:$0xff]
        %v5026 = vpack.c.bf16 %v4995, %v4994
        %v5027 = vpack.c.bf16 %v4997, %v4996
        %v5028 = vpack.c.bf16 %v4999, %v4998
        %v5029 = vpack.c.bf16 %v5001, %v5000
        %v5030 = vpack.c.bf16 %v5003, %v5002
        %v5031 = vpack.c.bf16 %v5005, %v5004
        %v5032 = vpack.c.bf16 %v5007, %v5006
        %v5033 = vpack.c.bf16 %v5009, %v5008
        %v5034 = vpack.c.bf16 %v5011, %v5010
        %v5035 = vpack.c.bf16 %v5013, %v5012
        %v5036 = vpack.c.bf16 %v5015, %v5014
        %v5037 = vpack.c.bf16 %v5017, %v5016
        %v5038 = vpack.c.bf16 %v5019, %v5018
        %v5039 = vpack.c.bf16 %v5021, %v5020
        %v5040 = vpack.c.bf16 %v5023, %v5022
        %v5041 = vpack.c.bf16 %v5025, %v5024
        %5058 = vrot.lane.b32.xlu0 %v5026, 32
        %v5059 = vpop.permute.xlu0 %5058
        %5060 = vrot.lane.b32.xlu0 %v5027, 32
        %v5061 = vpop.permute.xlu0 %5060
        %5062 = vrot.lane.b32.xlu0 %v5028, 32
        %v5063 = vpop.permute.xlu0 %5062
        %5064 = vrot.lane.b32.xlu0 %v5029, 32
        %v5065 = vpop.permute.xlu0 %5064
        %5066 = vrot.lane.b32.xlu0 %v5030, 32
        %v5067 = vpop.permute.xlu0 %5066
        %5068 = vrot.lane.b32.xlu0 %v5031, 32
        %v5069 = vpop.permute.xlu0 %5068
        %5070 = vrot.lane.b32.xlu0 %v5032, 32
        %v5071 = vpop.permute.xlu0 %5070
        %5072 = vrot.lane.b32.xlu0 %v5033, 32
        %v5073 = vpop.permute.xlu0 %5072
        %5074 = vrot.lane.b32.xlu0 %v5034, 32
        %v5075 = vpop.permute.xlu0 %5074
        %5076 = vrot.lane.b32.xlu0 %v5035, 32
        %v5077 = vpop.permute.xlu0 %5076
        %5078 = vrot.lane.b32.xlu0 %v5036, 32
        %v5079 = vpop.permute.xlu0 %5078
        %5080 = vrot.lane.b32.xlu0 %v5037, 32
        %v5081 = vpop.permute.xlu0 %5080
        %5082 = vrot.lane.b32.xlu0 %v5038, 32
        %v5083 = vpop.permute.xlu0 %5082
        %5084 = vrot.lane.b32.xlu0 %v5039, 32
        %v5085 = vpop.permute.xlu0 %5084
        %5086 = vrot.lane.b32.xlu0 %v5040, 32
        %v5087 = vpop.permute.xlu0 %5086
        %5088 = vrot.lane.b32.xlu0 %v5041, 32
        %v5089 = vpop.permute.xlu0 %5088
        %5106 = vst.msk [vmem:[#allocation4 + $0x8] sm:$0xff] %vm4139, %v5059
        %5107 = vst.msk [vmem:[#allocation4 + $0x28] sm:$0xff] %vm4139, %v5061
        %5108 = vst.msk [vmem:[#allocation4 + $0x48] sm:$0xff] %vm4139, %v5063
        %5109 = vst.msk [vmem:[#allocation4 + $0x68] sm:$0xff] %vm4139, %v5065
        %5110 = vst.msk [vmem:[#allocation4 + $0x88] sm:$0xff] %vm4139, %v5067
        %5111 = vst.msk [vmem:[#allocation4 + $0xa8] sm:$0xff] %vm4139, %v5069
        %5112 = vst.msk [vmem:[#allocation4 + $0xc8] sm:$0xff] %vm4139, %v5071
        %5113 = vst.msk [vmem:[#allocation4 + $0xe8] sm:$0xff] %vm4139, %v5073
        %5114 = vst.msk [vmem:[#allocation4 + $0x108] sm:$0xff] %vm4139, %v5075
        %5115 = vst.msk [vmem:[#allocation4 + $0x128] sm:$0xff] %vm4139, %v5077
        %5116 = vst.msk [vmem:[#allocation4 + $0x148] sm:$0xff] %vm4139, %v5079
        %5117 = vst.msk [vmem:[#allocation4 + $0x168] sm:$0xff] %vm4139, %v5081
        %5118 = vst.msk [vmem:[#allocation4 + $0x188] sm:$0xff] %vm4139, %v5083
        %5119 = vst.msk [vmem:[#allocation4 + $0x1a8] sm:$0xff] %vm4139, %v5085
        %5120 = vst.msk [vmem:[#allocation4 + $0x1c8] sm:$0xff] %vm4139, %v5087
        %5121 = vst.msk [vmem:[#allocation4 + $0x1e8] sm:$0xff] %vm4139, %v5089
        %v5122 = vld [vmem:[%s4993 + $0x1] sm:$0xff]
        %v5123 = vld [vmem:[%s4993 + $0x9] sm:$0xff]
        %v5124 = vld [vmem:[%s4993 + $0x19] sm:$0xff]
        %v5125 = vld [vmem:[%s4993 + $0x21] sm:$0xff]
        %v5126 = vld [vmem:[%s4993 + $0x31] sm:$0xff]
        %v5127 = vld [vmem:[%s4993 + $0x39] sm:$0xff]
        %v5128 = vld [vmem:[%s4993 + $0x49] sm:$0xff]
        %v5129 = vld [vmem:[%s4993 + $0x51] sm:$0xff]
        %v5130 = vld [vmem:[%s4993 + $0x61] sm:$0xff]
        %v5131 = vld [vmem:[%s4993 + $0x69] sm:$0xff]
        %v5132 = vld [vmem:[%s4993 + $0x79] sm:$0xff]
        %v5133 = vld [vmem:[%s4993 + $0x81] sm:$0xff]
        %v5134 = vld [vmem:[%s4993 + $0x91] sm:$0xff]
        %v5135 = vld [vmem:[%s4993 + $0x99] sm:$0xff]
        %v5136 = vld [vmem:[%s4993 + $0xa9] sm:$0xff]
        %v5137 = vld [vmem:[%s4993 + $0xb1] sm:$0xff]
        %v5138 = vld [vmem:[%s4993 + $0xc1] sm:$0xff]
        %v5139 = vld [vmem:[%s4993 + $0xc9] sm:$0xff]
        %v5140 = vld [vmem:[%s4993 + $0xd9] sm:$0xff]
        %v5141 = vld [vmem:[%s4993 + $0xe1] sm:$0xff]
        %v5142 = vld [vmem:[%s4993 + $0xf1] sm:$0xff]
        %v5143 = vld [vmem:[%s4993 + $0xf9] sm:$0xff]
        %v5144 = vld [vmem:[%s4993 + $0x109] sm:$0xff]
        %v5145 = vld [vmem:[%s4993 + $0x111] sm:$0xff]
        %v5146 = vld [vmem:[%s4993 + $0x121] sm:$0xff]
        %v5147 = vld [vmem:[%s4993 + $0x129] sm:$0xff]
        %v5148 = vld [vmem:[%s4993 + $0x139] sm:$0xff]
        %v5149 = vld [vmem:[%s4993 + $0x141] sm:$0xff]
        %v5150 = vld [vmem:[%s4993 + $0x151] sm:$0xff]
        %v5151 = vld [vmem:[%s4993 + $0x159] sm:$0xff]
        %v5152 = vld [vmem:[%s4993 + $0x169] sm:$0xff]
        %v5153 = vld [vmem:[%s4993 + $0x171] sm:$0xff]
        %v5154 = vpack.c.bf16 %v5123, %v5122
        %v5155 = vpack.c.bf16 %v5125, %v5124
        %v5156 = vpack.c.bf16 %v5127, %v5126
        %v5157 = vpack.c.bf16 %v5129, %v5128
        %v5158 = vpack.c.bf16 %v5131, %v5130
        %v5159 = vpack.c.bf16 %v5133, %v5132
        %v5160 = vpack.c.bf16 %v5135, %v5134
        %v5161 = vpack.c.bf16 %v5137, %v5136
        %v5162 = vpack.c.bf16 %v5139, %v5138
        %v5163 = vpack.c.bf16 %v5141, %v5140
        %v5164 = vpack.c.bf16 %v5143, %v5142
        %v5165 = vpack.c.bf16 %v5145, %v5144
        %v5166 = vpack.c.bf16 %v5147, %v5146
        %v5167 = vpack.c.bf16 %v5149, %v5148
        %v5168 = vpack.c.bf16 %v5151, %v5150
        %v5169 = vpack.c.bf16 %v5153, %v5152
        %5186 = vrot.lane.b32.xlu0 %v5154, 48
        %v5187 = vpop.permute.xlu0 %5186
        %5188 = vrot.lane.b32.xlu0 %v5155, 48
        %v5189 = vpop.permute.xlu0 %5188
        %5190 = vrot.lane.b32.xlu0 %v5156, 48
        %v5191 = vpop.permute.xlu0 %5190
        %5192 = vrot.lane.b32.xlu0 %v5157, 48
        %v5193 = vpop.permute.xlu0 %5192
        %5194 = vrot.lane.b32.xlu0 %v5158, 48
        %v5195 = vpop.permute.xlu0 %5194
        %5196 = vrot.lane.b32.xlu0 %v5159, 48
        %v5197 = vpop.permute.xlu0 %5196
        %5198 = vrot.lane.b32.xlu0 %v5160, 48
        %v5199 = vpop.permute.xlu0 %5198
        %5200 = vrot.lane.b32.xlu0 %v5161, 48
        %v5201 = vpop.permute.xlu0 %5200
        %5202 = vrot.lane.b32.xlu0 %v5162, 48
        %v5203 = vpop.permute.xlu0 %5202
        %5204 = vrot.lane.b32.xlu0 %v5163, 48
        %v5205 = vpop.permute.xlu0 %5204
        %5206 = vrot.lane.b32.xlu0 %v5164, 48
        %v5207 = vpop.permute.xlu0 %5206
        %5208 = vrot.lane.b32.xlu0 %v5165, 48
        %v5209 = vpop.permute.xlu0 %5208
        %5210 = vrot.lane.b32.xlu0 %v5166, 48
        %v5211 = vpop.permute.xlu0 %5210
        %5212 = vrot.lane.b32.xlu0 %v5167, 48
        %v5213 = vpop.permute.xlu0 %5212
        %5214 = vrot.lane.b32.xlu0 %v5168, 48
        %v5215 = vpop.permute.xlu0 %5214
        %5216 = vrot.lane.b32.xlu0 %v5169, 48
        %v5217 = vpop.permute.xlu0 %5216
        %5234 = vst.msk [vmem:[#allocation4 + $0x8] sm:$0xff] %vm4268, %v5187
        %5235 = vst.msk [vmem:[#allocation4 + $0x28] sm:$0xff] %vm4268, %v5189
        %5236 = vst.msk [vmem:[#allocation4 + $0x48] sm:$0xff] %vm4268, %v5191
        %5237 = vst.msk [vmem:[#allocation4 + $0x68] sm:$0xff] %vm4268, %v5193
        %5238 = vst.msk [vmem:[#allocation4 + $0x88] sm:$0xff] %vm4268, %v5195
        %5239 = vst.msk [vmem:[#allocation4 + $0xa8] sm:$0xff] %vm4268, %v5197
        %5240 = vst.msk [vmem:[#allocation4 + $0xc8] sm:$0xff] %vm4268, %v5199
        %5241 = vst.msk [vmem:[#allocation4 + $0xe8] sm:$0xff] %vm4268, %v5201
        %5242 = vst.msk [vmem:[#allocation4 + $0x108] sm:$0xff] %vm4268, %v5203
        %5243 = vst.msk [vmem:[#allocation4 + $0x128] sm:$0xff] %vm4268, %v5205
        %5244 = vst.msk [vmem:[#allocation4 + $0x148] sm:$0xff] %vm4268, %v5207
        %5245 = vst.msk [vmem:[#allocation4 + $0x168] sm:$0xff] %vm4268, %v5209
        %5246 = vst.msk [vmem:[#allocation4 + $0x188] sm:$0xff] %vm4268, %v5211
        %5247 = vst.msk [vmem:[#allocation4 + $0x1a8] sm:$0xff] %vm4268, %v5213
        %5248 = vst.msk [vmem:[#allocation4 + $0x1c8] sm:$0xff] %vm4268, %v5215
        %5249 = vst.msk [vmem:[#allocation4 + $0x1e8] sm:$0xff] %vm4268, %v5217
        %v5250 = vld [vmem:[%s4993 + $0x2] sm:$0xff]
        %v5251 = vld [vmem:[%s4993 + $0xa] sm:$0xff]
        %v5252 = vld [vmem:[%s4993 + $0x1a] sm:$0xff]
        %v5253 = vld [vmem:[%s4993 + $0x22] sm:$0xff]
        %v5254 = vld [vmem:[%s4993 + $0x32] sm:$0xff]
        %v5255 = vld [vmem:[%s4993 + $0x3a] sm:$0xff]
        %v5256 = vld [vmem:[%s4993 + $0x4a] sm:$0xff]
        %v5257 = vld [vmem:[%s4993 + $0x52] sm:$0xff]
        %v5258 = vld [vmem:[%s4993 + $0x62] sm:$0xff]
        %v5259 = vld [vmem:[%s4993 + $0x6a] sm:$0xff]
        %v5260 = vld [vmem:[%s4993 + $0x7a] sm:$0xff]
        %v5261 = vld [vmem:[%s4993 + $0x82] sm:$0xff]
        %v5262 = vld [vmem:[%s4993 + $0x92] sm:$0xff]
        %v5263 = vld [vmem:[%s4993 + $0x9a] sm:$0xff]
        %v5264 = vld [vmem:[%s4993 + $0xaa] sm:$0xff]
        %v5265 = vld [vmem:[%s4993 + $0xb2] sm:$0xff]
        %v5266 = vld [vmem:[%s4993 + $0xc2] sm:$0xff]
        %v5267 = vld [vmem:[%s4993 + $0xca] sm:$0xff]
        %v5268 = vld [vmem:[%s4993 + $0xda] sm:$0xff]
        %v5269 = vld [vmem:[%s4993 + $0xe2] sm:$0xff]
        %v5270 = vld [vmem:[%s4993 + $0xf2] sm:$0xff]
        %v5271 = vld [vmem:[%s4993 + $0xfa] sm:$0xff]
        %v5272 = vld [vmem:[%s4993 + $0x10a] sm:$0xff]
        %v5273 = vld [vmem:[%s4993 + $0x112] sm:$0xff]
        %v5274 = vld [vmem:[%s4993 + $0x122] sm:$0xff]
        %v5275 = vld [vmem:[%s4993 + $0x12a] sm:$0xff]
        %v5276 = vld [vmem:[%s4993 + $0x13a] sm:$0xff]
        %v5277 = vld [vmem:[%s4993 + $0x142] sm:$0xff]
        %v5278 = vld [vmem:[%s4993 + $0x152] sm:$0xff]
        %v5279 = vld [vmem:[%s4993 + $0x15a] sm:$0xff]
        %v5280 = vld [vmem:[%s4993 + $0x16a] sm:$0xff]
        %v5281 = vld [vmem:[%s4993 + $0x172] sm:$0xff]
        %v5282 = vpack.c.bf16 %v5251, %v5250
        %v5283 = vpack.c.bf16 %v5253, %v5252
        %v5284 = vpack.c.bf16 %v5255, %v5254
        %v5285 = vpack.c.bf16 %v5257, %v5256
        %v5286 = vpack.c.bf16 %v5259, %v5258
        %v5287 = vpack.c.bf16 %v5261, %v5260
        %v5288 = vpack.c.bf16 %v5263, %v5262
        %v5289 = vpack.c.bf16 %v5265, %v5264
        %v5290 = vpack.c.bf16 %v5267, %v5266
        %v5291 = vpack.c.bf16 %v5269, %v5268
        %v5292 = vpack.c.bf16 %v5271, %v5270
        %v5293 = vpack.c.bf16 %v5273, %v5272
        %v5294 = vpack.c.bf16 %v5275, %v5274
        %v5295 = vpack.c.bf16 %v5277, %v5276
        %v5296 = vpack.c.bf16 %v5279, %v5278
        %v5297 = vpack.c.bf16 %v5281, %v5280
        %5314 = vrot.lane.b32.xlu0 %v5282, 64
        %v5315 = vpop.permute.xlu0 %5314
        %5316 = vrot.lane.b32.xlu0 %v5283, 64
        %v5317 = vpop.permute.xlu0 %5316
        %5318 = vrot.lane.b32.xlu0 %v5284, 64
        %v5319 = vpop.permute.xlu0 %5318
        %5320 = vrot.lane.b32.xlu0 %v5285, 64
        %v5321 = vpop.permute.xlu0 %5320
        %5322 = vrot.lane.b32.xlu0 %v5286, 64
        %v5323 = vpop.permute.xlu0 %5322
        %5324 = vrot.lane.b32.xlu0 %v5287, 64
        %v5325 = vpop.permute.xlu0 %5324
        %5326 = vrot.lane.b32.xlu0 %v5288, 64
        %v5327 = vpop.permute.xlu0 %5326
        %5328 = vrot.lane.b32.xlu0 %v5289, 64
        %v5329 = vpop.permute.xlu0 %5328
        %5330 = vrot.lane.b32.xlu0 %v5290, 64
        %v5331 = vpop.permute.xlu0 %5330
        %5332 = vrot.lane.b32.xlu0 %v5291, 64
        %v5333 = vpop.permute.xlu0 %5332
        %5334 = vrot.lane.b32.xlu0 %v5292, 64
        %v5335 = vpop.permute.xlu0 %5334
        %5336 = vrot.lane.b32.xlu0 %v5293, 64
        %v5337 = vpop.permute.xlu0 %5336
        %5338 = vrot.lane.b32.xlu0 %v5294, 64
        %v5339 = vpop.permute.xlu0 %5338
        %5340 = vrot.lane.b32.xlu0 %v5295, 64
        %v5341 = vpop.permute.xlu0 %5340
        %5342 = vrot.lane.b32.xlu0 %v5296, 64
        %v5343 = vpop.permute.xlu0 %5342
        %5344 = vrot.lane.b32.xlu0 %v5297, 64
        %v5345 = vpop.permute.xlu0 %5344
        %5362 = vst.msk [vmem:[#allocation4 + $0x8] sm:$0xff] %vm4397, %v5315
        %5363 = vst.msk [vmem:[#allocation4 + $0x28] sm:$0xff] %vm4397, %v5317
        %5364 = vst.msk [vmem:[#allocation4 + $0x48] sm:$0xff] %vm4397, %v5319
        %5365 = vst.msk [vmem:[#allocation4 + $0x68] sm:$0xff] %vm4397, %v5321
        %5366 = vst.msk [vmem:[#allocation4 + $0x88] sm:$0xff] %vm4397, %v5323
        %5367 = vst.msk [vmem:[#allocation4 + $0xa8] sm:$0xff] %vm4397, %v5325
        %5368 = vst.msk [vmem:[#allocation4 + $0xc8] sm:$0xff] %vm4397, %v5327
        %5369 = vst.msk [vmem:[#allocation4 + $0xe8] sm:$0xff] %vm4397, %v5329
        %5370 = vst.msk [vmem:[#allocation4 + $0x108] sm:$0xff] %vm4397, %v5331
        %5371 = vst.msk [vmem:[#allocation4 + $0x128] sm:$0xff] %vm4397, %v5333
        %5372 = vst.msk [vmem:[#allocation4 + $0x148] sm:$0xff] %vm4397, %v5335
        %5373 = vst.msk [vmem:[#allocation4 + $0x168] sm:$0xff] %vm4397, %v5337
        %5374 = vst.msk [vmem:[#allocation4 + $0x188] sm:$0xff] %vm4397, %v5339
        %5375 = vst.msk [vmem:[#allocation4 + $0x1a8] sm:$0xff] %vm4397, %v5341
        %5376 = vst.msk [vmem:[#allocation4 + $0x1c8] sm:$0xff] %vm4397, %v5343
        %5377 = vst.msk [vmem:[#allocation4 + $0x1e8] sm:$0xff] %vm4397, %v5345
        %v5378 = vld [vmem:[%s4993 + $0x3] sm:$0xff]
        %v5379 = vld [vmem:[%s4993 + $0xb] sm:$0xff]
        %v5380 = vld [vmem:[%s4993 + $0x1b] sm:$0xff]
        %v5381 = vld [vmem:[%s4993 + $0x23] sm:$0xff]
        %v5382 = vld [vmem:[%s4993 + $0x33] sm:$0xff]
        %v5383 = vld [vmem:[%s4993 + $0x3b] sm:$0xff]
        %v5384 = vld [vmem:[%s4993 + $0x4b] sm:$0xff]
        %v5385 = vld [vmem:[%s4993 + $0x53] sm:$0xff]
        %v5386 = vld [vmem:[%s4993 + $0x63] sm:$0xff]
        %v5387 = vld [vmem:[%s4993 + $0x6b] sm:$0xff]
        %v5388 = vld [vmem:[%s4993 + $0x7b] sm:$0xff]
        %v5389 = vld [vmem:[%s4993 + $0x83] sm:$0xff]
        %v5390 = vld [vmem:[%s4993 + $0x93] sm:$0xff]
        %v5391 = vld [vmem:[%s4993 + $0x9b] sm:$0xff]
        %v5392 = vld [vmem:[%s4993 + $0xab] sm:$0xff]
        %v5393 = vld [vmem:[%s4993 + $0xb3] sm:$0xff]
        %v5394 = vld [vmem:[%s4993 + $0xc3] sm:$0xff]
        %v5395 = vld [vmem:[%s4993 + $0xcb] sm:$0xff]
        %v5396 = vld [vmem:[%s4993 + $0xdb] sm:$0xff]
        %v5397 = vld [vmem:[%s4993 + $0xe3] sm:$0xff]
        %v5398 = vld [vmem:[%s4993 + $0xf3] sm:$0xff]
        %v5399 = vld [vmem:[%s4993 + $0xfb] sm:$0xff]
        %v5400 = vld [vmem:[%s4993 + $0x10b] sm:$0xff]
        %v5401 = vld [vmem:[%s4993 + $0x113] sm:$0xff]
        %v5402 = vld [vmem:[%s4993 + $0x123] sm:$0xff]
        %v5403 = vld [vmem:[%s4993 + $0x12b] sm:$0xff]
        %v5404 = vld [vmem:[%s4993 + $0x13b] sm:$0xff]
        %v5405 = vld [vmem:[%s4993 + $0x143] sm:$0xff]
        %v5406 = vld [vmem:[%s4993 + $0x153] sm:$0xff]
        %v5407 = vld [vmem:[%s4993 + $0x15b] sm:$0xff]
        %v5408 = vld [vmem:[%s4993 + $0x16b] sm:$0xff]
        %v5409 = vld [vmem:[%s4993 + $0x173] sm:$0xff]
        %v5410 = vpack.c.bf16 %v5379, %v5378
        %v5411 = vpack.c.bf16 %v5381, %v5380
        %v5412 = vpack.c.bf16 %v5383, %v5382
        %v5413 = vpack.c.bf16 %v5385, %v5384
        %v5414 = vpack.c.bf16 %v5387, %v5386
        %v5415 = vpack.c.bf16 %v5389, %v5388
        %v5416 = vpack.c.bf16 %v5391, %v5390
        %v5417 = vpack.c.bf16 %v5393, %v5392
        %v5418 = vpack.c.bf16 %v5395, %v5394
        %v5419 = vpack.c.bf16 %v5397, %v5396
        %v5420 = vpack.c.bf16 %v5399, %v5398
        %v5421 = vpack.c.bf16 %v5401, %v5400
        %v5422 = vpack.c.bf16 %v5403, %v5402
        %v5423 = vpack.c.bf16 %v5405, %v5404
        %v5424 = vpack.c.bf16 %v5407, %v5406
        %v5425 = vpack.c.bf16 %v5409, %v5408
        %5442 = vrot.lane.b32.xlu0 %v5410, 80
        %v5443 = vpop.permute.xlu0 %5442
        %5444 = vrot.lane.b32.xlu0 %v5411, 80
        %v5445 = vpop.permute.xlu0 %5444
        %5446 = vrot.lane.b32.xlu0 %v5412, 80
        %v5447 = vpop.permute.xlu0 %5446
        %5448 = vrot.lane.b32.xlu0 %v5413, 80
        %v5449 = vpop.permute.xlu0 %5448
        %5450 = vrot.lane.b32.xlu0 %v5414, 80
        %v5451 = vpop.permute.xlu0 %5450
        %5452 = vrot.lane.b32.xlu0 %v5415, 80
        %v5453 = vpop.permute.xlu0 %5452
        %5454 = vrot.lane.b32.xlu0 %v5416, 80
        %v5455 = vpop.permute.xlu0 %5454
        %5456 = vrot.lane.b32.xlu0 %v5417, 80
        %v5457 = vpop.permute.xlu0 %5456
        %5458 = vrot.lane.b32.xlu0 %v5418, 80
        %v5459 = vpop.permute.xlu0 %5458
        %5460 = vrot.lane.b32.xlu0 %v5419, 80
        %v5461 = vpop.permute.xlu0 %5460
        %5462 = vrot.lane.b32.xlu0 %v5420, 80
        %v5463 = vpop.permute.xlu0 %5462
        %5464 = vrot.lane.b32.xlu0 %v5421, 80
        %v5465 = vpop.permute.xlu0 %5464
        %5466 = vrot.lane.b32.xlu0 %v5422, 80
        %v5467 = vpop.permute.xlu0 %5466
        %5468 = vrot.lane.b32.xlu0 %v5423, 80
        %v5469 = vpop.permute.xlu0 %5468
        %5470 = vrot.lane.b32.xlu0 %v5424, 80
        %v5471 = vpop.permute.xlu0 %5470
        %5472 = vrot.lane.b32.xlu0 %v5425, 80
        %v5473 = vpop.permute.xlu0 %5472
        %5490 = vst.msk [vmem:[#allocation4 + $0x8] sm:$0xff] %vm4526, %v5443
        %5491 = vst.msk [vmem:[#allocation4 + $0x28] sm:$0xff] %vm4526, %v5445
        %5492 = vst.msk [vmem:[#allocation4 + $0x48] sm:$0xff] %vm4526, %v5447
        %5493 = vst.msk [vmem:[#allocation4 + $0x68] sm:$0xff] %vm4526, %v5449
        %5494 = vst.msk [vmem:[#allocation4 + $0x88] sm:$0xff] %vm4526, %v5451
        %5495 = vst.msk [vmem:[#allocation4 + $0xa8] sm:$0xff] %vm4526, %v5453
        %5496 = vst.msk [vmem:[#allocation4 + $0xc8] sm:$0xff] %vm4526, %v5455
        %5497 = vst.msk [vmem:[#allocation4 + $0xe8] sm:$0xff] %vm4526, %v5457
        %5498 = vst.msk [vmem:[#allocation4 + $0x108] sm:$0xff] %vm4526, %v5459
        %5499 = vst.msk [vmem:[#allocation4 + $0x128] sm:$0xff] %vm4526, %v5461
        %5500 = vst.msk [vmem:[#allocation4 + $0x148] sm:$0xff] %vm4526, %v5463
        %5501 = vst.msk [vmem:[#allocation4 + $0x168] sm:$0xff] %vm4526, %v5465
        %5502 = vst.msk [vmem:[#allocation4 + $0x188] sm:$0xff] %vm4526, %v5467
        %5503 = vst.msk [vmem:[#allocation4 + $0x1a8] sm:$0xff] %vm4526, %v5469
        %5504 = vst.msk [vmem:[#allocation4 + $0x1c8] sm:$0xff] %vm4526, %v5471
        %5505 = vst.msk [vmem:[#allocation4 + $0x1e8] sm:$0xff] %vm4526, %v5473
        %v5506 = vld [vmem:[%s4993 + $0x4] sm:$0xff]
        %v5507 = vld [vmem:[%s4993 + $0xc] sm:$0xff]
        %v5508 = vld [vmem:[%s4993 + $0x1c] sm:$0xff]
        %v5509 = vld [vmem:[%s4993 + $0x24] sm:$0xff]
        %v5510 = vld [vmem:[%s4993 + $0x34] sm:$0xff]
        %v5511 = vld [vmem:[%s4993 + $0x3c] sm:$0xff]
        %v5512 = vld [vmem:[%s4993 + $0x4c] sm:$0xff]
        %v5513 = vld [vmem:[%s4993 + $0x54] sm:$0xff]
        %v5514 = vld [vmem:[%s4993 + $0x64] sm:$0xff]
        %v5515 = vld [vmem:[%s4993 + $0x6c] sm:$0xff]
        %v5516 = vld [vmem:[%s4993 + $0x7c] sm:$0xff]
        %v5517 = vld [vmem:[%s4993 + $0x84] sm:$0xff]
        %v5518 = vld [vmem:[%s4993 + $0x94] sm:$0xff]
        %v5519 = vld [vmem:[%s4993 + $0x9c] sm:$0xff]
        %v5520 = vld [vmem:[%s4993 + $0xac] sm:$0xff]
        %v5521 = vld [vmem:[%s4993 + $0xb4] sm:$0xff]
        %v5522 = vld [vmem:[%s4993 + $0xc4] sm:$0xff]
        %v5523 = vld [vmem:[%s4993 + $0xcc] sm:$0xff]
        %v5524 = vld [vmem:[%s4993 + $0xdc] sm:$0xff]
        %v5525 = vld [vmem:[%s4993 + $0xe4] sm:$0xff]
        %v5526 = vld [vmem:[%s4993 + $0xf4] sm:$0xff]
        %v5527 = vld [vmem:[%s4993 + $0xfc] sm:$0xff]
        %v5528 = vld [vmem:[%s4993 + $0x10c] sm:$0xff]
        %v5529 = vld [vmem:[%s4993 + $0x114] sm:$0xff]
        %v5530 = vld [vmem:[%s4993 + $0x124] sm:$0xff]
        %v5531 = vld [vmem:[%s4993 + $0x12c] sm:$0xff]
        %v5532 = vld [vmem:[%s4993 + $0x13c] sm:$0xff]
        %v5533 = vld [vmem:[%s4993 + $0x144] sm:$0xff]
        %v5534 = vld [vmem:[%s4993 + $0x154] sm:$0xff]
        %v5535 = vld [vmem:[%s4993 + $0x15c] sm:$0xff]
        %v5536 = vld [vmem:[%s4993 + $0x16c] sm:$0xff]
        %v5537 = vld [vmem:[%s4993 + $0x174] sm:$0xff]
        %v5538 = vpack.c.bf16 %v5507, %v5506
        %v5539 = vpack.c.bf16 %v5509, %v5508
        %v5540 = vpack.c.bf16 %v5511, %v5510
        %v5541 = vpack.c.bf16 %v5513, %v5512
        %v5542 = vpack.c.bf16 %v5515, %v5514
        %v5543 = vpack.c.bf16 %v5517, %v5516
        %v5544 = vpack.c.bf16 %v5519, %v5518
        %v5545 = vpack.c.bf16 %v5521, %v5520
        %v5546 = vpack.c.bf16 %v5523, %v5522
        %v5547 = vpack.c.bf16 %v5525, %v5524
        %v5548 = vpack.c.bf16 %v5527, %v5526
        %v5549 = vpack.c.bf16 %v5529, %v5528
        %v5550 = vpack.c.bf16 %v5531, %v5530
        %v5551 = vpack.c.bf16 %v5533, %v5532
        %v5552 = vpack.c.bf16 %v5535, %v5534
        %v5553 = vpack.c.bf16 %v5537, %v5536
        %5570 = vrot.lane.b32.xlu0 %v5538, 96
        %v5571 = vpop.permute.xlu0 %5570
        %5572 = vrot.lane.b32.xlu0 %v5539, 96
        %v5573 = vpop.permute.xlu0 %5572
        %5574 = vrot.lane.b32.xlu0 %v5540, 96
        %v5575 = vpop.permute.xlu0 %5574
        %5576 = vrot.lane.b32.xlu0 %v5541, 96
        %v5577 = vpop.permute.xlu0 %5576
        %5578 = vrot.lane.b32.xlu0 %v5542, 96
        %v5579 = vpop.permute.xlu0 %5578
        %5580 = vrot.lane.b32.xlu0 %v5543, 96
        %v5581 = vpop.permute.xlu0 %5580
        %5582 = vrot.lane.b32.xlu0 %v5544, 96
        %v5583 = vpop.permute.xlu0 %5582
        %5584 = vrot.lane.b32.xlu0 %v5545, 96
        %v5585 = vpop.permute.xlu0 %5584
        %5586 = vrot.lane.b32.xlu0 %v5546, 96
        %v5587 = vpop.permute.xlu0 %5586
        %5588 = vrot.lane.b32.xlu0 %v5547, 96
        %v5589 = vpop.permute.xlu0 %5588
        %5590 = vrot.lane.b32.xlu0 %v5548, 96
        %v5591 = vpop.permute.xlu0 %5590
        %5592 = vrot.lane.b32.xlu0 %v5549, 96
        %v5593 = vpop.permute.xlu0 %5592
        %5594 = vrot.lane.b32.xlu0 %v5550, 96
        %v5595 = vpop.permute.xlu0 %5594
        %5596 = vrot.lane.b32.xlu0 %v5551, 96
        %v5597 = vpop.permute.xlu0 %5596
        %5598 = vrot.lane.b32.xlu0 %v5552, 96
        %v5599 = vpop.permute.xlu0 %5598
        %5600 = vrot.lane.b32.xlu0 %v5553, 96
        %v5601 = vpop.permute.xlu0 %5600
        %5618 = vst.msk [vmem:[#allocation4 + $0x8] sm:$0xff] %vm4655, %v5571
        %5619 = vst.msk [vmem:[#allocation4 + $0x28] sm:$0xff] %vm4655, %v5573
        %5620 = vst.msk [vmem:[#allocation4 + $0x48] sm:$0xff] %vm4655, %v5575
        %5621 = vst.msk [vmem:[#allocation4 + $0x68] sm:$0xff] %vm4655, %v5577
        %5622 = vst.msk [vmem:[#allocation4 + $0x88] sm:$0xff] %vm4655, %v5579
        %5623 = vst.msk [vmem:[#allocation4 + $0xa8] sm:$0xff] %vm4655, %v5581
        %5624 = vst.msk [vmem:[#allocation4 + $0xc8] sm:$0xff] %vm4655, %v5583
        %5625 = vst.msk [vmem:[#allocation4 + $0xe8] sm:$0xff] %vm4655, %v5585
        %5626 = vst.msk [vmem:[#allocation4 + $0x108] sm:$0xff] %vm4655, %v5587
        %5627 = vst.msk [vmem:[#allocation4 + $0x128] sm:$0xff] %vm4655, %v5589
        %5628 = vst.msk [vmem:[#allocation4 + $0x148] sm:$0xff] %vm4655, %v5591
        %5629 = vst.msk [vmem:[#allocation4 + $0x168] sm:$0xff] %vm4655, %v5593
        %5630 = vst.msk [vmem:[#allocation4 + $0x188] sm:$0xff] %vm4655, %v5595
        %5631 = vst.msk [vmem:[#allocation4 + $0x1a8] sm:$0xff] %vm4655, %v5597
        %5632 = vst.msk [vmem:[#allocation4 + $0x1c8] sm:$0xff] %vm4655, %v5599
        %5633 = vst.msk [vmem:[#allocation4 + $0x1e8] sm:$0xff] %vm4655, %v5601
        %s5634 = scalar_lea.vmem [#allocation3], 72
        %v5635 = vld [vmem:[%s5634] sm:$0xff]
        %v5636 = vld [vmem:[%s5634 + $0x8] sm:$0xff]
        %v5637 = vld [vmem:[%s5634 + $0x18] sm:$0xff]
        %v5638 = vld [vmem:[%s5634 + $0x20] sm:$0xff]
        %v5639 = vld [vmem:[%s5634 + $0x30] sm:$0xff]
        %v5640 = vld [vmem:[%s5634 + $0x38] sm:$0xff]
        %v5641 = vld [vmem:[%s5634 + $0x48] sm:$0xff]
        %v5642 = vld [vmem:[%s5634 + $0x50] sm:$0xff]
        %v5643 = vld [vmem:[%s5634 + $0x60] sm:$0xff]
        %v5644 = vld [vmem:[%s5634 + $0x68] sm:$0xff]
        %v5645 = vld [vmem:[%s5634 + $0x78] sm:$0xff]
        %v5646 = vld [vmem:[%s5634 + $0x80] sm:$0xff]
        %v5647 = vld [vmem:[%s5634 + $0x90] sm:$0xff]
        %v5648 = vld [vmem:[%s5634 + $0x98] sm:$0xff]
        %v5649 = vld [vmem:[%s5634 + $0xa8] sm:$0xff]
        %v5650 = vld [vmem:[%s5634 + $0xb0] sm:$0xff]
        %v5651 = vld [vmem:[%s5634 + $0xc0] sm:$0xff]
        %v5652 = vld [vmem:[%s5634 + $0xc8] sm:$0xff]
        %v5653 = vld [vmem:[%s5634 + $0xd8] sm:$0xff]
        %v5654 = vld [vmem:[%s5634 + $0xe0] sm:$0xff]
        %v5655 = vld [vmem:[%s5634 + $0xf0] sm:$0xff]
        %v5656 = vld [vmem:[%s5634 + $0xf8] sm:$0xff]
        %v5657 = vld [vmem:[%s5634 + $0x108] sm:$0xff]
        %v5658 = vld [vmem:[%s5634 + $0x110] sm:$0xff]
        %v5659 = vld [vmem:[%s5634 + $0x120] sm:$0xff]
        %v5660 = vld [vmem:[%s5634 + $0x128] sm:$0xff]
        %v5661 = vld [vmem:[%s5634 + $0x138] sm:$0xff]
        %v5662 = vld [vmem:[%s5634 + $0x140] sm:$0xff]
        %v5663 = vld [vmem:[%s5634 + $0x150] sm:$0xff]
        %v5664 = vld [vmem:[%s5634 + $0x158] sm:$0xff]
        %v5665 = vld [vmem:[%s5634 + $0x168] sm:$0xff]
        %v5666 = vld [vmem:[%s5634 + $0x170] sm:$0xff]
        %v5667 = vpack.c.bf16 %v5636, %v5635
        %v5668 = vpack.c.bf16 %v5638, %v5637
        %v5669 = vpack.c.bf16 %v5640, %v5639
        %v5670 = vpack.c.bf16 %v5642, %v5641
        %v5671 = vpack.c.bf16 %v5644, %v5643
        %v5672 = vpack.c.bf16 %v5646, %v5645
        %v5673 = vpack.c.bf16 %v5648, %v5647
        %v5674 = vpack.c.bf16 %v5650, %v5649
        %v5675 = vpack.c.bf16 %v5652, %v5651
        %v5676 = vpack.c.bf16 %v5654, %v5653
        %v5677 = vpack.c.bf16 %v5656, %v5655
        %v5678 = vpack.c.bf16 %v5658, %v5657
        %v5679 = vpack.c.bf16 %v5660, %v5659
        %v5680 = vpack.c.bf16 %v5662, %v5661
        %v5681 = vpack.c.bf16 %v5664, %v5663
        %v5682 = vpack.c.bf16 %v5666, %v5665
        %5699 = vrot.lane.b32.xlu0 %v5667, 112
        %v5700 = vpop.permute.xlu0 %5699
        %5701 = vrot.lane.b32.xlu0 %v5668, 112
        %v5702 = vpop.permute.xlu0 %5701
        %5703 = vrot.lane.b32.xlu0 %v5669, 112
        %v5704 = vpop.permute.xlu0 %5703
        %5705 = vrot.lane.b32.xlu0 %v5670, 112
        %v5706 = vpop.permute.xlu0 %5705
        %5707 = vrot.lane.b32.xlu0 %v5671, 112
        %v5708 = vpop.permute.xlu0 %5707
        %5709 = vrot.lane.b32.xlu0 %v5672, 112
        %v5710 = vpop.permute.xlu0 %5709
        %5711 = vrot.lane.b32.xlu0 %v5673, 112
        %v5712 = vpop.permute.xlu0 %5711
        %5713 = vrot.lane.b32.xlu0 %v5674, 112
        %v5714 = vpop.permute.xlu0 %5713
        %5715 = vrot.lane.b32.xlu0 %v5675, 112
        %v5716 = vpop.permute.xlu0 %5715
        %5717 = vrot.lane.b32.xlu0 %v5676, 112
        %v5718 = vpop.permute.xlu0 %5717
        %5719 = vrot.lane.b32.xlu0 %v5677, 112
        %v5720 = vpop.permute.xlu0 %5719
        %5721 = vrot.lane.b32.xlu0 %v5678, 112
        %v5722 = vpop.permute.xlu0 %5721
        %5723 = vrot.lane.b32.xlu0 %v5679, 112
        %v5724 = vpop.permute.xlu0 %5723
        %5725 = vrot.lane.b32.xlu0 %v5680, 112
        %v5726 = vpop.permute.xlu0 %5725
        %5727 = vrot.lane.b32.xlu0 %v5681, 112
        %v5728 = vpop.permute.xlu0 %5727
        %5729 = vrot.lane.b32.xlu0 %v5682, 112
        %v5730 = vpop.permute.xlu0 %5729
        %5747 = vst.msk [vmem:[#allocation4 + $0x8] sm:$0xff] %vm4784, %v5700
        %5748 = vst.msk [vmem:[#allocation4 + $0x28] sm:$0xff] %vm4784, %v5702
        %5749 = vst.msk [vmem:[#allocation4 + $0x48] sm:$0xff] %vm4784, %v5704
        %5750 = vst.msk [vmem:[#allocation4 + $0x68] sm:$0xff] %vm4784, %v5706
        %5751 = vst.msk [vmem:[#allocation4 + $0x88] sm:$0xff] %vm4784, %v5708
        %5752 = vst.msk [vmem:[#allocation4 + $0xa8] sm:$0xff] %vm4784, %v5710
        %5753 = vst.msk [vmem:[#allocation4 + $0xc8] sm:$0xff] %vm4784, %v5712
        %5754 = vst.msk [vmem:[#allocation4 + $0xe8] sm:$0xff] %vm4784, %v5714
        %5755 = vst.msk [vmem:[#allocation4 + $0x108] sm:$0xff] %vm4784, %v5716
        %5756 = vst.msk [vmem:[#allocation4 + $0x128] sm:$0xff] %vm4784, %v5718
        %5757 = vst.msk [vmem:[#allocation4 + $0x148] sm:$0xff] %vm4784, %v5720
        %5758 = vst.msk [vmem:[#allocation4 + $0x168] sm:$0xff] %vm4784, %v5722
        %5759 = vst.msk [vmem:[#allocation4 + $0x188] sm:$0xff] %vm4784, %v5724
        %5760 = vst.msk [vmem:[#allocation4 + $0x1a8] sm:$0xff] %vm4784, %v5726
        %5761 = vst.msk [vmem:[#allocation4 + $0x1c8] sm:$0xff] %vm4784, %v5728
        %5762 = vst.msk [vmem:[#allocation4 + $0x1e8] sm:$0xff] %vm4784, %v5730
        %v5763 = vld [vmem:[%s5634 + $0x1] sm:$0xff]
        %v5764 = vld [vmem:[%s5634 + $0x9] sm:$0xff]
        %v5765 = vld [vmem:[%s5634 + $0x19] sm:$0xff]
        %v5766 = vld [vmem:[%s5634 + $0x21] sm:$0xff]
        %v5767 = vld [vmem:[%s5634 + $0x31] sm:$0xff]
        %v5768 = vld [vmem:[%s5634 + $0x39] sm:$0xff]
        %v5769 = vld [vmem:[%s5634 + $0x49] sm:$0xff]
        %v5770 = vld [vmem:[%s5634 + $0x51] sm:$0xff]
        %v5771 = vld [vmem:[%s5634 + $0x61] sm:$0xff]
        %v5772 = vld [vmem:[%s5634 + $0x69] sm:$0xff]
        %v5773 = vld [vmem:[%s5634 + $0x79] sm:$0xff]
        %v5774 = vld [vmem:[%s5634 + $0x81] sm:$0xff]
        %v5775 = vld [vmem:[%s5634 + $0x91] sm:$0xff]
        %v5776 = vld [vmem:[%s5634 + $0x99] sm:$0xff]
        %v5777 = vld [vmem:[%s5634 + $0xa9] sm:$0xff]
        %v5778 = vld [vmem:[%s5634 + $0xb1] sm:$0xff]
        %v5779 = vld [vmem:[%s5634 + $0xc1] sm:$0xff]
        %v5780 = vld [vmem:[%s5634 + $0xc9] sm:$0xff]
        %v5781 = vld [vmem:[%s5634 + $0xd9] sm:$0xff]
        %v5782 = vld [vmem:[%s5634 + $0xe1] sm:$0xff]
        %v5783 = vld [vmem:[%s5634 + $0xf1] sm:$0xff]
        %v5784 = vld [vmem:[%s5634 + $0xf9] sm:$0xff]
        %v5785 = vld [vmem:[%s5634 + $0x109] sm:$0xff]
        %v5786 = vld [vmem:[%s5634 + $0x111] sm:$0xff]
        %v5787 = vld [vmem:[%s5634 + $0x121] sm:$0xff]
        %v5788 = vld [vmem:[%s5634 + $0x129] sm:$0xff]
        %v5789 = vld [vmem:[%s5634 + $0x139] sm:$0xff]
        %v5790 = vld [vmem:[%s5634 + $0x141] sm:$0xff]
        %v5791 = vld [vmem:[%s5634 + $0x151] sm:$0xff]
        %v5792 = vld [vmem:[%s5634 + $0x159] sm:$0xff]
        %v5793 = vld [vmem:[%s5634 + $0x169] sm:$0xff]
        %v5794 = vld [vmem:[%s5634 + $0x171] sm:$0xff]
        %v5795 = vpack.c.bf16 %v5764, %v5763
        %v5796 = vpack.c.bf16 %v5766, %v5765
        %v5797 = vpack.c.bf16 %v5768, %v5767
        %v5798 = vpack.c.bf16 %v5770, %v5769
        %v5799 = vpack.c.bf16 %v5772, %v5771
        %v5800 = vpack.c.bf16 %v5774, %v5773
        %v5801 = vpack.c.bf16 %v5776, %v5775
        %v5802 = vpack.c.bf16 %v5778, %v5777
        %v5803 = vpack.c.bf16 %v5780, %v5779
        %v5804 = vpack.c.bf16 %v5782, %v5781
        %v5805 = vpack.c.bf16 %v5784, %v5783
        %v5806 = vpack.c.bf16 %v5786, %v5785
        %v5807 = vpack.c.bf16 %v5788, %v5787
        %v5808 = vpack.c.bf16 %v5790, %v5789
        %v5809 = vpack.c.bf16 %v5792, %v5791
        %v5810 = vpack.c.bf16 %v5794, %v5793
        %5811 = vst.msk [vmem:[#allocation4 + $0x10] sm:$0xff] %vm3752, %v5795
        %5812 = vst.msk [vmem:[#allocation4 + $0x30] sm:$0xff] %vm3752, %v5796
        %5813 = vst.msk [vmem:[#allocation4 + $0x50] sm:$0xff] %vm3752, %v5797
        %5814 = vst.msk [vmem:[#allocation4 + $0x70] sm:$0xff] %vm3752, %v5798
        %5815 = vst.msk [vmem:[#allocation4 + $0x90] sm:$0xff] %vm3752, %v5799
        %5816 = vst.msk [vmem:[#allocation4 + $0xb0] sm:$0xff] %vm3752, %v5800
        %5817 = vst.msk [vmem:[#allocation4 + $0xd0] sm:$0xff] %vm3752, %v5801
        %5818 = vst.msk [vmem:[#allocation4 + $0xf0] sm:$0xff] %vm3752, %v5802
        %5819 = vst.msk [vmem:[#allocation4 + $0x110] sm:$0xff] %vm3752, %v5803
        %5820 = vst.msk [vmem:[#allocation4 + $0x130] sm:$0xff] %vm3752, %v5804
        %5821 = vst.msk [vmem:[#allocation4 + $0x150] sm:$0xff] %vm3752, %v5805
        %5822 = vst.msk [vmem:[#allocation4 + $0x170] sm:$0xff] %vm3752, %v5806
        %5823 = vst.msk [vmem:[#allocation4 + $0x190] sm:$0xff] %vm3752, %v5807
        %5824 = vst.msk [vmem:[#allocation4 + $0x1b0] sm:$0xff] %vm3752, %v5808
        %5825 = vst.msk [vmem:[#allocation4 + $0x1d0] sm:$0xff] %vm3752, %v5809
        %5826 = vst.msk [vmem:[#allocation4 + $0x1f0] sm:$0xff] %vm3752, %v5810
        %v5827 = vld [vmem:[%s5634 + $0x2] sm:$0xff]
        %v5828 = vld [vmem:[%s5634 + $0xa] sm:$0xff]
        %v5829 = vld [vmem:[%s5634 + $0x1a] sm:$0xff]
        %v5830 = vld [vmem:[%s5634 + $0x22] sm:$0xff]
        %v5831 = vld [vmem:[%s5634 + $0x32] sm:$0xff]
        %v5832 = vld [vmem:[%s5634 + $0x3a] sm:$0xff]
        %v5833 = vld [vmem:[%s5634 + $0x4a] sm:$0xff]
        %v5834 = vld [vmem:[%s5634 + $0x52] sm:$0xff]
        %v5835 = vld [vmem:[%s5634 + $0x62] sm:$0xff]
        %v5836 = vld [vmem:[%s5634 + $0x6a] sm:$0xff]
        %v5837 = vld [vmem:[%s5634 + $0x7a] sm:$0xff]
        %v5838 = vld [vmem:[%s5634 + $0x82] sm:$0xff]
        %v5839 = vld [vmem:[%s5634 + $0x92] sm:$0xff]
        %v5840 = vld [vmem:[%s5634 + $0x9a] sm:$0xff]
        %v5841 = vld [vmem:[%s5634 + $0xaa] sm:$0xff]
        %v5842 = vld [vmem:[%s5634 + $0xb2] sm:$0xff]
        %v5843 = vld [vmem:[%s5634 + $0xc2] sm:$0xff]
        %v5844 = vld [vmem:[%s5634 + $0xca] sm:$0xff]
        %v5845 = vld [vmem:[%s5634 + $0xda] sm:$0xff]
        %v5846 = vld [vmem:[%s5634 + $0xe2] sm:$0xff]
        %v5847 = vld [vmem:[%s5634 + $0xf2] sm:$0xff]
        %v5848 = vld [vmem:[%s5634 + $0xfa] sm:$0xff]
        %v5849 = vld [vmem:[%s5634 + $0x10a] sm:$0xff]
        %v5850 = vld [vmem:[%s5634 + $0x112] sm:$0xff]
        %v5851 = vld [vmem:[%s5634 + $0x122] sm:$0xff]
        %v5852 = vld [vmem:[%s5634 + $0x12a] sm:$0xff]
        %v5853 = vld [vmem:[%s5634 + $0x13a] sm:$0xff]
        %v5854 = vld [vmem:[%s5634 + $0x142] sm:$0xff]
        %v5855 = vld [vmem:[%s5634 + $0x152] sm:$0xff]
        %v5856 = vld [vmem:[%s5634 + $0x15a] sm:$0xff]
        %v5857 = vld [vmem:[%s5634 + $0x16a] sm:$0xff]
        %v5858 = vld [vmem:[%s5634 + $0x172] sm:$0xff]
        %v5859 = vpack.c.bf16 %v5828, %v5827
        %v5860 = vpack.c.bf16 %v5830, %v5829
        %v5861 = vpack.c.bf16 %v5832, %v5831
        %v5862 = vpack.c.bf16 %v5834, %v5833
        %v5863 = vpack.c.bf16 %v5836, %v5835
        %v5864 = vpack.c.bf16 %v5838, %v5837
        %v5865 = vpack.c.bf16 %v5840, %v5839
        %v5866 = vpack.c.bf16 %v5842, %v5841
        %v5867 = vpack.c.bf16 %v5844, %v5843
        %v5868 = vpack.c.bf16 %v5846, %v5845
        %v5869 = vpack.c.bf16 %v5848, %v5847
        %v5870 = vpack.c.bf16 %v5850, %v5849
        %v5871 = vpack.c.bf16 %v5852, %v5851
        %v5872 = vpack.c.bf16 %v5854, %v5853
        %v5873 = vpack.c.bf16 %v5856, %v5855
        %v5874 = vpack.c.bf16 %v5858, %v5857
        %5891 = vrot.lane.b32.xlu0 %v5859, 16
        %v5892 = vpop.permute.xlu0 %5891
        %5893 = vrot.lane.b32.xlu0 %v5860, 16
        %v5894 = vpop.permute.xlu0 %5893
        %5895 = vrot.lane.b32.xlu0 %v5861, 16
        %v5896 = vpop.permute.xlu0 %5895
        %5897 = vrot.lane.b32.xlu0 %v5862, 16
        %v5898 = vpop.permute.xlu0 %5897
        %5899 = vrot.lane.b32.xlu0 %v5863, 16
        %v5900 = vpop.permute.xlu0 %5899
        %5901 = vrot.lane.b32.xlu0 %v5864, 16
        %v5902 = vpop.permute.xlu0 %5901
        %5903 = vrot.lane.b32.xlu0 %v5865, 16
        %v5904 = vpop.permute.xlu0 %5903
        %5905 = vrot.lane.b32.xlu0 %v5866, 16
        %v5906 = vpop.permute.xlu0 %5905
        %5907 = vrot.lane.b32.xlu0 %v5867, 16
        %v5908 = vpop.permute.xlu0 %5907
        %5909 = vrot.lane.b32.xlu0 %v5868, 16
        %v5910 = vpop.permute.xlu0 %5909
        %5911 = vrot.lane.b32.xlu0 %v5869, 16
        %v5912 = vpop.permute.xlu0 %5911
        %5913 = vrot.lane.b32.xlu0 %v5870, 16
        %v5914 = vpop.permute.xlu0 %5913
        %5915 = vrot.lane.b32.xlu0 %v5871, 16
        %v5916 = vpop.permute.xlu0 %5915
        %5917 = vrot.lane.b32.xlu0 %v5872, 16
        %v5918 = vpop.permute.xlu0 %5917
        %5919 = vrot.lane.b32.xlu0 %v5873, 16
        %v5920 = vpop.permute.xlu0 %5919
        %5921 = vrot.lane.b32.xlu0 %v5874, 16
        %v5922 = vpop.permute.xlu0 %5921
        %5939 = vst.msk [vmem:[#allocation4 + $0x10] sm:$0xff] %vm4010, %v5892
        %5940 = vst.msk [vmem:[#allocation4 + $0x30] sm:$0xff] %vm4010, %v5894
        %5941 = vst.msk [vmem:[#allocation4 + $0x50] sm:$0xff] %vm4010, %v5896
        %5942 = vst.msk [vmem:[#allocation4 + $0x70] sm:$0xff] %vm4010, %v5898
        %5943 = vst.msk [vmem:[#allocation4 + $0x90] sm:$0xff] %vm4010, %v5900
        %5944 = vst.msk [vmem:[#allocation4 + $0xb0] sm:$0xff] %vm4010, %v5902
        %5945 = vst.msk [vmem:[#allocation4 + $0xd0] sm:$0xff] %vm4010, %v5904
        %5946 = vst.msk [vmem:[#allocation4 + $0xf0] sm:$0xff] %vm4010, %v5906
        %5947 = vst.msk [vmem:[#allocation4 + $0x110] sm:$0xff] %vm4010, %v5908
        %5948 = vst.msk [vmem:[#allocation4 + $0x130] sm:$0xff] %vm4010, %v5910
        %5949 = vst.msk [vmem:[#allocation4 + $0x150] sm:$0xff] %vm4010, %v5912
        %5950 = vst.msk [vmem:[#allocation4 + $0x170] sm:$0xff] %vm4010, %v5914
        %5951 = vst.msk [vmem:[#allocation4 + $0x190] sm:$0xff] %vm4010, %v5916
        %5952 = vst.msk [vmem:[#allocation4 + $0x1b0] sm:$0xff] %vm4010, %v5918
        %5953 = vst.msk [vmem:[#allocation4 + $0x1d0] sm:$0xff] %vm4010, %v5920
        %5954 = vst.msk [vmem:[#allocation4 + $0x1f0] sm:$0xff] %vm4010, %v5922
        %v5955 = vld [vmem:[%s5634 + $0x3] sm:$0xff]
        %v5956 = vld [vmem:[%s5634 + $0xb] sm:$0xff]
        %v5957 = vld [vmem:[%s5634 + $0x1b] sm:$0xff]
        %v5958 = vld [vmem:[%s5634 + $0x23] sm:$0xff]
        %v5959 = vld [vmem:[%s5634 + $0x33] sm:$0xff]
        %v5960 = vld [vmem:[%s5634 + $0x3b] sm:$0xff]
        %v5961 = vld [vmem:[%s5634 + $0x4b] sm:$0xff]
        %v5962 = vld [vmem:[%s5634 + $0x53] sm:$0xff]
        %v5963 = vld [vmem:[%s5634 + $0x63] sm:$0xff]
        %v5964 = vld [vmem:[%s5634 + $0x6b] sm:$0xff]
        %v5965 = vld [vmem:[%s5634 + $0x7b] sm:$0xff]
        %v5966 = vld [vmem:[%s5634 + $0x83] sm:$0xff]
        %v5967 = vld [vmem:[%s5634 + $0x93] sm:$0xff]
        %v5968 = vld [vmem:[%s5634 + $0x9b] sm:$0xff]
        %v5969 = vld [vmem:[%s5634 + $0xab] sm:$0xff]
        %v5970 = vld [vmem:[%s5634 + $0xb3] sm:$0xff]
        %v5971 = vld [vmem:[%s5634 + $0xc3] sm:$0xff]
        %v5972 = vld [vmem:[%s5634 + $0xcb] sm:$0xff]
        %v5973 = vld [vmem:[%s5634 + $0xdb] sm:$0xff]
        %v5974 = vld [vmem:[%s5634 + $0xe3] sm:$0xff]
        %v5975 = vld [vmem:[%s5634 + $0xf3] sm:$0xff]
        %v5976 = vld [vmem:[%s5634 + $0xfb] sm:$0xff]
        %v5977 = vld [vmem:[%s5634 + $0x10b] sm:$0xff]
        %v5978 = vld [vmem:[%s5634 + $0x113] sm:$0xff]
        %v5979 = vld [vmem:[%s5634 + $0x123] sm:$0xff]
        %v5980 = vld [vmem:[%s5634 + $0x12b] sm:$0xff]
        %v5981 = vld [vmem:[%s5634 + $0x13b] sm:$0xff]
        %v5982 = vld [vmem:[%s5634 + $0x143] sm:$0xff]
        %v5983 = vld [vmem:[%s5634 + $0x153] sm:$0xff]
        %v5984 = vld [vmem:[%s5634 + $0x15b] sm:$0xff]
        %v5985 = vld [vmem:[%s5634 + $0x16b] sm:$0xff]
        %v5986 = vld [vmem:[%s5634 + $0x173] sm:$0xff]
        %v5987 = vpack.c.bf16 %v5956, %v5955
        %v5988 = vpack.c.bf16 %v5958, %v5957
        %v5989 = vpack.c.bf16 %v5960, %v5959
        %v5990 = vpack.c.bf16 %v5962, %v5961
        %v5991 = vpack.c.bf16 %v5964, %v5963
        %v5992 = vpack.c.bf16 %v5966, %v5965
        %v5993 = vpack.c.bf16 %v5968, %v5967
        %v5994 = vpack.c.bf16 %v5970, %v5969
        %v5995 = vpack.c.bf16 %v5972, %v5971
        %v5996 = vpack.c.bf16 %v5974, %v5973
        %v5997 = vpack.c.bf16 %v5976, %v5975
        %v5998 = vpack.c.bf16 %v5978, %v5977
        %v5999 = vpack.c.bf16 %v5980, %v5979
        %v6000 = vpack.c.bf16 %v5982, %v5981
        %v6001 = vpack.c.bf16 %v5984, %v5983
        %v6002 = vpack.c.bf16 %v5986, %v5985
        %6019 = vrot.lane.b32.xlu0 %v5987, 32
        %v6020 = vpop.permute.xlu0 %6019
        %6021 = vrot.lane.b32.xlu0 %v5988, 32
        %v6022 = vpop.permute.xlu0 %6021
        %6023 = vrot.lane.b32.xlu0 %v5989, 32
        %v6024 = vpop.permute.xlu0 %6023
        %6025 = vrot.lane.b32.xlu0 %v5990, 32
        %v6026 = vpop.permute.xlu0 %6025
        %6027 = vrot.lane.b32.xlu0 %v5991, 32
        %v6028 = vpop.permute.xlu0 %6027
        %6029 = vrot.lane.b32.xlu0 %v5992, 32
        %v6030 = vpop.permute.xlu0 %6029
        %6031 = vrot.lane.b32.xlu0 %v5993, 32
        %v6032 = vpop.permute.xlu0 %6031
        %6033 = vrot.lane.b32.xlu0 %v5994, 32
        %v6034 = vpop.permute.xlu0 %6033
        %6035 = vrot.lane.b32.xlu0 %v5995, 32
        %v6036 = vpop.permute.xlu0 %6035
        %6037 = vrot.lane.b32.xlu0 %v5996, 32
        %v6038 = vpop.permute.xlu0 %6037
        %6039 = vrot.lane.b32.xlu0 %v5997, 32
        %v6040 = vpop.permute.xlu0 %6039
        %6041 = vrot.lane.b32.xlu0 %v5998, 32
        %v6042 = vpop.permute.xlu0 %6041
        %6043 = vrot.lane.b32.xlu0 %v5999, 32
        %v6044 = vpop.permute.xlu0 %6043
        %6045 = vrot.lane.b32.xlu0 %v6000, 32
        %v6046 = vpop.permute.xlu0 %6045
        %6047 = vrot.lane.b32.xlu0 %v6001, 32
        %v6048 = vpop.permute.xlu0 %6047
        %6049 = vrot.lane.b32.xlu0 %v6002, 32
        %v6050 = vpop.permute.xlu0 %6049
        %6067 = vst.msk [vmem:[#allocation4 + $0x10] sm:$0xff] %vm4139, %v6020
        %6068 = vst.msk [vmem:[#allocation4 + $0x30] sm:$0xff] %vm4139, %v6022
        %6069 = vst.msk [vmem:[#allocation4 + $0x50] sm:$0xff] %vm4139, %v6024
        %6070 = vst.msk [vmem:[#allocation4 + $0x70] sm:$0xff] %vm4139, %v6026
        %6071 = vst.msk [vmem:[#allocation4 + $0x90] sm:$0xff] %vm4139, %v6028
        %6072 = vst.msk [vmem:[#allocation4 + $0xb0] sm:$0xff] %vm4139, %v6030
        %6073 = vst.msk [vmem:[#allocation4 + $0xd0] sm:$0xff] %vm4139, %v6032
        %6074 = vst.msk [vmem:[#allocation4 + $0xf0] sm:$0xff] %vm4139, %v6034
        %6075 = vst.msk [vmem:[#allocation4 + $0x110] sm:$0xff] %vm4139, %v6036
        %6076 = vst.msk [vmem:[#allocation4 + $0x130] sm:$0xff] %vm4139, %v6038
        %6077 = vst.msk [vmem:[#allocation4 + $0x150] sm:$0xff] %vm4139, %v6040
        %6078 = vst.msk [vmem:[#allocation4 + $0x170] sm:$0xff] %vm4139, %v6042
        %6079 = vst.msk [vmem:[#allocation4 + $0x190] sm:$0xff] %vm4139, %v6044
        %6080 = vst.msk [vmem:[#allocation4 + $0x1b0] sm:$0xff] %vm4139, %v6046
        %6081 = vst.msk [vmem:[#allocation4 + $0x1d0] sm:$0xff] %vm4139, %v6048
        %6082 = vst.msk [vmem:[#allocation4 + $0x1f0] sm:$0xff] %vm4139, %v6050
        %v6083 = vld [vmem:[%s5634 + $0x4] sm:$0xff]
        %v6084 = vld [vmem:[%s5634 + $0xc] sm:$0xff]
        %v6085 = vld [vmem:[%s5634 + $0x1c] sm:$0xff]
        %v6086 = vld [vmem:[%s5634 + $0x24] sm:$0xff]
        %v6087 = vld [vmem:[%s5634 + $0x34] sm:$0xff]
        %v6088 = vld [vmem:[%s5634 + $0x3c] sm:$0xff]
        %v6089 = vld [vmem:[%s5634 + $0x4c] sm:$0xff]
        %v6090 = vld [vmem:[%s5634 + $0x54] sm:$0xff]
        %v6091 = vld [vmem:[%s5634 + $0x64] sm:$0xff]
        %v6092 = vld [vmem:[%s5634 + $0x6c] sm:$0xff]
        %v6093 = vld [vmem:[%s5634 + $0x7c] sm:$0xff]
        %v6094 = vld [vmem:[%s5634 + $0x84] sm:$0xff]
        %v6095 = vld [vmem:[%s5634 + $0x94] sm:$0xff]
        %v6096 = vld [vmem:[%s5634 + $0x9c] sm:$0xff]
        %v6097 = vld [vmem:[%s5634 + $0xac] sm:$0xff]
        %v6098 = vld [vmem:[%s5634 + $0xb4] sm:$0xff]
        %v6099 = vld [vmem:[%s5634 + $0xc4] sm:$0xff]
        %v6100 = vld [vmem:[%s5634 + $0xcc] sm:$0xff]
        %v6101 = vld [vmem:[%s5634 + $0xdc] sm:$0xff]
        %v6102 = vld [vmem:[%s5634 + $0xe4] sm:$0xff]
        %v6103 = vld [vmem:[%s5634 + $0xf4] sm:$0xff]
        %v6104 = vld [vmem:[%s5634 + $0xfc] sm:$0xff]
        %v6105 = vld [vmem:[%s5634 + $0x10c] sm:$0xff]
        %v6106 = vld [vmem:[%s5634 + $0x114] sm:$0xff]
        %v6107 = vld [vmem:[%s5634 + $0x124] sm:$0xff]
        %v6108 = vld [vmem:[%s5634 + $0x12c] sm:$0xff]
        %v6109 = vld [vmem:[%s5634 + $0x13c] sm:$0xff]
        %v6110 = vld [vmem:[%s5634 + $0x144] sm:$0xff]
        %v6111 = vld [vmem:[%s5634 + $0x154] sm:$0xff]
        %v6112 = vld [vmem:[%s5634 + $0x15c] sm:$0xff]
        %v6113 = vld [vmem:[%s5634 + $0x16c] sm:$0xff]
        %v6114 = vld [vmem:[%s5634 + $0x174] sm:$0xff]
        %v6115 = vpack.c.bf16 %v6084, %v6083
        %v6116 = vpack.c.bf16 %v6086, %v6085
        %v6117 = vpack.c.bf16 %v6088, %v6087
        %v6118 = vpack.c.bf16 %v6090, %v6089
        %v6119 = vpack.c.bf16 %v6092, %v6091
        %v6120 = vpack.c.bf16 %v6094, %v6093
        %v6121 = vpack.c.bf16 %v6096, %v6095
        %v6122 = vpack.c.bf16 %v6098, %v6097
        %v6123 = vpack.c.bf16 %v6100, %v6099
        %v6124 = vpack.c.bf16 %v6102, %v6101
        %v6125 = vpack.c.bf16 %v6104, %v6103
        %v6126 = vpack.c.bf16 %v6106, %v6105
        %v6127 = vpack.c.bf16 %v6108, %v6107
        %v6128 = vpack.c.bf16 %v6110, %v6109
        %v6129 = vpack.c.bf16 %v6112, %v6111
        %v6130 = vpack.c.bf16 %v6114, %v6113
        %6147 = vrot.lane.b32.xlu0 %v6115, 48
        %v6148 = vpop.permute.xlu0 %6147
        %6149 = vrot.lane.b32.xlu0 %v6116, 48
        %v6150 = vpop.permute.xlu0 %6149
        %6151 = vrot.lane.b32.xlu0 %v6117, 48
        %v6152 = vpop.permute.xlu0 %6151
        %6153 = vrot.lane.b32.xlu0 %v6118, 48
        %v6154 = vpop.permute.xlu0 %6153
        %6155 = vrot.lane.b32.xlu0 %v6119, 48
        %v6156 = vpop.permute.xlu0 %6155
        %6157 = vrot.lane.b32.xlu0 %v6120, 48
        %v6158 = vpop.permute.xlu0 %6157
        %6159 = vrot.lane.b32.xlu0 %v6121, 48
        %v6160 = vpop.permute.xlu0 %6159
        %6161 = vrot.lane.b32.xlu0 %v6122, 48
        %v6162 = vpop.permute.xlu0 %6161
        %6163 = vrot.lane.b32.xlu0 %v6123, 48
        %v6164 = vpop.permute.xlu0 %6163
        %6165 = vrot.lane.b32.xlu0 %v6124, 48
        %v6166 = vpop.permute.xlu0 %6165
        %6167 = vrot.lane.b32.xlu0 %v6125, 48
        %v6168 = vpop.permute.xlu0 %6167
        %6169 = vrot.lane.b32.xlu0 %v6126, 48
        %v6170 = vpop.permute.xlu0 %6169
        %6171 = vrot.lane.b32.xlu0 %v6127, 48
        %v6172 = vpop.permute.xlu0 %6171
        %6173 = vrot.lane.b32.xlu0 %v6128, 48
        %v6174 = vpop.permute.xlu0 %6173
        %6175 = vrot.lane.b32.xlu0 %v6129, 48
        %v6176 = vpop.permute.xlu0 %6175
        %6177 = vrot.lane.b32.xlu0 %v6130, 48
        %v6178 = vpop.permute.xlu0 %6177
        %6195 = vst.msk [vmem:[#allocation4 + $0x10] sm:$0xff] %vm4268, %v6148
        %6196 = vst.msk [vmem:[#allocation4 + $0x30] sm:$0xff] %vm4268, %v6150
        %6197 = vst.msk [vmem:[#allocation4 + $0x50] sm:$0xff] %vm4268, %v6152
        %6198 = vst.msk [vmem:[#allocation4 + $0x70] sm:$0xff] %vm4268, %v6154
        %6199 = vst.msk [vmem:[#allocation4 + $0x90] sm:$0xff] %vm4268, %v6156
        %6200 = vst.msk [vmem:[#allocation4 + $0xb0] sm:$0xff] %vm4268, %v6158
        %6201 = vst.msk [vmem:[#allocation4 + $0xd0] sm:$0xff] %vm4268, %v6160
        %6202 = vst.msk [vmem:[#allocation4 + $0xf0] sm:$0xff] %vm4268, %v6162
        %6203 = vst.msk [vmem:[#allocation4 + $0x110] sm:$0xff] %vm4268, %v6164
        %6204 = vst.msk [vmem:[#allocation4 + $0x130] sm:$0xff] %vm4268, %v6166
        %6205 = vst.msk [vmem:[#allocation4 + $0x150] sm:$0xff] %vm4268, %v6168
        %6206 = vst.msk [vmem:[#allocation4 + $0x170] sm:$0xff] %vm4268, %v6170
        %6207 = vst.msk [vmem:[#allocation4 + $0x190] sm:$0xff] %vm4268, %v6172
        %6208 = vst.msk [vmem:[#allocation4 + $0x1b0] sm:$0xff] %vm4268, %v6174
        %6209 = vst.msk [vmem:[#allocation4 + $0x1d0] sm:$0xff] %vm4268, %v6176
        %6210 = vst.msk [vmem:[#allocation4 + $0x1f0] sm:$0xff] %vm4268, %v6178
        %s6211 = scalar_lea.vmem [#allocation3], 96
        %v6212 = vld [vmem:[%s6211] sm:$0xff]
        %v6213 = vld [vmem:[%s6211 + $0x8] sm:$0xff]
        %v6214 = vld [vmem:[%s6211 + $0x18] sm:$0xff]
        %v6215 = vld [vmem:[%s6211 + $0x20] sm:$0xff]
        %v6216 = vld [vmem:[%s6211 + $0x30] sm:$0xff]
        %v6217 = vld [vmem:[%s6211 + $0x38] sm:$0xff]
        %v6218 = vld [vmem:[%s6211 + $0x48] sm:$0xff]
        %v6219 = vld [vmem:[%s6211 + $0x50] sm:$0xff]
        %v6220 = vld [vmem:[%s6211 + $0x60] sm:$0xff]
        %v6221 = vld [vmem:[%s6211 + $0x68] sm:$0xff]
        %v6222 = vld [vmem:[%s6211 + $0x78] sm:$0xff]
        %v6223 = vld [vmem:[%s6211 + $0x80] sm:$0xff]
        %v6224 = vld [vmem:[%s6211 + $0x90] sm:$0xff]
        %v6225 = vld [vmem:[%s6211 + $0x98] sm:$0xff]
        %v6226 = vld [vmem:[%s6211 + $0xa8] sm:$0xff]
        %v6227 = vld [vmem:[%s6211 + $0xb0] sm:$0xff]
        %v6228 = vld [vmem:[%s6211 + $0xc0] sm:$0xff]
        %v6229 = vld [vmem:[%s6211 + $0xc8] sm:$0xff]
        %v6230 = vld [vmem:[%s6211 + $0xd8] sm:$0xff]
        %v6231 = vld [vmem:[%s6211 + $0xe0] sm:$0xff]
        %v6232 = vld [vmem:[%s6211 + $0xf0] sm:$0xff]
        %v6233 = vld [vmem:[%s6211 + $0xf8] sm:$0xff]
        %v6234 = vld [vmem:[%s6211 + $0x108] sm:$0xff]
        %v6235 = vld [vmem:[%s6211 + $0x110] sm:$0xff]
        %v6236 = vld [vmem:[%s6211 + $0x120] sm:$0xff]
        %v6237 = vld [vmem:[%s6211 + $0x128] sm:$0xff]
        %v6238 = vld [vmem:[%s6211 + $0x138] sm:$0xff]
        %v6239 = vld [vmem:[%s6211 + $0x140] sm:$0xff]
        %v6240 = vld [vmem:[%s6211 + $0x150] sm:$0xff]
        %v6241 = vld [vmem:[%s6211 + $0x158] sm:$0xff]
        %v6242 = vld [vmem:[%s6211 + $0x168] sm:$0xff]
        %v6243 = vld [vmem:[%s6211 + $0x170] sm:$0xff]
        %v6244 = vpack.c.bf16 %v6213, %v6212
        %v6245 = vpack.c.bf16 %v6215, %v6214
        %v6246 = vpack.c.bf16 %v6217, %v6216
        %v6247 = vpack.c.bf16 %v6219, %v6218
        %v6248 = vpack.c.bf16 %v6221, %v6220
        %v6249 = vpack.c.bf16 %v6223, %v6222
        %v6250 = vpack.c.bf16 %v6225, %v6224
        %v6251 = vpack.c.bf16 %v6227, %v6226
        %v6252 = vpack.c.bf16 %v6229, %v6228
        %v6253 = vpack.c.bf16 %v6231, %v6230
        %v6254 = vpack.c.bf16 %v6233, %v6232
        %v6255 = vpack.c.bf16 %v6235, %v6234
        %v6256 = vpack.c.bf16 %v6237, %v6236
        %v6257 = vpack.c.bf16 %v6239, %v6238
        %v6258 = vpack.c.bf16 %v6241, %v6240
        %v6259 = vpack.c.bf16 %v6243, %v6242
        %6276 = vrot.lane.b32.xlu0 %v6244, 64
        %v6277 = vpop.permute.xlu0 %6276
        %6278 = vrot.lane.b32.xlu0 %v6245, 64
        %v6279 = vpop.permute.xlu0 %6278
        %6280 = vrot.lane.b32.xlu0 %v6246, 64
        %v6281 = vpop.permute.xlu0 %6280
        %6282 = vrot.lane.b32.xlu0 %v6247, 64
        %v6283 = vpop.permute.xlu0 %6282
        %6284 = vrot.lane.b32.xlu0 %v6248, 64
        %v6285 = vpop.permute.xlu0 %6284
        %6286 = vrot.lane.b32.xlu0 %v6249, 64
        %v6287 = vpop.permute.xlu0 %6286
        %6288 = vrot.lane.b32.xlu0 %v6250, 64
        %v6289 = vpop.permute.xlu0 %6288
        %6290 = vrot.lane.b32.xlu0 %v6251, 64
        %v6291 = vpop.permute.xlu0 %6290
        %6292 = vrot.lane.b32.xlu0 %v6252, 64
        %v6293 = vpop.permute.xlu0 %6292
        %6294 = vrot.lane.b32.xlu0 %v6253, 64
        %v6295 = vpop.permute.xlu0 %6294
        %6296 = vrot.lane.b32.xlu0 %v6254, 64
        %v6297 = vpop.permute.xlu0 %6296
        %6298 = vrot.lane.b32.xlu0 %v6255, 64
        %v6299 = vpop.permute.xlu0 %6298
        %6300 = vrot.lane.b32.xlu0 %v6256, 64
        %v6301 = vpop.permute.xlu0 %6300
        %6302 = vrot.lane.b32.xlu0 %v6257, 64
        %v6303 = vpop.permute.xlu0 %6302
        %6304 = vrot.lane.b32.xlu0 %v6258, 64
        %v6305 = vpop.permute.xlu0 %6304
        %6306 = vrot.lane.b32.xlu0 %v6259, 64
        %v6307 = vpop.permute.xlu0 %6306
        %6324 = vst.msk [vmem:[#allocation4 + $0x10] sm:$0xff] %vm4397, %v6277
        %6325 = vst.msk [vmem:[#allocation4 + $0x30] sm:$0xff] %vm4397, %v6279
        %6326 = vst.msk [vmem:[#allocation4 + $0x50] sm:$0xff] %vm4397, %v6281
        %6327 = vst.msk [vmem:[#allocation4 + $0x70] sm:$0xff] %vm4397, %v6283
        %6328 = vst.msk [vmem:[#allocation4 + $0x90] sm:$0xff] %vm4397, %v6285
        %6329 = vst.msk [vmem:[#allocation4 + $0xb0] sm:$0xff] %vm4397, %v6287
        %6330 = vst.msk [vmem:[#allocation4 + $0xd0] sm:$0xff] %vm4397, %v6289
        %6331 = vst.msk [vmem:[#allocation4 + $0xf0] sm:$0xff] %vm4397, %v6291
        %6332 = vst.msk [vmem:[#allocation4 + $0x110] sm:$0xff] %vm4397, %v6293
        %6333 = vst.msk [vmem:[#allocation4 + $0x130] sm:$0xff] %vm4397, %v6295
        %6334 = vst.msk [vmem:[#allocation4 + $0x150] sm:$0xff] %vm4397, %v6297
        %6335 = vst.msk [vmem:[#allocation4 + $0x170] sm:$0xff] %vm4397, %v6299
        %6336 = vst.msk [vmem:[#allocation4 + $0x190] sm:$0xff] %vm4397, %v6301
        %6337 = vst.msk [vmem:[#allocation4 + $0x1b0] sm:$0xff] %vm4397, %v6303
        %6338 = vst.msk [vmem:[#allocation4 + $0x1d0] sm:$0xff] %vm4397, %v6305
        %6339 = vst.msk [vmem:[#allocation4 + $0x1f0] sm:$0xff] %vm4397, %v6307
        %v6340 = vld [vmem:[%s6211 + $0x1] sm:$0xff]
        %v6341 = vld [vmem:[%s6211 + $0x9] sm:$0xff]
        %v6342 = vld [vmem:[%s6211 + $0x19] sm:$0xff]
        %v6343 = vld [vmem:[%s6211 + $0x21] sm:$0xff]
        %v6344 = vld [vmem:[%s6211 + $0x31] sm:$0xff]
        %v6345 = vld [vmem:[%s6211 + $0x39] sm:$0xff]
        %v6346 = vld [vmem:[%s6211 + $0x49] sm:$0xff]
        %v6347 = vld [vmem:[%s6211 + $0x51] sm:$0xff]
        %v6348 = vld [vmem:[%s6211 + $0x61] sm:$0xff]
        %v6349 = vld [vmem:[%s6211 + $0x69] sm:$0xff]
        %v6350 = vld [vmem:[%s6211 + $0x79] sm:$0xff]
        %v6351 = vld [vmem:[%s6211 + $0x81] sm:$0xff]
        %v6352 = vld [vmem:[%s6211 + $0x91] sm:$0xff]
        %v6353 = vld [vmem:[%s6211 + $0x99] sm:$0xff]
        %v6354 = vld [vmem:[%s6211 + $0xa9] sm:$0xff]
        %v6355 = vld [vmem:[%s6211 + $0xb1] sm:$0xff]
        %v6356 = vld [vmem:[%s6211 + $0xc1] sm:$0xff]
        %v6357 = vld [vmem:[%s6211 + $0xc9] sm:$0xff]
        %v6358 = vld [vmem:[%s6211 + $0xd9] sm:$0xff]
        %v6359 = vld [vmem:[%s6211 + $0xe1] sm:$0xff]
        %v6360 = vld [vmem:[%s6211 + $0xf1] sm:$0xff]
        %v6361 = vld [vmem:[%s6211 + $0xf9] sm:$0xff]
        %v6362 = vld [vmem:[%s6211 + $0x109] sm:$0xff]
        %v6363 = vld [vmem:[%s6211 + $0x111] sm:$0xff]
        %v6364 = vld [vmem:[%s6211 + $0x121] sm:$0xff]
        %v6365 = vld [vmem:[%s6211 + $0x129] sm:$0xff]
        %v6366 = vld [vmem:[%s6211 + $0x139] sm:$0xff]
        %v6367 = vld [vmem:[%s6211 + $0x141] sm:$0xff]
        %v6368 = vld [vmem:[%s6211 + $0x151] sm:$0xff]
        %v6369 = vld [vmem:[%s6211 + $0x159] sm:$0xff]
        %v6370 = vld [vmem:[%s6211 + $0x169] sm:$0xff]
        %v6371 = vld [vmem:[%s6211 + $0x171] sm:$0xff]
        %v6372 = vpack.c.bf16 %v6341, %v6340
        %v6373 = vpack.c.bf16 %v6343, %v6342
        %v6374 = vpack.c.bf16 %v6345, %v6344
        %v6375 = vpack.c.bf16 %v6347, %v6346
        %v6376 = vpack.c.bf16 %v6349, %v6348
        %v6377 = vpack.c.bf16 %v6351, %v6350
        %v6378 = vpack.c.bf16 %v6353, %v6352
        %v6379 = vpack.c.bf16 %v6355, %v6354
        %v6380 = vpack.c.bf16 %v6357, %v6356
        %v6381 = vpack.c.bf16 %v6359, %v6358
        %v6382 = vpack.c.bf16 %v6361, %v6360
        %v6383 = vpack.c.bf16 %v6363, %v6362
        %v6384 = vpack.c.bf16 %v6365, %v6364
        %v6385 = vpack.c.bf16 %v6367, %v6366
        %v6386 = vpack.c.bf16 %v6369, %v6368
        %v6387 = vpack.c.bf16 %v6371, %v6370
        %6404 = vrot.lane.b32.xlu0 %v6372, 80
        %v6405 = vpop.permute.xlu0 %6404
        %6406 = vrot.lane.b32.xlu0 %v6373, 80
        %v6407 = vpop.permute.xlu0 %6406
        %6408 = vrot.lane.b32.xlu0 %v6374, 80
        %v6409 = vpop.permute.xlu0 %6408
        %6410 = vrot.lane.b32.xlu0 %v6375, 80
        %v6411 = vpop.permute.xlu0 %6410
        %6412 = vrot.lane.b32.xlu0 %v6376, 80
        %v6413 = vpop.permute.xlu0 %6412
        %6414 = vrot.lane.b32.xlu0 %v6377, 80
        %v6415 = vpop.permute.xlu0 %6414
        %6416 = vrot.lane.b32.xlu0 %v6378, 80
        %v6417 = vpop.permute.xlu0 %6416
        %6418 = vrot.lane.b32.xlu0 %v6379, 80
        %v6419 = vpop.permute.xlu0 %6418
        %6420 = vrot.lane.b32.xlu0 %v6380, 80
        %v6421 = vpop.permute.xlu0 %6420
        %6422 = vrot.lane.b32.xlu0 %v6381, 80
        %v6423 = vpop.permute.xlu0 %6422
        %6424 = vrot.lane.b32.xlu0 %v6382, 80
        %v6425 = vpop.permute.xlu0 %6424
        %6426 = vrot.lane.b32.xlu0 %v6383, 80
        %v6427 = vpop.permute.xlu0 %6426
        %6428 = vrot.lane.b32.xlu0 %v6384, 80
        %v6429 = vpop.permute.xlu0 %6428
        %6430 = vrot.lane.b32.xlu0 %v6385, 80
        %v6431 = vpop.permute.xlu0 %6430
        %6432 = vrot.lane.b32.xlu0 %v6386, 80
        %v6433 = vpop.permute.xlu0 %6432
        %6434 = vrot.lane.b32.xlu0 %v6387, 80
        %v6435 = vpop.permute.xlu0 %6434
        %6452 = vst.msk [vmem:[#allocation4 + $0x10] sm:$0xff] %vm4526, %v6405
        %6453 = vst.msk [vmem:[#allocation4 + $0x30] sm:$0xff] %vm4526, %v6407
        %6454 = vst.msk [vmem:[#allocation4 + $0x50] sm:$0xff] %vm4526, %v6409
        %6455 = vst.msk [vmem:[#allocation4 + $0x70] sm:$0xff] %vm4526, %v6411
        %6456 = vst.msk [vmem:[#allocation4 + $0x90] sm:$0xff] %vm4526, %v6413
        %6457 = vst.msk [vmem:[#allocation4 + $0xb0] sm:$0xff] %vm4526, %v6415
        %6458 = vst.msk [vmem:[#allocation4 + $0xd0] sm:$0xff] %vm4526, %v6417
        %6459 = vst.msk [vmem:[#allocation4 + $0xf0] sm:$0xff] %vm4526, %v6419
        %6460 = vst.msk [vmem:[#allocation4 + $0x110] sm:$0xff] %vm4526, %v6421
        %6461 = vst.msk [vmem:[#allocation4 + $0x130] sm:$0xff] %vm4526, %v6423
        %6462 = vst.msk [vmem:[#allocation4 + $0x150] sm:$0xff] %vm4526, %v6425
        %6463 = vst.msk [vmem:[#allocation4 + $0x170] sm:$0xff] %vm4526, %v6427
        %6464 = vst.msk [vmem:[#allocation4 + $0x190] sm:$0xff] %vm4526, %v6429
        %6465 = vst.msk [vmem:[#allocation4 + $0x1b0] sm:$0xff] %vm4526, %v6431
        %6466 = vst.msk [vmem:[#allocation4 + $0x1d0] sm:$0xff] %vm4526, %v6433
        %6467 = vst.msk [vmem:[#allocation4 + $0x1f0] sm:$0xff] %vm4526, %v6435
        %v6468 = vld [vmem:[%s6211 + $0x2] sm:$0xff]
        %v6469 = vld [vmem:[%s6211 + $0xa] sm:$0xff]
        %v6470 = vld [vmem:[%s6211 + $0x1a] sm:$0xff]
        %v6471 = vld [vmem:[%s6211 + $0x22] sm:$0xff]
        %v6472 = vld [vmem:[%s6211 + $0x32] sm:$0xff]
        %v6473 = vld [vmem:[%s6211 + $0x3a] sm:$0xff]
        %v6474 = vld [vmem:[%s6211 + $0x4a] sm:$0xff]
        %v6475 = vld [vmem:[%s6211 + $0x52] sm:$0xff]
        %v6476 = vld [vmem:[%s6211 + $0x62] sm:$0xff]
        %v6477 = vld [vmem:[%s6211 + $0x6a] sm:$0xff]
        %v6478 = vld [vmem:[%s6211 + $0x7a] sm:$0xff]
        %v6479 = vld [vmem:[%s6211 + $0x82] sm:$0xff]
        %v6480 = vld [vmem:[%s6211 + $0x92] sm:$0xff]
        %v6481 = vld [vmem:[%s6211 + $0x9a] sm:$0xff]
        %v6482 = vld [vmem:[%s6211 + $0xaa] sm:$0xff]
        %v6483 = vld [vmem:[%s6211 + $0xb2] sm:$0xff]
        %v6484 = vld [vmem:[%s6211 + $0xc2] sm:$0xff]
        %v6485 = vld [vmem:[%s6211 + $0xca] sm:$0xff]
        %v6486 = vld [vmem:[%s6211 + $0xda] sm:$0xff]
        %v6487 = vld [vmem:[%s6211 + $0xe2] sm:$0xff]
        %v6488 = vld [vmem:[%s6211 + $0xf2] sm:$0xff]
        %v6489 = vld [vmem:[%s6211 + $0xfa] sm:$0xff]
        %v6490 = vld [vmem:[%s6211 + $0x10a] sm:$0xff]
        %v6491 = vld [vmem:[%s6211 + $0x112] sm:$0xff]
        %v6492 = vld [vmem:[%s6211 + $0x122] sm:$0xff]
        %v6493 = vld [vmem:[%s6211 + $0x12a] sm:$0xff]
        %v6494 = vld [vmem:[%s6211 + $0x13a] sm:$0xff]
        %v6495 = vld [vmem:[%s6211 + $0x142] sm:$0xff]
        %v6496 = vld [vmem:[%s6211 + $0x152] sm:$0xff]
        %v6497 = vld [vmem:[%s6211 + $0x15a] sm:$0xff]
        %v6498 = vld [vmem:[%s6211 + $0x16a] sm:$0xff]
        %v6499 = vld [vmem:[%s6211 + $0x172] sm:$0xff]
        %v6500 = vpack.c.bf16 %v6469, %v6468
        %v6501 = vpack.c.bf16 %v6471, %v6470
        %v6502 = vpack.c.bf16 %v6473, %v6472
        %v6503 = vpack.c.bf16 %v6475, %v6474
        %v6504 = vpack.c.bf16 %v6477, %v6476
        %v6505 = vpack.c.bf16 %v6479, %v6478
        %v6506 = vpack.c.bf16 %v6481, %v6480
        %v6507 = vpack.c.bf16 %v6483, %v6482
        %v6508 = vpack.c.bf16 %v6485, %v6484
        %v6509 = vpack.c.bf16 %v6487, %v6486
        %v6510 = vpack.c.bf16 %v6489, %v6488
        %v6511 = vpack.c.bf16 %v6491, %v6490
        %v6512 = vpack.c.bf16 %v6493, %v6492
        %v6513 = vpack.c.bf16 %v6495, %v6494
        %v6514 = vpack.c.bf16 %v6497, %v6496
        %v6515 = vpack.c.bf16 %v6499, %v6498
        %6532 = vrot.lane.b32.xlu0 %v6500, 96
        %v6533 = vpop.permute.xlu0 %6532
        %6534 = vrot.lane.b32.xlu0 %v6501, 96
        %v6535 = vpop.permute.xlu0 %6534
        %6536 = vrot.lane.b32.xlu0 %v6502, 96
        %v6537 = vpop.permute.xlu0 %6536
        %6538 = vrot.lane.b32.xlu0 %v6503, 96
        %v6539 = vpop.permute.xlu0 %6538
        %6540 = vrot.lane.b32.xlu0 %v6504, 96
        %v6541 = vpop.permute.xlu0 %6540
        %6542 = vrot.lane.b32.xlu0 %v6505, 96
        %v6543 = vpop.permute.xlu0 %6542
        %6544 = vrot.lane.b32.xlu0 %v6506, 96
        %v6545 = vpop.permute.xlu0 %6544
        %6546 = vrot.lane.b32.xlu0 %v6507, 96
        %v6547 = vpop.permute.xlu0 %6546
        %6548 = vrot.lane.b32.xlu0 %v6508, 96
        %v6549 = vpop.permute.xlu0 %6548
        %6550 = vrot.lane.b32.xlu0 %v6509, 96
        %v6551 = vpop.permute.xlu0 %6550
        %6552 = vrot.lane.b32.xlu0 %v6510, 96
        %v6553 = vpop.permute.xlu0 %6552
        %6554 = vrot.lane.b32.xlu0 %v6511, 96
        %v6555 = vpop.permute.xlu0 %6554
        %6556 = vrot.lane.b32.xlu0 %v6512, 96
        %v6557 = vpop.permute.xlu0 %6556
        %6558 = vrot.lane.b32.xlu0 %v6513, 96
        %v6559 = vpop.permute.xlu0 %6558
        %6560 = vrot.lane.b32.xlu0 %v6514, 96
        %v6561 = vpop.permute.xlu0 %6560
        %6562 = vrot.lane.b32.xlu0 %v6515, 96
        %v6563 = vpop.permute.xlu0 %6562
        %6580 = vst.msk [vmem:[#allocation4 + $0x10] sm:$0xff] %vm4655, %v6533
        %6581 = vst.msk [vmem:[#allocation4 + $0x30] sm:$0xff] %vm4655, %v6535
        %6582 = vst.msk [vmem:[#allocation4 + $0x50] sm:$0xff] %vm4655, %v6537
        %6583 = vst.msk [vmem:[#allocation4 + $0x70] sm:$0xff] %vm4655, %v6539
        %6584 = vst.msk [vmem:[#allocation4 + $0x90] sm:$0xff] %vm4655, %v6541
        %6585 = vst.msk [vmem:[#allocation4 + $0xb0] sm:$0xff] %vm4655, %v6543
        %6586 = vst.msk [vmem:[#allocation4 + $0xd0] sm:$0xff] %vm4655, %v6545
        %6587 = vst.msk [vmem:[#allocation4 + $0xf0] sm:$0xff] %vm4655, %v6547
        %6588 = vst.msk [vmem:[#allocation4 + $0x110] sm:$0xff] %vm4655, %v6549
        %6589 = vst.msk [vmem:[#allocation4 + $0x130] sm:$0xff] %vm4655, %v6551
        %6590 = vst.msk [vmem:[#allocation4 + $0x150] sm:$0xff] %vm4655, %v6553
        %6591 = vst.msk [vmem:[#allocation4 + $0x170] sm:$0xff] %vm4655, %v6555
        %6592 = vst.msk [vmem:[#allocation4 + $0x190] sm:$0xff] %vm4655, %v6557
        %6593 = vst.msk [vmem:[#allocation4 + $0x1b0] sm:$0xff] %vm4655, %v6559
        %6594 = vst.msk [vmem:[#allocation4 + $0x1d0] sm:$0xff] %vm4655, %v6561
        %6595 = vst.msk [vmem:[#allocation4 + $0x1f0] sm:$0xff] %vm4655, %v6563
        %v6596 = vld [vmem:[%s6211 + $0x3] sm:$0xff]
        %v6597 = vld [vmem:[%s6211 + $0xb] sm:$0xff]
        %v6598 = vld [vmem:[%s6211 + $0x1b] sm:$0xff]
        %v6599 = vld [vmem:[%s6211 + $0x23] sm:$0xff]
        %v6600 = vld [vmem:[%s6211 + $0x33] sm:$0xff]
        %v6601 = vld [vmem:[%s6211 + $0x3b] sm:$0xff]
        %v6602 = vld [vmem:[%s6211 + $0x4b] sm:$0xff]
        %v6603 = vld [vmem:[%s6211 + $0x53] sm:$0xff]
        %v6604 = vld [vmem:[%s6211 + $0x63] sm:$0xff]
        %v6605 = vld [vmem:[%s6211 + $0x6b] sm:$0xff]
        %v6606 = vld [vmem:[%s6211 + $0x7b] sm:$0xff]
        %v6607 = vld [vmem:[%s6211 + $0x83] sm:$0xff]
        %v6608 = vld [vmem:[%s6211 + $0x93] sm:$0xff]
        %v6609 = vld [vmem:[%s6211 + $0x9b] sm:$0xff]
        %v6610 = vld [vmem:[%s6211 + $0xab] sm:$0xff]
        %v6611 = vld [vmem:[%s6211 + $0xb3] sm:$0xff]
        %v6612 = vld [vmem:[%s6211 + $0xc3] sm:$0xff]
        %v6613 = vld [vmem:[%s6211 + $0xcb] sm:$0xff]
        %v6614 = vld [vmem:[%s6211 + $0xdb] sm:$0xff]
        %v6615 = vld [vmem:[%s6211 + $0xe3] sm:$0xff]
        %v6616 = vld [vmem:[%s6211 + $0xf3] sm:$0xff]
        %v6617 = vld [vmem:[%s6211 + $0xfb] sm:$0xff]
        %v6618 = vld [vmem:[%s6211 + $0x10b] sm:$0xff]
        %v6619 = vld [vmem:[%s6211 + $0x113] sm:$0xff]
        %v6620 = vld [vmem:[%s6211 + $0x123] sm:$0xff]
        %v6621 = vld [vmem:[%s6211 + $0x12b] sm:$0xff]
        %v6622 = vld [vmem:[%s6211 + $0x13b] sm:$0xff]
        %v6623 = vld [vmem:[%s6211 + $0x143] sm:$0xff]
        %v6624 = vld [vmem:[%s6211 + $0x153] sm:$0xff]
        %v6625 = vld [vmem:[%s6211 + $0x15b] sm:$0xff]
        %v6626 = vld [vmem:[%s6211 + $0x16b] sm:$0xff]
        %v6627 = vld [vmem:[%s6211 + $0x173] sm:$0xff]
        %v6628 = vpack.c.bf16 %v6597, %v6596
        %v6629 = vpack.c.bf16 %v6599, %v6598
        %v6630 = vpack.c.bf16 %v6601, %v6600
        %v6631 = vpack.c.bf16 %v6603, %v6602
        %v6632 = vpack.c.bf16 %v6605, %v6604
        %v6633 = vpack.c.bf16 %v6607, %v6606
        %v6634 = vpack.c.bf16 %v6609, %v6608
        %v6635 = vpack.c.bf16 %v6611, %v6610
        %v6636 = vpack.c.bf16 %v6613, %v6612
        %v6637 = vpack.c.bf16 %v6615, %v6614
        %v6638 = vpack.c.bf16 %v6617, %v6616
        %v6639 = vpack.c.bf16 %v6619, %v6618
        %v6640 = vpack.c.bf16 %v6621, %v6620
        %v6641 = vpack.c.bf16 %v6623, %v6622
        %v6642 = vpack.c.bf16 %v6625, %v6624
        %v6643 = vpack.c.bf16 %v6627, %v6626
        %6660 = vrot.lane.b32.xlu0 %v6628, 112
        %v6661 = vpop.permute.xlu0 %6660
        %6662 = vrot.lane.b32.xlu0 %v6629, 112
        %v6663 = vpop.permute.xlu0 %6662
        %6664 = vrot.lane.b32.xlu0 %v6630, 112
        %v6665 = vpop.permute.xlu0 %6664
        %6666 = vrot.lane.b32.xlu0 %v6631, 112
        %v6667 = vpop.permute.xlu0 %6666
        %6668 = vrot.lane.b32.xlu0 %v6632, 112
        %v6669 = vpop.permute.xlu0 %6668
        %6670 = vrot.lane.b32.xlu0 %v6633, 112
        %v6671 = vpop.permute.xlu0 %6670
        %6672 = vrot.lane.b32.xlu0 %v6634, 112
        %v6673 = vpop.permute.xlu0 %6672
        %6674 = vrot.lane.b32.xlu0 %v6635, 112
        %v6675 = vpop.permute.xlu0 %6674
        %6676 = vrot.lane.b32.xlu0 %v6636, 112
        %v6677 = vpop.permute.xlu0 %6676
        %6678 = vrot.lane.b32.xlu0 %v6637, 112
        %v6679 = vpop.permute.xlu0 %6678
        %6680 = vrot.lane.b32.xlu0 %v6638, 112
        %v6681 = vpop.permute.xlu0 %6680
        %6682 = vrot.lane.b32.xlu0 %v6639, 112
        %v6683 = vpop.permute.xlu0 %6682
        %6684 = vrot.lane.b32.xlu0 %v6640, 112
        %v6685 = vpop.permute.xlu0 %6684
        %6686 = vrot.lane.b32.xlu0 %v6641, 112
        %v6687 = vpop.permute.xlu0 %6686
        %6688 = vrot.lane.b32.xlu0 %v6642, 112
        %v6689 = vpop.permute.xlu0 %6688
        %6690 = vrot.lane.b32.xlu0 %v6643, 112
        %v6691 = vpop.permute.xlu0 %6690
        %6708 = vst.msk [vmem:[#allocation4 + $0x10] sm:$0xff] %vm4784, %v6661
        %6709 = vst.msk [vmem:[#allocation4 + $0x30] sm:$0xff] %vm4784, %v6663
        %6710 = vst.msk [vmem:[#allocation4 + $0x50] sm:$0xff] %vm4784, %v6665
        %6711 = vst.msk [vmem:[#allocation4 + $0x70] sm:$0xff] %vm4784, %v6667
        %6712 = vst.msk [vmem:[#allocation4 + $0x90] sm:$0xff] %vm4784, %v6669
        %6713 = vst.msk [vmem:[#allocation4 + $0xb0] sm:$0xff] %vm4784, %v6671
        %6714 = vst.msk [vmem:[#allocation4 + $0xd0] sm:$0xff] %vm4784, %v6673
        %6715 = vst.msk [vmem:[#allocation4 + $0xf0] sm:$0xff] %vm4784, %v6675
        %6716 = vst.msk [vmem:[#allocation4 + $0x110] sm:$0xff] %vm4784, %v6677
        %6717 = vst.msk [vmem:[#allocation4 + $0x130] sm:$0xff] %vm4784, %v6679
        %6718 = vst.msk [vmem:[#allocation4 + $0x150] sm:$0xff] %vm4784, %v6681
        %6719 = vst.msk [vmem:[#allocation4 + $0x170] sm:$0xff] %vm4784, %v6683
        %6720 = vst.msk [vmem:[#allocation4 + $0x190] sm:$0xff] %vm4784, %v6685
        %6721 = vst.msk [vmem:[#allocation4 + $0x1b0] sm:$0xff] %vm4784, %v6687
        %6722 = vst.msk [vmem:[#allocation4 + $0x1d0] sm:$0xff] %vm4784, %v6689
        %6723 = vst.msk [vmem:[#allocation4 + $0x1f0] sm:$0xff] %vm4784, %v6691
        %v6724 = vld [vmem:[%s6211 + $0x4] sm:$0xff]
        %v6725 = vld [vmem:[%s6211 + $0xc] sm:$0xff]
        %v6726 = vld [vmem:[%s6211 + $0x1c] sm:$0xff]
        %v6727 = vld [vmem:[%s6211 + $0x24] sm:$0xff]
        %v6728 = vld [vmem:[%s6211 + $0x34] sm:$0xff]
        %v6729 = vld [vmem:[%s6211 + $0x3c] sm:$0xff]
        %v6730 = vld [vmem:[%s6211 + $0x4c] sm:$0xff]
        %v6731 = vld [vmem:[%s6211 + $0x54] sm:$0xff]
        %v6732 = vld [vmem:[%s6211 + $0x64] sm:$0xff]
        %v6733 = vld [vmem:[%s6211 + $0x6c] sm:$0xff]
        %v6734 = vld [vmem:[%s6211 + $0x7c] sm:$0xff]
        %v6735 = vld [vmem:[%s6211 + $0x84] sm:$0xff]
        %v6736 = vld [vmem:[%s6211 + $0x94] sm:$0xff]
        %v6737 = vld [vmem:[%s6211 + $0x9c] sm:$0xff]
        %v6738 = vld [vmem:[%s6211 + $0xac] sm:$0xff]
        %v6739 = vld [vmem:[%s6211 + $0xb4] sm:$0xff]
        %v6740 = vld [vmem:[%s6211 + $0xc4] sm:$0xff]
        %v6741 = vld [vmem:[%s6211 + $0xcc] sm:$0xff]
        %v6742 = vld [vmem:[%s6211 + $0xdc] sm:$0xff]
        %v6743 = vld [vmem:[%s6211 + $0xe4] sm:$0xff]
        %v6744 = vld [vmem:[%s6211 + $0xf4] sm:$0xff]
        %v6745 = vld [vmem:[%s6211 + $0xfc] sm:$0xff]
        %v6746 = vld [vmem:[%s6211 + $0x10c] sm:$0xff]
        %v6747 = vld [vmem:[%s6211 + $0x114] sm:$0xff]
        %v6748 = vld [vmem:[%s6211 + $0x124] sm:$0xff]
        %v6749 = vld [vmem:[%s6211 + $0x12c] sm:$0xff]
        %v6750 = vld [vmem:[%s6211 + $0x13c] sm:$0xff]
        %v6751 = vld [vmem:[%s6211 + $0x144] sm:$0xff]
        %v6752 = vld [vmem:[%s6211 + $0x154] sm:$0xff]
        %v6753 = vld [vmem:[%s6211 + $0x15c] sm:$0xff]
        %v6754 = vld [vmem:[%s6211 + $0x16c] sm:$0xff]
        %v6755 = vld [vmem:[%s6211 + $0x174] sm:$0xff]
        %v6756 = vpack.c.bf16 %v6725, %v6724
        %v6757 = vpack.c.bf16 %v6727, %v6726
        %v6758 = vpack.c.bf16 %v6729, %v6728
        %v6759 = vpack.c.bf16 %v6731, %v6730
        %v6760 = vpack.c.bf16 %v6733, %v6732
        %v6761 = vpack.c.bf16 %v6735, %v6734
        %v6762 = vpack.c.bf16 %v6737, %v6736
        %v6763 = vpack.c.bf16 %v6739, %v6738
        %v6764 = vpack.c.bf16 %v6741, %v6740
        %v6765 = vpack.c.bf16 %v6743, %v6742
        %v6766 = vpack.c.bf16 %v6745, %v6744
        %v6767 = vpack.c.bf16 %v6747, %v6746
        %v6768 = vpack.c.bf16 %v6749, %v6748
        %v6769 = vpack.c.bf16 %v6751, %v6750
        %v6770 = vpack.c.bf16 %v6753, %v6752
        %v6771 = vpack.c.bf16 %v6755, %v6754
        %6772 = vst.msk [vmem:[#allocation4 + $0x18] sm:$0xff] %vm3752, %v6756
        %6773 = vst.msk [vmem:[#allocation4 + $0x38] sm:$0xff] %vm3752, %v6757
        %6774 = vst.msk [vmem:[#allocation4 + $0x58] sm:$0xff] %vm3752, %v6758
        %6775 = vst.msk [vmem:[#allocation4 + $0x78] sm:$0xff] %vm3752, %v6759
        %6776 = vst.msk [vmem:[#allocation4 + $0x98] sm:$0xff] %vm3752, %v6760
        %6777 = vst.msk [vmem:[#allocation4 + $0xb8] sm:$0xff] %vm3752, %v6761
        %6778 = vst.msk [vmem:[#allocation4 + $0xd8] sm:$0xff] %vm3752, %v6762
        %6779 = vst.msk [vmem:[#allocation4 + $0xf8] sm:$0xff] %vm3752, %v6763
        %6780 = vst.msk [vmem:[#allocation4 + $0x118] sm:$0xff] %vm3752, %v6764
        %6781 = vst.msk [vmem:[#allocation4 + $0x138] sm:$0xff] %vm3752, %v6765
        %6782 = vst.msk [vmem:[#allocation4 + $0x158] sm:$0xff] %vm3752, %v6766
        %6783 = vst.msk [vmem:[#allocation4 + $0x178] sm:$0xff] %vm3752, %v6767
        %6784 = vst.msk [vmem:[#allocation4 + $0x198] sm:$0xff] %vm3752, %v6768
        %6785 = vst.msk [vmem:[#allocation4 + $0x1b8] sm:$0xff] %vm3752, %v6769
        %6786 = vst.msk [vmem:[#allocation4 + $0x1d8] sm:$0xff] %vm3752, %v6770
        %6787 = vst.msk [vmem:[#allocation4 + $0x1f8] sm:$0xff] %vm3752, %v6771
        %v6788 = vld [vmem:[#allocation4] sm:$0xff]
        %v6789 = vld [vmem:[#allocation4 + $0x8] sm:$0xff]
        %v6790 = vld [vmem:[#allocation4 + $0x10] sm:$0xff]
        %v6791 = vld [vmem:[#allocation4 + $0x18] sm:$0xff]
        %v6792 = vld [vmem:[#allocation4 + $0x20] sm:$0xff]
        %v6793 = vld [vmem:[#allocation4 + $0x28] sm:$0xff]
        %v6794 = vld [vmem:[#allocation4 + $0x30] sm:$0xff]
        %v6795 = vld [vmem:[#allocation4 + $0x38] sm:$0xff]
        %v6796 = vld [vmem:[#allocation4 + $0x40] sm:$0xff]
        %v6797 = vld [vmem:[#allocation4 + $0x48] sm:$0xff]
        %v6798 = vld [vmem:[#allocation4 + $0x50] sm:$0xff]
        %v6799 = vld [vmem:[#allocation4 + $0x58] sm:$0xff]
        %v6800 = vld [vmem:[#allocation4 + $0x60] sm:$0xff]
        %v6801 = vld [vmem:[#allocation4 + $0x68] sm:$0xff]
        %v6802 = vld [vmem:[#allocation4 + $0x70] sm:$0xff]
        %v6803 = vld [vmem:[#allocation4 + $0x78] sm:$0xff]
        %v6804 = vld [vmem:[#allocation4 + $0x80] sm:$0xff]
        %v6805 = vld [vmem:[#allocation4 + $0x88] sm:$0xff]
        %v6806 = vld [vmem:[#allocation4 + $0x90] sm:$0xff]
        %v6807 = vld [vmem:[#allocation4 + $0x98] sm:$0xff]
        %v6808 = vld [vmem:[#allocation4 + $0xa0] sm:$0xff]
        %v6809 = vld [vmem:[#allocation4 + $0xa8] sm:$0xff]
        %v6810 = vld [vmem:[#allocation4 + $0xb0] sm:$0xff]
        %v6811 = vld [vmem:[#allocation4 + $0xb8] sm:$0xff]
        %v6812 = vld [vmem:[#allocation4 + $0xc0] sm:$0xff]
        %v6813 = vld [vmem:[#allocation4 + $0xc8] sm:$0xff]
        %v6814 = vld [vmem:[#allocation4 + $0xd0] sm:$0xff]
        %v6815 = vld [vmem:[#allocation4 + $0xd8] sm:$0xff]
        %v6816 = vld [vmem:[#allocation4 + $0xe0] sm:$0xff]
        %v6817 = vld [vmem:[#allocation4 + $0xe8] sm:$0xff]
        %v6818 = vld [vmem:[#allocation4 + $0xf0] sm:$0xff]
        %v6819 = vld [vmem:[#allocation4 + $0xf8] sm:$0xff]
        %v6820 = vld [vmem:[#allocation4 + $0x100] sm:$0xff]
        %v6821 = vld [vmem:[#allocation4 + $0x108] sm:$0xff]
        %v6822 = vld [vmem:[#allocation4 + $0x110] sm:$0xff]
        %v6823 = vld [vmem:[#allocation4 + $0x118] sm:$0xff]
        %v6824 = vld [vmem:[#allocation4 + $0x120] sm:$0xff]
        %v6825 = vld [vmem:[#allocation4 + $0x128] sm:$0xff]
        %v6826 = vld [vmem:[#allocation4 + $0x130] sm:$0xff]
        %v6827 = vld [vmem:[#allocation4 + $0x138] sm:$0xff]
        %v6828 = vld [vmem:[#allocation4 + $0x140] sm:$0xff]
        %v6829 = vld [vmem:[#allocation4 + $0x148] sm:$0xff]
        %v6830 = vld [vmem:[#allocation4 + $0x150] sm:$0xff]
        %v6831 = vld [vmem:[#allocation4 + $0x158] sm:$0xff]
        %v6832 = vld [vmem:[#allocation4 + $0x160] sm:$0xff]
        %v6833 = vld [vmem:[#allocation4 + $0x168] sm:$0xff]
        %v6834 = vld [vmem:[#allocation4 + $0x170] sm:$0xff]
        %v6835 = vld [vmem:[#allocation4 + $0x178] sm:$0xff]
        %v6836 = vld [vmem:[#allocation4 + $0x180] sm:$0xff]
        %v6837 = vld [vmem:[#allocation4 + $0x188] sm:$0xff]
        %v6838 = vld [vmem:[#allocation4 + $0x190] sm:$0xff]
        %v6839 = vld [vmem:[#allocation4 + $0x198] sm:$0xff]
        %v6840 = vld [vmem:[#allocation4 + $0x1a0] sm:$0xff]
        %v6841 = vld [vmem:[#allocation4 + $0x1a8] sm:$0xff]
        %v6842 = vld [vmem:[#allocation4 + $0x1b0] sm:$0xff]
        %v6843 = vld [vmem:[#allocation4 + $0x1b8] sm:$0xff]
        %v6844 = vld [vmem:[#allocation4 + $0x1c0] sm:$0xff]
        %v6845 = vld [vmem:[#allocation4 + $0x1c8] sm:$0xff]
        %v6846 = vld [vmem:[#allocation4 + $0x1d0] sm:$0xff]
        %v6847 = vld [vmem:[#allocation4 + $0x1d8] sm:$0xff]
        %v6848 = vld [vmem:[#allocation4 + $0x1e0] sm:$0xff]
        %v6849 = vld [vmem:[#allocation4 + $0x1e8] sm:$0xff]
        %v6850 = vld [vmem:[#allocation4 + $0x1f0] sm:$0xff]
        %v6851 = vld [vmem:[#allocation4 + $0x1f8] sm:$0xff]
        %v6852 = vld [vmem:[%s4] sm:$0xf]
        %v6853 = vld [vmem:[%s4 + $0x4] sm:$0xf]
        %v6854 = vld [vmem:[%s4 + $0x8] sm:$0xf]
        %v6855 = vld [vmem:[%s4 + $0xc] sm:$0xf]
        %v6856 = vld [vmem:[%s4 + $0x10] sm:$0xf]
        %v6857 = vld [vmem:[%s4 + $0x14] sm:$0xf]
        %v6858 = vld [vmem:[%s4 + $0x18] sm:$0xf]
        %v6859 = vld [vmem:[%s4 + $0x1c] sm:$0xf]
        %v6860 = vld [vmem:[%s4 + $0x20] sm:$0xf]
        %v6861 = vld [vmem:[%s4 + $0x24] sm:$0xf]
        %v6862 = vld [vmem:[%s4 + $0x28] sm:$0xf]
        %v6863 = vld [vmem:[%s4 + $0x2c] sm:$0xf]
        %v6864 = vld [vmem:[%s4 + $0x30] sm:$0xf]
        %v6865 = vld [vmem:[%s4 + $0x34] sm:$0xf]
        %v6866 = vld [vmem:[%s4 + $0x38] sm:$0xf]
        %v6867 = vld [vmem:[%s4 + $0x3c] sm:$0xf]
        %v6868 = vld [vmem:[%s4 + $0x40] sm:$0xf]
        %v6869 = vld [vmem:[%s4 + $0x44] sm:$0xf]
        %v6870 = vld [vmem:[%s4 + $0x48] sm:$0xf]
        %v6871 = vld [vmem:[%s4 + $0x4c] sm:$0xf]
        %v6872 = vld [vmem:[%s4 + $0x50] sm:$0xf]
        %v6873 = vld [vmem:[%s4 + $0x54] sm:$0xf]
        %v6874 = vld [vmem:[%s4 + $0x58] sm:$0xf]
        %v6875 = vld [vmem:[%s4 + $0x5c] sm:$0xf]
        %v6876 = vld [vmem:[%s4 + $0x60] sm:$0xf]
        %v6877 = vld [vmem:[%s4 + $0x64] sm:$0xf]
        %v6878 = vld [vmem:[%s4 + $0x68] sm:$0xf]
        %v6879 = vld [vmem:[%s4 + $0x6c] sm:$0xf]
        %v6880 = vld [vmem:[%s4 + $0x70] sm:$0xf]
        %v6881 = vld [vmem:[%s4 + $0x74] sm:$0xf]
        %v6882 = vld [vmem:[%s4 + $0x78] sm:$0xf]
        %v6883 = vld [vmem:[%s4 + $0x7c] sm:$0xf]
        %v6884 = vld [vmem:[%s4 + $0x80] sm:$0xf]
        %v6885 = vld [vmem:[%s4 + $0x84] sm:$0xf]
        %v6886 = vld [vmem:[%s4 + $0x88] sm:$0xf]
        %v6887 = vld [vmem:[%s4 + $0x8c] sm:$0xf]
        %v6888 = vld [vmem:[%s4 + $0x90] sm:$0xf]
        %v6889 = vld [vmem:[%s4 + $0x94] sm:$0xf]
        %v6890 = vld [vmem:[%s4 + $0x98] sm:$0xf]
        %v6891 = vld [vmem:[%s4 + $0x9c] sm:$0xf]
        %v6892 = vld [vmem:[%s4 + $0xa0] sm:$0xf]
        %v6893 = vld [vmem:[%s4 + $0xa4] sm:$0xf]
        %v6894 = vld [vmem:[%s4 + $0xa8] sm:$0xf]
        %v6895 = vld [vmem:[%s4 + $0xac] sm:$0xf]
        %v6896 = vld [vmem:[%s4 + $0xb0] sm:$0xf]
        %v6897 = vld [vmem:[%s4 + $0xb4] sm:$0xf]
        %v6898 = vld [vmem:[%s4 + $0xb8] sm:$0xf]
        %v6899 = vld [vmem:[%s4 + $0xbc] sm:$0xf]
        %v6900 = vld [vmem:[%s4 + $0xc0] sm:$0xf]
        %v6901 = vld [vmem:[%s4 + $0xc4] sm:$0xf]
        %v6902 = vld [vmem:[%s5] sm:$0x1]
        %v6904 = vlaneseq
        %v6905 = vshrl.u32 %v6904, 7
        %v6906 = vsub.s32 0, %v6905
        %v6907 = vrot.slane %v6902, %v6906
        %v6959 = vunpack.c.l.b16 %v6852
        %v6960 = vunpack.c.l.b16 %v6853
        %v6961 = vunpack.c.l.b16 %v6854
        %v6962 = vunpack.c.l.b16 %v6855
        %v6963 = vunpack.c.l.b16 %v6856
        %v6964 = vunpack.c.l.b16 %v6857
        %v6965 = vunpack.c.l.b16 %v6858
        %v6966 = vunpack.c.l.b16 %v6859
        %v6967 = vunpack.c.l.b16 %v6860
        %v6968 = vunpack.c.l.b16 %v6861
        %v6969 = vunpack.c.l.b16 %v6862
        %v6970 = vunpack.c.l.b16 %v6863
        %v6971 = vunpack.c.l.b16 %v6864
        %v6972 = vunpack.c.l.b16 %v6865
        %v6973 = vunpack.c.l.b16 %v6866
        %v6974 = vunpack.c.l.b16 %v6867
        %v6975 = vunpack.c.l.b16 %v6868
        %v6976 = vunpack.c.l.b16 %v6869
        %v6977 = vunpack.c.l.b16 %v6870
        %v6978 = vunpack.c.l.b16 %v6871
        %v6979 = vunpack.c.l.b16 %v6872
        %v6980 = vunpack.c.l.b16 %v6873
        %v6981 = vunpack.c.l.b16 %v6874
        %v6982 = vunpack.c.l.b16 %v6875
        %v6983 = vunpack.c.l.b16 %v6876
        %v6984 = vunpack.c.l.b16 %v6877
        %v6985 = vunpack.c.l.b16 %v6878
        %v6986 = vunpack.c.l.b16 %v6879
        %v6987 = vunpack.c.l.b16 %v6880
        %v6988 = vunpack.c.l.b16 %v6881
        %v6989 = vunpack.c.l.b16 %v6882
        %v6990 = vunpack.c.l.b16 %v6883
        %v6991 = vunpack.c.l.b16 %v6884
        %v6992 = vunpack.c.l.b16 %v6885
        %v6993 = vunpack.c.l.b16 %v6886
        %v6994 = vunpack.c.l.b16 %v6887
        %v6995 = vunpack.c.l.b16 %v6888
        %v6996 = vunpack.c.l.b16 %v6889
        %v6997 = vunpack.c.l.b16 %v6890
        %v6998 = vunpack.c.l.b16 %v6891
        %v6999 = vunpack.c.l.b16 %v6892
        %v7000 = vunpack.c.l.b16 %v6893
        %v7001 = vunpack.c.l.b16 %v6894
        %v7002 = vunpack.c.l.b16 %v6895
        %v7003 = vunpack.c.l.b16 %v6896
        %v7004 = vunpack.c.l.b16 %v6897
        %v7005 = vunpack.c.l.b16 %v6898
        %v7006 = vunpack.c.l.b16 %v6899
        %v7007 = vunpack.c.l.b16 %v6900
        %v7008 = vunpack.c.l.b16 %v6901
        %v7009 = vpack.c.b16 %v6960, %v6959
        %v7010 = vpack.c.b16 %v6962, %v6961
        %v7011 = vpack.c.b16 %v6964, %v6963
        %v7012 = vpack.c.b16 %v6966, %v6965
        %v7013 = vpack.c.b16 %v6968, %v6967
        %v7014 = vpack.c.b16 %v6970, %v6969
        %v7015 = vpack.c.b16 %v6972, %v6971
        %v7016 = vpack.c.b16 %v6974, %v6973
        %v7017 = vpack.c.b16 %v6976, %v6975
        %v7018 = vpack.c.b16 %v6978, %v6977
        %v7019 = vpack.c.b16 %v6980, %v6979
        %v7020 = vpack.c.b16 %v6982, %v6981
        %v7021 = vpack.c.b16 %v6984, %v6983
        %v7022 = vpack.c.b16 %v6986, %v6985
        %v7023 = vpack.c.b16 %v6988, %v6987
        %v7024 = vpack.c.b16 %v6990, %v6989
        %v7025 = vpack.c.b16 %v6992, %v6991
        %v7026 = vpack.c.b16 %v6994, %v6993
        %v7027 = vpack.c.b16 %v6996, %v6995
        %v7028 = vpack.c.b16 %v6998, %v6997
        %v7029 = vpack.c.b16 %v7000, %v6999
        %v7030 = vpack.c.b16 %v7002, %v7001
        %v7031 = vpack.c.b16 %v7004, %v7003
        %v7032 = vpack.c.b16 %v7006, %v7005
        %v7033 = vpack.c.b16 %v7008, %v7007
        %v7060 = vsel %vm3752, %v6791, 0
        %v7063 = vsel %vm3752, %v6795, 0
        %v7066 = vsel %vm3752, %v6799, 0
        %v7069 = vsel %vm3752, %v6803, 0
        %v7072 = vsel %vm3752, %v6807, 0
        %v7075 = vsel %vm3752, %v6811, 0
        %v7078 = vsel %vm3752, %v6815, 0
        %v7081 = vsel %vm3752, %v6819, 0
        %v7084 = vsel %vm3752, %v6823, 0
        %v7087 = vsel %vm3752, %v6827, 0
        %v7090 = vsel %vm3752, %v6831, 0
        %v7093 = vsel %vm3752, %v6835, 0
        %v7096 = vsel %vm3752, %v6839, 0
        %v7099 = vsel %vm3752, %v6843, 0
        %v7102 = vsel %vm3752, %v6847, 0
        %v7105 = vsel %vm3752, %v6851, 0
        %7107 = vmatprep.subr.bf16.mxu0 0
        %7108 = vmatpush1.bf16.msra.mxu0 %v7009
        %7109 = vmatprep.subr.bf16.mxu0 0
        %7110 = vmatpush1.bf16.msra.mxu0 %v7010
        %7111 = vmatprep.subr.bf16.mxu0 0
        %7112 = vmatpush1.bf16.msra.mxu0 %v7011
        %7113 = vmatprep.subr.bf16.mxu0 0
        %7114 = vmatpush1.bf16.msra.mxu0 %v7012
        %7115 = vmatprep.subr.bf16.mxu0 0
        %7116 = vmatpush1.bf16.msra.mxu0 %v7013
        %7117 = vmatprep.subr.bf16.mxu0 0
        %7118 = vmatpush1.bf16.msra.mxu0 %v7014
        %7119 = vmatprep.subr.bf16.mxu0 0
        %7120 = vmatpush1.bf16.msra.mxu0 %v7015
        %7121 = vmatprep.subr.bf16.mxu0 0
        %7122 = vmatpush1.bf16.msra.mxu0 %v7016
        %7123 = vmatprep.subr.bf16.mxu0 0
        %7124 = vmatpush1.bf16.msra.mxu0 %v7017
        %7125 = vmatprep.subr.bf16.mxu0 0
        %7126 = vmatpush1.bf16.msra.mxu0 %v7018
        %7127 = vmatprep.subr.bf16.mxu0 0
        %7128 = vmatpush1.bf16.msra.mxu0 %v7019
        %7129 = vmatprep.subr.bf16.mxu0 0
        %7130 = vmatpush1.bf16.msra.mxu0 %v7020
        %7131 = vmatprep.subr.bf16.mxu0 0
        %7132 = vmatpush1.bf16.msra.mxu0 %v7021
        %7133 = vmatprep.subr.bf16.mxu0 0
        %7134 = vmatpush1.bf16.msra.mxu0 %v7022
        %7135 = vmatprep.subr.bf16.mxu0 0
        %7136 = vmatpush1.bf16.msra.mxu0 %v7023
        %7137 = vmatprep.subr.bf16.mxu0 0
        %7138 = vmatpush1.bf16.msra.mxu0 %v7024
        %7139 = vmatprep.mubr.bf16.mxu0 %v6789
        %7140 = vmatmul.mubr.bf16.gmra.mrb[0].mxu0 %v6788
        %v7141 = vpop.f32.mrb[0].mxu0
        %v7142 = vadd.f32 %v6907, %v7141
        %v7143 = vpop.f32.mrb[0].mxu0
        %v7144 = vpop.f32.mrb[0].mxu0
        %v7145 = vadd.f32 %v6907, %v7144
        %v7146 = vpop.f32.mrb[0].mxu0
        %7147 = vmatprep.mubr.bf16.mxu0 %v6793
        %7148 = vmatmul.mubr.bf16.gmra.mrb[0].mxu0 %v6792
        %v7149 = vpop.f32.mrb[0].mxu0
        %v7150 = vadd.f32 %v6907, %v7149
        %v7151 = vpop.f32.mrb[0].mxu0
        %v7152 = vpop.f32.mrb[0].mxu0
        %v7153 = vadd.f32 %v6907, %v7152
        %v7154 = vpop.f32.mrb[0].mxu0
        %7155 = vmatprep.mubr.bf16.mxu0 %v6797
        %7156 = vmatmul.mubr.bf16.gmra.mrb[0].mxu0 %v6796
        %v7157 = vpop.f32.mrb[0].mxu0
        %v7158 = vadd.f32 %v6907, %v7157
        %v7159 = vpop.f32.mrb[0].mxu0
        %v7160 = vpop.f32.mrb[0].mxu0
        %v7161 = vadd.f32 %v6907, %v7160
        %v7162 = vpop.f32.mrb[0].mxu0
        %7163 = vmatprep.mubr.bf16.mxu0 %v6801
        %7164 = vmatmul.mubr.bf16.gmra.mrb[0].mxu0 %v6800
        %v7165 = vpop.f32.mrb[0].mxu0
        %v7166 = vadd.f32 %v6907, %v7165
        %v7167 = vpop.f32.mrb[0].mxu0
        %v7168 = vpop.f32.mrb[0].mxu0
        %v7169 = vadd.f32 %v6907, %v7168
        %v7170 = vpop.f32.mrb[0].mxu0
        %7171 = vmatprep.mubr.bf16.mxu0 %v6805
        %7172 = vmatmul.mubr.bf16.gmra.mrb[0].mxu0 %v6804
        %v7173 = vpop.f32.mrb[0].mxu0
        %v7174 = vadd.f32 %v6907, %v7173
        %v7175 = vpop.f32.mrb[0].mxu0
        %v7176 = vpop.f32.mrb[0].mxu0
        %v7177 = vadd.f32 %v6907, %v7176
        %v7178 = vpop.f32.mrb[0].mxu0
        %7179 = vmatprep.mubr.bf16.mxu0 %v6809
        %7180 = vmatmul.mubr.bf16.gmra.mrb[0].mxu0 %v6808
        %v7181 = vpop.f32.mrb[0].mxu0
        %v7182 = vadd.f32 %v6907, %v7181
        %v7183 = vpop.f32.mrb[0].mxu0
        %v7184 = vpop.f32.mrb[0].mxu0
        %v7185 = vadd.f32 %v6907, %v7184
        %v7186 = vpop.f32.mrb[0].mxu0
        %7187 = vmatprep.mubr.bf16.mxu0 %v6813
        %7188 = vmatmul.mubr.bf16.gmra.mrb[0].mxu0 %v6812
        %v7189 = vpop.f32.mrb[0].mxu0
        %v7190 = vadd.f32 %v6907, %v7189
        %v7191 = vpop.f32.mrb[0].mxu0
        %v7192 = vpop.f32.mrb[0].mxu0
        %v7193 = vadd.f32 %v6907, %v7192
        %v7194 = vpop.f32.mrb[0].mxu0
        %7195 = vmatprep.mubr.bf16.mxu0 %v6817
        %7196 = vmatmul.mubr.bf16.gmra.mrb[0].mxu0 %v6816
        %v7197 = vpop.f32.mrb[0].mxu0
        %v7198 = vadd.f32 %v6907, %v7197
        %v7199 = vpop.f32.mrb[0].mxu0
        %v7200 = vpop.f32.mrb[0].mxu0
        %v7201 = vadd.f32 %v6907, %v7200
        %v7202 = vpop.f32.mrb[0].mxu0
        %7203 = vmatprep.mubr.bf16.mxu0 %v6821
        %7204 = vmatmul.mubr.bf16.gmra.mrb[0].mxu0 %v6820
        %v7205 = vpop.f32.mrb[0].mxu0
        %v7206 = vadd.f32 %v6907, %v7205
        %v7207 = vpop.f32.mrb[0].mxu0
        %v7208 = vpop.f32.mrb[0].mxu0
        %v7209 = vadd.f32 %v6907, %v7208
        %v7210 = vpop.f32.mrb[0].mxu0
        %7211 = vmatprep.mubr.bf16.mxu0 %v6825
        %7212 = vmatmul.mubr.bf16.gmra.mrb[0].mxu0 %v6824
        %v7213 = vpop.f32.mrb[0].mxu0
        %v7214 = vadd.f32 %v6907, %v7213
        %v7215 = vpop.f32.mrb[0].mxu0
        %v7216 = vpop.f32.mrb[0].mxu0
        %v7217 = vadd.f32 %v6907, %v7216
        %v7218 = vpop.f32.mrb[0].mxu0
        %7219 = vmatprep.mubr.bf16.mxu0 %v6829
        %7220 = vmatmul.mubr.bf16.gmra.mrb[0].mxu0 %v6828
        %v7221 = vpop.f32.mrb[0].mxu0
        %v7222 = vadd.f32 %v6907, %v7221
        %v7223 = vpop.f32.mrb[0].mxu0
        %v7224 = vpop.f32.mrb[0].mxu0
        %v7225 = vadd.f32 %v6907, %v7224
        %v7226 = vpop.f32.mrb[0].mxu0
        %7227 = vmatprep.mubr.bf16.mxu0 %v6833
        %7228 = vmatmul.mubr.bf16.gmra.mrb[0].mxu0 %v6832
        %v7229 = vpop.f32.mrb[0].mxu0
        %v7230 = vadd.f32 %v6907, %v7229
        %v7231 = vpop.f32.mrb[0].mxu0
        %v7232 = vpop.f32.mrb[0].mxu0
        %v7233 = vadd.f32 %v6907, %v7232
        %v7234 = vpop.f32.mrb[0].mxu0
        %7235 = vmatprep.mubr.bf16.mxu0 %v6837
        %7236 = vmatmul.mubr.bf16.gmra.mrb[0].mxu0 %v6836
        %v7237 = vpop.f32.mrb[0].mxu0
        %v7238 = vadd.f32 %v6907, %v7237
        %v7239 = vpop.f32.mrb[0].mxu0
        %v7240 = vpop.f32.mrb[0].mxu0
        %v7241 = vadd.f32 %v6907, %v7240
        %v7242 = vpop.f32.mrb[0].mxu0
        %7243 = vmatprep.mubr.bf16.mxu0 %v6841
        %7244 = vmatmul.mubr.bf16.gmra.mrb[0].mxu0 %v6840
        %v7245 = vpop.f32.mrb[0].mxu0
        %v7246 = vadd.f32 %v6907, %v7245
        %v7247 = vpop.f32.mrb[0].mxu0
        %v7248 = vpop.f32.mrb[0].mxu0
        %v7249 = vadd.f32 %v6907, %v7248
        %v7250 = vpop.f32.mrb[0].mxu0
        %7251 = vmatprep.mubr.bf16.mxu0 %v6845
        %7252 = vmatmul.mubr.bf16.gmra.mrb[0].mxu0 %v6844
        %v7253 = vpop.f32.mrb[0].mxu0
        %v7254 = vadd.f32 %v6907, %v7253
        %v7255 = vpop.f32.mrb[0].mxu0
        %v7256 = vpop.f32.mrb[0].mxu0
        %v7257 = vadd.f32 %v6907, %v7256
        %v7258 = vpop.f32.mrb[0].mxu0
        %7259 = vmatprep.mubr.bf16.mxu0 %v6849
        %7260 = vmatmul.mubr.bf16.gmra.mrb[0].mxu0 %v6848
        %v7261 = vpop.f32.mrb[0].mxu0
        %v7262 = vadd.f32 %v6907, %v7261
        %v7263 = vpop.f32.mrb[0].mxu0
        %v7264 = vpop.f32.mrb[0].mxu0
        %v7265 = vadd.f32 %v6907, %v7264
        %v7266 = vpop.f32.mrb[0].mxu0
        %7267 = vdwg.mxu0
        %7268 = vmatprep.subr.bf16.mxu0 0
        %7269 = vmatpush1.bf16.msra.mxu0 %v7025
        %7270 = vmatprep.subr.bf16.mxu0 0
        %7271 = vmatpush1.bf16.msra.mxu0 %v7026
        %7272 = vmatprep.subr.bf16.mxu0 0
        %7273 = vmatpush1.bf16.msra.mxu0 %v7027
        %7274 = vmatprep.subr.bf16.mxu0 0
        %7275 = vmatpush1.bf16.msra.mxu0 %v7028
        %7276 = vmatprep.subr.bf16.mxu0 0
        %7277 = vmatpush1.bf16.msra.mxu0 %v7029
        %7278 = vmatprep.subr.bf16.mxu0 0
        %7279 = vmatpush1.bf16.msra.mxu0 %v7030
        %7280 = vmatprep.subr.bf16.mxu0 0
        %7281 = vmatpush1.bf16.msra.mxu0 %v7031
        %7282 = vmatprep.subr.bf16.mxu0 0
        %7283 = vmatpush1.bf16.msra.mxu0 %v7032
        %7284 = vmatprep.subr.bf16.mxu0 0
        %7285 = vmatpush1.bf16.msra.mxu0 %v7033
        %7286 = vmatprep.subr.bf16.mxu0 0
        %7287 = vmatpush1.bf16.msra.mxu0 0
        %7288 = vmatprep.subr.bf16.mxu0 0
        %7289 = vmatpush1.bf16.msra.mxu0 0
        %7290 = vmatprep.subr.bf16.mxu0 0
        %7291 = vmatpush1.bf16.msra.mxu0 0
        %7292 = vmatprep.subr.bf16.mxu0 0
        %7293 = vmatpush1.bf16.msra.mxu0 0
        %7294 = vmatprep.subr.bf16.mxu0 0
        %7295 = vmatpush1.bf16.msra.mxu0 0
        %7296 = vmatprep.subr.bf16.mxu0 0
        %7297 = vmatpush1.bf16.msra.mxu0 0
        %7298 = vmatprep.subr.bf16.mxu0 0
        %7299 = vmatpush1.bf16.msra.mxu0 0
        %7300 = vmatprep.mubr.bf16.mxu0 %v7060
        %7301 = vmatmul.mubr.bf16.gmra.mrb[0].mxu0 %v6790
        %v7302 = vpop.f32.mrb[0].mxu0
        %v7303 = vadd.f32 %v7142, %v7302
        %v7304 = vpop.f32.mrb[0].mxu0
        %v7305 = vpop.f32.mrb[0].mxu0
        %v7306 = vadd.f32 %v7145, %v7305
        %v7307 = vpop.f32.mrb[0].mxu0
        %7308 = vmatprep.mubr.bf16.mxu0 %v7063
        %7309 = vmatmul.mubr.bf16.gmra.mrb[0].mxu0 %v6794
        %v7310 = vpop.f32.mrb[0].mxu0
        %v7311 = vadd.f32 %v7150, %v7310
        %v7312 = vpop.f32.mrb[0].mxu0
        %v7313 = vpop.f32.mrb[0].mxu0
        %v7314 = vadd.f32 %v7153, %v7313
        %v7315 = vpop.f32.mrb[0].mxu0
        %7316 = vmatprep.mubr.bf16.mxu0 %v7066
        %7317 = vmatmul.mubr.bf16.gmra.mrb[0].mxu0 %v6798
        %v7318 = vpop.f32.mrb[0].mxu0
        %v7319 = vadd.f32 %v7158, %v7318
        %v7320 = vpop.f32.mrb[0].mxu0
        %v7321 = vpop.f32.mrb[0].mxu0
        %v7322 = vadd.f32 %v7161, %v7321
        %v7323 = vpop.f32.mrb[0].mxu0
        %7324 = vmatprep.mubr.bf16.mxu0 %v7069
        %7325 = vmatmul.mubr.bf16.gmra.mrb[0].mxu0 %v6802
        %v7326 = vpop.f32.mrb[0].mxu0
        %v7327 = vadd.f32 %v7166, %v7326
        %v7328 = vpop.f32.mrb[0].mxu0
        %v7329 = vpop.f32.mrb[0].mxu0
        %v7330 = vadd.f32 %v7169, %v7329
        %v7331 = vpop.f32.mrb[0].mxu0
        %7332 = vmatprep.mubr.bf16.mxu0 %v7072
        %7333 = vmatmul.mubr.bf16.gmra.mrb[0].mxu0 %v6806
        %v7334 = vpop.f32.mrb[0].mxu0
        %v7335 = vadd.f32 %v7174, %v7334
        %v7336 = vpop.f32.mrb[0].mxu0
        %v7337 = vpop.f32.mrb[0].mxu0
        %v7338 = vadd.f32 %v7177, %v7337
        %v7339 = vpop.f32.mrb[0].mxu0
        %7340 = vmatprep.mubr.bf16.mxu0 %v7075
        %7341 = vmatmul.mubr.bf16.gmra.mrb[0].mxu0 %v6810
        %v7342 = vpop.f32.mrb[0].mxu0
        %v7343 = vadd.f32 %v7182, %v7342
        %v7344 = vpop.f32.mrb[0].mxu0
        %v7345 = vpop.f32.mrb[0].mxu0
        %v7346 = vadd.f32 %v7185, %v7345
        %v7347 = vpop.f32.mrb[0].mxu0
        %7348 = vmatprep.mubr.bf16.mxu0 %v7078
        %7349 = vmatmul.mubr.bf16.gmra.mrb[0].mxu0 %v6814
        %v7350 = vpop.f32.mrb[0].mxu0
        %v7351 = vadd.f32 %v7190, %v7350
        %v7352 = vpop.f32.mrb[0].mxu0
        %v7353 = vpop.f32.mrb[0].mxu0
        %v7354 = vadd.f32 %v7193, %v7353
        %v7355 = vpop.f32.mrb[0].mxu0
        %7356 = vmatprep.mubr.bf16.mxu0 %v7081
        %7357 = vmatmul.mubr.bf16.gmra.mrb[0].mxu0 %v6818
        %v7358 = vpop.f32.mrb[0].mxu0
        %v7359 = vadd.f32 %v7198, %v7358
        %v7360 = vpop.f32.mrb[0].mxu0
        %v7361 = vpop.f32.mrb[0].mxu0
        %v7362 = vadd.f32 %v7201, %v7361
        %v7363 = vpop.f32.mrb[0].mxu0
        %7364 = vmatprep.mubr.bf16.mxu0 %v7084
        %7365 = vmatmul.mubr.bf16.gmra.mrb[0].mxu0 %v6822
        %v7366 = vpop.f32.mrb[0].mxu0
        %v7367 = vadd.f32 %v7206, %v7366
        %v7368 = vpop.f32.mrb[0].mxu0
        %v7369 = vpop.f32.mrb[0].mxu0
        %v7370 = vadd.f32 %v7209, %v7369
        %v7371 = vpop.f32.mrb[0].mxu0
        %7372 = vmatprep.mubr.bf16.mxu0 %v7087
        %7373 = vmatmul.mubr.bf16.gmra.mrb[0].mxu0 %v6826
        %v7374 = vpop.f32.mrb[0].mxu0
        %v7375 = vadd.f32 %v7214, %v7374
        %v7376 = vpop.f32.mrb[0].mxu0
        %v7377 = vpop.f32.mrb[0].mxu0
        %v7378 = vadd.f32 %v7217, %v7377
        %v7379 = vpop.f32.mrb[0].mxu0
        %7380 = vmatprep.mubr.bf16.mxu0 %v7090
        %7381 = vmatmul.mubr.bf16.gmra.mrb[0].mxu0 %v6830
        %v7382 = vpop.f32.mrb[0].mxu0
        %v7383 = vadd.f32 %v7222, %v7382
        %v7384 = vpop.f32.mrb[0].mxu0
        %v7385 = vpop.f32.mrb[0].mxu0
        %v7386 = vadd.f32 %v7225, %v7385
        %v7387 = vpop.f32.mrb[0].mxu0
        %7388 = vmatprep.mubr.bf16.mxu0 %v7093
        %7389 = vmatmul.mubr.bf16.gmra.mrb[0].mxu0 %v6834
        %v7390 = vpop.f32.mrb[0].mxu0
        %v7391 = vadd.f32 %v7230, %v7390
        %v7392 = vpop.f32.mrb[0].mxu0
        %v7393 = vpop.f32.mrb[0].mxu0
        %v7394 = vadd.f32 %v7233, %v7393
        %v7395 = vpop.f32.mrb[0].mxu0
        %7396 = vmatprep.mubr.bf16.mxu0 %v7096
        %7397 = vmatmul.mubr.bf16.gmra.mrb[0].mxu0 %v6838
        %v7398 = vpop.f32.mrb[0].mxu0
        %v7399 = vadd.f32 %v7238, %v7398
        %v7400 = vpop.f32.mrb[0].mxu0
        %v7401 = vpop.f32.mrb[0].mxu0
        %v7402 = vadd.f32 %v7241, %v7401
        %v7403 = vpop.f32.mrb[0].mxu0
        %7404 = vmatprep.mubr.bf16.mxu0 %v7099
        %7405 = vmatmul.mubr.bf16.gmra.mrb[0].mxu0 %v6842
        %v7406 = vpop.f32.mrb[0].mxu0
        %v7407 = vadd.f32 %v7246, %v7406
        %v7408 = vpop.f32.mrb[0].mxu0
        %v7409 = vpop.f32.mrb[0].mxu0
        %v7410 = vadd.f32 %v7249, %v7409
        %v7411 = vpop.f32.mrb[0].mxu0
        %7412 = vmatprep.mubr.bf16.mxu0 %v7102
        %7413 = vmatmul.mubr.bf16.gmra.mrb[0].mxu0 %v6846
        %v7414 = vpop.f32.mrb[0].mxu0
        %v7415 = vadd.f32 %v7254, %v7414
        %v7416 = vpop.f32.mrb[0].mxu0
        %v7417 = vpop.f32.mrb[0].mxu0
        %v7418 = vadd.f32 %v7257, %v7417
        %v7419 = vpop.f32.mrb[0].mxu0
        %7420 = vmatprep.mubr.bf16.mxu0 %v7105
        %7421 = vmatmul.mubr.bf16.gmra.mrb[0].mxu0 %v6850
        %v7422 = vpop.f32.mrb[0].mxu0
        %v7423 = vadd.f32 %v7262, %v7422
        %v7424 = vpop.f32.mrb[0].mxu0
        %v7425 = vpop.f32.mrb[0].mxu0
        %v7426 = vadd.f32 %v7265, %v7425
        %v7427 = vpop.f32.mrb[0].mxu0
        %7428 = vdwg.mxu0
        %v7429 = vmax.f32 %v7303, 0.0
        %v7430 = vmax.f32 %v7306, 0.0
        %v7431 = vmax.f32 %v7311, 0.0
        %v7432 = vmax.f32 %v7314, 0.0
        %v7433 = vmax.f32 %v7319, 0.0
        %v7434 = vmax.f32 %v7322, 0.0
        %v7435 = vmax.f32 %v7327, 0.0
        %v7436 = vmax.f32 %v7330, 0.0
        %v7437 = vmax.f32 %v7335, 0.0
        %v7438 = vmax.f32 %v7338, 0.0
        %v7439 = vmax.f32 %v7343, 0.0
        %v7440 = vmax.f32 %v7346, 0.0
        %v7441 = vmax.f32 %v7351, 0.0
        %v7442 = vmax.f32 %v7354, 0.0
        %v7443 = vmax.f32 %v7359, 0.0
        %v7444 = vmax.f32 %v7362, 0.0
        %v7445 = vmax.f32 %v7367, 0.0
        %v7446 = vmax.f32 %v7370, 0.0
        %v7447 = vmax.f32 %v7375, 0.0
        %v7448 = vmax.f32 %v7378, 0.0
        %v7449 = vmax.f32 %v7383, 0.0
        %v7450 = vmax.f32 %v7386, 0.0
        %v7451 = vmax.f32 %v7391, 0.0
        %v7452 = vmax.f32 %v7394, 0.0
        %v7453 = vmax.f32 %v7399, 0.0
        %v7454 = vmax.f32 %v7402, 0.0
        %v7455 = vmax.f32 %v7407, 0.0
        %v7456 = vmax.f32 %v7410, 0.0
        %v7457 = vmax.f32 %v7415, 0.0
        %v7458 = vmax.f32 %v7418, 0.0
        %v7459 = vmax.f32 %v7423, 0.0
        %v7460 = vmax.f32 %v7426, 0.0
        %v7461 = vld [vmem:[%s1] sm:$0xff]
        %v7462 = vld [vmem:[%s1 + $0x8] sm:$0xff]
        %v7463 = vld [vmem:[%s1 + $0x10] sm:$0xff]
        %v7464 = vld [vmem:[%s1 + $0x18] sm:$0xff]
        %7465 = vmatprep.subr.mxu0 0.0
        %7466 = vmatpush1.msra.mxu0 %v7429
        %7467 = vmatprep.subr.mxu0 0.0
        %7468 = vmatpush1.msra.mxu0 %v7430
        %7469 = vmatprep.subr.mxu0 0.0
        %7470 = vmatpush1.msra.mxu0 %v7431
        %7471 = vmatprep.subr.mxu0 0.0
        %7472 = vmatpush1.msra.mxu0 %v7432
        %7473 = vmatprep.subr.mxu0 0.0
        %7474 = vmatpush1.msra.mxu0 %v7433
        %7475 = vmatprep.subr.mxu0 0.0
        %7476 = vmatpush1.msra.mxu0 %v7434
        %7477 = vmatprep.subr.mxu0 0.0
        %7478 = vmatpush1.msra.mxu0 %v7435
        %7479 = vmatprep.subr.mxu0 0.0
        %7480 = vmatpush1.msra.mxu0 %v7436
        %7481 = vmatprep.subr.mxu0 0.0
        %7482 = vmatpush1.msra.mxu0 %v7437
        %7483 = vmatprep.subr.mxu0 0.0
        %7484 = vmatpush1.msra.mxu0 %v7438
        %7485 = vmatprep.subr.mxu0 0.0
        %7486 = vmatpush1.msra.mxu0 %v7439
        %7487 = vmatprep.subr.mxu0 0.0
        %7488 = vmatpush1.msra.mxu0 %v7440
        %7489 = vmatprep.subr.mxu0 0.0
        %7490 = vmatpush1.msra.mxu0 %v7441
        %7491 = vmatprep.subr.mxu0 0.0
        %7492 = vmatpush1.msra.mxu0 %v7442
        %7493 = vmatprep.subr.mxu0 0.0
        %7494 = vmatpush1.msra.mxu0 %v7443
        %7495 = vmatprep.subr.mxu0 0.0
        %7496 = vmatpush1.msra.mxu0 %v7444
        %7497 = vmatprep.subr.mxu0 0.0
        %7498 = vmatpush1.msra.mxu0 %v7445
        %7499 = vmatprep.subr.mxu0 0.0
        %7500 = vmatpush1.msra.mxu0 %v7446
        %7501 = vmatprep.subr.mxu0 0.0
        %7502 = vmatpush1.msra.mxu0 %v7447
        %7503 = vmatprep.subr.mxu0 0.0
        %7504 = vmatpush1.msra.mxu0 %v7448
        %7505 = vmatprep.subr.mxu0 0.0
        %7506 = vmatpush1.msra.mxu0 %v7449
        %7507 = vmatprep.subr.mxu0 0.0
        %7508 = vmatpush1.msra.mxu0 %v7450
        %7509 = vmatprep.subr.mxu0 0.0
        %7510 = vmatpush1.msra.mxu0 %v7451
        %7511 = vmatprep.subr.mxu0 0.0
        %7512 = vmatpush1.msra.mxu0 %v7452
        %7513 = vmatprep.subr.mxu0 0.0
        %7514 = vmatpush1.msra.mxu0 %v7453
        %7515 = vmatprep.subr.mxu0 0.0
        %7516 = vmatpush1.msra.mxu0 %v7454
        %7517 = vmatprep.subr.mxu0 0.0
        %7518 = vmatpush1.msra.mxu0 %v7455
        %7519 = vmatprep.subr.mxu0 0.0
        %7520 = vmatpush1.msra.mxu0 %v7456
        %7521 = vmatprep.subr.mxu0 0.0
        %7522 = vmatpush1.msra.mxu0 %v7457
        %7523 = vmatprep.subr.mxu0 0.0
        %7524 = vmatpush1.msra.mxu0 %v7458
        %7525 = vmatprep.subr.mxu0 0.0
        %7526 = vmatpush1.msra.mxu0 %v7459
        %7527 = vmatprep.subr.mxu0 0.0
        %7528 = vmatpush1.msra.mxu0 %v7460
        %7529 = vmatprep.mubr.f32.mxu0 %v7462
        %7530 = vmatmul.mubr.f32.gmra.mrb[0].mxu0 %v7461
        %v7531 = vpop.f32.mrb[0].mxu0
        %v7532 = vadd.f32 0.0, %v7531
        %v7533 = vpop.f32.mrb[0].mxu0
        %7534 = vmatprep.mubr.f32.mxu0 %v7464
        %7535 = vmatmul.mubr.f32.gmra.mrb[0].mxu0 %v7463
        %v7536 = vpop.f32.mrb[0].mxu0
        %v7537 = vadd.f32 0.0, %v7536
        %v7538 = vpop.f32.mrb[0].mxu0
        %7539 = vdwg.mxu0
        %v7540 = vlaneseq
        %vm7541 = vcmp.ge.s32.totalorder %v7540, 0
        %vm7542 = vcmp.lt.s32.totalorder %v7540, 64
        %vm7543 = vmand %vm7541, %vm7542
        %7544 = vst.msk [vmem:[#allocation5] sm:$0x1] %vm7543, %v7532
        %v7547 = vunpack.c.l.s4 1966171168
        %v7548 = vunpack.c.0.s8 %v7547
        %v7549 = vlaneseq
        %v7550 = vshrl.u32 %v7549, 7
        %v7551 = vsub.s32 %v7548, %v7550
        %v7552 = vrot.slane %v7532, %v7551
        %v7553 = vcombine.high %v7552, %v7552
        %v7555 = vunpack.c.l.s4 1966171168
        %v7556 = vunpack.c.0.s8 %v7555
        %v7557 = vlaneseq
        %v7558 = vshrl.u32 %v7557, 7
        %v7559 = vsub.s32 %v7556, %v7558
        %v7560 = vrot.slane %v7552, %v7559
        %v7562 = vunpack.c.l.s4 1966171168
        %v7563 = vunpack.c.0.s8 %v7562
        %v7564 = vlaneseq
        %v7565 = vshrl.u32 %v7564, 7
        %v7566 = vsub.s32 %v7563, %v7565
        %v7567 = vrot.slane %v7553, %v7566
        %7568 = vrot.lane.b32.xlu0 %v7567, 64
        %v7569 = vpop.permute.xlu0 %7568
        %vm7571 = vcmp.ge.s32.totalorder %v7540, 64
        %vm7572 = vcmp.lt.s32.totalorder %v7540, 128
        %vm7573 = vmand %vm7571, %vm7572
        %7574 = vst.msk [vmem:[#allocation5] sm:$0x1] %vm7573, %v7569
        %v7575 = vcombine.high %v7560, %v7560
        %7577 = vst.msk [vmem:[#allocation5 + $0x1] sm:$0x1] %vm7543, %v7575
        %v7578 = vcombine.high %v7567, %v7567
        %7579 = vrot.lane.b32.xlu0 %v7578, 64
        %v7580 = vpop.permute.xlu0 %7579
        %7582 = vst.msk [vmem:[#allocation5 + $0x1] sm:$0x1] %vm7573, %v7580
        %v7583 = vcombine.high %v7532, %v7532
        %v7585 = vunpack.c.l.s4 1966171168
        %v7586 = vunpack.c.0.s8 %v7585
        %v7587 = vlaneseq
        %v7588 = vshrl.u32 %v7587, 7
        %v7589 = vsub.s32 %v7586, %v7588
        %v7590 = vrot.slane %v7583, %v7589
        %v7592 = vunpack.c.l.s4 1966171168
        %v7593 = vunpack.c.0.s8 %v7592
        %v7594 = vlaneseq
        %v7595 = vshrl.u32 %v7594, 7
        %v7596 = vsub.s32 %v7593, %v7595
        %v7597 = vrot.slane %v7590, %v7596
        %7599 = vst.msk [vmem:[#allocation5 + $0x2] sm:$0x1] %vm7543, %v7597
        %v7600 = vcombine.high %v7590, %v7590
        %v7602 = vunpack.c.l.s4 1966171168
        %v7603 = vunpack.c.0.s8 %v7602
        %v7604 = vlaneseq
        %v7605 = vshrl.u32 %v7604, 7
        %v7606 = vsub.s32 %v7603, %v7605
        %v7607 = vrot.slane %v7600, %v7606
        %7608 = vrot.lane.b32.xlu0 %v7607, 64
        %v7609 = vpop.permute.xlu0 %7608
        %7611 = vst.msk [vmem:[#allocation5 + $0x2] sm:$0x1] %vm7573, %v7609
        %v7612 = vcombine.high %v7597, %v7597
        %7614 = vst.msk [vmem:[#allocation5 + $0x3] sm:$0x1] %vm7543, %v7612
        %v7615 = vcombine.high %v7607, %v7607
        %7616 = vrot.lane.b32.xlu0 %v7615, 64
        %v7617 = vpop.permute.xlu0 %7616
        %7619 = vst.msk [vmem:[#allocation5 + $0x3] sm:$0x1] %vm7573, %v7617
        %7620 = vst.msk [vmem:[#allocation5 + $0x4] sm:$0x1] %vm7543, %v7537
        %v7623 = vunpack.c.l.s4 1966171168
        %v7624 = vunpack.c.0.s8 %v7623
        %v7625 = vlaneseq
        %v7626 = vshrl.u32 %v7625, 7
        %v7627 = vsub.s32 %v7624, %v7626
        %v7628 = vrot.slane %v7537, %v7627
        %v7629 = vcombine.high %v7628, %v7628
        %v7631 = vunpack.c.l.s4 1966171168
        %v7632 = vunpack.c.0.s8 %v7631
        %v7633 = vlaneseq
        %v7634 = vshrl.u32 %v7633, 7
        %v7635 = vsub.s32 %v7632, %v7634
        %v7636 = vrot.slane %v7628, %v7635
        %v7638 = vunpack.c.l.s4 1966171168
        %v7639 = vunpack.c.0.s8 %v7638
        %v7640 = vlaneseq
        %v7641 = vshrl.u32 %v7640, 7
        %v7642 = vsub.s32 %v7639, %v7641
        %v7643 = vrot.slane %v7629, %v7642
        %7644 = vrot.lane.b32.xlu0 %v7643, 64
        %v7645 = vpop.permute.xlu0 %7644
        %7647 = vst.msk [vmem:[#allocation5 + $0x4] sm:$0x1] %vm7573, %v7645
        %v7648 = vcombine.high %v7636, %v7636
        %7650 = vst.msk [vmem:[#allocation5 + $0x5] sm:$0x1] %vm7543, %v7648
        %v7651 = vcombine.high %v7643, %v7643
        %7652 = vrot.lane.b32.xlu0 %v7651, 64
        %v7653 = vpop.permute.xlu0 %7652
        %7655 = vst.msk [vmem:[#allocation5 + $0x5] sm:$0x1] %vm7573, %v7653
        %v7656 = vcombine.high %v7537, %v7537
        %v7658 = vunpack.c.l.s4 1966171168
        %v7659 = vunpack.c.0.s8 %v7658
        %v7660 = vlaneseq
        %v7661 = vshrl.u32 %v7660, 7
        %v7662 = vsub.s32 %v7659, %v7661
        %v7663 = vrot.slane %v7656, %v7662
        %v7665 = vunpack.c.l.s4 1966171168
        %v7666 = vunpack.c.0.s8 %v7665
        %v7667 = vlaneseq
        %v7668 = vshrl.u32 %v7667, 7
        %v7669 = vsub.s32 %v7666, %v7668
        %v7670 = vrot.slane %v7663, %v7669
        %7672 = vst.msk [vmem:[#allocation5 + $0x6] sm:$0x1] %vm7543, %v7670
        %v7673 = vcombine.high %v7663, %v7663
        %v7675 = vunpack.c.l.s4 1966171168
        %v7676 = vunpack.c.0.s8 %v7675
        %v7677 = vlaneseq
        %v7678 = vshrl.u32 %v7677, 7
        %v7679 = vsub.s32 %v7676, %v7678
        %v7680 = vrot.slane %v7673, %v7679
        %7681 = vrot.lane.b32.xlu0 %v7680, 64
        %v7682 = vpop.permute.xlu0 %7681
        %7684 = vst.msk [vmem:[#allocation5 + $0x6] sm:$0x1] %vm7573, %v7682
        %v7685 = vcombine.high %v7670, %v7670
        %7687 = vst.msk [vmem:[#allocation5 + $0x7] sm:$0x1] %vm7543, %v7685
        %v7688 = vcombine.high %v7680, %v7680
        %7689 = vrot.lane.b32.xlu0 %v7688, 64
        %v7690 = vpop.permute.xlu0 %7689
        %7692 = vst.msk [vmem:[#allocation5 + $0x7] sm:$0x1] %vm7573, %v7690
        %v7693 = vld [vmem:[#allocation5] sm:$0xff]
        %v7694 = vld [vmem:[%s6] sm:$0xff]
        %v7695 = vld [vmem:[%s6 + $0x8] sm:$0xff]
        %v7696 = vld [vmem:[%s6 + $0x10] sm:$0xff]
        %v7697 = vld [vmem:[%s6 + $0x18] sm:$0xff]
        %v7698 = vld [vmem:[%s6 + $0x20] sm:$0xff]
        %v7699 = vld [vmem:[%s6 + $0x28] sm:$0xff]
        %v7700 = vld [vmem:[%s6 + $0x30] sm:$0xff]
        %v7701 = vld [vmem:[%s6 + $0x38] sm:$0xff]
        %v7702 = vld [vmem:[%s6 + $0x40] sm:$0xff]
        %v7703 = vld [vmem:[%s6 + $0x48] sm:$0xff]
        %v7704 = vld [vmem:[%s6 + $0x50] sm:$0xff]
        %v7705 = vld [vmem:[%s6 + $0x58] sm:$0xff]
        %v7706 = vld [vmem:[%s6 + $0x60] sm:$0xff]
        %v7707 = vld [vmem:[%s6 + $0x68] sm:$0xff]
        %v7708 = vld [vmem:[%s6 + $0x70] sm:$0xff]
        %v7709 = vld [vmem:[%s6 + $0x78] sm:$0xff]
        %v7710 = vld [vmem:[%s6 + $0x80] sm:$0xff]
        %v7711 = vld [vmem:[%s6 + $0x88] sm:$0xff]
        %v7712 = vld [vmem:[%s6 + $0x90] sm:$0xff]
        %v7713 = vld [vmem:[%s6 + $0x98] sm:$0xff]
        %v7714 = vld [vmem:[%s6 + $0xa0] sm:$0xff]
        %v7715 = vld [vmem:[%s6 + $0xa8] sm:$0xff]
        %v7716 = vld [vmem:[%s6 + $0xb0] sm:$0xff]
        %v7717 = vld [vmem:[%s6 + $0xb8] sm:$0xff]
        %v7718 = vld [vmem:[%s6 + $0xc0] sm:$0xff]
        %v7719 = vld [vmem:[%s6 + $0xc8] sm:$0xff]
        %v7720 = vld [vmem:[%s6 + $0xd0] sm:$0xff]
        %v7721 = vld [vmem:[%s6 + $0xd8] sm:$0xff]
        %v7722 = vld [vmem:[%s6 + $0xe0] sm:$0xff]
        %v7723 = vld [vmem:[%s6 + $0xe8] sm:$0xff]
        %v7724 = vld [vmem:[%s6 + $0xf0] sm:$0xff]
        %v7725 = vld [vmem:[%s6 + $0xf8] sm:$0xff]
        %v7726 = vld [vmem:[%s6 + $0x100] sm:$0xff]
        %v7727 = vld [vmem:[%s6 + $0x108] sm:$0xff]
        %v7728 = vld [vmem:[%s6 + $0x110] sm:$0xff]
        %v7729 = vld [vmem:[%s6 + $0x118] sm:$0xff]
        %v7730 = vld [vmem:[%s6 + $0x120] sm:$0xff]
        %v7731 = vld [vmem:[%s6 + $0x128] sm:$0xff]
        %v7732 = vld [vmem:[%s6 + $0x130] sm:$0xff]
        %v7733 = vld [vmem:[%s6 + $0x138] sm:$0xff]
        %v7734 = vld [vmem:[%s6 + $0x140] sm:$0xff]
        %v7735 = vld [vmem:[%s6 + $0x148] sm:$0xff]
        %v7736 = vld [vmem:[%s6 + $0x150] sm:$0xff]
        %v7737 = vld [vmem:[%s6 + $0x158] sm:$0xff]
        %v7738 = vld [vmem:[%s6 + $0x160] sm:$0xff]
        %v7739 = vld [vmem:[%s6 + $0x168] sm:$0xff]
        %v7740 = vld [vmem:[%s6 + $0x170] sm:$0xff]
        %v7741 = vld [vmem:[%s6 + $0x178] sm:$0xff]
        %v7742 = vld [vmem:[%s6 + $0x180] sm:$0xff]
        %v7743 = vld [vmem:[%s6 + $0x188] sm:$0xff]
        %v7744 = vld [vmem:[%s6 + $0x190] sm:$0xff]
        %v7745 = vld [vmem:[%s6 + $0x198] sm:$0xff]
        %v7746 = vld [vmem:[%s6 + $0x1a0] sm:$0xff]
        %v7747 = vld [vmem:[%s6 + $0x1a8] sm:$0xff]
        %v7748 = vld [vmem:[%s6 + $0x1b0] sm:$0xff]
        %v7749 = vld [vmem:[%s6 + $0x1b8] sm:$0xff]
        %v7750 = vld [vmem:[%s6 + $0x1c0] sm:$0xff]
        %v7751 = vld [vmem:[%s6 + $0x1c8] sm:$0xff]
        %v7752 = vld [vmem:[%s6 + $0x1d0] sm:$0xff]
        %v7753 = vld [vmem:[%s6 + $0x1d8] sm:$0xff]
        %v7754 = vld [vmem:[%s6 + $0x1e0] sm:$0xff]
        %v7755 = vld [vmem:[%s6 + $0x1e8] sm:$0xff]
        %v7756 = vld [vmem:[%s6 + $0x1f0] sm:$0xff]
        %v7757 = vld [vmem:[%s6 + $0x1f8] sm:$0xff]
        %v7758 = vld [vmem:[%s6 + $0x200] sm:$0xff]
        %v7759 = vld [vmem:[%s6 + $0x208] sm:$0xff]
        %v7760 = vld [vmem:[%s6 + $0x210] sm:$0xff]
        %v7761 = vld [vmem:[%s6 + $0x218] sm:$0xff]
        %v7762 = vld [vmem:[%s6 + $0x220] sm:$0xff]
        %v7763 = vld [vmem:[%s6 + $0x228] sm:$0xff]
        %v7764 = vld [vmem:[%s6 + $0x230] sm:$0xff]
        %v7765 = vld [vmem:[%s6 + $0x238] sm:$0xff]
        %v7766 = vld [vmem:[%s6 + $0x240] sm:$0xff]
        %v7767 = vld [vmem:[%s6 + $0x248] sm:$0xff]
        %v7768 = vld [vmem:[%s6 + $0x250] sm:$0xff]
        %v7769 = vld [vmem:[%s6 + $0x258] sm:$0xff]
        %v7770 = vld [vmem:[%s6 + $0x260] sm:$0xff]
        %v7771 = vld [vmem:[%s6 + $0x268] sm:$0xff]
        %v7772 = vld [vmem:[%s6 + $0x270] sm:$0xff]
        %v7773 = vld [vmem:[%s6 + $0x278] sm:$0xff]
        %v7774 = vld [vmem:[%s6 + $0x280] sm:$0xff]
        %v7775 = vld [vmem:[%s6 + $0x288] sm:$0xff]
        %v7776 = vld [vmem:[%s6 + $0x290] sm:$0xff]
        %v7777 = vld [vmem:[%s6 + $0x298] sm:$0xff]
        %v7778 = vld [vmem:[%s6 + $0x2a0] sm:$0xff]
        %v7779 = vld [vmem:[%s6 + $0x2a8] sm:$0xff]
        %v7780 = vld [vmem:[%s6 + $0x2b0] sm:$0xff]
        %v7781 = vld [vmem:[%s6 + $0x2b8] sm:$0xff]
        %v7782 = vld [vmem:[%s6 + $0x2c0] sm:$0xff]
        %v7783 = vld [vmem:[%s6 + $0x2c8] sm:$0xff]
        %v7784 = vld [vmem:[%s6 + $0x2d0] sm:$0xff]
        %v7785 = vld [vmem:[%s6 + $0x2d8] sm:$0xff]
        %v7786 = vld [vmem:[%s6 + $0x2e0] sm:$0xff]
        %v7787 = vld [vmem:[%s6 + $0x2e8] sm:$0xff]
        %v7788 = vld [vmem:[%s6 + $0x2f0] sm:$0xff]
        %v7789 = vld [vmem:[%s6 + $0x2f8] sm:$0xff]
        %v7790 = vld [vmem:[%s6 + $0x300] sm:$0xff]
        %v7791 = vld [vmem:[%s6 + $0x308] sm:$0xff]
        %v7792 = vld [vmem:[%s6 + $0x310] sm:$0xff]
        %v7793 = vld [vmem:[%s6 + $0x318] sm:$0xff]
        %v7794 = vld [vmem:[%s6 + $0x320] sm:$0xff]
        %v7795 = vld [vmem:[%s6 + $0x328] sm:$0xff]
        %v7796 = vld [vmem:[%s6 + $0x330] sm:$0xff]
        %v7797 = vld [vmem:[%s6 + $0x338] sm:$0xff]
        %v7798 = vld [vmem:[%s6 + $0x340] sm:$0xff]
        %v7799 = vld [vmem:[%s6 + $0x348] sm:$0xff]
        %v7800 = vld [vmem:[%s6 + $0x350] sm:$0xff]
        %v7801 = vld [vmem:[%s6 + $0x358] sm:$0xff]
        %v7802 = vld [vmem:[%s6 + $0x360] sm:$0xff]
        %v7803 = vld [vmem:[%s6 + $0x368] sm:$0xff]
        %v7804 = vld [vmem:[%s6 + $0x370] sm:$0xff]
        %v7805 = vld [vmem:[%s6 + $0x378] sm:$0xff]
        %v7806 = vld [vmem:[%s6 + $0x380] sm:$0xff]
        %v7807 = vld [vmem:[%s6 + $0x388] sm:$0xff]
        %v7808 = vld [vmem:[%s6 + $0x390] sm:$0xff]
        %v7809 = vld [vmem:[%s6 + $0x398] sm:$0xff]
        %v7810 = vld [vmem:[%s6 + $0x3a0] sm:$0xff]
        %v7811 = vld [vmem:[%s6 + $0x3a8] sm:$0xff]
        %v7812 = vld [vmem:[%s6 + $0x3b0] sm:$0xff]
        %v7813 = vld [vmem:[%s6 + $0x3b8] sm:$0xff]
        %v7814 = vld [vmem:[%s6 + $0x3c0] sm:$0xff]
        %v7815 = vld [vmem:[%s6 + $0x3c8] sm:$0xff]
        %v7816 = vld [vmem:[%s6 + $0x3d0] sm:$0xff]
        %v7817 = vld [vmem:[%s6 + $0x3d8] sm:$0xff]
        %v7818 = vld [vmem:[%s6 + $0x3e0] sm:$0xff]
        %v7819 = vld [vmem:[%s6 + $0x3e8] sm:$0xff]
        %v7820 = vld [vmem:[%s6 + $0x3f0] sm:$0xff]
        %v7821 = vld [vmem:[%s6 + $0x3f8] sm:$0xff]
        %v7822 = vld [vmem:[%s7] sm:$0x1]
        %v7824 = vlaneseq
        %v7825 = vshrl.u32 %v7824, 7
        %v7826 = vsub.s32 0, %v7825
        %v7827 = vrot.slane %v7693, %v7826
        %v7828 = vlaneseq
        %v7829 = vshrl.u32 %v7828, 7
        %v7830 = vsub.s32 1, %v7829
        %v7831 = vrot.slane %v7693, %v7830
        %v7832 = vlaneseq
        %v7833 = vshrl.u32 %v7832, 7
        %v7834 = vsub.s32 2, %v7833
        %v7835 = vrot.slane %v7693, %v7834
        %v7836 = vlaneseq
        %v7837 = vshrl.u32 %v7836, 7
        %v7838 = vsub.s32 3, %v7837
        %v7839 = vrot.slane %v7693, %v7838
        %v7840 = vlaneseq
        %v7841 = vshrl.u32 %v7840, 7
        %v7842 = vsub.s32 4, %v7841
        %v7843 = vrot.slane %v7693, %v7842
        %v7844 = vlaneseq
        %v7845 = vshrl.u32 %v7844, 7
        %v7846 = vsub.s32 5, %v7845
        %v7847 = vrot.slane %v7693, %v7846
        %v7848 = vlaneseq
        %v7849 = vshrl.u32 %v7848, 7
        %v7850 = vsub.s32 6, %v7849
        %v7851 = vrot.slane %v7693, %v7850
        %v7852 = vlaneseq
        %v7853 = vshrl.u32 %v7852, 7
        %v7854 = vsub.s32 7, %v7853
        %v7855 = vrot.slane %v7693, %v7854
        %7864 = vmatprep.subr.mxu0 0.0
        %7865 = vmatpush1.msra.mxu0 %v7694
        %7866 = vmatprep.subr.mxu0 0.0
        %7867 = vmatpush1.msra.mxu0 %v7695
        %7868 = vmatprep.subr.mxu0 0.0
        %7869 = vmatpush1.msra.mxu0 %v7696
        %7870 = vmatprep.subr.mxu0 0.0
        %7871 = vmatpush1.msra.mxu0 %v7697
        %7872 = vmatprep.subr.mxu0 0.0
        %7873 = vmatpush1.msra.mxu0 %v7698
        %7874 = vmatprep.subr.mxu0 0.0
        %7875 = vmatpush1.msra.mxu0 %v7699
        %7876 = vmatprep.subr.mxu0 0.0
        %7877 = vmatpush1.msra.mxu0 %v7700
        %7878 = vmatprep.subr.mxu0 0.0
        %7879 = vmatpush1.msra.mxu0 %v7701
        %7880 = vmatprep.subr.mxu0 0.0
        %7881 = vmatpush1.msra.mxu0 %v7702
        %7882 = vmatprep.subr.mxu0 0.0
        %7883 = vmatpush1.msra.mxu0 %v7703
        %7884 = vmatprep.subr.mxu0 0.0
        %7885 = vmatpush1.msra.mxu0 %v7704
        %7886 = vmatprep.subr.mxu0 0.0
        %7887 = vmatpush1.msra.mxu0 %v7705
        %7888 = vmatprep.subr.mxu0 0.0
        %7889 = vmatpush1.msra.mxu0 %v7706
        %7890 = vmatprep.subr.mxu0 0.0
        %7891 = vmatpush1.msra.mxu0 %v7707
        %7892 = vmatprep.subr.mxu0 0.0
        %7893 = vmatpush1.msra.mxu0 %v7708
        %7894 = vmatprep.subr.mxu0 0.0
        %7895 = vmatpush1.msra.mxu0 %v7709
        %7896 = vmatprep.subr.mxu0 0.0
        %7897 = vmatpush1.msra.mxu0 %v7710
        %7898 = vmatprep.subr.mxu0 0.0
        %7899 = vmatpush1.msra.mxu0 %v7711
        %7900 = vmatprep.subr.mxu0 0.0
        %7901 = vmatpush1.msra.mxu0 %v7712
        %7902 = vmatprep.subr.mxu0 0.0
        %7903 = vmatpush1.msra.mxu0 %v7713
        %7904 = vmatprep.subr.mxu0 0.0
        %7905 = vmatpush1.msra.mxu0 %v7714
        %7906 = vmatprep.subr.mxu0 0.0
        %7907 = vmatpush1.msra.mxu0 %v7715
        %7908 = vmatprep.subr.mxu0 0.0
        %7909 = vmatpush1.msra.mxu0 %v7716
        %7910 = vmatprep.subr.mxu0 0.0
        %7911 = vmatpush1.msra.mxu0 %v7717
        %7912 = vmatprep.subr.mxu0 0.0
        %7913 = vmatpush1.msra.mxu0 %v7718
        %7914 = vmatprep.subr.mxu0 0.0
        %7915 = vmatpush1.msra.mxu0 %v7719
        %7916 = vmatprep.subr.mxu0 0.0
        %7917 = vmatpush1.msra.mxu0 %v7720
        %7918 = vmatprep.subr.mxu0 0.0
        %7919 = vmatpush1.msra.mxu0 %v7721
        %7920 = vmatprep.subr.mxu0 0.0
        %7921 = vmatpush1.msra.mxu0 %v7722
        %7922 = vmatprep.subr.mxu0 0.0
        %7923 = vmatpush1.msra.mxu0 %v7723
        %7924 = vmatprep.subr.mxu0 0.0
        %7925 = vmatpush1.msra.mxu0 %v7724
        %7926 = vmatprep.subr.mxu0 0.0
        %7927 = vmatpush1.msra.mxu0 %v7725
        %7928 = vmatprep.mubr.f32.mxu0 %v7831
        %7929 = vmatmul.mubr.f32.gmra.mrb[0].mxu0 %v7827
        %v7930 = vpop.f32.mrb[0].mxu0
        %v7931 = vadd.f32 %v7822, %v7930
        %v7932 = vpop.f32.mrb[0].mxu0
        %7933 = vdwg.mxu0
        %7934 = vmatprep.subr.mxu0 0.0
        %7935 = vmatpush1.msra.mxu0 %v7726
        %7936 = vmatprep.subr.mxu0 0.0
        %7937 = vmatpush1.msra.mxu0 %v7727
        %7938 = vmatprep.subr.mxu0 0.0
        %7939 = vmatpush1.msra.mxu0 %v7728
        %7940 = vmatprep.subr.mxu0 0.0
        %7941 = vmatpush1.msra.mxu0 %v7729
        %7942 = vmatprep.subr.mxu0 0.0
        %7943 = vmatpush1.msra.mxu0 %v7730
        %7944 = vmatprep.subr.mxu0 0.0
        %7945 = vmatpush1.msra.mxu0 %v7731
        %7946 = vmatprep.subr.mxu0 0.0
        %7947 = vmatpush1.msra.mxu0 %v7732
        %7948 = vmatprep.subr.mxu0 0.0
        %7949 = vmatpush1.msra.mxu0 %v7733
        %7950 = vmatprep.subr.mxu0 0.0
        %7951 = vmatpush1.msra.mxu0 %v7734
        %7952 = vmatprep.subr.mxu0 0.0
        %7953 = vmatpush1.msra.mxu0 %v7735
        %7954 = vmatprep.subr.mxu0 0.0
        %7955 = vmatpush1.msra.mxu0 %v7736
        %7956 = vmatprep.subr.mxu0 0.0
        %7957 = vmatpush1.msra.mxu0 %v7737
        %7958 = vmatprep.subr.mxu0 0.0
        %7959 = vmatpush1.msra.mxu0 %v7738
        %7960 = vmatprep.subr.mxu0 0.0
        %7961 = vmatpush1.msra.mxu0 %v7739
        %7962 = vmatprep.subr.mxu0 0.0
        %7963 = vmatpush1.msra.mxu0 %v7740
        %7964 = vmatprep.subr.mxu0 0.0
        %7965 = vmatpush1.msra.mxu0 %v7741
        %7966 = vmatprep.subr.mxu0 0.0
        %7967 = vmatpush1.msra.mxu0 %v7742
        %7968 = vmatprep.subr.mxu0 0.0
        %7969 = vmatpush1.msra.mxu0 %v7743
        %7970 = vmatprep.subr.mxu0 0.0
        %7971 = vmatpush1.msra.mxu0 %v7744
        %7972 = vmatprep.subr.mxu0 0.0
        %7973 = vmatpush1.msra.mxu0 %v7745
        %7974 = vmatprep.subr.mxu0 0.0
        %7975 = vmatpush1.msra.mxu0 %v7746
        %7976 = vmatprep.subr.mxu0 0.0
        %7977 = vmatpush1.msra.mxu0 %v7747
        %7978 = vmatprep.subr.mxu0 0.0
        %7979 = vmatpush1.msra.mxu0 %v7748
        %7980 = vmatprep.subr.mxu0 0.0
        %7981 = vmatpush1.msra.mxu0 %v7749
        %7982 = vmatprep.subr.mxu0 0.0
        %7983 = vmatpush1.msra.mxu0 %v7750
        %7984 = vmatprep.subr.mxu0 0.0
        %7985 = vmatpush1.msra.mxu0 %v7751
        %7986 = vmatprep.subr.mxu0 0.0
        %7987 = vmatpush1.msra.mxu0 %v7752
        %7988 = vmatprep.subr.mxu0 0.0
        %7989 = vmatpush1.msra.mxu0 %v7753
        %7990 = vmatprep.subr.mxu0 0.0
        %7991 = vmatpush1.msra.mxu0 %v7754
        %7992 = vmatprep.subr.mxu0 0.0
        %7993 = vmatpush1.msra.mxu0 %v7755
        %7994 = vmatprep.subr.mxu0 0.0
        %7995 = vmatpush1.msra.mxu0 %v7756
        %7996 = vmatprep.subr.mxu0 0.0
        %7997 = vmatpush1.msra.mxu0 %v7757
        %7998 = vmatprep.mubr.f32.mxu0 %v7839
        %7999 = vmatmul.mubr.f32.gmra.mrb[0].mxu0 %v7835
        %v8000 = vpop.f32.mrb[0].mxu0
        %v8001 = vadd.f32 %v7931, %v8000
        %v8002 = vpop.f32.mrb[0].mxu0
        %8003 = vdwg.mxu0
        %8004 = vmatprep.subr.mxu0 0.0
        %8005 = vmatpush1.msra.mxu0 %v7758
        %8006 = vmatprep.subr.mxu0 0.0
        %8007 = vmatpush1.msra.mxu0 %v7759
        %8008 = vmatprep.subr.mxu0 0.0
        %8009 = vmatpush1.msra.mxu0 %v7760
        %8010 = vmatprep.subr.mxu0 0.0
        %8011 = vmatpush1.msra.mxu0 %v7761
        %8012 = vmatprep.subr.mxu0 0.0
        %8013 = vmatpush1.msra.mxu0 %v7762
        %8014 = vmatprep.subr.mxu0 0.0
        %8015 = vmatpush1.msra.mxu0 %v7763
        %8016 = vmatprep.subr.mxu0 0.0
        %8017 = vmatpush1.msra.mxu0 %v7764
        %8018 = vmatprep.subr.mxu0 0.0
        %8019 = vmatpush1.msra.mxu0 %v7765
        %8020 = vmatprep.subr.mxu0 0.0
        %8021 = vmatpush1.msra.mxu0 %v7766
        %8022 = vmatprep.subr.mxu0 0.0
        %8023 = vmatpush1.msra.mxu0 %v7767
        %8024 = vmatprep.subr.mxu0 0.0
        %8025 = vmatpush1.msra.mxu0 %v7768
        %8026 = vmatprep.subr.mxu0 0.0
        %8027 = vmatpush1.msra.mxu0 %v7769
        %8028 = vmatprep.subr.mxu0 0.0
        %8029 = vmatpush1.msra.mxu0 %v7770
        %8030 = vmatprep.subr.mxu0 0.0
        %8031 = vmatpush1.msra.mxu0 %v7771
        %8032 = vmatprep.subr.mxu0 0.0
        %8033 = vmatpush1.msra.mxu0 %v7772
        %8034 = vmatprep.subr.mxu0 0.0
        %8035 = vmatpush1.msra.mxu0 %v7773
        %8036 = vmatprep.subr.mxu0 0.0
        %8037 = vmatpush1.msra.mxu0 %v7774
        %8038 = vmatprep.subr.mxu0 0.0
        %8039 = vmatpush1.msra.mxu0 %v7775
        %8040 = vmatprep.subr.mxu0 0.0
        %8041 = vmatpush1.msra.mxu0 %v7776
        %8042 = vmatprep.subr.mxu0 0.0
        %8043 = vmatpush1.msra.mxu0 %v7777
        %8044 = vmatprep.subr.mxu0 0.0
        %8045 = vmatpush1.msra.mxu0 %v7778
        %8046 = vmatprep.subr.mxu0 0.0
        %8047 = vmatpush1.msra.mxu0 %v7779
        %8048 = vmatprep.subr.mxu0 0.0
        %8049 = vmatpush1.msra.mxu0 %v7780
        %8050 = vmatprep.subr.mxu0 0.0
        %8051 = vmatpush1.msra.mxu0 %v7781
        %8052 = vmatprep.subr.mxu0 0.0
        %8053 = vmatpush1.msra.mxu0 %v7782
        %8054 = vmatprep.subr.mxu0 0.0
        %8055 = vmatpush1.msra.mxu0 %v7783
        %8056 = vmatprep.subr.mxu0 0.0
        %8057 = vmatpush1.msra.mxu0 %v7784
        %8058 = vmatprep.subr.mxu0 0.0
        %8059 = vmatpush1.msra.mxu0 %v7785
        %8060 = vmatprep.subr.mxu0 0.0
        %8061 = vmatpush1.msra.mxu0 %v7786
        %8062 = vmatprep.subr.mxu0 0.0
        %8063 = vmatpush1.msra.mxu0 %v7787
        %8064 = vmatprep.subr.mxu0 0.0
        %8065 = vmatpush1.msra.mxu0 %v7788
        %8066 = vmatprep.subr.mxu0 0.0
        %8067 = vmatpush1.msra.mxu0 %v7789
        %8068 = vmatprep.mubr.f32.mxu0 %v7847
        %8069 = vmatmul.mubr.f32.gmra.mrb[0].mxu0 %v7843
        %v8070 = vpop.f32.mrb[0].mxu0
        %v8071 = vadd.f32 %v8001, %v8070
        %v8072 = vpop.f32.mrb[0].mxu0
        %8073 = vdwg.mxu0
        %8074 = vmatprep.subr.mxu0 0.0
        %8075 = vmatpush1.msra.mxu0 %v7790
        %8076 = vmatprep.subr.mxu0 0.0
        %8077 = vmatpush1.msra.mxu0 %v7791
        %8078 = vmatprep.subr.mxu0 0.0
        %8079 = vmatpush1.msra.mxu0 %v7792
        %8080 = vmatprep.subr.mxu0 0.0
        %8081 = vmatpush1.msra.mxu0 %v7793
        %8082 = vmatprep.subr.mxu0 0.0
        %8083 = vmatpush1.msra.mxu0 %v7794
        %8084 = vmatprep.subr.mxu0 0.0
        %8085 = vmatpush1.msra.mxu0 %v7795
        %8086 = vmatprep.subr.mxu0 0.0
        %8087 = vmatpush1.msra.mxu0 %v7796
        %8088 = vmatprep.subr.mxu0 0.0
        %8089 = vmatpush1.msra.mxu0 %v7797
        %8090 = vmatprep.subr.mxu0 0.0
        %8091 = vmatpush1.msra.mxu0 %v7798
        %8092 = vmatprep.subr.mxu0 0.0
        %8093 = vmatpush1.msra.mxu0 %v7799
        %8094 = vmatprep.subr.mxu0 0.0
        %8095 = vmatpush1.msra.mxu0 %v7800
        %8096 = vmatprep.subr.mxu0 0.0
        %8097 = vmatpush1.msra.mxu0 %v7801
        %8098 = vmatprep.subr.mxu0 0.0
        %8099 = vmatpush1.msra.mxu0 %v7802
        %8100 = vmatprep.subr.mxu0 0.0
        %8101 = vmatpush1.msra.mxu0 %v7803
        %8102 = vmatprep.subr.mxu0 0.0
        %8103 = vmatpush1.msra.mxu0 %v7804
        %8104 = vmatprep.subr.mxu0 0.0
        %8105 = vmatpush1.msra.mxu0 %v7805
        %8106 = vmatprep.subr.mxu0 0.0
        %8107 = vmatpush1.msra.mxu0 %v7806
        %8108 = vmatprep.subr.mxu0 0.0
        %8109 = vmatpush1.msra.mxu0 %v7807
        %8110 = vmatprep.subr.mxu0 0.0
        %8111 = vmatpush1.msra.mxu0 %v7808
        %8112 = vmatprep.subr.mxu0 0.0
        %8113 = vmatpush1.msra.mxu0 %v7809
        %8114 = vmatprep.subr.mxu0 0.0
        %8115 = vmatpush1.msra.mxu0 %v7810
        %8116 = vmatprep.subr.mxu0 0.0
        %8117 = vmatpush1.msra.mxu0 %v7811
        %8118 = vmatprep.subr.mxu0 0.0
        %8119 = vmatpush1.msra.mxu0 %v7812
        %8120 = vmatprep.subr.mxu0 0.0
        %8121 = vmatpush1.msra.mxu0 %v7813
        %8122 = vmatprep.subr.mxu0 0.0
        %8123 = vmatpush1.msra.mxu0 %v7814
        %8124 = vmatprep.subr.mxu0 0.0
        %8125 = vmatpush1.msra.mxu0 %v7815
        %8126 = vmatprep.subr.mxu0 0.0
        %8127 = vmatpush1.msra.mxu0 %v7816
        %8128 = vmatprep.subr.mxu0 0.0
        %8129 = vmatpush1.msra.mxu0 %v7817
        %8130 = vmatprep.subr.mxu0 0.0
        %8131 = vmatpush1.msra.mxu0 %v7818
        %8132 = vmatprep.subr.mxu0 0.0
        %8133 = vmatpush1.msra.mxu0 %v7819
        %8134 = vmatprep.subr.mxu0 0.0
        %8135 = vmatpush1.msra.mxu0 %v7820
        %8136 = vmatprep.subr.mxu0 0.0
        %8137 = vmatpush1.msra.mxu0 %v7821
        %8138 = vmatprep.mubr.f32.mxu0 %v7855
        %8139 = vmatmul.mubr.f32.gmra.mrb[0].mxu0 %v7851
        %v8140 = vpop.f32.mrb[0].mxu0
        %v8141 = vadd.f32 %v8071, %v8140
        %v8142 = vpop.f32.mrb[0].mxu0
        %8143 = vdwg.mxu0
        %v8144 = vmax.f32 %v8141, 0.0
        %v8145 = vld [vmem:[%s8] sm:$0xff]
        %v8146 = vld [vmem:[%s8 + $0x8] sm:$0xff]
        %v8147 = vld [vmem:[%s8 + $0x10] sm:$0xff]
        %v8148 = vld [vmem:[%s8 + $0x18] sm:$0xff]
        %v8149 = vld [vmem:[%s8 + $0x20] sm:$0xff]
        %v8150 = vld [vmem:[%s8 + $0x28] sm:$0xff]
        %v8151 = vld [vmem:[%s8 + $0x30] sm:$0xff]
        %v8152 = vld [vmem:[%s8 + $0x38] sm:$0xff]
        %v8153 = vld [vmem:[%s8 + $0x40] sm:$0xff]
        %v8154 = vld [vmem:[%s8 + $0x48] sm:$0xff]
        %v8155 = vld [vmem:[%s8 + $0x50] sm:$0xff]
        %v8156 = vld [vmem:[%s8 + $0x58] sm:$0xff]
        %v8157 = vld [vmem:[%s8 + $0x60] sm:$0xff]
        %v8158 = vld [vmem:[%s8 + $0x68] sm:$0xff]
        %v8159 = vld [vmem:[%s8 + $0x70] sm:$0xff]
        %v8160 = vld [vmem:[%s8 + $0x78] sm:$0xff]
        %v8161 = vld [vmem:[%s9] sm:$0x1]
        %8162 = vmatprep.subr.mxu0 0.0
        %8163 = vmatpush1.msra.mxu0 %v8145
        %8164 = vmatprep.subr.mxu0 0.0
        %8165 = vmatpush1.msra.mxu0 %v8146
        %8166 = vmatprep.subr.mxu0 0.0
        %8167 = vmatpush1.msra.mxu0 %v8147
        %8168 = vmatprep.subr.mxu0 0.0
        %8169 = vmatpush1.msra.mxu0 %v8148
        %8170 = vmatprep.subr.mxu0 0.0
        %8171 = vmatpush1.msra.mxu0 %v8149
        %8172 = vmatprep.subr.mxu0 0.0
        %8173 = vmatpush1.msra.mxu0 %v8150
        %8174 = vmatprep.subr.mxu0 0.0
        %8175 = vmatpush1.msra.mxu0 %v8151
        %8176 = vmatprep.subr.mxu0 0.0
        %8177 = vmatpush1.msra.mxu0 %v8152
        %8178 = vmatprep.subr.mxu0 0.0
        %8179 = vmatpush1.msra.mxu0 %v8153
        %8180 = vmatprep.subr.mxu0 0.0
        %8181 = vmatpush1.msra.mxu0 %v8154
        %8182 = vmatprep.subr.mxu0 0.0
        %8183 = vmatpush1.msra.mxu0 %v8155
        %8184 = vmatprep.subr.mxu0 0.0
        %8185 = vmatpush1.msra.mxu0 %v8156
        %8186 = vmatprep.subr.mxu0 0.0
        %8187 = vmatpush1.msra.mxu0 %v8157
        %8188 = vmatprep.subr.mxu0 0.0
        %8189 = vmatpush1.msra.mxu0 %v8158
        %8190 = vmatprep.subr.mxu0 0.0
        %8191 = vmatpush1.msra.mxu0 %v8159
        %8192 = vmatprep.subr.mxu0 0.0
        %8193 = vmatpush1.msra.mxu0 %v8160
        %8194 = vmatprep.subr.mxu0 0.0
        %8195 = vmatpush1.msra.mxu0 0.0
        %8196 = vmatprep.subr.mxu0 0.0
        %8197 = vmatpush1.msra.mxu0 0.0
        %8198 = vmatprep.subr.mxu0 0.0
        %8199 = vmatpush1.msra.mxu0 0.0
        %8200 = vmatprep.subr.mxu0 0.0
        %8201 = vmatpush1.msra.mxu0 0.0
        %8202 = vmatprep.subr.mxu0 0.0
        %8203 = vmatpush1.msra.mxu0 0.0
        %8204 = vmatprep.subr.mxu0 0.0
        %8205 = vmatpush1.msra.mxu0 0.0
        %8206 = vmatprep.subr.mxu0 0.0
        %8207 = vmatpush1.msra.mxu0 0.0
        %8208 = vmatprep.subr.mxu0 0.0
        %8209 = vmatpush1.msra.mxu0 0.0
        %8210 = vmatprep.subr.mxu0 0.0
        %8211 = vmatpush1.msra.mxu0 0.0
        %8212 = vmatprep.subr.mxu0 0.0
        %8213 = vmatpush1.msra.mxu0 0.0
        %8214 = vmatprep.subr.mxu0 0.0
        %8215 = vmatpush1.msra.mxu0 0.0
        %8216 = vmatprep.subr.mxu0 0.0
        %8217 = vmatpush1.msra.mxu0 0.0
        %8218 = vmatprep.subr.mxu0 0.0
        %8219 = vmatpush1.msra.mxu0 0.0
        %8220 = vmatprep.subr.mxu0 0.0
        %8221 = vmatpush1.msra.mxu0 0.0
        %8222 = vmatprep.subr.mxu0 0.0
        %8223 = vmatpush1.msra.mxu0 0.0
        %8224 = vmatprep.subr.mxu0 0.0
        %8225 = vmatpush1.msra.mxu0 0.0
        %8226 = vmatprep.mubr.f32.mxu0 0.0
        %8227 = vmatmul.mubr.f32.gmra.mrb[0].mxu0 %v8144
        %v8228 = vpop.f32.mrb[0].mxu0
        %v8229 = vadd.f32 %v8161, %v8228
        %v8230 = vpop.f32.mrb[0].mxu0
        %8231 = vdwg.mxu0
        %vm8232 = vcmask 24576
        %8233 = vst.msk [vmem:[%s351] sm:$0x1] %vm8232, %v8229
        %s8234 = sand.u32 %s247, 1
        %s8235 = scalar_lea.sflag [#allocation7], %s8234
        %s8236 = sand.u32 %s247, 1
        %s8237 = scalar_lea.vmem [#allocation6], %s8236
        // Predicated region
        $region61: #{snake_convnet_sm_forward.1} parent=59 // pred_check
          %p8238 = pneg %p257
        $region62: #{snake_convnet_sm_forward.1} parent=59 // pred_check_branch
          %8240 = sbr.rel (%p8238) target = $region64
        $region63: #{snake_convnet_sm_forward.1} parent=59 // pred_region
          %s8242 = ssub.s32 16, 16
          %8243 = vsyncadd %s8235, %s8242
          %s8244 = smul.addr %s24, 16
          %s8245 = scalar_lea.hbm %s10, %s8244
          %s8247 = sshll.u32 %s8237, 4
          %s8248 = int_to_ptr.vmem [resolvable:$true] %s8247
          %8250 = dma.vmem_to_hbm [thread:$0]  %s8248, 16, %s8245, %s8235
        $region64: #{snake_convnet_sm_forward.1} parent=59 // pred_fallthru
          _
      $region60: #{snake_convnet_sm_forward.1} parent=5 // pred_fallthru
        _
      %p8251 = scmp.le.s32.totalorder 2, %s19
      // Predicated region
      $region65: #{snake_convnet_sm_forward.1} parent=5 // pred_check
        %p8252 = pneg %p8251
      $region66: #{snake_convnet_sm_forward.1} parent=5 // pred_check_branch
        %8254 = sbr.rel (%p8252) target = $region68
      $region67: #{snake_convnet_sm_forward.1} parent=5 // pred_region
        %s8255 = ssub.s32 %s19, 2
        // Predicated region
        $region69: #{snake_convnet_sm_forward.1} parent=67 // pred_check
          %p8256 = pneg %p263
        $region70: #{snake_convnet_sm_forward.1} parent=67 // pred_check_branch
          %8258 = sbr.rel (%p8256) target = $region72
        $region71: #{snake_convnet_sm_forward.1} parent=67 // pred_region
          %s8259 = sand.u32 %s248, 1
          %s8260 = scalar_lea.sflag [#allocation7], %s8259
          %s8261 = sand.u32 %s248, 1
          %s8262 = scalar_lea.vmem [#allocation6], %s8261
          %8263 = dma.done %s8260, 16
        $region72: #{snake_convnet_sm_forward.1} parent=67 // pred_fallthru
          _
      $region68: #{snake_convnet_sm_forward.1} parent=5 // pred_fallthru
        _
    $region6: #{snake_convnet_sm_forward.1} parent=1 // loop_footer
      %s23 = sadd.s32 1, %s19
    $region7: #{snake_convnet_sm_forward.1} parent=1 // loop_footer_branch
      %18 = sbr.rel target = $region3
    $region8: #{snake_convnet_sm_forward.1} parent=1 // loop_exit
      _
    %8264 = vsyncpa [#allocation7], 1
    %s8265 = scalar_lea.sflag [#allocation7], 1
    %8266 = vsyncpa %s8265, 1

</llo_original>
